<compile_context>
chip_gen: v7x
topology: tpu7x:2x2x1
jax: 0.10.0
libtpu: 0.0.40
codegen_flags: <defaults>
</compile_context>

<pallas_src>
import numpy as np
import jax
import jax.numpy as jnp
from jax.experimental import pallas as pl
from jax.experimental.pallas import tpu as pltpu

NEG_SLOPE = 0.3          # LeakyReLU slope used everywhere in the module
C = 64
NCLASS = 11

BLOCK_KEYS = ('w_exp', 'exp_scale', 'exp_bias', 'S', 'w_dw', 'dw_scale', 'dw_bias',
              'w_se1', 'b_se1', 'w_se2', 'b_se2', 'w_un', 'un_scale', 'un_bias')
HEAD_KEYS = ('w_conv', 'b_conv', 'w_fc1', 'b_fc1', 'w_fc2', 'b_fc2')


def _lrelu(x):
    return jnp.where(x > 0, x, NEG_SLOPE * x)


def _bdot(a, b):  # MXU matmul: bf16 operands, f32 accumulate
    return jnp.dot(a.astype(jnp.bfloat16), b.astype(jnp.bfloat16),
                   preferred_element_type=jnp.float32)


# ----------------------------------------------------------------------------
# Fused whole-network kernel (one grid step == one batch sample)
# ----------------------------------------------------------------------------
def _block(x, p, H, W):
    """One `Block`: expander 1x1 + BN + LReLU, depthwise 3x3 s2 + BN + LReLU,
    SqueezeExcite, unexpander 1x1 + BN.
    x: (H*W, Cin) f32, or (Cin, H*W, 1) f32 for the tiny-Cin layer_1 (VPU path)."""
    Ho, Wo = H // 2, W // 2
    M = Ho * Wo

    # ---- expander (1x1 conv) + BN + LeakyReLU -----------------------------
    if x.ndim == 3:
        # Cin == 3: three broadcast FMAs on the VPU instead of a K=3 MXU pass.
        cin = p['w_exp'].shape[0]                      # w_exp ref: (Cin, 1, Cexp) f32
        e = x[0] * p['w_exp'][0]                       # (H*W,1)*(1,Cexp) -> (H*W,Cexp)
        for c in range(1, cin):
            e = e + x[c] * p['w_exp'][c]
    else:
        e = _bdot(x, p['w_exp'][...])                  # (H*W, Cexp) f32
    e = _lrelu(e * p['exp_scale'][...] + p['exp_bias'][...])

    # ---- depthwise 3x3 stride-2 pad-1 conv + BN + LeakyReLU ---------------
    # Tap k is gathered with a constant 0/1 selection matrix S[k] (rows = output
    # positions, cols = flattened input positions; zero rows encode the padding),
    # then accumulated per-channel on the VPU.
    e_b = e.astype(jnp.bfloat16)
    acc = None
    for k in range(9):
        tap = jnp.dot(p['S'][k], e_b, preferred_element_type=jnp.float32)  # (M, Cexp)
        term = tap * p['w_dw'][k]                                          # (1, Cexp) bcast
        acc = term if acc is None else acc + term
    z = _lrelu(acc * p['dw_scale'][...] + p['dw_bias'][...])               # (M, Cexp)

    # ---- SqueezeExcite (full-map avg pool -> FC -> LReLU -> FC -> sigmoid) -
    pooled = jnp.mean(z, axis=0, keepdims=True)                            # (1, Cexp)
    h = _lrelu(_bdot(pooled, p['w_se1'][...]) + p['b_se1'][...])
    g = jax.nn.sigmoid(_bdot(h, p['w_se2'][...]) + p['b_se2'][...])        # (1, Cexp)
    gated = z * g

    # ---- unexpander (1x1 conv) + BN (no activation) -----------------------
    o = _bdot(gated, p['w_un'][...])
    return o * p['un_scale'][...] + p['un_bias'][...]                      # (M, Cout)


def _net_kernel(*refs):
    x_ref, side_ref = refs[0], refs[1]
    o_ref = refs[-1]
    w = refs[2:-1]
    nb = len(BLOCK_KEYS)
    blk = [dict(zip(BLOCK_KEYS, w[i * nb:(i + 1) * nb])) for i in range(3)]
    head = dict(zip(HEAD_KEYS, w[3 * nb:]))

    x0 = x_ref[0]                                    # (3, 256, 1) f32  -- one sample
    side = side_ref[0]                               # (64, 1) f32

    # layer_1: 16x16x3 -> 8x8x63 (padded to 64); fuse torch.cat((y, side), dim=C):
    y = _block(x0, blk[0], 16, 16)                   # (64, 64), lane 63 == 0
    col = jax.lax.broadcasted_iota(jnp.int32, y.shape, 1)
    y = jnp.where(col == y.shape[1] - 1, side, y)    # side channel -> lane 63

    y = _block(y, blk[1], 8, 8)                      # (16, 64)
    y = _block(y, blk[2], 4, 4)                      # (4, 128)

    # Head: Conv2d(2C, 4C, 2) on the 2x2 map == FC over the 4 spatial rows.
    # TODO(synk): nn.Dropout(0.25) is stochastic; implemented as eval-mode identity.
    h = head['b_conv'][...]                          # (1, 256) f32
    y_b = y.astype(jnp.bfloat16)
    for r in range(4):
        sel = (jax.lax.broadcasted_iota(jnp.int32, (1, 4), 1) == r).astype(jnp.bfloat16)
        row = jnp.dot(sel, y_b, preferred_element_type=jnp.float32)        # (1, 128)
        h = h + _bdot(row, head['w_conv'][r])                              # (1, 256)
    h = _lrelu(h)
    h = _lrelu(_bdot(h, head['w_fc1'][...]) + head['b_fc1'][...])
    logits = _bdot(h, head['w_fc2'][...]) + head['b_fc2'][...]             # (1, 11)

    m = jnp.max(logits, axis=-1, keepdims=True)
    zc = logits - m
    lse = jnp.log(jnp.sum(jnp.exp(zc), axis=-1, keepdims=True))
    o_ref[0] = zc - lse                              # (1, 11) log-probs


# ----------------------------------------------------------------------------
# Wrapper: one pallas_call for the whole network
# ----------------------------------------------------------------------------
def _const_spec(shape):
    zeros = (0,) * len(shape)
    return pl.BlockSpec(shape, lambda n, _z=zeros: _z)


def flatten_params(params):
    flat = []
    for name in ('layer1', 'block2', 'block3'):
        flat += [params[name][k] for k in BLOCK_KEYS]
    flat += [params['head'][k] for k in HEAD_KEYS]
    return tuple(flat)


def course_progress_classifier(x_nchw, side_nchw, flat_params):
    """x: (N,3,16,16), side: (N,1,8,8) (PyTorch NCHW) -> (N,11) log-probs."""
    N = x_nchw.shape[0]
    # Channels-last rows (raster order h*W+w on sublanes, channels on lanes);
    # layer_1 input kept channel-split for the VPU-FMA expander.
    x = x_nchw.reshape(N, 3, 16 * 16, 1).astype(jnp.float32)
    side = side_nchw.reshape(N, 8 * 8, 1).astype(jnp.float32)

    in_specs = ([pl.BlockSpec((1, 3, 256, 1), lambda n: (n, 0, 0, 0)),
                 pl.BlockSpec((1, 64, 1), lambda n: (n, 0, 0))]
                + [_const_spec(p.shape) for p in flat_params])

    out = pl.pallas_call(
        _net_kernel,
        out_shape=jax.ShapeDtypeStruct((N, 1, NCLASS), jnp.float32),
        grid=(N,),
        in_specs=in_specs,
        out_specs=pl.BlockSpec((1, 1, NCLASS), lambda n: (n, 0, 0)),
        compiler_params=pltpu.CompilerParams(
            dimension_semantics=("parallel",),   # megacore-friendly on v7x
        ),
    )(x, side, *flat_params)
    return out.reshape(N, NCLASS)


# ----------------------------------------------------------------------------
# Deterministic synthetic parameters (BN eps=1e-3 folded, matmul weights in bf16)
# ----------------------------------------------------------------------------
def _make_tap_select(H, W):
    """S[k]: (Ho*Wo, H*W) 0/1 matrix selecting padded input (2i+ky-1, 2j+kx-1) for
    output (i, j); out-of-bounds taps are all-zero rows (== zero padding)."""
    Ho, Wo = H // 2, W // 2
    S = np.zeros((9, Ho * Wo, H * W), np.float32)
    for k in range(9):
        ky, kx = divmod(k, 3)
        for i in range(Ho):
            for j in range(Wo):
                hi, wi = 2 * i + ky - 1, 2 * j + kx - 1
                if 0 <= hi < H and 0 <= wi < W:
                    S[k, i * Wo + j, hi * W + wi] = 1.0
    return S


def _bn_fold(key, conv_bias, c, eps=1e-3):
    k1, k2, k3, k4 = jax.random.split(key, 4)
    gamma = jax.random.uniform(k1, (c,), jnp.float32, 0.5, 1.5)
    beta = 0.1 * jax.random.normal(k2, (c,), jnp.float32)
    mean = 0.1 * jax.random.normal(k3, (c,), jnp.float32)
    var = jax.random.uniform(k4, (c,), jnp.float32, 0.5, 1.5)
    scale = gamma / jnp.sqrt(var + eps)
    bias = (conv_bias - mean) * scale + beta
    return scale, bias


def init_block_params(key, cin, cexp, cout, hw, pad_out_to=None):
    H, W = hw
    ks = jax.random.split(key, 13)
    w_exp = 0.1 * jax.random.normal(ks[0], (cin, cexp), jnp.float32)
    b_exp = 0.1 * jax.random.normal(ks[1], (cexp,), jnp.float32)
    exp_scale, exp_bias = _bn_fold(ks[2], b_exp, cexp)
    w_dw = 0.1 * jax.random.normal(ks[3], (9, 1, cexp), jnp.float32)
    b_dw = 0.1 * jax.random.normal(ks[4], (cexp,), jnp.float32)
    dw_scale, dw_bias = _bn_fold(ks[5], b_dw, cexp)
    w_se1 = 0.1 * jax.random.normal(ks[6], (cexp, cexp // 4), jnp.float32)
    b_se1 = 0.1 * jax.random.normal(ks[7], (cexp // 4,), jnp.float32)
    w_se2 = 0.1 * jax.random.normal(ks[8], (cexp // 4, cexp), jnp.float32)
    b_se2 = 0.1 * jax.random.normal(ks[9], (cexp,), jnp.float32)
    w_un = 0.1 * jax.random.normal(ks[10], (cexp, cout), jnp.float32)
    b_un = 0.1 * jax.random.normal(ks[11], (cout,), jnp.float32)
    un_scale, un_bias = _bn_fold(ks[12], b_un, cout)
    if pad_out_to is not None and pad_out_to > cout:
        # Lane-dense output; the extra (zero) channel is the fused torch.cat slot.
        extra = pad_out_to - cout
        w_un = jnp.pad(w_un, ((0, 0), (0, extra)))
        un_scale = jnp.pad(un_scale, (0, extra))
        un_bias = jnp.pad(un_bias, (0, extra))
    if cin <= 8:
        w_exp_store = w_exp.reshape(cin, 1, cexp)                 # f32, VPU-FMA path
    else:
        w_exp_store = w_exp.astype(jnp.bfloat16)                  # bf16, MXU path
    return dict(
        w_exp=w_exp_store,
        exp_scale=exp_scale.reshape(1, -1), exp_bias=exp_bias.reshape(1, -1),
        S=jnp.asarray(_make_tap_select(H, W), jnp.bfloat16),
        w_dw=w_dw,
        dw_scale=dw_scale.reshape(1, -1), dw_bias=dw_bias.reshape(1, -1),
        w_se1=w_se1.astype(jnp.bfloat16), b_se1=b_se1.reshape(1, -1),
        w_se2=w_se2.astype(jnp.bfloat16), b_se2=b_se2.reshape(1, -1),
        w_un=w_un.astype(jnp.bfloat16),
        un_scale=un_scale.reshape(1, -1), un_bias=un_bias.reshape(1, -1),
    )


def init_head_params(key, spatial, cin, hidden, nclass):
    ks = jax.random.split(key, 6)
    # TODO(synk): real PyTorch Conv2d(2C,4C,2) weights flatten as (c, kh, kw); this synthetic
    # weight is stored as (kh*kw, c, hidden) -- permute accordingly when porting weights.
    w_conv = 0.05 * jax.random.normal(ks[0], (spatial, cin, hidden), jnp.float32)
    b_conv = 0.05 * jax.random.normal(ks[1], (hidden,), jnp.float32)
    w_fc1 = 0.05 * jax.random.normal(ks[2], (hidden, hidden), jnp.float32)
    b_fc1 = 0.05 * jax.random.normal(ks[3], (hidden,), jnp.float32)
    w_fc2 = 0.05 * jax.random.normal(ks[4], (hidden, nclass), jnp.float32)
    b_fc2 = 0.05 * jax.random.normal(ks[5], (nclass,), jnp.float32)
    return dict(
        w_conv=w_conv.astype(jnp.bfloat16), b_conv=b_conv.reshape(1, -1),
        w_fc1=w_fc1.astype(jnp.bfloat16), b_fc1=b_fc1.reshape(1, -1),
        w_fc2=w_fc2.astype(jnp.bfloat16), b_fc2=b_fc2.reshape(1, -1),
    )


if __name__ == "__main__":
    key = jax.random.PRNGKey(0)
    kx, kside, kp = jax.random.split(key, 3)
    N = 2
    x = jax.random.normal(kx, (N, 3, 16, 16), jnp.float32)       # NCHW, like PyTorch
    side = jax.random.normal(kside, (N, 1, 8, 8), jnp.float32)   # NCHW, 1 extra channel
    kp1, kp2, kp3, kph = jax.random.split(kp, 4)
    params = dict(
        layer1=init_block_params(kp1, 3, 3 * C, C - 1, (16, 16), pad_out_to=C),  # Block(3,192,16,63)
        block2=init_block_params(kp2, C, 3 * C, C, (8, 8)),                      # Block(64,192,8,64)
        block3=init_block_params(kp3, C, 6 * C, 2 * C, (4, 4)),                  # Block(64,384,4,128)
        head=init_head_params(kph, 4, 2 * C, 4 * C, NCLASS),
    )
    flat = flatten_params(params)

    fwd = jax.jit(course_progress_classifier)
    out = jax.block_until_ready(fwd(x, side, flat))
    assert out.shape == (N, NCLASS)
    assert bool(jnp.all(jnp.isfinite(out)))
    # log-softmax rows should (approximately) normalize
    assert bool(jnp.all(jnp.abs(jnp.sum(jnp.exp(out), axis=-1) - 1.0) < 1e-2))
    print("KERNEL_OK")
</pallas_src>

<mosaic_0001>
module attributes {stable_mosaic.version = 11 : i64} {
  func.func @_net_kernel(%arg0: i32, %arg1: memref<1x3x256x1xf32, #tpu.memory_space<vmem>>, %arg2: memref<1x64x1xf32, #tpu.memory_space<vmem>>, %arg3: memref<3x1x192xf32, #tpu.memory_space<vmem>>, %arg4: memref<1x192xf32, #tpu.memory_space<vmem>>, %arg5: memref<1x192xf32, #tpu.memory_space<vmem>>, %arg6: memref<9x64x256xbf16, #tpu.memory_space<vmem>>, %arg7: memref<9x1x192xf32, #tpu.memory_space<vmem>>, %arg8: memref<1x192xf32, #tpu.memory_space<vmem>>, %arg9: memref<1x192xf32, #tpu.memory_space<vmem>>, %arg10: memref<192x48xbf16, #tpu.memory_space<vmem>>, %arg11: memref<1x48xf32, #tpu.memory_space<vmem>>, %arg12: memref<48x192xbf16, #tpu.memory_space<vmem>>, %arg13: memref<1x192xf32, #tpu.memory_space<vmem>>, %arg14: memref<192x64xbf16, #tpu.memory_space<vmem>>, %arg15: memref<1x64xf32, #tpu.memory_space<vmem>>, %arg16: memref<1x64xf32, #tpu.memory_space<vmem>>, %arg17: memref<64x192xbf16, #tpu.memory_space<vmem>>, %arg18: memref<1x192xf32, #tpu.memory_space<vmem>>, %arg19: memref<1x192xf32, #tpu.memory_space<vmem>>, %arg20: memref<9x16x64xbf16, #tpu.memory_space<vmem>>, %arg21: memref<9x1x192xf32, #tpu.memory_space<vmem>>, %arg22: memref<1x192xf32, #tpu.memory_space<vmem>>, %arg23: memref<1x192xf32, #tpu.memory_space<vmem>>, %arg24: memref<192x48xbf16, #tpu.memory_space<vmem>>, %arg25: memref<1x48xf32, #tpu.memory_space<vmem>>, %arg26: memref<48x192xbf16, #tpu.memory_space<vmem>>, %arg27: memref<1x192xf32, #tpu.memory_space<vmem>>, %arg28: memref<192x64xbf16, #tpu.memory_space<vmem>>, %arg29: memref<1x64xf32, #tpu.memory_space<vmem>>, %arg30: memref<1x64xf32, #tpu.memory_space<vmem>>, %arg31: memref<64x384xbf16, #tpu.memory_space<vmem>>, %arg32: memref<1x384xf32, #tpu.memory_space<vmem>>, %arg33: memref<1x384xf32, #tpu.memory_space<vmem>>, %arg34: memref<9x4x16xbf16, #tpu.memory_space<vmem>>, %arg35: memref<9x1x384xf32, #tpu.memory_space<vmem>>, %arg36: memref<1x384xf32, #tpu.memory_space<vmem>>, %arg37: memref<1x384xf32, #tpu.memory_space<vmem>>, %arg38: memref<384x96xbf16, #tpu.memory_space<vmem>>, %arg39: memref<1x96xf32, #tpu.memory_space<vmem>>, %arg40: memref<96x384xbf16, #tpu.memory_space<vmem>>, %arg41: memref<1x384xf32, #tpu.memory_space<vmem>>, %arg42: memref<384x128xbf16, #tpu.memory_space<vmem>>, %arg43: memref<1x128xf32, #tpu.memory_space<vmem>>, %arg44: memref<1x128xf32, #tpu.memory_space<vmem>>, %arg45: memref<4x128x256xbf16, #tpu.memory_space<vmem>>, %arg46: memref<1x256xf32, #tpu.memory_space<vmem>>, %arg47: memref<256x256xbf16, #tpu.memory_space<vmem>>, %arg48: memref<1x256xf32, #tpu.memory_space<vmem>>, %arg49: memref<256x11xbf16, #tpu.memory_space<vmem>>, %arg50: memref<1x11xf32, #tpu.memory_space<vmem>>, %arg51: memref<1x1x11xf32, #tpu.memory_space<vmem>>) attributes {dimension_semantics = [#tpu.dimension_semantics<parallel>], iteration_bounds = array<i64: 2>, scalar_prefetch = 0 : i64, scratch_operands = 0 : i64, tpu.core_type = #tpu.core_type<tc>, window_params = [{transform_indices = @transform_0, window_bounds = array<i64: 1, 3, 256, 1>}, {transform_indices = @transform_1, window_bounds = array<i64: 1, 64, 1>}, {pipeline_mode = #tpu.pipeline_mode<synchronous>, transform_indices = @transform_2, window_bounds = array<i64: 3, 1, 192>}, {pipeline_mode = #tpu.pipeline_mode<synchronous>, transform_indices = @transform_3, window_bounds = array<i64: 1, 192>}, {pipeline_mode = #tpu.pipeline_mode<synchronous>, transform_indices = @transform_4, window_bounds = array<i64: 1, 192>}, {pipeline_mode = #tpu.pipeline_mode<synchronous>, transform_indices = @transform_5, window_bounds = array<i64: 9, 64, 256>}, {pipeline_mode = #tpu.pipeline_mode<synchronous>, transform_indices = @transform_6, window_bounds = array<i64: 9, 1, 192>}, {pipeline_mode = #tpu.pipeline_mode<synchronous>, transform_indices = @transform_7, window_bounds = array<i64: 1, 192>}, {pipeline_mode = #tpu.pipeline_mode<synchronous>, transform_indices = @transform_8, window_bounds = array<i64: 1, 192>}, {pipeline_mode = #tpu.pipeline_mode<synchronous>, transform_indices = @transform_9, window_bounds = array<i64: 192, 48>}, {pipeline_mode = #tpu.pipeline_mode<synchronous>, transform_indices = @transform_10, window_bounds = array<i64: 1, 48>}, {pipeline_mode = #tpu.pipeline_mode<synchronous>, transform_indices = @transform_11, window_bounds = array<i64: 48, 192>}, {pipeline_mode = #tpu.pipeline_mode<synchronous>, transform_indices = @transform_12, window_bounds = array<i64: 1, 192>}, {pipeline_mode = #tpu.pipeline_mode<synchronous>, transform_indices = @transform_13, window_bounds = array<i64: 192, 64>}, {pipeline_mode = #tpu.pipeline_mode<synchronous>, transform_indices = @transform_14, window_bounds = array<i64: 1, 64>}, {pipeline_mode = #tpu.pipeline_mode<synchronous>, transform_indices = @transform_15, window_bounds = array<i64: 1, 64>}, {pipeline_mode = #tpu.pipeline_mode<synchronous>, transform_indices = @transform_16, window_bounds = array<i64: 64, 192>}, {pipeline_mode = #tpu.pipeline_mode<synchronous>, transform_indices = @transform_17, window_bounds = array<i64: 1, 192>}, {pipeline_mode = #tpu.pipeline_mode<synchronous>, transform_indices = @transform_18, window_bounds = array<i64: 1, 192>}, {pipeline_mode = #tpu.pipeline_mode<synchronous>, transform_indices = @transform_19, window_bounds = array<i64: 9, 16, 64>}, {pipeline_mode = #tpu.pipeline_mode<synchronous>, transform_indices = @transform_20, window_bounds = array<i64: 9, 1, 192>}, {pipeline_mode = #tpu.pipeline_mode<synchronous>, transform_indices = @transform_21, window_bounds = array<i64: 1, 192>}, {pipeline_mode = #tpu.pipeline_mode<synchronous>, transform_indices = @transform_22, window_bounds = array<i64: 1, 192>}, {pipeline_mode = #tpu.pipeline_mode<synchronous>, transform_indices = @transform_23, window_bounds = array<i64: 192, 48>}, {pipeline_mode = #tpu.pipeline_mode<synchronous>, transform_indices = @transform_24, window_bounds = array<i64: 1, 48>}, {pipeline_mode = #tpu.pipeline_mode<synchronous>, transform_indices = @transform_25, window_bounds = array<i64: 48, 192>}, {pipeline_mode = #tpu.pipeline_mode<synchronous>, transform_indices = @transform_26, window_bounds = array<i64: 1, 192>}, {pipeline_mode = #tpu.pipeline_mode<synchronous>, transform_indices = @transform_27, window_bounds = array<i64: 192, 64>}, {pipeline_mode = #tpu.pipeline_mode<synchronous>, transform_indices = @transform_28, window_bounds = array<i64: 1, 64>}, {pipeline_mode = #tpu.pipeline_mode<synchronous>, transform_indices = @transform_29, window_bounds = array<i64: 1, 64>}, {pipeline_mode = #tpu.pipeline_mode<synchronous>, transform_indices = @transform_30, window_bounds = array<i64: 64, 384>}, {pipeline_mode = #tpu.pipeline_mode<synchronous>, transform_indices = @transform_31, window_bounds = array<i64: 1, 384>}, {pipeline_mode = #tpu.pipeline_mode<synchronous>, transform_indices = @transform_32, window_bounds = array<i64: 1, 384>}, {pipeline_mode = #tpu.pipeline_mode<synchronous>, transform_indices = @transform_33, window_bounds = array<i64: 9, 4, 16>}, {pipeline_mode = #tpu.pipeline_mode<synchronous>, transform_indices = @transform_34, window_bounds = array<i64: 9, 1, 384>}, {pipeline_mode = #tpu.pipeline_mode<synchronous>, transform_indices = @transform_35, window_bounds = array<i64: 1, 384>}, {pipeline_mode = #tpu.pipeline_mode<synchronous>, transform_indices = @transform_36, window_bounds = array<i64: 1, 384>}, {pipeline_mode = #tpu.pipeline_mode<synchronous>, transform_indices = @transform_37, window_bounds = array<i64: 384, 96>}, {pipeline_mode = #tpu.pipeline_mode<synchronous>, transform_indices = @transform_38, window_bounds = array<i64: 1, 96>}, {pipeline_mode = #tpu.pipeline_mode<synchronous>, transform_indices = @transform_39, window_bounds = array<i64: 96, 384>}, {pipeline_mode = #tpu.pipeline_mode<synchronous>, transform_indices = @transform_40, window_bounds = array<i64: 1, 384>}, {pipeline_mode = #tpu.pipeline_mode<synchronous>, transform_indices = @transform_41, window_bounds = array<i64: 384, 128>}, {pipeline_mode = #tpu.pipeline_mode<synchronous>, transform_indices = @transform_42, window_bounds = array<i64: 1, 128>}, {pipeline_mode = #tpu.pipeline_mode<synchronous>, transform_indices = @transform_43, window_bounds = array<i64: 1, 128>}, {pipeline_mode = #tpu.pipeline_mode<synchronous>, transform_indices = @transform_44, window_bounds = array<i64: 4, 128, 256>}, {pipeline_mode = #tpu.pipeline_mode<synchronous>, transform_indices = @transform_45, window_bounds = array<i64: 1, 256>}, {pipeline_mode = #tpu.pipeline_mode<synchronous>, transform_indices = @transform_46, window_bounds = array<i64: 256, 256>}, {pipeline_mode = #tpu.pipeline_mode<synchronous>, transform_indices = @transform_47, window_bounds = array<i64: 1, 256>}, {pipeline_mode = #tpu.pipeline_mode<synchronous>, transform_indices = @transform_48, window_bounds = array<i64: 256, 11>}, {pipeline_mode = #tpu.pipeline_mode<synchronous>, transform_indices = @transform_49, window_bounds = array<i64: 1, 11>}, {transform_indices = @transform_50, window_bounds = array<i64: 1, 1, 11>}]} {
    %c0 = arith.constant 0 : index
    %c0_0 = arith.constant 0 : index
    %c0_1 = arith.constant 0 : index
    %c0_2 = arith.constant 0 : index
    %0 = vector.load %arg1[%c0, %c0_0, %c0_1, %c0_2] : memref<1x3x256x1xf32, #tpu.memory_space<vmem>>, vector<1x3x256x1xf32>
    %1 = vector.shape_cast %0 : vector<1x3x256x1xf32> to vector<3x256x1xf32>
    %c0_3 = arith.constant 0 : index
    %c0_4 = arith.constant 0 : index
    %c0_5 = arith.constant 0 : index
    %2 = vector.load %arg2[%c0_3, %c0_4, %c0_5] : memref<1x64x1xf32, #tpu.memory_space<vmem>>, vector<1x64x1xf32>
    %3 = vector.shape_cast %2 : vector<1x64x1xf32> to vector<64x1xf32>
    %4 = vector.extract_strided_slice %1 {offsets = [0, 0, 0], sizes = [1, 256, 1], strides = [1, 1, 1]} : vector<3x256x1xf32> to vector<1x256x1xf32>
    %5 = vector.shape_cast %4 : vector<1x256x1xf32> to vector<256x1xf32>
    %c0_6 = arith.constant 0 : index
    %c0_7 = arith.constant 0 : index
    %c0_8 = arith.constant 0 : index
    %6 = vector.load %arg3[%c0_6, %c0_7, %c0_8] : memref<3x1x192xf32, #tpu.memory_space<vmem>>, vector<1x1x192xf32>
    %7 = vector.shape_cast %6 : vector<1x1x192xf32> to vector<1x192xf32>
    %8 = vector.broadcast %5 : vector<256x1xf32> to vector<256x192xf32>
    %9 = vector.broadcast %7 : vector<1x192xf32> to vector<256x192xf32>
    %10 = arith.mulf %8, %9 : vector<256x192xf32>
    %11 = vector.extract_strided_slice %1 {offsets = [1, 0, 0], sizes = [1, 256, 1], strides = [1, 1, 1]} : vector<3x256x1xf32> to vector<1x256x1xf32>
    %12 = vector.shape_cast %11 : vector<1x256x1xf32> to vector<256x1xf32>
    %c1 = arith.constant 1 : index
    %c0_9 = arith.constant 0 : index
    %c0_10 = arith.constant 0 : index
    %13 = vector.load %arg3[%c1, %c0_9, %c0_10] : memref<3x1x192xf32, #tpu.memory_space<vmem>>, vector<1x1x192xf32>
    %14 = vector.shape_cast %13 : vector<1x1x192xf32> to vector<1x192xf32>
    %15 = vector.broadcast %12 : vector<256x1xf32> to vector<256x192xf32>
    %16 = vector.broadcast %14 : vector<1x192xf32> to vector<256x192xf32>
    %17 = arith.mulf %15, %16 : vector<256x192xf32>
    %18 = arith.addf %10, %17 : vector<256x192xf32>
    %19 = vector.extract_strided_slice %1 {offsets = [2, 0, 0], sizes = [1, 256, 1], strides = [1, 1, 1]} : vector<3x256x1xf32> to vector<1x256x1xf32>
    %20 = vector.shape_cast %19 : vector<1x256x1xf32> to vector<256x1xf32>
    %c2 = arith.constant 2 : index
    %c0_11 = arith.constant 0 : index
    %c0_12 = arith.constant 0 : index
    %21 = vector.load %arg3[%c2, %c0_11, %c0_12] : memref<3x1x192xf32, #tpu.memory_space<vmem>>, vector<1x1x192xf32>
    %22 = vector.shape_cast %21 : vector<1x1x192xf32> to vector<1x192xf32>
    %23 = vector.broadcast %20 : vector<256x1xf32> to vector<256x192xf32>
    %24 = vector.broadcast %22 : vector<1x192xf32> to vector<256x192xf32>
    %25 = arith.mulf %23, %24 : vector<256x192xf32>
    %26 = arith.addf %18, %25 : vector<256x192xf32>
    %c0_13 = arith.constant 0 : index
    %c0_14 = arith.constant 0 : index
    %27 = vector.load %arg4[%c0_13, %c0_14] : memref<1x192xf32, #tpu.memory_space<vmem>>, vector<1x192xf32>
    %28 = vector.broadcast %27 : vector<1x192xf32> to vector<256x192xf32>
    %29 = arith.mulf %26, %28 : vector<256x192xf32>
    %c0_15 = arith.constant 0 : index
    %c0_16 = arith.constant 0 : index
    %30 = vector.load %arg5[%c0_15, %c0_16] : memref<1x192xf32, #tpu.memory_space<vmem>>, vector<1x192xf32>
    %31 = vector.broadcast %30 : vector<1x192xf32> to vector<256x192xf32>
    %32 = arith.addf %29, %31 : vector<256x192xf32>
    %cst = arith.constant 0.000000e+00 : f32
    %33 = vector.broadcast %cst : f32 to vector<256x192xf32>
    %34 = arith.cmpf ogt, %32, %33 : vector<256x192xf32>
    %cst_17 = arith.constant 3.000000e-01 : f32
    %35 = vector.broadcast %cst_17 : f32 to vector<256x192xf32>
    %36 = arith.mulf %35, %32 : vector<256x192xf32>
    %37 = arith.select %34, %32, %36 : vector<256x192xi1>, vector<256x192xf32>
    %38 = arith.truncf %37 : vector<256x192xf32> to vector<256x192xbf16>
    %c0_18 = arith.constant 0 : index
    %c0_19 = arith.constant 0 : index
    %c0_20 = arith.constant 0 : index
    %39 = vector.load %arg6[%c0_18, %c0_19, %c0_20] : memref<9x64x256xbf16, #tpu.memory_space<vmem>>, vector<1x64x256xbf16>
    %40 = vector.shape_cast %39 : vector<1x64x256xbf16> to vector<64x256xbf16>
    %cst_21 = arith.constant dense<0.000000e+00> : vector<64x192xf32>
    %41 = tpu.matmul %40, %38, %cst_21 {dimension_numbers = #tpu.dot_dimension_numbers<[1], [0], [0], [1], [0, 0, 1, 1], [], []>} : vector<64x256xbf16>, vector<256x192xbf16>, vector<64x192xf32> -> vector<64x192xf32>
    %c0_22 = arith.constant 0 : index
    %c0_23 = arith.constant 0 : index
    %c0_24 = arith.constant 0 : index
    %42 = vector.load %arg7[%c0_22, %c0_23, %c0_24] : memref<9x1x192xf32, #tpu.memory_space<vmem>>, vector<1x1x192xf32>
    %43 = vector.shape_cast %42 : vector<1x1x192xf32> to vector<1x192xf32>
    %44 = vector.broadcast %43 : vector<1x192xf32> to vector<64x192xf32>
    %45 = arith.mulf %41, %44 : vector<64x192xf32>
    %c1_25 = arith.constant 1 : index
    %c0_26 = arith.constant 0 : index
    %c0_27 = arith.constant 0 : index
    %46 = vector.load %arg6[%c1_25, %c0_26, %c0_27] : memref<9x64x256xbf16, #tpu.memory_space<vmem>>, vector<1x64x256xbf16>
    %47 = vector.shape_cast %46 : vector<1x64x256xbf16> to vector<64x256xbf16>
    %cst_28 = arith.constant dense<0.000000e+00> : vector<64x192xf32>
    %48 = tpu.matmul %47, %38, %cst_28 {dimension_numbers = #tpu.dot_dimension_numbers<[1], [0], [0], [1], [0, 0, 1, 1], [], []>} : vector<64x256xbf16>, vector<256x192xbf16>, vector<64x192xf32> -> vector<64x192xf32>
    %c1_29 = arith.constant 1 : index
    %c0_30 = arith.constant 0 : index
    %c0_31 = arith.constant 0 : index
    %49 = vector.load %arg7[%c1_29, %c0_30, %c0_31] : memref<9x1x192xf32, #tpu.memory_space<vmem>>, vector<1x1x192xf32>
    %50 = vector.shape_cast %49 : vector<1x1x192xf32> to vector<1x192xf32>
    %51 = vector.broadcast %50 : vector<1x192xf32> to vector<64x192xf32>
    %52 = arith.mulf %48, %51 : vector<64x192xf32>
    %53 = arith.addf %45, %52 : vector<64x192xf32>
    %c2_32 = arith.constant 2 : index
    %c0_33 = arith.constant 0 : index
    %c0_34 = arith.constant 0 : index
    %54 = vector.load %arg6[%c2_32, %c0_33, %c0_34] : memref<9x64x256xbf16, #tpu.memory_space<vmem>>, vector<1x64x256xbf16>
    %55 = vector.shape_cast %54 : vector<1x64x256xbf16> to vector<64x256xbf16>
    %cst_35 = arith.constant dense<0.000000e+00> : vector<64x192xf32>
    %56 = tpu.matmul %55, %38, %cst_35 {dimension_numbers = #tpu.dot_dimension_numbers<[1], [0], [0], [1], [0, 0, 1, 1], [], []>} : vector<64x256xbf16>, vector<256x192xbf16>, vector<64x192xf32> -> vector<64x192xf32>
    %c2_36 = arith.constant 2 : index
    %c0_37 = arith.constant 0 : index
    %c0_38 = arith.constant 0 : index
    %57 = vector.load %arg7[%c2_36, %c0_37, %c0_38] : memref<9x1x192xf32, #tpu.memory_space<vmem>>, vector<1x1x192xf32>
    %58 = vector.shape_cast %57 : vector<1x1x192xf32> to vector<1x192xf32>
    %59 = vector.broadcast %58 : vector<1x192xf32> to vector<64x192xf32>
    %60 = arith.mulf %56, %59 : vector<64x192xf32>
    %61 = arith.addf %53, %60 : vector<64x192xf32>
    %c3 = arith.constant 3 : index
    %c0_39 = arith.constant 0 : index
    %c0_40 = arith.constant 0 : index
    %62 = vector.load %arg6[%c3, %c0_39, %c0_40] : memref<9x64x256xbf16, #tpu.memory_space<vmem>>, vector<1x64x256xbf16>
    %63 = vector.shape_cast %62 : vector<1x64x256xbf16> to vector<64x256xbf16>
    %cst_41 = arith.constant dense<0.000000e+00> : vector<64x192xf32>
    %64 = tpu.matmul %63, %38, %cst_41 {dimension_numbers = #tpu.dot_dimension_numbers<[1], [0], [0], [1], [0, 0, 1, 1], [], []>} : vector<64x256xbf16>, vector<256x192xbf16>, vector<64x192xf32> -> vector<64x192xf32>
    %c3_42 = arith.constant 3 : index
    %c0_43 = arith.constant 0 : index
    %c0_44 = arith.constant 0 : index
    %65 = vector.load %arg7[%c3_42, %c0_43, %c0_44] : memref<9x1x192xf32, #tpu.memory_space<vmem>>, vector<1x1x192xf32>
    %66 = vector.shape_cast %65 : vector<1x1x192xf32> to vector<1x192xf32>
    %67 = vector.broadcast %66 : vector<1x192xf32> to vector<64x192xf32>
    %68 = arith.mulf %64, %67 : vector<64x192xf32>
    %69 = arith.addf %61, %68 : vector<64x192xf32>
    %c4 = arith.constant 4 : index
    %c0_45 = arith.constant 0 : index
    %c0_46 = arith.constant 0 : index
    %70 = vector.load %arg6[%c4, %c0_45, %c0_46] : memref<9x64x256xbf16, #tpu.memory_space<vmem>>, vector<1x64x256xbf16>
    %71 = vector.shape_cast %70 : vector<1x64x256xbf16> to vector<64x256xbf16>
    %cst_47 = arith.constant dense<0.000000e+00> : vector<64x192xf32>
    %72 = tpu.matmul %71, %38, %cst_47 {dimension_numbers = #tpu.dot_dimension_numbers<[1], [0], [0], [1], [0, 0, 1, 1], [], []>} : vector<64x256xbf16>, vector<256x192xbf16>, vector<64x192xf32> -> vector<64x192xf32>
    %c4_48 = arith.constant 4 : index
    %c0_49 = arith.constant 0 : index
    %c0_50 = arith.constant 0 : index
    %73 = vector.load %arg7[%c4_48, %c0_49, %c0_50] : memref<9x1x192xf32, #tpu.memory_space<vmem>>, vector<1x1x192xf32>
    %74 = vector.shape_cast %73 : vector<1x1x192xf32> to vector<1x192xf32>
    %75 = vector.broadcast %74 : vector<1x192xf32> to vector<64x192xf32>
    %76 = arith.mulf %72, %75 : vector<64x192xf32>
    %77 = arith.addf %69, %76 : vector<64x192xf32>
    %c5 = arith.constant 5 : index
    %c0_51 = arith.constant 0 : index
    %c0_52 = arith.constant 0 : index
    %78 = vector.load %arg6[%c5, %c0_51, %c0_52] : memref<9x64x256xbf16, #tpu.memory_space<vmem>>, vector<1x64x256xbf16>
    %79 = vector.shape_cast %78 : vector<1x64x256xbf16> to vector<64x256xbf16>
    %cst_53 = arith.constant dense<0.000000e+00> : vector<64x192xf32>
    %80 = tpu.matmul %79, %38, %cst_53 {dimension_numbers = #tpu.dot_dimension_numbers<[1], [0], [0], [1], [0, 0, 1, 1], [], []>} : vector<64x256xbf16>, vector<256x192xbf16>, vector<64x192xf32> -> vector<64x192xf32>
    %c5_54 = arith.constant 5 : index
    %c0_55 = arith.constant 0 : index
    %c0_56 = arith.constant 0 : index
    %81 = vector.load %arg7[%c5_54, %c0_55, %c0_56] : memref<9x1x192xf32, #tpu.memory_space<vmem>>, vector<1x1x192xf32>
    %82 = vector.shape_cast %81 : vector<1x1x192xf32> to vector<1x192xf32>
    %83 = vector.broadcast %82 : vector<1x192xf32> to vector<64x192xf32>
    %84 = arith.mulf %80, %83 : vector<64x192xf32>
    %85 = arith.addf %77, %84 : vector<64x192xf32>
    %c6 = arith.constant 6 : index
    %c0_57 = arith.constant 0 : index
    %c0_58 = arith.constant 0 : index
    %86 = vector.load %arg6[%c6, %c0_57, %c0_58] : memref<9x64x256xbf16, #tpu.memory_space<vmem>>, vector<1x64x256xbf16>
    %87 = vector.shape_cast %86 : vector<1x64x256xbf16> to vector<64x256xbf16>
    %cst_59 = arith.constant dense<0.000000e+00> : vector<64x192xf32>
    %88 = tpu.matmul %87, %38, %cst_59 {dimension_numbers = #tpu.dot_dimension_numbers<[1], [0], [0], [1], [0, 0, 1, 1], [], []>} : vector<64x256xbf16>, vector<256x192xbf16>, vector<64x192xf32> -> vector<64x192xf32>
    %c6_60 = arith.constant 6 : index
    %c0_61 = arith.constant 0 : index
    %c0_62 = arith.constant 0 : index
    %89 = vector.load %arg7[%c6_60, %c0_61, %c0_62] : memref<9x1x192xf32, #tpu.memory_space<vmem>>, vector<1x1x192xf32>
    %90 = vector.shape_cast %89 : vector<1x1x192xf32> to vector<1x192xf32>
    %91 = vector.broadcast %90 : vector<1x192xf32> to vector<64x192xf32>
    %92 = arith.mulf %88, %91 : vector<64x192xf32>
    %93 = arith.addf %85, %92 : vector<64x192xf32>
    %c7 = arith.constant 7 : index
    %c0_63 = arith.constant 0 : index
    %c0_64 = arith.constant 0 : index
    %94 = vector.load %arg6[%c7, %c0_63, %c0_64] : memref<9x64x256xbf16, #tpu.memory_space<vmem>>, vector<1x64x256xbf16>
    %95 = vector.shape_cast %94 : vector<1x64x256xbf16> to vector<64x256xbf16>
    %cst_65 = arith.constant dense<0.000000e+00> : vector<64x192xf32>
    %96 = tpu.matmul %95, %38, %cst_65 {dimension_numbers = #tpu.dot_dimension_numbers<[1], [0], [0], [1], [0, 0, 1, 1], [], []>} : vector<64x256xbf16>, vector<256x192xbf16>, vector<64x192xf32> -> vector<64x192xf32>
    %c7_66 = arith.constant 7 : index
    %c0_67 = arith.constant 0 : index
    %c0_68 = arith.constant 0 : index
    %97 = vector.load %arg7[%c7_66, %c0_67, %c0_68] : memref<9x1x192xf32, #tpu.memory_space<vmem>>, vector<1x1x192xf32>
    %98 = vector.shape_cast %97 : vector<1x1x192xf32> to vector<1x192xf32>
    %99 = vector.broadcast %98 : vector<1x192xf32> to vector<64x192xf32>
    %100 = arith.mulf %96, %99 : vector<64x192xf32>
    %101 = arith.addf %93, %100 : vector<64x192xf32>
    %c8 = arith.constant 8 : index
    %c0_69 = arith.constant 0 : index
    %c0_70 = arith.constant 0 : index
    %102 = vector.load %arg6[%c8, %c0_69, %c0_70] : memref<9x64x256xbf16, #tpu.memory_space<vmem>>, vector<1x64x256xbf16>
    %103 = vector.shape_cast %102 : vector<1x64x256xbf16> to vector<64x256xbf16>
    %cst_71 = arith.constant dense<0.000000e+00> : vector<64x192xf32>
    %104 = tpu.matmul %103, %38, %cst_71 {dimension_numbers = #tpu.dot_dimension_numbers<[1], [0], [0], [1], [0, 0, 1, 1], [], []>} : vector<64x256xbf16>, vector<256x192xbf16>, vector<64x192xf32> -> vector<64x192xf32>
    %c8_72 = arith.constant 8 : index
    %c0_73 = arith.constant 0 : index
    %c0_74 = arith.constant 0 : index
    %105 = vector.load %arg7[%c8_72, %c0_73, %c0_74] : memref<9x1x192xf32, #tpu.memory_space<vmem>>, vector<1x1x192xf32>
    %106 = vector.shape_cast %105 : vector<1x1x192xf32> to vector<1x192xf32>
    %107 = vector.broadcast %106 : vector<1x192xf32> to vector<64x192xf32>
    %108 = arith.mulf %104, %107 : vector<64x192xf32>
    %109 = arith.addf %101, %108 : vector<64x192xf32>
    %c0_75 = arith.constant 0 : index
    %c0_76 = arith.constant 0 : index
    %110 = vector.load %arg8[%c0_75, %c0_76] : memref<1x192xf32, #tpu.memory_space<vmem>>, vector<1x192xf32>
    %111 = vector.broadcast %110 : vector<1x192xf32> to vector<64x192xf32>
    %112 = arith.mulf %109, %111 : vector<64x192xf32>
    %c0_77 = arith.constant 0 : index
    %c0_78 = arith.constant 0 : index
    %113 = vector.load %arg9[%c0_77, %c0_78] : memref<1x192xf32, #tpu.memory_space<vmem>>, vector<1x192xf32>
    %114 = vector.broadcast %113 : vector<1x192xf32> to vector<64x192xf32>
    %115 = arith.addf %112, %114 : vector<64x192xf32>
    %cst_79 = arith.constant 0.000000e+00 : f32
    %116 = vector.broadcast %cst_79 : f32 to vector<64x192xf32>
    %117 = arith.cmpf ogt, %115, %116 : vector<64x192xf32>
    %cst_80 = arith.constant 3.000000e-01 : f32
    %118 = vector.broadcast %cst_80 : f32 to vector<64x192xf32>
    %119 = arith.mulf %118, %115 : vector<64x192xf32>
    %120 = arith.select %117, %115, %119 : vector<64x192xi1>, vector<64x192xf32>
    %cst_81 = arith.constant dense<0.000000e+00> : vector<192xf32>
    %121 = vector.multi_reduction <add>, %120, %cst_81 [0] : vector<64x192xf32> to vector<192xf32>
    %122 = vector.shape_cast %121 : vector<192xf32> to vector<1x192xf32>
    %cst_82 = arith.constant 6.400000e+01 : f32
    %123 = vector.broadcast %cst_82 : f32 to vector<1x192xf32>
    %124 = arith.divf %122, %123 : vector<1x192xf32>
    %c0_83 = arith.constant 0 : index
    %c0_84 = arith.constant 0 : index
    %125 = vector.load %arg10[%c0_83, %c0_84] : memref<192x48xbf16, #tpu.memory_space<vmem>>, vector<192x48xbf16>
    %126 = arith.truncf %124 : vector<1x192xf32> to vector<1x192xbf16>
    %cst_85 = arith.constant dense<0.000000e+00> : vector<1x48xf32>
    %127 = tpu.matmul %126, %125, %cst_85 {dimension_numbers = #tpu.dot_dimension_numbers<[1], [0], [0], [1], [0, 0, 1, 1], [], []>} : vector<1x192xbf16>, vector<192x48xbf16>, vector<1x48xf32> -> vector<1x48xf32>
    %c0_86 = arith.constant 0 : index
    %c0_87 = arith.constant 0 : index
    %128 = vector.load %arg11[%c0_86, %c0_87] : memref<1x48xf32, #tpu.memory_space<vmem>>, vector<1x48xf32>
    %129 = arith.addf %127, %128 : vector<1x48xf32>
    %cst_88 = arith.constant 0.000000e+00 : f32
    %130 = vector.broadcast %cst_88 : f32 to vector<1x48xf32>
    %131 = arith.cmpf ogt, %129, %130 : vector<1x48xf32>
    %cst_89 = arith.constant 3.000000e-01 : f32
    %132 = vector.broadcast %cst_89 : f32 to vector<1x48xf32>
    %133 = arith.mulf %132, %129 : vector<1x48xf32>
    %134 = arith.select %131, %129, %133 : vector<1x48xi1>, vector<1x48xf32>
    %c0_90 = arith.constant 0 : index
    %c0_91 = arith.constant 0 : index
    %135 = vector.load %arg12[%c0_90, %c0_91] : memref<48x192xbf16, #tpu.memory_space<vmem>>, vector<48x192xbf16>
    %136 = arith.truncf %134 : vector<1x48xf32> to vector<1x48xbf16>
    %cst_92 = arith.constant dense<0.000000e+00> : vector<1x192xf32>
    %137 = tpu.matmul %136, %135, %cst_92 {dimension_numbers = #tpu.dot_dimension_numbers<[1], [0], [0], [1], [0, 0, 1, 1], [], []>} : vector<1x48xbf16>, vector<48x192xbf16>, vector<1x192xf32> -> vector<1x192xf32>
    %c0_93 = arith.constant 0 : index
    %c0_94 = arith.constant 0 : index
    %138 = vector.load %arg13[%c0_93, %c0_94] : memref<1x192xf32, #tpu.memory_space<vmem>>, vector<1x192xf32>
    %139 = arith.addf %137, %138 : vector<1x192xf32>
    %140 = arith.negf %139 : vector<1x192xf32>
    %141 = math.exp %140 : vector<1x192xf32>
    %cst_95 = arith.constant 1.000000e+00 : f32
    %142 = vector.broadcast %cst_95 : f32 to vector<1x192xf32>
    %143 = arith.addf %142, %141 : vector<1x192xf32>
    %144 = arith.divf %142, %143 : vector<1x192xf32>
    %145 = vector.broadcast %144 : vector<1x192xf32> to vector<64x192xf32>
    %146 = arith.mulf %120, %145 : vector<64x192xf32>
    %c0_96 = arith.constant 0 : index
    %c0_97 = arith.constant 0 : index
    %147 = vector.load %arg14[%c0_96, %c0_97] : memref<192x64xbf16, #tpu.memory_space<vmem>>, vector<192x64xbf16>
    %148 = arith.truncf %146 : vector<64x192xf32> to vector<64x192xbf16>
    %cst_98 = arith.constant dense<0.000000e+00> : vector<64x64xf32>
    %149 = tpu.matmul %148, %147, %cst_98 {dimension_numbers = #tpu.dot_dimension_numbers<[1], [0], [0], [1], [0, 0, 1, 1], [], []>} : vector<64x192xbf16>, vector<192x64xbf16>, vector<64x64xf32> -> vector<64x64xf32>
    %c0_99 = arith.constant 0 : index
    %c0_100 = arith.constant 0 : index
    %150 = vector.load %arg15[%c0_99, %c0_100] : memref<1x64xf32, #tpu.memory_space<vmem>>, vector<1x64xf32>
    %151 = vector.broadcast %150 : vector<1x64xf32> to vector<64x64xf32>
    %152 = arith.mulf %149, %151 : vector<64x64xf32>
    %c0_101 = arith.constant 0 : index
    %c0_102 = arith.constant 0 : index
    %153 = vector.load %arg16[%c0_101, %c0_102] : memref<1x64xf32, #tpu.memory_space<vmem>>, vector<1x64xf32>
    %154 = vector.broadcast %153 : vector<1x64xf32> to vector<64x64xf32>
    %155 = arith.addf %152, %154 : vector<64x64xf32>
    %156 = tpu.iota {dimensions = array<i32: 1>} : vector<64x64xi32>
    %c63_i32 = arith.constant 63 : i32
    %157 = vector.broadcast %c63_i32 : i32 to vector<64x64xi32>
    %158 = arith.cmpi eq, %156, %157 : vector<64x64xi32>
    %159 = vector.shape_cast %3 : vector<64x1xf32> to vector<64x1xf32>
    %160 = vector.broadcast %159 : vector<64x1xf32> to vector<64x64xf32>
    %161 = arith.select %158, %160, %155 : vector<64x64xi1>, vector<64x64xf32>
    %c0_103 = arith.constant 0 : index
    %c0_104 = arith.constant 0 : index
    %162 = vector.load %arg17[%c0_103, %c0_104] : memref<64x192xbf16, #tpu.memory_space<vmem>>, vector<64x192xbf16>
    %163 = arith.truncf %161 : vector<64x64xf32> to vector<64x64xbf16>
    %cst_105 = arith.constant dense<0.000000e+00> : vector<64x192xf32>
    %164 = tpu.matmul %163, %162, %cst_105 {dimension_numbers = #tpu.dot_dimension_numbers<[1], [0], [0], [1], [0, 0, 1, 1], [], []>} : vector<64x64xbf16>, vector<64x192xbf16>, vector<64x192xf32> -> vector<64x192xf32>
    %c0_106 = arith.constant 0 : index
    %c0_107 = arith.constant 0 : index
    %165 = vector.load %arg18[%c0_106, %c0_107] : memref<1x192xf32, #tpu.memory_space<vmem>>, vector<1x192xf32>
    %166 = vector.broadcast %165 : vector<1x192xf32> to vector<64x192xf32>
    %167 = arith.mulf %164, %166 : vector<64x192xf32>
    %c0_108 = arith.constant 0 : index
    %c0_109 = arith.constant 0 : index
    %168 = vector.load %arg19[%c0_108, %c0_109] : memref<1x192xf32, #tpu.memory_space<vmem>>, vector<1x192xf32>
    %169 = vector.broadcast %168 : vector<1x192xf32> to vector<64x192xf32>
    %170 = arith.addf %167, %169 : vector<64x192xf32>
    %cst_110 = arith.constant 0.000000e+00 : f32
    %171 = vector.broadcast %cst_110 : f32 to vector<64x192xf32>
    %172 = arith.cmpf ogt, %170, %171 : vector<64x192xf32>
    %cst_111 = arith.constant 3.000000e-01 : f32
    %173 = vector.broadcast %cst_111 : f32 to vector<64x192xf32>
    %174 = arith.mulf %173, %170 : vector<64x192xf32>
    %175 = arith.select %172, %170, %174 : vector<64x192xi1>, vector<64x192xf32>
    %176 = arith.truncf %175 : vector<64x192xf32> to vector<64x192xbf16>
    %c0_112 = arith.constant 0 : index
    %c0_113 = arith.constant 0 : index
    %c0_114 = arith.constant 0 : index
    %177 = vector.load %arg20[%c0_112, %c0_113, %c0_114] : memref<9x16x64xbf16, #tpu.memory_space<vmem>>, vector<1x16x64xbf16>
    %178 = vector.shape_cast %177 : vector<1x16x64xbf16> to vector<16x64xbf16>
    %cst_115 = arith.constant dense<0.000000e+00> : vector<16x192xf32>
    %179 = tpu.matmul %178, %176, %cst_115 {dimension_numbers = #tpu.dot_dimension_numbers<[1], [0], [0], [1], [0, 0, 1, 1], [], []>} : vector<16x64xbf16>, vector<64x192xbf16>, vector<16x192xf32> -> vector<16x192xf32>
    %c0_116 = arith.constant 0 : index
    %c0_117 = arith.constant 0 : index
    %c0_118 = arith.constant 0 : index
    %180 = vector.load %arg21[%c0_116, %c0_117, %c0_118] : memref<9x1x192xf32, #tpu.memory_space<vmem>>, vector<1x1x192xf32>
    %181 = vector.shape_cast %180 : vector<1x1x192xf32> to vector<1x192xf32>
    %182 = vector.broadcast %181 : vector<1x192xf32> to vector<16x192xf32>
    %183 = arith.mulf %179, %182 : vector<16x192xf32>
    %c1_119 = arith.constant 1 : index
    %c0_120 = arith.constant 0 : index
    %c0_121 = arith.constant 0 : index
    %184 = vector.load %arg20[%c1_119, %c0_120, %c0_121] : memref<9x16x64xbf16, #tpu.memory_space<vmem>>, vector<1x16x64xbf16>
    %185 = vector.shape_cast %184 : vector<1x16x64xbf16> to vector<16x64xbf16>
    %cst_122 = arith.constant dense<0.000000e+00> : vector<16x192xf32>
    %186 = tpu.matmul %185, %176, %cst_122 {dimension_numbers = #tpu.dot_dimension_numbers<[1], [0], [0], [1], [0, 0, 1, 1], [], []>} : vector<16x64xbf16>, vector<64x192xbf16>, vector<16x192xf32> -> vector<16x192xf32>
    %c1_123 = arith.constant 1 : index
    %c0_124 = arith.constant 0 : index
    %c0_125 = arith.constant 0 : index
    %187 = vector.load %arg21[%c1_123, %c0_124, %c0_125] : memref<9x1x192xf32, #tpu.memory_space<vmem>>, vector<1x1x192xf32>
    %188 = vector.shape_cast %187 : vector<1x1x192xf32> to vector<1x192xf32>
    %189 = vector.broadcast %188 : vector<1x192xf32> to vector<16x192xf32>
    %190 = arith.mulf %186, %189 : vector<16x192xf32>
    %191 = arith.addf %183, %190 : vector<16x192xf32>
    %c2_126 = arith.constant 2 : index
    %c0_127 = arith.constant 0 : index
    %c0_128 = arith.constant 0 : index
    %192 = vector.load %arg20[%c2_126, %c0_127, %c0_128] : memref<9x16x64xbf16, #tpu.memory_space<vmem>>, vector<1x16x64xbf16>
    %193 = vector.shape_cast %192 : vector<1x16x64xbf16> to vector<16x64xbf16>
    %cst_129 = arith.constant dense<0.000000e+00> : vector<16x192xf32>
    %194 = tpu.matmul %193, %176, %cst_129 {dimension_numbers = #tpu.dot_dimension_numbers<[1], [0], [0], [1], [0, 0, 1, 1], [], []>} : vector<16x64xbf16>, vector<64x192xbf16>, vector<16x192xf32> -> vector<16x192xf32>
    %c2_130 = arith.constant 2 : index
    %c0_131 = arith.constant 0 : index
    %c0_132 = arith.constant 0 : index
    %195 = vector.load %arg21[%c2_130, %c0_131, %c0_132] : memref<9x1x192xf32, #tpu.memory_space<vmem>>, vector<1x1x192xf32>
    %196 = vector.shape_cast %195 : vector<1x1x192xf32> to vector<1x192xf32>
    %197 = vector.broadcast %196 : vector<1x192xf32> to vector<16x192xf32>
    %198 = arith.mulf %194, %197 : vector<16x192xf32>
    %199 = arith.addf %191, %198 : vector<16x192xf32>
    %c3_133 = arith.constant 3 : index
    %c0_134 = arith.constant 0 : index
    %c0_135 = arith.constant 0 : index
    %200 = vector.load %arg20[%c3_133, %c0_134, %c0_135] : memref<9x16x64xbf16, #tpu.memory_space<vmem>>, vector<1x16x64xbf16>
    %201 = vector.shape_cast %200 : vector<1x16x64xbf16> to vector<16x64xbf16>
    %cst_136 = arith.constant dense<0.000000e+00> : vector<16x192xf32>
    %202 = tpu.matmul %201, %176, %cst_136 {dimension_numbers = #tpu.dot_dimension_numbers<[1], [0], [0], [1], [0, 0, 1, 1], [], []>} : vector<16x64xbf16>, vector<64x192xbf16>, vector<16x192xf32> -> vector<16x192xf32>
    %c3_137 = arith.constant 3 : index
    %c0_138 = arith.constant 0 : index
    %c0_139 = arith.constant 0 : index
    %203 = vector.load %arg21[%c3_137, %c0_138, %c0_139] : memref<9x1x192xf32, #tpu.memory_space<vmem>>, vector<1x1x192xf32>
    %204 = vector.shape_cast %203 : vector<1x1x192xf32> to vector<1x192xf32>
    %205 = vector.broadcast %204 : vector<1x192xf32> to vector<16x192xf32>
    %206 = arith.mulf %202, %205 : vector<16x192xf32>
    %207 = arith.addf %199, %206 : vector<16x192xf32>
    %c4_140 = arith.constant 4 : index
    %c0_141 = arith.constant 0 : index
    %c0_142 = arith.constant 0 : index
    %208 = vector.load %arg20[%c4_140, %c0_141, %c0_142] : memref<9x16x64xbf16, #tpu.memory_space<vmem>>, vector<1x16x64xbf16>
    %209 = vector.shape_cast %208 : vector<1x16x64xbf16> to vector<16x64xbf16>
    %cst_143 = arith.constant dense<0.000000e+00> : vector<16x192xf32>
    %210 = tpu.matmul %209, %176, %cst_143 {dimension_numbers = #tpu.dot_dimension_numbers<[1], [0], [0], [1], [0, 0, 1, 1], [], []>} : vector<16x64xbf16>, vector<64x192xbf16>, vector<16x192xf32> -> vector<16x192xf32>
    %c4_144 = arith.constant 4 : index
    %c0_145 = arith.constant 0 : index
    %c0_146 = arith.constant 0 : index
    %211 = vector.load %arg21[%c4_144, %c0_145, %c0_146] : memref<9x1x192xf32, #tpu.memory_space<vmem>>, vector<1x1x192xf32>
    %212 = vector.shape_cast %211 : vector<1x1x192xf32> to vector<1x192xf32>
    %213 = vector.broadcast %212 : vector<1x192xf32> to vector<16x192xf32>
    %214 = arith.mulf %210, %213 : vector<16x192xf32>
    %215 = arith.addf %207, %214 : vector<16x192xf32>
    %c5_147 = arith.constant 5 : index
    %c0_148 = arith.constant 0 : index
    %c0_149 = arith.constant 0 : index
    %216 = vector.load %arg20[%c5_147, %c0_148, %c0_149] : memref<9x16x64xbf16, #tpu.memory_space<vmem>>, vector<1x16x64xbf16>
    %217 = vector.shape_cast %216 : vector<1x16x64xbf16> to vector<16x64xbf16>
    %cst_150 = arith.constant dense<0.000000e+00> : vector<16x192xf32>
    %218 = tpu.matmul %217, %176, %cst_150 {dimension_numbers = #tpu.dot_dimension_numbers<[1], [0], [0], [1], [0, 0, 1, 1], [], []>} : vector<16x64xbf16>, vector<64x192xbf16>, vector<16x192xf32> -> vector<16x192xf32>
    %c5_151 = arith.constant 5 : index
    %c0_152 = arith.constant 0 : index
    %c0_153 = arith.constant 0 : index
    %219 = vector.load %arg21[%c5_151, %c0_152, %c0_153] : memref<9x1x192xf32, #tpu.memory_space<vmem>>, vector<1x1x192xf32>
    %220 = vector.shape_cast %219 : vector<1x1x192xf32> to vector<1x192xf32>
    %221 = vector.broadcast %220 : vector<1x192xf32> to vector<16x192xf32>
    %222 = arith.mulf %218, %221 : vector<16x192xf32>
    %223 = arith.addf %215, %222 : vector<16x192xf32>
    %c6_154 = arith.constant 6 : index
    %c0_155 = arith.constant 0 : index
    %c0_156 = arith.constant 0 : index
    %224 = vector.load %arg20[%c6_154, %c0_155, %c0_156] : memref<9x16x64xbf16, #tpu.memory_space<vmem>>, vector<1x16x64xbf16>
    %225 = vector.shape_cast %224 : vector<1x16x64xbf16> to vector<16x64xbf16>
    %cst_157 = arith.constant dense<0.000000e+00> : vector<16x192xf32>
    %226 = tpu.matmul %225, %176, %cst_157 {dimension_numbers = #tpu.dot_dimension_numbers<[1], [0], [0], [1], [0, 0, 1, 1], [], []>} : vector<16x64xbf16>, vector<64x192xbf16>, vector<16x192xf32> -> vector<16x192xf32>
    %c6_158 = arith.constant 6 : index
    %c0_159 = arith.constant 0 : index
    %c0_160 = arith.constant 0 : index
    %227 = vector.load %arg21[%c6_158, %c0_159, %c0_160] : memref<9x1x192xf32, #tpu.memory_space<vmem>>, vector<1x1x192xf32>
    %228 = vector.shape_cast %227 : vector<1x1x192xf32> to vector<1x192xf32>
    %229 = vector.broadcast %228 : vector<1x192xf32> to vector<16x192xf32>
    %230 = arith.mulf %226, %229 : vector<16x192xf32>
    %231 = arith.addf %223, %230 : vector<16x192xf32>
    %c7_161 = arith.constant 7 : index
    %c0_162 = arith.constant 0 : index
    %c0_163 = arith.constant 0 : index
    %232 = vector.load %arg20[%c7_161, %c0_162, %c0_163] : memref<9x16x64xbf16, #tpu.memory_space<vmem>>, vector<1x16x64xbf16>
    %233 = vector.shape_cast %232 : vector<1x16x64xbf16> to vector<16x64xbf16>
    %cst_164 = arith.constant dense<0.000000e+00> : vector<16x192xf32>
    %234 = tpu.matmul %233, %176, %cst_164 {dimension_numbers = #tpu.dot_dimension_numbers<[1], [0], [0], [1], [0, 0, 1, 1], [], []>} : vector<16x64xbf16>, vector<64x192xbf16>, vector<16x192xf32> -> vector<16x192xf32>
    %c7_165 = arith.constant 7 : index
    %c0_166 = arith.constant 0 : index
    %c0_167 = arith.constant 0 : index
    %235 = vector.load %arg21[%c7_165, %c0_166, %c0_167] : memref<9x1x192xf32, #tpu.memory_space<vmem>>, vector<1x1x192xf32>
    %236 = vector.shape_cast %235 : vector<1x1x192xf32> to vector<1x192xf32>
    %237 = vector.broadcast %236 : vector<1x192xf32> to vector<16x192xf32>
    %238 = arith.mulf %234, %237 : vector<16x192xf32>
    %239 = arith.addf %231, %238 : vector<16x192xf32>
    %c8_168 = arith.constant 8 : index
    %c0_169 = arith.constant 0 : index
    %c0_170 = arith.constant 0 : index
    %240 = vector.load %arg20[%c8_168, %c0_169, %c0_170] : memref<9x16x64xbf16, #tpu.memory_space<vmem>>, vector<1x16x64xbf16>
    %241 = vector.shape_cast %240 : vector<1x16x64xbf16> to vector<16x64xbf16>
    %cst_171 = arith.constant dense<0.000000e+00> : vector<16x192xf32>
    %242 = tpu.matmul %241, %176, %cst_171 {dimension_numbers = #tpu.dot_dimension_numbers<[1], [0], [0], [1], [0, 0, 1, 1], [], []>} : vector<16x64xbf16>, vector<64x192xbf16>, vector<16x192xf32> -> vector<16x192xf32>
    %c8_172 = arith.constant 8 : index
    %c0_173 = arith.constant 0 : index
    %c0_174 = arith.constant 0 : index
    %243 = vector.load %arg21[%c8_172, %c0_173, %c0_174] : memref<9x1x192xf32, #tpu.memory_space<vmem>>, vector<1x1x192xf32>
    %244 = vector.shape_cast %243 : vector<1x1x192xf32> to vector<1x192xf32>
    %245 = vector.broadcast %244 : vector<1x192xf32> to vector<16x192xf32>
    %246 = arith.mulf %242, %245 : vector<16x192xf32>
    %247 = arith.addf %239, %246 : vector<16x192xf32>
    %c0_175 = arith.constant 0 : index
    %c0_176 = arith.constant 0 : index
    %248 = vector.load %arg22[%c0_175, %c0_176] : memref<1x192xf32, #tpu.memory_space<vmem>>, vector<1x192xf32>
    %249 = vector.broadcast %248 : vector<1x192xf32> to vector<16x192xf32>
    %250 = arith.mulf %247, %249 : vector<16x192xf32>
    %c0_177 = arith.constant 0 : index
    %c0_178 = arith.constant 0 : index
    %251 = vector.load %arg23[%c0_177, %c0_178] : memref<1x192xf32, #tpu.memory_space<vmem>>, vector<1x192xf32>
    %252 = vector.broadcast %251 : vector<1x192xf32> to vector<16x192xf32>
    %253 = arith.addf %250, %252 : vector<16x192xf32>
    %cst_179 = arith.constant 0.000000e+00 : f32
    %254 = vector.broadcast %cst_179 : f32 to vector<16x192xf32>
    %255 = arith.cmpf ogt, %253, %254 : vector<16x192xf32>
    %cst_180 = arith.constant 3.000000e-01 : f32
    %256 = vector.broadcast %cst_180 : f32 to vector<16x192xf32>
    %257 = arith.mulf %256, %253 : vector<16x192xf32>
    %258 = arith.select %255, %253, %257 : vector<16x192xi1>, vector<16x192xf32>
    %cst_181 = arith.constant dense<0.000000e+00> : vector<192xf32>
    %259 = vector.multi_reduction <add>, %258, %cst_181 [0] : vector<16x192xf32> to vector<192xf32>
    %260 = vector.shape_cast %259 : vector<192xf32> to vector<1x192xf32>
    %cst_182 = arith.constant 1.600000e+01 : f32
    %261 = vector.broadcast %cst_182 : f32 to vector<1x192xf32>
    %262 = arith.divf %260, %261 : vector<1x192xf32>
    %c0_183 = arith.constant 0 : index
    %c0_184 = arith.constant 0 : index
    %263 = vector.load %arg24[%c0_183, %c0_184] : memref<192x48xbf16, #tpu.memory_space<vmem>>, vector<192x48xbf16>
    %264 = arith.truncf %262 : vector<1x192xf32> to vector<1x192xbf16>
    %cst_185 = arith.constant dense<0.000000e+00> : vector<1x48xf32>
    %265 = tpu.matmul %264, %263, %cst_185 {dimension_numbers = #tpu.dot_dimension_numbers<[1], [0], [0], [1], [0, 0, 1, 1], [], []>} : vector<1x192xbf16>, vector<192x48xbf16>, vector<1x48xf32> -> vector<1x48xf32>
    %c0_186 = arith.constant 0 : index
    %c0_187 = arith.constant 0 : index
    %266 = vector.load %arg25[%c0_186, %c0_187] : memref<1x48xf32, #tpu.memory_space<vmem>>, vector<1x48xf32>
    %267 = arith.addf %265, %266 : vector<1x48xf32>
    %cst_188 = arith.constant 0.000000e+00 : f32
    %268 = vector.broadcast %cst_188 : f32 to vector<1x48xf32>
    %269 = arith.cmpf ogt, %267, %268 : vector<1x48xf32>
    %cst_189 = arith.constant 3.000000e-01 : f32
    %270 = vector.broadcast %cst_189 : f32 to vector<1x48xf32>
    %271 = arith.mulf %270, %267 : vector<1x48xf32>
    %272 = arith.select %269, %267, %271 : vector<1x48xi1>, vector<1x48xf32>
    %c0_190 = arith.constant 0 : index
    %c0_191 = arith.constant 0 : index
    %273 = vector.load %arg26[%c0_190, %c0_191] : memref<48x192xbf16, #tpu.memory_space<vmem>>, vector<48x192xbf16>
    %274 = arith.truncf %272 : vector<1x48xf32> to vector<1x48xbf16>
    %cst_192 = arith.constant dense<0.000000e+00> : vector<1x192xf32>
    %275 = tpu.matmul %274, %273, %cst_192 {dimension_numbers = #tpu.dot_dimension_numbers<[1], [0], [0], [1], [0, 0, 1, 1], [], []>} : vector<1x48xbf16>, vector<48x192xbf16>, vector<1x192xf32> -> vector<1x192xf32>
    %c0_193 = arith.constant 0 : index
    %c0_194 = arith.constant 0 : index
    %276 = vector.load %arg27[%c0_193, %c0_194] : memref<1x192xf32, #tpu.memory_space<vmem>>, vector<1x192xf32>
    %277 = arith.addf %275, %276 : vector<1x192xf32>
    %278 = arith.negf %277 : vector<1x192xf32>
    %279 = math.exp %278 : vector<1x192xf32>
    %cst_195 = arith.constant 1.000000e+00 : f32
    %280 = vector.broadcast %cst_195 : f32 to vector<1x192xf32>
    %281 = arith.addf %280, %279 : vector<1x192xf32>
    %282 = arith.divf %280, %281 : vector<1x192xf32>
    %283 = vector.broadcast %282 : vector<1x192xf32> to vector<16x192xf32>
    %284 = arith.mulf %258, %283 : vector<16x192xf32>
    %c0_196 = arith.constant 0 : index
    %c0_197 = arith.constant 0 : index
    %285 = vector.load %arg28[%c0_196, %c0_197] : memref<192x64xbf16, #tpu.memory_space<vmem>>, vector<192x64xbf16>
    %286 = arith.truncf %284 : vector<16x192xf32> to vector<16x192xbf16>
    %cst_198 = arith.constant dense<0.000000e+00> : vector<16x64xf32>
    %287 = tpu.matmul %286, %285, %cst_198 {dimension_numbers = #tpu.dot_dimension_numbers<[1], [0], [0], [1], [0, 0, 1, 1], [], []>} : vector<16x192xbf16>, vector<192x64xbf16>, vector<16x64xf32> -> vector<16x64xf32>
    %c0_199 = arith.constant 0 : index
    %c0_200 = arith.constant 0 : index
    %288 = vector.load %arg29[%c0_199, %c0_200] : memref<1x64xf32, #tpu.memory_space<vmem>>, vector<1x64xf32>
    %289 = vector.broadcast %288 : vector<1x64xf32> to vector<16x64xf32>
    %290 = arith.mulf %287, %289 : vector<16x64xf32>
    %c0_201 = arith.constant 0 : index
    %c0_202 = arith.constant 0 : index
    %291 = vector.load %arg30[%c0_201, %c0_202] : memref<1x64xf32, #tpu.memory_space<vmem>>, vector<1x64xf32>
    %292 = vector.broadcast %291 : vector<1x64xf32> to vector<16x64xf32>
    %293 = arith.addf %290, %292 : vector<16x64xf32>
    %c0_203 = arith.constant 0 : index
    %c0_204 = arith.constant 0 : index
    %294 = vector.load %arg31[%c0_203, %c0_204] : memref<64x384xbf16, #tpu.memory_space<vmem>>, vector<64x384xbf16>
    %295 = arith.truncf %293 : vector<16x64xf32> to vector<16x64xbf16>
    %cst_205 = arith.constant dense<0.000000e+00> : vector<16x384xf32>
    %296 = tpu.matmul %295, %294, %cst_205 {dimension_numbers = #tpu.dot_dimension_numbers<[1], [0], [0], [1], [0, 0, 1, 1], [], []>} : vector<16x64xbf16>, vector<64x384xbf16>, vector<16x384xf32> -> vector<16x384xf32>
    %c0_206 = arith.constant 0 : index
    %c0_207 = arith.constant 0 : index
    %297 = vector.load %arg32[%c0_206, %c0_207] : memref<1x384xf32, #tpu.memory_space<vmem>>, vector<1x384xf32>
    %298 = vector.broadcast %297 : vector<1x384xf32> to vector<16x384xf32>
    %299 = arith.mulf %296, %298 : vector<16x384xf32>
    %c0_208 = arith.constant 0 : index
    %c0_209 = arith.constant 0 : index
    %300 = vector.load %arg33[%c0_208, %c0_209] : memref<1x384xf32, #tpu.memory_space<vmem>>, vector<1x384xf32>
    %301 = vector.broadcast %300 : vector<1x384xf32> to vector<16x384xf32>
    %302 = arith.addf %299, %301 : vector<16x384xf32>
    %cst_210 = arith.constant 0.000000e+00 : f32
    %303 = vector.broadcast %cst_210 : f32 to vector<16x384xf32>
    %304 = arith.cmpf ogt, %302, %303 : vector<16x384xf32>
    %cst_211 = arith.constant 3.000000e-01 : f32
    %305 = vector.broadcast %cst_211 : f32 to vector<16x384xf32>
    %306 = arith.mulf %305, %302 : vector<16x384xf32>
    %307 = arith.select %304, %302, %306 : vector<16x384xi1>, vector<16x384xf32>
    %308 = arith.truncf %307 : vector<16x384xf32> to vector<16x384xbf16>
    %c0_212 = arith.constant 0 : index
    %c0_213 = arith.constant 0 : index
    %c0_214 = arith.constant 0 : index
    %309 = vector.load %arg34[%c0_212, %c0_213, %c0_214] : memref<9x4x16xbf16, #tpu.memory_space<vmem>>, vector<1x4x16xbf16>
    %310 = vector.shape_cast %309 : vector<1x4x16xbf16> to vector<4x16xbf16>
    %cst_215 = arith.constant dense<0.000000e+00> : vector<4x384xf32>
    %311 = tpu.matmul %310, %308, %cst_215 {dimension_numbers = #tpu.dot_dimension_numbers<[1], [0], [0], [1], [0, 0, 1, 1], [], []>} : vector<4x16xbf16>, vector<16x384xbf16>, vector<4x384xf32> -> vector<4x384xf32>
    %c0_216 = arith.constant 0 : index
    %c0_217 = arith.constant 0 : index
    %c0_218 = arith.constant 0 : index
    %312 = vector.load %arg35[%c0_216, %c0_217, %c0_218] : memref<9x1x384xf32, #tpu.memory_space<vmem>>, vector<1x1x384xf32>
    %313 = vector.shape_cast %312 : vector<1x1x384xf32> to vector<1x384xf32>
    %314 = vector.broadcast %313 : vector<1x384xf32> to vector<4x384xf32>
    %315 = arith.mulf %311, %314 : vector<4x384xf32>
    %c1_219 = arith.constant 1 : index
    %c0_220 = arith.constant 0 : index
    %c0_221 = arith.constant 0 : index
    %316 = vector.load %arg34[%c1_219, %c0_220, %c0_221] : memref<9x4x16xbf16, #tpu.memory_space<vmem>>, vector<1x4x16xbf16>
    %317 = vector.shape_cast %316 : vector<1x4x16xbf16> to vector<4x16xbf16>
    %cst_222 = arith.constant dense<0.000000e+00> : vector<4x384xf32>
    %318 = tpu.matmul %317, %308, %cst_222 {dimension_numbers = #tpu.dot_dimension_numbers<[1], [0], [0], [1], [0, 0, 1, 1], [], []>} : vector<4x16xbf16>, vector<16x384xbf16>, vector<4x384xf32> -> vector<4x384xf32>
    %c1_223 = arith.constant 1 : index
    %c0_224 = arith.constant 0 : index
    %c0_225 = arith.constant 0 : index
    %319 = vector.load %arg35[%c1_223, %c0_224, %c0_225] : memref<9x1x384xf32, #tpu.memory_space<vmem>>, vector<1x1x384xf32>
    %320 = vector.shape_cast %319 : vector<1x1x384xf32> to vector<1x384xf32>
    %321 = vector.broadcast %320 : vector<1x384xf32> to vector<4x384xf32>
    %322 = arith.mulf %318, %321 : vector<4x384xf32>
    %323 = arith.addf %315, %322 : vector<4x384xf32>
    %c2_226 = arith.constant 2 : index
    %c0_227 = arith.constant 0 : index
    %c0_228 = arith.constant 0 : index
    %324 = vector.load %arg34[%c2_226, %c0_227, %c0_228] : memref<9x4x16xbf16, #tpu.memory_space<vmem>>, vector<1x4x16xbf16>
    %325 = vector.shape_cast %324 : vector<1x4x16xbf16> to vector<4x16xbf16>
    %cst_229 = arith.constant dense<0.000000e+00> : vector<4x384xf32>
    %326 = tpu.matmul %325, %308, %cst_229 {dimension_numbers = #tpu.dot_dimension_numbers<[1], [0], [0], [1], [0, 0, 1, 1], [], []>} : vector<4x16xbf16>, vector<16x384xbf16>, vector<4x384xf32> -> vector<4x384xf32>
    %c2_230 = arith.constant 2 : index
    %c0_231 = arith.constant 0 : index
    %c0_232 = arith.constant 0 : index
    %327 = vector.load %arg35[%c2_230, %c0_231, %c0_232] : memref<9x1x384xf32, #tpu.memory_space<vmem>>, vector<1x1x384xf32>
    %328 = vector.shape_cast %327 : vector<1x1x384xf32> to vector<1x384xf32>
    %329 = vector.broadcast %328 : vector<1x384xf32> to vector<4x384xf32>
    %330 = arith.mulf %326, %329 : vector<4x384xf32>
    %331 = arith.addf %323, %330 : vector<4x384xf32>
    %c3_233 = arith.constant 3 : index
    %c0_234 = arith.constant 0 : index
    %c0_235 = arith.constant 0 : index
    %332 = vector.load %arg34[%c3_233, %c0_234, %c0_235] : memref<9x4x16xbf16, #tpu.memory_space<vmem>>, vector<1x4x16xbf16>
    %333 = vector.shape_cast %332 : vector<1x4x16xbf16> to vector<4x16xbf16>
    %cst_236 = arith.constant dense<0.000000e+00> : vector<4x384xf32>
    %334 = tpu.matmul %333, %308, %cst_236 {dimension_numbers = #tpu.dot_dimension_numbers<[1], [0], [0], [1], [0, 0, 1, 1], [], []>} : vector<4x16xbf16>, vector<16x384xbf16>, vector<4x384xf32> -> vector<4x384xf32>
    %c3_237 = arith.constant 3 : index
    %c0_238 = arith.constant 0 : index
    %c0_239 = arith.constant 0 : index
    %335 = vector.load %arg35[%c3_237, %c0_238, %c0_239] : memref<9x1x384xf32, #tpu.memory_space<vmem>>, vector<1x1x384xf32>
    %336 = vector.shape_cast %335 : vector<1x1x384xf32> to vector<1x384xf32>
    %337 = vector.broadcast %336 : vector<1x384xf32> to vector<4x384xf32>
    %338 = arith.mulf %334, %337 : vector<4x384xf32>
    %339 = arith.addf %331, %338 : vector<4x384xf32>
    %c4_240 = arith.constant 4 : index
    %c0_241 = arith.constant 0 : index
    %c0_242 = arith.constant 0 : index
    %340 = vector.load %arg34[%c4_240, %c0_241, %c0_242] : memref<9x4x16xbf16, #tpu.memory_space<vmem>>, vector<1x4x16xbf16>
    %341 = vector.shape_cast %340 : vector<1x4x16xbf16> to vector<4x16xbf16>
    %cst_243 = arith.constant dense<0.000000e+00> : vector<4x384xf32>
    %342 = tpu.matmul %341, %308, %cst_243 {dimension_numbers = #tpu.dot_dimension_numbers<[1], [0], [0], [1], [0, 0, 1, 1], [], []>} : vector<4x16xbf16>, vector<16x384xbf16>, vector<4x384xf32> -> vector<4x384xf32>
    %c4_244 = arith.constant 4 : index
    %c0_245 = arith.constant 0 : index
    %c0_246 = arith.constant 0 : index
    %343 = vector.load %arg35[%c4_244, %c0_245, %c0_246] : memref<9x1x384xf32, #tpu.memory_space<vmem>>, vector<1x1x384xf32>
    %344 = vector.shape_cast %343 : vector<1x1x384xf32> to vector<1x384xf32>
    %345 = vector.broadcast %344 : vector<1x384xf32> to vector<4x384xf32>
    %346 = arith.mulf %342, %345 : vector<4x384xf32>
    %347 = arith.addf %339, %346 : vector<4x384xf32>
    %c5_247 = arith.constant 5 : index
    %c0_248 = arith.constant 0 : index
    %c0_249 = arith.constant 0 : index
    %348 = vector.load %arg34[%c5_247, %c0_248, %c0_249] : memref<9x4x16xbf16, #tpu.memory_space<vmem>>, vector<1x4x16xbf16>
    %349 = vector.shape_cast %348 : vector<1x4x16xbf16> to vector<4x16xbf16>
    %cst_250 = arith.constant dense<0.000000e+00> : vector<4x384xf32>
    %350 = tpu.matmul %349, %308, %cst_250 {dimension_numbers = #tpu.dot_dimension_numbers<[1], [0], [0], [1], [0, 0, 1, 1], [], []>} : vector<4x16xbf16>, vector<16x384xbf16>, vector<4x384xf32> -> vector<4x384xf32>
    %c5_251 = arith.constant 5 : index
    %c0_252 = arith.constant 0 : index
    %c0_253 = arith.constant 0 : index
    %351 = vector.load %arg35[%c5_251, %c0_252, %c0_253] : memref<9x1x384xf32, #tpu.memory_space<vmem>>, vector<1x1x384xf32>
    %352 = vector.shape_cast %351 : vector<1x1x384xf32> to vector<1x384xf32>
    %353 = vector.broadcast %352 : vector<1x384xf32> to vector<4x384xf32>
    %354 = arith.mulf %350, %353 : vector<4x384xf32>
    %355 = arith.addf %347, %354 : vector<4x384xf32>
    %c6_254 = arith.constant 6 : index
    %c0_255 = arith.constant 0 : index
    %c0_256 = arith.constant 0 : index
    %356 = vector.load %arg34[%c6_254, %c0_255, %c0_256] : memref<9x4x16xbf16, #tpu.memory_space<vmem>>, vector<1x4x16xbf16>
    %357 = vector.shape_cast %356 : vector<1x4x16xbf16> to vector<4x16xbf16>
    %cst_257 = arith.constant dense<0.000000e+00> : vector<4x384xf32>
    %358 = tpu.matmul %357, %308, %cst_257 {dimension_numbers = #tpu.dot_dimension_numbers<[1], [0], [0], [1], [0, 0, 1, 1], [], []>} : vector<4x16xbf16>, vector<16x384xbf16>, vector<4x384xf32> -> vector<4x384xf32>
    %c6_258 = arith.constant 6 : index
    %c0_259 = arith.constant 0 : index
    %c0_260 = arith.constant 0 : index
    %359 = vector.load %arg35[%c6_258, %c0_259, %c0_260] : memref<9x1x384xf32, #tpu.memory_space<vmem>>, vector<1x1x384xf32>
    %360 = vector.shape_cast %359 : vector<1x1x384xf32> to vector<1x384xf32>
    %361 = vector.broadcast %360 : vector<1x384xf32> to vector<4x384xf32>
    %362 = arith.mulf %358, %361 : vector<4x384xf32>
    %363 = arith.addf %355, %362 : vector<4x384xf32>
    %c7_261 = arith.constant 7 : index
    %c0_262 = arith.constant 0 : index
    %c0_263 = arith.constant 0 : index
    %364 = vector.load %arg34[%c7_261, %c0_262, %c0_263] : memref<9x4x16xbf16, #tpu.memory_space<vmem>>, vector<1x4x16xbf16>
    %365 = vector.shape_cast %364 : vector<1x4x16xbf16> to vector<4x16xbf16>
    %cst_264 = arith.constant dense<0.000000e+00> : vector<4x384xf32>
    %366 = tpu.matmul %365, %308, %cst_264 {dimension_numbers = #tpu.dot_dimension_numbers<[1], [0], [0], [1], [0, 0, 1, 1], [], []>} : vector<4x16xbf16>, vector<16x384xbf16>, vector<4x384xf32> -> vector<4x384xf32>
    %c7_265 = arith.constant 7 : index
    %c0_266 = arith.constant 0 : index
    %c0_267 = arith.constant 0 : index
    %367 = vector.load %arg35[%c7_265, %c0_266, %c0_267] : memref<9x1x384xf32, #tpu.memory_space<vmem>>, vector<1x1x384xf32>
    %368 = vector.shape_cast %367 : vector<1x1x384xf32> to vector<1x384xf32>
    %369 = vector.broadcast %368 : vector<1x384xf32> to vector<4x384xf32>
    %370 = arith.mulf %366, %369 : vector<4x384xf32>
    %371 = arith.addf %363, %370 : vector<4x384xf32>
    %c8_268 = arith.constant 8 : index
    %c0_269 = arith.constant 0 : index
    %c0_270 = arith.constant 0 : index
    %372 = vector.load %arg34[%c8_268, %c0_269, %c0_270] : memref<9x4x16xbf16, #tpu.memory_space<vmem>>, vector<1x4x16xbf16>
    %373 = vector.shape_cast %372 : vector<1x4x16xbf16> to vector<4x16xbf16>
    %cst_271 = arith.constant dense<0.000000e+00> : vector<4x384xf32>
    %374 = tpu.matmul %373, %308, %cst_271 {dimension_numbers = #tpu.dot_dimension_numbers<[1], [0], [0], [1], [0, 0, 1, 1], [], []>} : vector<4x16xbf16>, vector<16x384xbf16>, vector<4x384xf32> -> vector<4x384xf32>
    %c8_272 = arith.constant 8 : index
    %c0_273 = arith.constant 0 : index
    %c0_274 = arith.constant 0 : index
    %375 = vector.load %arg35[%c8_272, %c0_273, %c0_274] : memref<9x1x384xf32, #tpu.memory_space<vmem>>, vector<1x1x384xf32>
    %376 = vector.shape_cast %375 : vector<1x1x384xf32> to vector<1x384xf32>
    %377 = vector.broadcast %376 : vector<1x384xf32> to vector<4x384xf32>
    %378 = arith.mulf %374, %377 : vector<4x384xf32>
    %379 = arith.addf %371, %378 : vector<4x384xf32>
    %c0_275 = arith.constant 0 : index
    %c0_276 = arith.constant 0 : index
    %380 = vector.load %arg36[%c0_275, %c0_276] : memref<1x384xf32, #tpu.memory_space<vmem>>, vector<1x384xf32>
    %381 = vector.broadcast %380 : vector<1x384xf32> to vector<4x384xf32>
    %382 = arith.mulf %379, %381 : vector<4x384xf32>
    %c0_277 = arith.constant 0 : index
    %c0_278 = arith.constant 0 : index
    %383 = vector.load %arg37[%c0_277, %c0_278] : memref<1x384xf32, #tpu.memory_space<vmem>>, vector<1x384xf32>
    %384 = vector.broadcast %383 : vector<1x384xf32> to vector<4x384xf32>
    %385 = arith.addf %382, %384 : vector<4x384xf32>
    %cst_279 = arith.constant 0.000000e+00 : f32
    %386 = vector.broadcast %cst_279 : f32 to vector<4x384xf32>
    %387 = arith.cmpf ogt, %385, %386 : vector<4x384xf32>
    %cst_280 = arith.constant 3.000000e-01 : f32
    %388 = vector.broadcast %cst_280 : f32 to vector<4x384xf32>
    %389 = arith.mulf %388, %385 : vector<4x384xf32>
    %390 = arith.select %387, %385, %389 : vector<4x384xi1>, vector<4x384xf32>
    %cst_281 = arith.constant dense<0.000000e+00> : vector<384xf32>
    %391 = vector.multi_reduction <add>, %390, %cst_281 [0] : vector<4x384xf32> to vector<384xf32>
    %392 = vector.shape_cast %391 : vector<384xf32> to vector<1x384xf32>
    %cst_282 = arith.constant 4.000000e+00 : f32
    %393 = vector.broadcast %cst_282 : f32 to vector<1x384xf32>
    %394 = arith.divf %392, %393 : vector<1x384xf32>
    %c0_283 = arith.constant 0 : index
    %c0_284 = arith.constant 0 : index
    %395 = vector.load %arg38[%c0_283, %c0_284] : memref<384x96xbf16, #tpu.memory_space<vmem>>, vector<384x96xbf16>
    %396 = arith.truncf %394 : vector<1x384xf32> to vector<1x384xbf16>
    %cst_285 = arith.constant dense<0.000000e+00> : vector<1x96xf32>
    %397 = tpu.matmul %396, %395, %cst_285 {dimension_numbers = #tpu.dot_dimension_numbers<[1], [0], [0], [1], [0, 0, 1, 1], [], []>} : vector<1x384xbf16>, vector<384x96xbf16>, vector<1x96xf32> -> vector<1x96xf32>
    %c0_286 = arith.constant 0 : index
    %c0_287 = arith.constant 0 : index
    %398 = vector.load %arg39[%c0_286, %c0_287] : memref<1x96xf32, #tpu.memory_space<vmem>>, vector<1x96xf32>
    %399 = arith.addf %397, %398 : vector<1x96xf32>
    %cst_288 = arith.constant 0.000000e+00 : f32
    %400 = vector.broadcast %cst_288 : f32 to vector<1x96xf32>
    %401 = arith.cmpf ogt, %399, %400 : vector<1x96xf32>
    %cst_289 = arith.constant 3.000000e-01 : f32
    %402 = vector.broadcast %cst_289 : f32 to vector<1x96xf32>
    %403 = arith.mulf %402, %399 : vector<1x96xf32>
    %404 = arith.select %401, %399, %403 : vector<1x96xi1>, vector<1x96xf32>
    %c0_290 = arith.constant 0 : index
    %c0_291 = arith.constant 0 : index
    %405 = vector.load %arg40[%c0_290, %c0_291] : memref<96x384xbf16, #tpu.memory_space<vmem>>, vector<96x384xbf16>
    %406 = arith.truncf %404 : vector<1x96xf32> to vector<1x96xbf16>
    %cst_292 = arith.constant dense<0.000000e+00> : vector<1x384xf32>
    %407 = tpu.matmul %406, %405, %cst_292 {dimension_numbers = #tpu.dot_dimension_numbers<[1], [0], [0], [1], [0, 0, 1, 1], [], []>} : vector<1x96xbf16>, vector<96x384xbf16>, vector<1x384xf32> -> vector<1x384xf32>
    %c0_293 = arith.constant 0 : index
    %c0_294 = arith.constant 0 : index
    %408 = vector.load %arg41[%c0_293, %c0_294] : memref<1x384xf32, #tpu.memory_space<vmem>>, vector<1x384xf32>
    %409 = arith.addf %407, %408 : vector<1x384xf32>
    %410 = arith.negf %409 : vector<1x384xf32>
    %411 = math.exp %410 : vector<1x384xf32>
    %cst_295 = arith.constant 1.000000e+00 : f32
    %412 = vector.broadcast %cst_295 : f32 to vector<1x384xf32>
    %413 = arith.addf %412, %411 : vector<1x384xf32>
    %414 = arith.divf %412, %413 : vector<1x384xf32>
    %415 = vector.broadcast %414 : vector<1x384xf32> to vector<4x384xf32>
    %416 = arith.mulf %390, %415 : vector<4x384xf32>
    %c0_296 = arith.constant 0 : index
    %c0_297 = arith.constant 0 : index
    %417 = vector.load %arg42[%c0_296, %c0_297] : memref<384x128xbf16, #tpu.memory_space<vmem>>, vector<384x128xbf16>
    %418 = arith.truncf %416 : vector<4x384xf32> to vector<4x384xbf16>
    %cst_298 = arith.constant dense<0.000000e+00> : vector<4x128xf32>
    %419 = tpu.matmul %418, %417, %cst_298 {dimension_numbers = #tpu.dot_dimension_numbers<[1], [0], [0], [1], [0, 0, 1, 1], [], []>} : vector<4x384xbf16>, vector<384x128xbf16>, vector<4x128xf32> -> vector<4x128xf32>
    %c0_299 = arith.constant 0 : index
    %c0_300 = arith.constant 0 : index
    %420 = vector.load %arg43[%c0_299, %c0_300] : memref<1x128xf32, #tpu.memory_space<vmem>>, vector<1x128xf32>
    %421 = vector.broadcast %420 : vector<1x128xf32> to vector<4x128xf32>
    %422 = arith.mulf %419, %421 : vector<4x128xf32>
    %c0_301 = arith.constant 0 : index
    %c0_302 = arith.constant 0 : index
    %423 = vector.load %arg44[%c0_301, %c0_302] : memref<1x128xf32, #tpu.memory_space<vmem>>, vector<1x128xf32>
    %424 = vector.broadcast %423 : vector<1x128xf32> to vector<4x128xf32>
    %425 = arith.addf %422, %424 : vector<4x128xf32>
    %c0_303 = arith.constant 0 : index
    %c0_304 = arith.constant 0 : index
    %426 = vector.load %arg46[%c0_303, %c0_304] : memref<1x256xf32, #tpu.memory_space<vmem>>, vector<1x256xf32>
    %427 = arith.truncf %425 : vector<4x128xf32> to vector<4x128xbf16>
    %428 = tpu.iota {dimensions = array<i32: 1>} : vector<1x4xi32>
    %c0_i32 = arith.constant 0 : i32
    %429 = vector.broadcast %c0_i32 : i32 to vector<1x4xi32>
    %430 = arith.cmpi eq, %428, %429 : vector<1x4xi32>
    %431 = arith.extui %430 : vector<1x4xi1> to vector<1x4xi32>
    %432 = arith.sitofp %431 : vector<1x4xi32> to vector<1x4xf32>
    %433 = arith.truncf %432 : vector<1x4xf32> to vector<1x4xbf16>
    %cst_305 = arith.constant dense<0.000000e+00> : vector<1x128xf32>
    %434 = tpu.matmul %433, %427, %cst_305 {dimension_numbers = #tpu.dot_dimension_numbers<[1], [0], [0], [1], [0, 0, 1, 1], [], []>} : vector<1x4xbf16>, vector<4x128xbf16>, vector<1x128xf32> -> vector<1x128xf32>
    %c0_306 = arith.constant 0 : index
    %c0_307 = arith.constant 0 : index
    %c0_308 = arith.constant 0 : index
    %435 = vector.load %arg45[%c0_306, %c0_307, %c0_308] : memref<4x128x256xbf16, #tpu.memory_space<vmem>>, vector<1x128x256xbf16>
    %436 = vector.shape_cast %435 : vector<1x128x256xbf16> to vector<128x256xbf16>
    %437 = arith.truncf %434 : vector<1x128xf32> to vector<1x128xbf16>
    %cst_309 = arith.constant dense<0.000000e+00> : vector<1x256xf32>
    %438 = tpu.matmul %437, %436, %cst_309 {dimension_numbers = #tpu.dot_dimension_numbers<[1], [0], [0], [1], [0, 0, 1, 1], [], []>} : vector<1x128xbf16>, vector<128x256xbf16>, vector<1x256xf32> -> vector<1x256xf32>
    %439 = arith.addf %426, %438 : vector<1x256xf32>
    %440 = tpu.iota {dimensions = array<i32: 1>} : vector<1x4xi32>
    %c1_i32 = arith.constant 1 : i32
    %441 = vector.broadcast %c1_i32 : i32 to vector<1x4xi32>
    %442 = arith.cmpi eq, %440, %441 : vector<1x4xi32>
    %443 = arith.extui %442 : vector<1x4xi1> to vector<1x4xi32>
    %444 = arith.sitofp %443 : vector<1x4xi32> to vector<1x4xf32>
    %445 = arith.truncf %444 : vector<1x4xf32> to vector<1x4xbf16>
    %cst_310 = arith.constant dense<0.000000e+00> : vector<1x128xf32>
    %446 = tpu.matmul %445, %427, %cst_310 {dimension_numbers = #tpu.dot_dimension_numbers<[1], [0], [0], [1], [0, 0, 1, 1], [], []>} : vector<1x4xbf16>, vector<4x128xbf16>, vector<1x128xf32> -> vector<1x128xf32>
    %c1_311 = arith.constant 1 : index
    %c0_312 = arith.constant 0 : index
    %c0_313 = arith.constant 0 : index
    %447 = vector.load %arg45[%c1_311, %c0_312, %c0_313] : memref<4x128x256xbf16, #tpu.memory_space<vmem>>, vector<1x128x256xbf16>
    %448 = vector.shape_cast %447 : vector<1x128x256xbf16> to vector<128x256xbf16>
    %449 = arith.truncf %446 : vector<1x128xf32> to vector<1x128xbf16>
    %cst_314 = arith.constant dense<0.000000e+00> : vector<1x256xf32>
    %450 = tpu.matmul %449, %448, %cst_314 {dimension_numbers = #tpu.dot_dimension_numbers<[1], [0], [0], [1], [0, 0, 1, 1], [], []>} : vector<1x128xbf16>, vector<128x256xbf16>, vector<1x256xf32> -> vector<1x256xf32>
    %451 = arith.addf %439, %450 : vector<1x256xf32>
    %452 = tpu.iota {dimensions = array<i32: 1>} : vector<1x4xi32>
    %c2_i32 = arith.constant 2 : i32
    %453 = vector.broadcast %c2_i32 : i32 to vector<1x4xi32>
    %454 = arith.cmpi eq, %452, %453 : vector<1x4xi32>
    %455 = arith.extui %454 : vector<1x4xi1> to vector<1x4xi32>
    %456 = arith.sitofp %455 : vector<1x4xi32> to vector<1x4xf32>
    %457 = arith.truncf %456 : vector<1x4xf32> to vector<1x4xbf16>
    %cst_315 = arith.constant dense<0.000000e+00> : vector<1x128xf32>
    %458 = tpu.matmul %457, %427, %cst_315 {dimension_numbers = #tpu.dot_dimension_numbers<[1], [0], [0], [1], [0, 0, 1, 1], [], []>} : vector<1x4xbf16>, vector<4x128xbf16>, vector<1x128xf32> -> vector<1x128xf32>
    %c2_316 = arith.constant 2 : index
    %c0_317 = arith.constant 0 : index
    %c0_318 = arith.constant 0 : index
    %459 = vector.load %arg45[%c2_316, %c0_317, %c0_318] : memref<4x128x256xbf16, #tpu.memory_space<vmem>>, vector<1x128x256xbf16>
    %460 = vector.shape_cast %459 : vector<1x128x256xbf16> to vector<128x256xbf16>
    %461 = arith.truncf %458 : vector<1x128xf32> to vector<1x128xbf16>
    %cst_319 = arith.constant dense<0.000000e+00> : vector<1x256xf32>
    %462 = tpu.matmul %461, %460, %cst_319 {dimension_numbers = #tpu.dot_dimension_numbers<[1], [0], [0], [1], [0, 0, 1, 1], [], []>} : vector<1x128xbf16>, vector<128x256xbf16>, vector<1x256xf32> -> vector<1x256xf32>
    %463 = arith.addf %451, %462 : vector<1x256xf32>
    %464 = tpu.iota {dimensions = array<i32: 1>} : vector<1x4xi32>
    %c3_i32 = arith.constant 3 : i32
    %465 = vector.broadcast %c3_i32 : i32 to vector<1x4xi32>
    %466 = arith.cmpi eq, %464, %465 : vector<1x4xi32>
    %467 = arith.extui %466 : vector<1x4xi1> to vector<1x4xi32>
    %468 = arith.sitofp %467 : vector<1x4xi32> to vector<1x4xf32>
    %469 = arith.truncf %468 : vector<1x4xf32> to vector<1x4xbf16>
    %cst_320 = arith.constant dense<0.000000e+00> : vector<1x128xf32>
    %470 = tpu.matmul %469, %427, %cst_320 {dimension_numbers = #tpu.dot_dimension_numbers<[1], [0], [0], [1], [0, 0, 1, 1], [], []>} : vector<1x4xbf16>, vector<4x128xbf16>, vector<1x128xf32> -> vector<1x128xf32>
    %c3_321 = arith.constant 3 : index
    %c0_322 = arith.constant 0 : index
    %c0_323 = arith.constant 0 : index
    %471 = vector.load %arg45[%c3_321, %c0_322, %c0_323] : memref<4x128x256xbf16, #tpu.memory_space<vmem>>, vector<1x128x256xbf16>
    %472 = vector.shape_cast %471 : vector<1x128x256xbf16> to vector<128x256xbf16>
    %473 = arith.truncf %470 : vector<1x128xf32> to vector<1x128xbf16>
    %cst_324 = arith.constant dense<0.000000e+00> : vector<1x256xf32>
    %474 = tpu.matmul %473, %472, %cst_324 {dimension_numbers = #tpu.dot_dimension_numbers<[1], [0], [0], [1], [0, 0, 1, 1], [], []>} : vector<1x128xbf16>, vector<128x256xbf16>, vector<1x256xf32> -> vector<1x256xf32>
    %475 = arith.addf %463, %474 : vector<1x256xf32>
    %cst_325 = arith.constant 0.000000e+00 : f32
    %476 = vector.broadcast %cst_325 : f32 to vector<1x256xf32>
    %477 = arith.cmpf ogt, %475, %476 : vector<1x256xf32>
    %cst_326 = arith.constant 3.000000e-01 : f32
    %478 = vector.broadcast %cst_326 : f32 to vector<1x256xf32>
    %479 = arith.mulf %478, %475 : vector<1x256xf32>
    %480 = arith.select %477, %475, %479 : vector<1x256xi1>, vector<1x256xf32>
    %c0_327 = arith.constant 0 : index
    %c0_328 = arith.constant 0 : index
    %481 = vector.load %arg47[%c0_327, %c0_328] : memref<256x256xbf16, #tpu.memory_space<vmem>>, vector<256x256xbf16>
    %482 = arith.truncf %480 : vector<1x256xf32> to vector<1x256xbf16>
    %cst_329 = arith.constant dense<0.000000e+00> : vector<1x256xf32>
    %483 = tpu.matmul %482, %481, %cst_329 {dimension_numbers = #tpu.dot_dimension_numbers<[1], [0], [0], [1], [0, 0, 1, 1], [], []>} : vector<1x256xbf16>, vector<256x256xbf16>, vector<1x256xf32> -> vector<1x256xf32>
    %c0_330 = arith.constant 0 : index
    %c0_331 = arith.constant 0 : index
    %484 = vector.load %arg48[%c0_330, %c0_331] : memref<1x256xf32, #tpu.memory_space<vmem>>, vector<1x256xf32>
    %485 = arith.addf %483, %484 : vector<1x256xf32>
    %cst_332 = arith.constant 0.000000e+00 : f32
    %486 = vector.broadcast %cst_332 : f32 to vector<1x256xf32>
    %487 = arith.cmpf ogt, %485, %486 : vector<1x256xf32>
    %cst_333 = arith.constant 3.000000e-01 : f32
    %488 = vector.broadcast %cst_333 : f32 to vector<1x256xf32>
    %489 = arith.mulf %488, %485 : vector<1x256xf32>
    %490 = arith.select %487, %485, %489 : vector<1x256xi1>, vector<1x256xf32>
    %c0_334 = arith.constant 0 : index
    %c0_335 = arith.constant 0 : index
    %491 = vector.load %arg49[%c0_334, %c0_335] : memref<256x11xbf16, #tpu.memory_space<vmem>>, vector<256x11xbf16>
    %492 = arith.truncf %490 : vector<1x256xf32> to vector<1x256xbf16>
    %cst_336 = arith.constant dense<0.000000e+00> : vector<1x11xf32>
    %493 = tpu.matmul %492, %491, %cst_336 {dimension_numbers = #tpu.dot_dimension_numbers<[1], [0], [0], [1], [0, 0, 1, 1], [], []>} : vector<1x256xbf16>, vector<256x11xbf16>, vector<1x11xf32> -> vector<1x11xf32>
    %c0_337 = arith.constant 0 : index
    %c0_338 = arith.constant 0 : index
    %494 = vector.load %arg50[%c0_337, %c0_338] : memref<1x11xf32, #tpu.memory_space<vmem>>, vector<1x11xf32>
    %495 = arith.addf %493, %494 : vector<1x11xf32>
    %cst_339 = arith.constant dense<0xFF800000> : vector<1xf32>
    %496 = vector.multi_reduction <maximumf>, %495, %cst_339 [1] : vector<1x11xf32> to vector<1xf32>
    %497 = vector.shape_cast %496 : vector<1xf32> to vector<1x1xf32>
    %498 = vector.broadcast %497 : vector<1x1xf32> to vector<1x11xf32>
    %499 = arith.subf %495, %498 : vector<1x11xf32>
    %500 = math.exp %499 : vector<1x11xf32>
    %cst_340 = arith.constant dense<0.000000e+00> : vector<1xf32>
    %501 = vector.multi_reduction <add>, %500, %cst_340 [1] : vector<1x11xf32> to vector<1xf32>
    %502 = vector.shape_cast %501 : vector<1xf32> to vector<1x1xf32>
    %503 = math.log %502 : vector<1x1xf32>
    %504 = vector.broadcast %503 : vector<1x1xf32> to vector<1x11xf32>
    %505 = arith.subf %499, %504 : vector<1x11xf32>
    %c0_341 = arith.constant 0 : index
    %c0_342 = arith.constant 0 : index
    %c0_343 = arith.constant 0 : index
    %506 = vector.load %arg51[%c0_341, %c0_342, %c0_343] : memref<1x1x11xf32, #tpu.memory_space<vmem>>, vector<1x1x11xf32>
    %507 = vector.shape_cast %506 : vector<1x1x11xf32> to vector<1x11xf32>
    %508 = vector.shape_cast %505 : vector<1x11xf32> to vector<1x1x11xf32>
    tpu.vector_store %arg51[%c0_341, %c0_342, %c0_343], %508 {strides = array<i32>} : memref<1x1x11xf32, #tpu.memory_space<vmem>>, vector<1x1x11xf32>,
    return
  }
  func.func @transform_0(%arg0: i32) -> (i32, i32, i32, i32) {
    %c0_i32 = arith.constant 0 : i32
    %c0_i32_0 = arith.constant 0 : i32
    %c0_i32_1 = arith.constant 0 : i32
    %c0_i32_2 = arith.constant 0 : i32
    return %arg0, %c0_i32, %c0_i32_0, %c0_i32_1 : i32, i32, i32, i32
  }
  func.func @transform_1(%arg0: i32) -> (i32, i32, i32) {
    %c0_i32 = arith.constant 0 : i32
    %c0_i32_0 = arith.constant 0 : i32
    %c0_i32_1 = arith.constant 0 : i32
    return %arg0, %c0_i32, %c0_i32_0 : i32, i32, i32
  }
  func.func @transform_2(%arg0: i32) -> (i32, i32, i32) {
    %c0_i32 = arith.constant 0 : i32
    %c0_i32_0 = arith.constant 0 : i32
    %c0_i32_1 = arith.constant 0 : i32
    %c0_i32_2 = arith.constant 0 : i32
    return %c0_i32, %c0_i32_0, %c0_i32_1 : i32, i32, i32
  }
  func.func @transform_3(%arg0: i32) -> (i32, i32) {
    %c0_i32 = arith.constant 0 : i32
    %c0_i32_0 = arith.constant 0 : i32
    %c0_i32_1 = arith.constant 0 : i32
    return %c0_i32, %c0_i32_0 : i32, i32
  }
  func.func @transform_4(%arg0: i32) -> (i32, i32) {
    %c0_i32 = arith.constant 0 : i32
    %c0_i32_0 = arith.constant 0 : i32
    %c0_i32_1 = arith.constant 0 : i32
    return %c0_i32, %c0_i32_0 : i32, i32
  }
  func.func @transform_5(%arg0: i32) -> (i32, i32, i32) {
    %c0_i32 = arith.constant 0 : i32
    %c0_i32_0 = arith.constant 0 : i32
    %c0_i32_1 = arith.constant 0 : i32
    %c0_i32_2 = arith.constant 0 : i32
    return %c0_i32, %c0_i32_0, %c0_i32_1 : i32, i32, i32
  }
  func.func @transform_6(%arg0: i32) -> (i32, i32, i32) {
    %c0_i32 = arith.constant 0 : i32
    %c0_i32_0 = arith.constant 0 : i32
    %c0_i32_1 = arith.constant 0 : i32
    %c0_i32_2 = arith.constant 0 : i32
    return %c0_i32, %c0_i32_0, %c0_i32_1 : i32, i32, i32
  }
  func.func @transform_7(%arg0: i32) -> (i32, i32) {
    %c0_i32 = arith.constant 0 : i32
    %c0_i32_0 = arith.constant 0 : i32
    %c0_i32_1 = arith.constant 0 : i32
    return %c0_i32, %c0_i32_0 : i32, i32
  }
  func.func @transform_8(%arg0: i32) -> (i32, i32) {
    %c0_i32 = arith.constant 0 : i32
    %c0_i32_0 = arith.constant 0 : i32
    %c0_i32_1 = arith.constant 0 : i32
    return %c0_i32, %c0_i32_0 : i32, i32
  }
  func.func @transform_9(%arg0: i32) -> (i32, i32) {
    %c0_i32 = arith.constant 0 : i32
    %c0_i32_0 = arith.constant 0 : i32
    %c0_i32_1 = arith.constant 0 : i32
    return %c0_i32, %c0_i32_0 : i32, i32
  }
  func.func @transform_10(%arg0: i32) -> (i32, i32) {
    %c0_i32 = arith.constant 0 : i32
    %c0_i32_0 = arith.constant 0 : i32
    %c0_i32_1 = arith.constant 0 : i32
    return %c0_i32, %c0_i32_0 : i32, i32
  }
  func.func @transform_11(%arg0: i32) -> (i32, i32) {
    %c0_i32 = arith.constant 0 : i32
    %c0_i32_0 = arith.constant 0 : i32
    %c0_i32_1 = arith.constant 0 : i32
    return %c0_i32, %c0_i32_0 : i32, i32
  }
  func.func @transform_12(%arg0: i32) -> (i32, i32) {
    %c0_i32 = arith.constant 0 : i32
    %c0_i32_0 = arith.constant 0 : i32
    %c0_i32_1 = arith.constant 0 : i32
    return %c0_i32, %c0_i32_0 : i32, i32
  }
  func.func @transform_13(%arg0: i32) -> (i32, i32) {
    %c0_i32 = arith.constant 0 : i32
    %c0_i32_0 = arith.constant 0 : i32
    %c0_i32_1 = arith.constant 0 : i32
    return %c0_i32, %c0_i32_0 : i32, i32
  }
  func.func @transform_14(%arg0: i32) -> (i32, i32) {
    %c0_i32 = arith.constant 0 : i32
    %c0_i32_0 = arith.constant 0 : i32
    %c0_i32_1 = arith.constant 0 : i32
    return %c0_i32, %c0_i32_0 : i32, i32
  }
  func.func @transform_15(%arg0: i32) -> (i32, i32) {
    %c0_i32 = arith.constant 0 : i32
    %c0_i32_0 = arith.constant 0 : i32
    %c0_i32_1 = arith.constant 0 : i32
    return %c0_i32, %c0_i32_0 : i32, i32
  }
  func.func @transform_16(%arg0: i32) -> (i32, i32) {
    %c0_i32 = arith.constant 0 : i32
    %c0_i32_0 = arith.constant 0 : i32
    %c0_i32_1 = arith.constant 0 : i32
    return %c0_i32, %c0_i32_0 : i32, i32
  }
  func.func @transform_17(%arg0: i32) -> (i32, i32) {
    %c0_i32 = arith.constant 0 : i32
    %c0_i32_0 = arith.constant 0 : i32
    %c0_i32_1 = arith.constant 0 : i32
    return %c0_i32, %c0_i32_0 : i32, i32
  }
  func.func @transform_18(%arg0: i32) -> (i32, i32) {
    %c0_i32 = arith.constant 0 : i32
    %c0_i32_0 = arith.constant 0 : i32
    %c0_i32_1 = arith.constant 0 : i32
    return %c0_i32, %c0_i32_0 : i32, i32
  }
  func.func @transform_19(%arg0: i32) -> (i32, i32, i32) {
    %c0_i32 = arith.constant 0 : i32
    %c0_i32_0 = arith.constant 0 : i32
    %c0_i32_1 = arith.constant 0 : i32
    %c0_i32_2 = arith.constant 0 : i32
    return %c0_i32, %c0_i32_0, %c0_i32_1 : i32, i32, i32
  }
  func.func @transform_20(%arg0: i32) -> (i32, i32, i32) {
    %c0_i32 = arith.constant 0 : i32
    %c0_i32_0 = arith.constant 0 : i32
    %c0_i32_1 = arith.constant 0 : i32
    %c0_i32_2 = arith.constant 0 : i32
    return %c0_i32, %c0_i32_0, %c0_i32_1 : i32, i32, i32
  }
  func.func @transform_21(%arg0: i32) -> (i32, i32) {
    %c0_i32 = arith.constant 0 : i32
    %c0_i32_0 = arith.constant 0 : i32
    %c0_i32_1 = arith.constant 0 : i32
    return %c0_i32, %c0_i32_0 : i32, i32
  }
  func.func @transform_22(%arg0: i32) -> (i32, i32) {
    %c0_i32 = arith.constant 0 : i32
    %c0_i32_0 = arith.constant 0 : i32
    %c0_i32_1 = arith.constant 0 : i32
    return %c0_i32, %c0_i32_0 : i32, i32
  }
  func.func @transform_23(%arg0: i32) -> (i32, i32) {
    %c0_i32 = arith.constant 0 : i32
    %c0_i32_0 = arith.constant 0 : i32
    %c0_i32_1 = arith.constant 0 : i32
    return %c0_i32, %c0_i32_0 : i32, i32
  }
  func.func @transform_24(%arg0: i32) -> (i32, i32) {
    %c0_i32 = arith.constant 0 : i32
    %c0_i32_0 = arith.constant 0 : i32
    %c0_i32_1 = arith.constant 0 : i32
    return %c0_i32, %c0_i32_0 : i32, i32
  }
  func.func @transform_25(%arg0: i32) -> (i32, i32) {
    %c0_i32 = arith.constant 0 : i32
    %c0_i32_0 = arith.constant 0 : i32
    %c0_i32_1 = arith.constant 0 : i32
    return %c0_i32, %c0_i32_0 : i32, i32
  }
  func.func @transform_26(%arg0: i32) -> (i32, i32) {
    %c0_i32 = arith.constant 0 : i32
    %c0_i32_0 = arith.constant 0 : i32
    %c0_i32_1 = arith.constant 0 : i32
    return %c0_i32, %c0_i32_0 : i32, i32
  }
  func.func @transform_27(%arg0: i32) -> (i32, i32) {
    %c0_i32 = arith.constant 0 : i32
    %c0_i32_0 = arith.constant 0 : i32
    %c0_i32_1 = arith.constant 0 : i32
    return %c0_i32, %c0_i32_0 : i32, i32
  }
  func.func @transform_28(%arg0: i32) -> (i32, i32) {
    %c0_i32 = arith.constant 0 : i32
    %c0_i32_0 = arith.constant 0 : i32
    %c0_i32_1 = arith.constant 0 : i32
    return %c0_i32, %c0_i32_0 : i32, i32
  }
  func.func @transform_29(%arg0: i32) -> (i32, i32) {
    %c0_i32 = arith.constant 0 : i32
    %c0_i32_0 = arith.constant 0 : i32
    %c0_i32_1 = arith.constant 0 : i32
    return %c0_i32, %c0_i32_0 : i32, i32
  }
  func.func @transform_30(%arg0: i32) -> (i32, i32) {
    %c0_i32 = arith.constant 0 : i32
    %c0_i32_0 = arith.constant 0 : i32
    %c0_i32_1 = arith.constant 0 : i32
    return %c0_i32, %c0_i32_0 : i32, i32
  }
  func.func @transform_31(%arg0: i32) -> (i32, i32) {
    %c0_i32 = arith.constant 0 : i32
    %c0_i32_0 = arith.constant 0 : i32
    %c0_i32_1 = arith.constant 0 : i32
    return %c0_i32, %c0_i32_0 : i32, i32
  }
  func.func @transform_32(%arg0: i32) -> (i32, i32) {
    %c0_i32 = arith.constant 0 : i32
    %c0_i32_0 = arith.constant 0 : i32
    %c0_i32_1 = arith.constant 0 : i32
    return %c0_i32, %c0_i32_0 : i32, i32
  }
  func.func @transform_33(%arg0: i32) -> (i32, i32, i32) {
    %c0_i32 = arith.constant 0 : i32
    %c0_i32_0 = arith.constant 0 : i32
    %c0_i32_1 = arith.constant 0 : i32
    %c0_i32_2 = arith.constant 0 : i32
    return %c0_i32, %c0_i32_0, %c0_i32_1 : i32, i32, i32
  }
  func.func @transform_34(%arg0: i32) -> (i32, i32, i32) {
    %c0_i32 = arith.constant 0 : i32
    %c0_i32_0 = arith.constant 0 : i32
    %c0_i32_1 = arith.constant 0 : i32
    %c0_i32_2 = arith.constant 0 : i32
    return %c0_i32, %c0_i32_0, %c0_i32_1 : i32, i32, i32
  }
  func.func @transform_35(%arg0: i32) -> (i32, i32) {
    %c0_i32 = arith.constant 0 : i32
    %c0_i32_0 = arith.constant 0 : i32
    %c0_i32_1 = arith.constant 0 : i32
    return %c0_i32, %c0_i32_0 : i32, i32
  }
  func.func @transform_36(%arg0: i32) -> (i32, i32) {
    %c0_i32 = arith.constant 0 : i32
    %c0_i32_0 = arith.constant 0 : i32
    %c0_i32_1 = arith.constant 0 : i32
    return %c0_i32, %c0_i32_0 : i32, i32
  }
  func.func @transform_37(%arg0: i32) -> (i32, i32) {
    %c0_i32 = arith.constant 0 : i32
    %c0_i32_0 = arith.constant 0 : i32
    %c0_i32_1 = arith.constant 0 : i32
    return %c0_i32, %c0_i32_0 : i32, i32
  }
  func.func @transform_38(%arg0: i32) -> (i32, i32) {
    %c0_i32 = arith.constant 0 : i32
    %c0_i32_0 = arith.constant 0 : i32
    %c0_i32_1 = arith.constant 0 : i32
    return %c0_i32, %c0_i32_0 : i32, i32
  }
  func.func @transform_39(%arg0: i32) -> (i32, i32) {
    %c0_i32 = arith.constant 0 : i32
    %c0_i32_0 = arith.constant 0 : i32
    %c0_i32_1 = arith.constant 0 : i32
    return %c0_i32, %c0_i32_0 : i32, i32
  }
  func.func @transform_40(%arg0: i32) -> (i32, i32) {
    %c0_i32 = arith.constant 0 : i32
    %c0_i32_0 = arith.constant 0 : i32
    %c0_i32_1 = arith.constant 0 : i32
    return %c0_i32, %c0_i32_0 : i32, i32
  }
  func.func @transform_41(%arg0: i32) -> (i32, i32) {
    %c0_i32 = arith.constant 0 : i32
    %c0_i32_0 = arith.constant 0 : i32
    %c0_i32_1 = arith.constant 0 : i32
    return %c0_i32, %c0_i32_0 : i32, i32
  }
  func.func @transform_42(%arg0: i32) -> (i32, i32) {
    %c0_i32 = arith.constant 0 : i32
    %c0_i32_0 = arith.constant 0 : i32
    %c0_i32_1 = arith.constant 0 : i32
    return %c0_i32, %c0_i32_0 : i32, i32
  }
  func.func @transform_43(%arg0: i32) -> (i32, i32) {
    %c0_i32 = arith.constant 0 : i32
    %c0_i32_0 = arith.constant 0 : i32
    %c0_i32_1 = arith.constant 0 : i32
    return %c0_i32, %c0_i32_0 : i32, i32
  }
  func.func @transform_44(%arg0: i32) -> (i32, i32, i32) {
    %c0_i32 = arith.constant 0 : i32
    %c0_i32_0 = arith.constant 0 : i32
    %c0_i32_1 = arith.constant 0 : i32
    %c0_i32_2 = arith.constant 0 : i32
    return %c0_i32, %c0_i32_0, %c0_i32_1 : i32, i32, i32
  }
  func.func @transform_45(%arg0: i32) -> (i32, i32) {
    %c0_i32 = arith.constant 0 : i32
    %c0_i32_0 = arith.constant 0 : i32
    %c0_i32_1 = arith.constant 0 : i32
    return %c0_i32, %c0_i32_0 : i32, i32
  }
  func.func @transform_46(%arg0: i32) -> (i32, i32) {
    %c0_i32 = arith.constant 0 : i32
    %c0_i32_0 = arith.constant 0 : i32
    %c0_i32_1 = arith.constant 0 : i32
    return %c0_i32, %c0_i32_0 : i32, i32
  }
  func.func @transform_47(%arg0: i32) -> (i32, i32) {
    %c0_i32 = arith.constant 0 : i32
    %c0_i32_0 = arith.constant 0 : i32
    %c0_i32_1 = arith.constant 0 : i32
    return %c0_i32, %c0_i32_0 : i32, i32
  }
  func.func @transform_48(%arg0: i32) -> (i32, i32) {
    %c0_i32 = arith.constant 0 : i32
    %c0_i32_0 = arith.constant 0 : i32
    %c0_i32_1 = arith.constant 0 : i32
    return %c0_i32, %c0_i32_0 : i32, i32
  }
  func.func @transform_49(%arg0: i32) -> (i32, i32) {
    %c0_i32 = arith.constant 0 : i32
    %c0_i32_0 = arith.constant 0 : i32
    %c0_i32_1 = arith.constant 0 : i32
    return %c0_i32, %c0_i32_0 : i32, i32
  }
  func.func @transform_50(%arg0: i32) -> (i32, i32, i32) {
    %c0_i32 = arith.constant 0 : i32
    %c0_i32_0 = arith.constant 0 : i32
    %c0_i32_1 = arith.constant 0 : i32
    return %arg0, %c0_i32, %c0_i32_0 : i32, i32, i32
  }
}

</mosaic_0001>

<llo_original>
// kernel: course_progress_classifier.1
$region0: #{course_progress_classifier.1}
  #allocation0 [shape = 'u32[]', space=smem, size = 0x4, offset = 0x4, fixed_abs, tag = 'smem constant byte address 0x4 - core index']
  #allocation1 [shape = 'u32[144,128]{1,0:T(1,128)}', space=vmem, size = 0x12000, scoped, tag = 'internal scratch']
  %s0 = inlined_call_operand.smem [shape: u32[51], index: -1, kind: input, shape index: {}]
  %s1 = sld [smem:[%s0]]
  %s2 = scalar_lea.smem %s0, 1
  %s3 = sld [smem:[%s2]]
  %s4 = scalar_lea.smem %s0, 2
  %s5 = sld [smem:[%s4]]
  %s6 = scalar_lea.smem %s0, 3
  %s7 = sld [smem:[%s6]]
  %s8 = scalar_lea.smem %s0, 4
  %s9 = sld [smem:[%s8]]
  %s10 = scalar_lea.smem %s0, 5
  %s11 = sld [smem:[%s10]]
  %s12 = scalar_lea.smem %s0, 6
  %s13 = sld [smem:[%s12]]
  %s14 = scalar_lea.smem %s0, 7
  %s15 = sld [smem:[%s14]]
  %s16 = scalar_lea.smem %s0, 8
  %s17 = sld [smem:[%s16]]
  %s18 = scalar_lea.smem %s0, 9
  %s19 = sld [smem:[%s18]]
  %s20 = scalar_lea.smem %s0, 10
  %s21 = sld [smem:[%s20]]
  %s22 = scalar_lea.smem %s0, 11
  %s23 = sld [smem:[%s22]]
  %s24 = scalar_lea.smem %s0, 12
  %s25 = sld [smem:[%s24]]
  %s26 = scalar_lea.smem %s0, 13
  %s27 = sld [smem:[%s26]]
  %s28 = scalar_lea.smem %s0, 14
  %s29 = sld [smem:[%s28]]
  %s30 = scalar_lea.smem %s0, 15
  %s31 = sld [smem:[%s30]]
  %s32 = scalar_lea.smem %s0, 16
  %s33 = sld [smem:[%s32]]
  %s34 = scalar_lea.smem %s0, 17
  %s35 = sld [smem:[%s34]]
  %s36 = scalar_lea.smem %s0, 18
  %s37 = sld [smem:[%s36]]
  %s38 = scalar_lea.smem %s0, 19
  %s39 = sld [smem:[%s38]]
  %s40 = scalar_lea.smem %s0, 20
  %s41 = sld [smem:[%s40]]
  %s42 = scalar_lea.smem %s0, 21
  %s43 = sld [smem:[%s42]]
  %s44 = scalar_lea.smem %s0, 22
  %s45 = sld [smem:[%s44]]
  %s46 = scalar_lea.smem %s0, 23
  %s47 = sld [smem:[%s46]]
  %s48 = scalar_lea.smem %s0, 24
  %s49 = sld [smem:[%s48]]
  %s50 = scalar_lea.smem %s0, 25
  %s51 = sld [smem:[%s50]]
  %s52 = scalar_lea.smem %s0, 26
  %s53 = sld [smem:[%s52]]
  %s54 = scalar_lea.smem %s0, 27
  %s55 = sld [smem:[%s54]]
  %s56 = scalar_lea.smem %s0, 28
  %s57 = sld [smem:[%s56]]
  %s58 = scalar_lea.smem %s0, 29
  %s59 = sld [smem:[%s58]]
  %s60 = scalar_lea.smem %s0, 30
  %s61 = sld [smem:[%s60]]
  %s62 = scalar_lea.smem %s0, 31
  %s63 = sld [smem:[%s62]]
  %s64 = scalar_lea.smem %s0, 32
  %s65 = sld [smem:[%s64]]
  %s66 = scalar_lea.smem %s0, 33
  %s67 = sld [smem:[%s66]]
  %s68 = scalar_lea.smem %s0, 34
  %s69 = sld [smem:[%s68]]
  %s70 = scalar_lea.smem %s0, 35
  %s71 = sld [smem:[%s70]]
  %s72 = scalar_lea.smem %s0, 36
  %s73 = sld [smem:[%s72]]
  %s74 = scalar_lea.smem %s0, 37
  %s75 = sld [smem:[%s74]]
  %s76 = scalar_lea.smem %s0, 38
  %s77 = sld [smem:[%s76]]
  %s78 = scalar_lea.smem %s0, 39
  %s79 = sld [smem:[%s78]]
  %s80 = scalar_lea.smem %s0, 40
  %s81 = sld [smem:[%s80]]
  %s82 = scalar_lea.smem %s0, 41
  %s83 = sld [smem:[%s82]]
  %s84 = scalar_lea.smem %s0, 42
  %s85 = sld [smem:[%s84]]
  %s86 = scalar_lea.smem %s0, 43
  %s87 = sld [smem:[%s86]]
  %s88 = scalar_lea.smem %s0, 44
  %s89 = sld [smem:[%s88]]
  %s90 = scalar_lea.smem %s0, 45
  %s91 = sld [smem:[%s90]]
  %s92 = scalar_lea.smem %s0, 46
  %s93 = sld [smem:[%s92]]
  %s94 = scalar_lea.smem %s0, 47
  %s95 = sld [smem:[%s94]]
  %s96 = scalar_lea.smem %s0, 48
  %s97 = sld [smem:[%s96]]
  %s98 = scalar_lea.smem %s0, 49
  %s99 = sld [smem:[%s98]]
  %s100 = scalar_lea.smem %s0, 50
  %s101 = sld [smem:[%s100]]
  %s102 = sld [smem:[#allocation0]]
  $region265: #{course_progress_classifier.1} parent=0
    _
  %s104 = ssub.s32 1, %s102
  %s105 = scalar_select 0, %s104, %s102
  $region1: #{course_progress_classifier.1} parent=0
    #allocation2 [shape = 'u8[512]{0}', space=vmem, size = 0x400, scoped, tag = 'input window, operand 15, single buffered']
    #allocation3 [shape = 's32[2]{0}', space=sflag, size = 0x8, scoped, tag = 'scoped memory for course_progress_classifier.1']
    #allocation4 [shape = 's32[2]{0}', space=sflag, size = 0x8, scoped, tag = 'scoped memory for course_progress_classifier.1']
    #allocation5 [shape = 'u8[512]{0}', space=vmem, size = 0x400, scoped, tag = 'input window, operand 24, single buffered']
    #allocation6 [shape = 's32[1]{0}', space=sflag, size = 0x4, scoped, tag = 'scoped memory for course_progress_classifier.1']
    #allocation7 [shape = 'u8[512]{0}', space=vmem, size = 0x400, scoped, tag = 'input window, operand 28, single buffered']
    #allocation8 [shape = 'u8[512]{0}', space=vmem, size = 0x400, scoped, tag = 'input window, operand 29, single buffered']
    #allocation9 [shape = 's32[1]{0}', space=sflag, size = 0x4, scoped, tag = 'scoped memory for course_progress_classifier.1']
    #allocation10 [shape = 'u8[512]{0}', space=vmem, size = 0x400, scoped, tag = 'input window, operand 38, single buffered']
    #allocation11 [shape = 'u8[512]{0}', space=vmem, size = 0x400, scoped, tag = 'input window, operand 42, single buffered']
    #allocation12 [shape = 's32[1]{0}', space=sflag, size = 0x4, scoped, tag = 'scoped memory for course_progress_classifier.1']
    #allocation13 [shape = 'u8[512]{0}', space=vmem, size = 0x400, scoped, tag = 'input window, operand 43, single buffered']
    #allocation14 [shape = 'u8[512]{0}', space=vmem, size = 0x400, scoped, tag = 'input window, operand 49, single buffered']
    #allocation15 [shape = 's32[1]{0}', space=sflag, size = 0x4, scoped, tag = 'scoped memory for course_progress_classifier.1']
    #allocation16 [shape = 'u8[1024]{0}', space=vmem, size = 0x400, scoped, tag = 'output window, operand 0']
    %106 = vsyncpa [#allocation3], 0
    %107 = vsyncpa [#allocation6], 0
    %108 = vsyncpa [#allocation9], 0
    %109 = vsyncpa [#allocation12], 0
    %110 = vsyncpa [#allocation15], 0
    %111 = vsyncpa [#allocation4], 0
    %s112 = scalar_lea.sflag [#allocation4], 1
    %113 = vsyncpa %s112, 0
    loop: start=0, step=1, limit=4
    $region2: #{course_progress_classifier.1} parent=1 // loop_pre_header
      _
    $region3: #{course_progress_classifier.1} parent=1 // loop_header
      %s115 = sphi 0, %s119
      %p116 = scmp.ge.s32.totalorder %s115, 4
      %s125 = sphi 0, %s127
      %s128 = sphi 0, %s125
      %s129 = sphi 0, %s128
      %s145 = sphi 0, %s129
      %s151 = sphi 0, %s153
      %s154 = sphi 0, %s151
      %s155 = sphi 0, %s154
      %s171 = sphi 0, %s155
      %s175 = sphi 0, %s175
      %s177 = sphi 0, %s175
      %s178 = sphi 0, %s177
      %s192 = sphi 0, %s178
      %s196 = sphi 0, %s196
      %s198 = sphi 0, %s196
      %s199 = sphi 0, %s198
      %s213 = sphi 0, %s199
      %s217 = sphi 0, %s217
      %s219 = sphi 0, %s217
      %s220 = sphi 0, %s219
      %s234 = sphi 0, %s220
      %s238 = sphi 0, %s238
      %s240 = sphi 0, %s238
      %s241 = sphi 0, %s240
      %s255 = sphi 0, %s241
      %s259 = sphi 0, %s259
      %s261 = sphi 0, %s259
      %s262 = sphi 0, %s261
      %s276 = sphi 0, %s262
      %s280 = sphi 0, %s280
      %s282 = sphi 0, %s280
      %s283 = sphi 0, %s282
      %s297 = sphi 0, %s283
      %s301 = sphi 0, %s301
      %s303 = sphi 0, %s301
      %s304 = sphi 0, %s303
      %s318 = sphi 0, %s304
      %s322 = sphi 0, %s322
      %s324 = sphi 0, %s322
      %s325 = sphi 0, %s324
      %s339 = sphi 0, %s325
      %s343 = sphi 0, %s343
      %s345 = sphi 0, %s343
      %s346 = sphi 0, %s345
      %s360 = sphi 0, %s346
      %s364 = sphi 0, %s364
      %s366 = sphi 0, %s364
      %s367 = sphi 0, %s366
      %s381 = sphi 0, %s367
      %s385 = sphi 0, %s385
      %s387 = sphi 0, %s385
      %s388 = sphi 0, %s387
      %s402 = sphi 0, %s388
      %s406 = sphi 0, %s406
      %s408 = sphi 0, %s406
      %s409 = sphi 0, %s408
      %s423 = sphi 0, %s409
      %s427 = sphi 0, %s427
      %s429 = sphi 0, %s427
      %s430 = sphi 0, %s429
      %s444 = sphi 0, %s430
      %s448 = sphi 0, %s448
      %s450 = sphi 0, %s448
      %s451 = sphi 0, %s450
      %s465 = sphi 0, %s451
      %s469 = sphi 0, %s469
      %s471 = sphi 0, %s469
      %s472 = sphi 0, %s471
      %s486 = sphi 0, %s472
      %s490 = sphi 0, %s490
      %s492 = sphi 0, %s490
      %s493 = sphi 0, %s492
      %s507 = sphi 0, %s493
      %s511 = sphi 0, %s511
      %s513 = sphi 0, %s511
      %s514 = sphi 0, %s513
      %s528 = sphi 0, %s514
      %s532 = sphi 0, %s532
      %s534 = sphi 0, %s532
      %s535 = sphi 0, %s534
      %s549 = sphi 0, %s535
      %s553 = sphi 0, %s553
      %s555 = sphi 0, %s553
      %s556 = sphi 0, %s555
      %s570 = sphi 0, %s556
      %s574 = sphi 0, %s574
      %s576 = sphi 0, %s574
      %s577 = sphi 0, %s576
      %s591 = sphi 0, %s577
      %s595 = sphi 0, %s595
      %s597 = sphi 0, %s595
      %s598 = sphi 0, %s597
      %s612 = sphi 0, %s598
      %s616 = sphi 0, %s616
      %s618 = sphi 0, %s616
      %s619 = sphi 0, %s618
      %s633 = sphi 0, %s619
      %s637 = sphi 0, %s637
      %s639 = sphi 0, %s637
      %s640 = sphi 0, %s639
      %s654 = sphi 0, %s640
      %s658 = sphi 0, %s658
      %s660 = sphi 0, %s658
      %s661 = sphi 0, %s660
      %s675 = sphi 0, %s661
      %s679 = sphi 0, %s679
      %s681 = sphi 0, %s679
      %s682 = sphi 0, %s681
      %s696 = sphi 0, %s682
      %s700 = sphi 0, %s700
      %s702 = sphi 0, %s700
      %s703 = sphi 0, %s702
      %s717 = sphi 0, %s703
      %s721 = sphi 0, %s721
      %s723 = sphi 0, %s721
      %s724 = sphi 0, %s723
      %s738 = sphi 0, %s724
      %s742 = sphi 0, %s742
      %s744 = sphi 0, %s742
      %s745 = sphi 0, %s744
      %s759 = sphi 0, %s745
      %s763 = sphi 0, %s763
      %s765 = sphi 0, %s763
      %s766 = sphi 0, %s765
      %s780 = sphi 0, %s766
      %s784 = sphi 0, %s784
      %s786 = sphi 0, %s784
      %s787 = sphi 0, %s786
      %s801 = sphi 0, %s787
      %s805 = sphi 0, %s805
      %s807 = sphi 0, %s805
      %s808 = sphi 0, %s807
      %s822 = sphi 0, %s808
      %s826 = sphi 0, %s826
      %s828 = sphi 0, %s826
      %s829 = sphi 0, %s828
      %s843 = sphi 0, %s829
      %s847 = sphi 0, %s847
      %s849 = sphi 0, %s847
      %s850 = sphi 0, %s849
      %s864 = sphi 0, %s850
      %s868 = sphi 0, %s868
      %s870 = sphi 0, %s868
      %s871 = sphi 0, %s870
      %s885 = sphi 0, %s871
      %s889 = sphi 0, %s889
      %s891 = sphi 0, %s889
      %s892 = sphi 0, %s891
      %s906 = sphi 0, %s892
      %s910 = sphi 0, %s910
      %s912 = sphi 0, %s910
      %s913 = sphi 0, %s912
      %s927 = sphi 0, %s913
      %s931 = sphi 0, %s931
      %s933 = sphi 0, %s931
      %s934 = sphi 0, %s933
      %s948 = sphi 0, %s934
      %s952 = sphi 0, %s952
      %s954 = sphi 0, %s952
      %s955 = sphi 0, %s954
      %s969 = sphi 0, %s955
      %s973 = sphi 0, %s973
      %s975 = sphi 0, %s973
      %s976 = sphi 0, %s975
      %s990 = sphi 0, %s976
      %s994 = sphi 0, %s994
      %s996 = sphi 0, %s994
      %s997 = sphi 0, %s996
      %s1011 = sphi 0, %s997
      %s1015 = sphi 0, %s1015
      %s1017 = sphi 0, %s1015
      %s1018 = sphi 0, %s1017
      %s1032 = sphi 0, %s1018
      %s1036 = sphi 0, %s1036
      %s1038 = sphi 0, %s1036
      %s1039 = sphi 0, %s1038
      %s1053 = sphi 0, %s1039
      %s1057 = sphi 0, %s1057
      %s1059 = sphi 0, %s1057
      %s1060 = sphi 0, %s1059
      %s1074 = sphi 0, %s1060
      %s1078 = sphi 0, %s1078
      %s1080 = sphi 0, %s1078
      %s1081 = sphi 0, %s1080
      %s1095 = sphi 0, %s1081
      %s1099 = sphi 0, %s1099
      %s1101 = sphi 0, %s1099
      %s1102 = sphi 0, %s1101
      %s1116 = sphi 0, %s1102
      %s1120 = sphi 0, %s1120
      %s1122 = sphi 0, %s1120
      %s1123 = sphi 0, %s1122
      %s1137 = sphi 0, %s1123
      %s1141 = sphi 0, %s1141
      %s1143 = sphi 0, %s1141
      %s1144 = sphi 0, %s1143
      %s1158 = sphi 0, %s1144
      %s1162 = sphi 0, %s1162
      %s1164 = sphi 0, %s1162
      %s1165 = sphi 0, %s1164
      %s1179 = sphi 0, %s1165
      %s1185 = sphi 0, %s1187
      %s1188 = sphi 0, %s1185
      %s1189 = sphi 0, %s1188
      %s1205 = sphi 0, %s1189
    $region4: #{course_progress_classifier.1} parent=1 // loop_header_branch
      %118 = sbr.rel (%p116) target = $region8
    $region5: #{course_progress_classifier.1} parent=1 // loop_body
      %s120 = ssub.s32 %s115, 1
      %s121 = ssub.s32 %s115, 2
      %s122 = sadd.s32 %s115, 1
      %s123 = ssub.s32 %s115, %s122
      %p124 = scmp.eq.s32.totalorder %s123, 0
      %s126 = sadd.s32 %s125, 1
      %s127 = scalar_select %p124, %s125, %s126
      %p130 = pneg %p124
      %p131 = scmp.eq.s32.totalorder %s115, 1
      %p132 = por %p130, %p131
      %p133 = scmp.ne.s32.totalorder %s125, %s128
      %p134 = scmp.eq.s32.totalorder %s115, 0
      %p135 = por %p133, %p134
      %p136 = scmp.ne.s32.totalorder %s125, %s128
      %p137 = scmp.eq.s32.totalorder %s120, 1
      %p138 = por %p136, %p137
      %p139 = scmp.ne.s32.totalorder %s128, %s129
      %p140 = scmp.eq.s32.totalorder %s120, 0
      %p141 = por %p139, %p140
      %p142 = scmp.ne.s32.totalorder %s128, %s129
      %p143 = scmp.eq.s32.totalorder %s121, 1
      %p144 = por %p142, %p143
      %p146 = scmp.ne.s32.totalorder %s129, %s145
      %p147 = scmp.eq.s32.totalorder %s121, 0
      %p148 = por %p146, %p147
      %s149 = ssub.s32 %s115, %s122
      %p150 = scmp.eq.s32.totalorder %s149, 0
      %s152 = sadd.s32 %s151, 1
      %s153 = scalar_select %p150, %s151, %s152
      %p156 = pneg %p150
      %p157 = scmp.eq.s32.totalorder %s115, 1
      %p158 = por %p156, %p157
      %p159 = scmp.ne.s32.totalorder %s151, %s154
      %p160 = scmp.eq.s32.totalorder %s115, 0
      %p161 = por %p159, %p160
      %p162 = scmp.ne.s32.totalorder %s151, %s154
      %p163 = scmp.eq.s32.totalorder %s120, 1
      %p164 = por %p162, %p163
      %p165 = scmp.ne.s32.totalorder %s154, %s155
      %p166 = scmp.eq.s32.totalorder %s120, 0
      %p167 = por %p165, %p166
      %p168 = scmp.ne.s32.totalorder %s154, %s155
      %p169 = scmp.eq.s32.totalorder %s121, 1
      %p170 = por %p168, %p169
      %p172 = scmp.ne.s32.totalorder %s155, %s171
      %p173 = scmp.eq.s32.totalorder %s121, 0
      %p174 = por %p172, %p173
      %s176 = sadd.s32 %s175, 1
      %p179 = scmp.eq.s32.totalorder %s115, 1
      %p180 = scmp.ne.s32.totalorder %s175, %s177
      %p181 = scmp.eq.s32.totalorder %s115, 0
      %p182 = por %p180, %p181
      %p183 = scmp.ne.s32.totalorder %s175, %s177
      %p184 = scmp.eq.s32.totalorder %s120, 1
      %p185 = por %p183, %p184
      %p186 = scmp.ne.s32.totalorder %s177, %s178
      %p187 = scmp.eq.s32.totalorder %s120, 0
      %p188 = por %p186, %p187
      %p189 = scmp.ne.s32.totalorder %s177, %s178
      %p190 = scmp.eq.s32.totalorder %s121, 1
      %p191 = por %p189, %p190
      %p193 = scmp.ne.s32.totalorder %s178, %s192
      %p194 = scmp.eq.s32.totalorder %s121, 0
      %p195 = por %p193, %p194
      %s197 = sadd.s32 %s196, 1
      %p200 = scmp.eq.s32.totalorder %s115, 1
      %p201 = scmp.ne.s32.totalorder %s196, %s198
      %p202 = scmp.eq.s32.totalorder %s115, 0
      %p203 = por %p201, %p202
      %p204 = scmp.ne.s32.totalorder %s196, %s198
      %p205 = scmp.eq.s32.totalorder %s120, 1
      %p206 = por %p204, %p205
      %p207 = scmp.ne.s32.totalorder %s198, %s199
      %p208 = scmp.eq.s32.totalorder %s120, 0
      %p209 = por %p207, %p208
      %p210 = scmp.ne.s32.totalorder %s198, %s199
      %p211 = scmp.eq.s32.totalorder %s121, 1
      %p212 = por %p210, %p211
      %p214 = scmp.ne.s32.totalorder %s199, %s213
      %p215 = scmp.eq.s32.totalorder %s121, 0
      %p216 = por %p214, %p215
      %s218 = sadd.s32 %s217, 1
      %p221 = scmp.eq.s32.totalorder %s115, 1
      %p222 = scmp.ne.s32.totalorder %s217, %s219
      %p223 = scmp.eq.s32.totalorder %s115, 0
      %p224 = por %p222, %p223
      %p225 = scmp.ne.s32.totalorder %s217, %s219
      %p226 = scmp.eq.s32.totalorder %s120, 1
      %p227 = por %p225, %p226
      %p228 = scmp.ne.s32.totalorder %s219, %s220
      %p229 = scmp.eq.s32.totalorder %s120, 0
      %p230 = por %p228, %p229
      %p231 = scmp.ne.s32.totalorder %s219, %s220
      %p232 = scmp.eq.s32.totalorder %s121, 1
      %p233 = por %p231, %p232
      %p235 = scmp.ne.s32.totalorder %s220, %s234
      %p236 = scmp.eq.s32.totalorder %s121, 0
      %p237 = por %p235, %p236
      %s239 = sadd.s32 %s238, 1
      %p242 = scmp.eq.s32.totalorder %s115, 1
      %p243 = scmp.ne.s32.totalorder %s238, %s240
      %p244 = scmp.eq.s32.totalorder %s115, 0
      %p245 = por %p243, %p244
      %p246 = scmp.ne.s32.totalorder %s238, %s240
      %p247 = scmp.eq.s32.totalorder %s120, 1
      %p248 = por %p246, %p247
      %p249 = scmp.ne.s32.totalorder %s240, %s241
      %p250 = scmp.eq.s32.totalorder %s120, 0
      %p251 = por %p249, %p250
      %p252 = scmp.ne.s32.totalorder %s240, %s241
      %p253 = scmp.eq.s32.totalorder %s121, 1
      %p254 = por %p252, %p253
      %p256 = scmp.ne.s32.totalorder %s241, %s255
      %p257 = scmp.eq.s32.totalorder %s121, 0
      %p258 = por %p256, %p257
      %s260 = sadd.s32 %s259, 1
      %p263 = scmp.eq.s32.totalorder %s115, 1
      %p264 = scmp.ne.s32.totalorder %s259, %s261
      %p265 = scmp.eq.s32.totalorder %s115, 0
      %p266 = por %p264, %p265
      %p267 = scmp.ne.s32.totalorder %s259, %s261
      %p268 = scmp.eq.s32.totalorder %s120, 1
      %p269 = por %p267, %p268
      %p270 = scmp.ne.s32.totalorder %s261, %s262
      %p271 = scmp.eq.s32.totalorder %s120, 0
      %p272 = por %p270, %p271
      %p273 = scmp.ne.s32.totalorder %s261, %s262
      %p274 = scmp.eq.s32.totalorder %s121, 1
      %p275 = por %p273, %p274
      %p277 = scmp.ne.s32.totalorder %s262, %s276
      %p278 = scmp.eq.s32.totalorder %s121, 0
      %p279 = por %p277, %p278
      %s281 = sadd.s32 %s280, 1
      %p284 = scmp.eq.s32.totalorder %s115, 1
      %p285 = scmp.ne.s32.totalorder %s280, %s282
      %p286 = scmp.eq.s32.totalorder %s115, 0
      %p287 = por %p285, %p286
      %p288 = scmp.ne.s32.totalorder %s280, %s282
      %p289 = scmp.eq.s32.totalorder %s120, 1
      %p290 = por %p288, %p289
      %p291 = scmp.ne.s32.totalorder %s282, %s283
      %p292 = scmp.eq.s32.totalorder %s120, 0
      %p293 = por %p291, %p292
      %p294 = scmp.ne.s32.totalorder %s282, %s283
      %p295 = scmp.eq.s32.totalorder %s121, 1
      %p296 = por %p294, %p295
      %p298 = scmp.ne.s32.totalorder %s283, %s297
      %p299 = scmp.eq.s32.totalorder %s121, 0
      %p300 = por %p298, %p299
      %s302 = sadd.s32 %s301, 1
      %p305 = scmp.eq.s32.totalorder %s115, 1
      %p306 = scmp.ne.s32.totalorder %s301, %s303
      %p307 = scmp.eq.s32.totalorder %s115, 0
      %p308 = por %p306, %p307
      %p309 = scmp.ne.s32.totalorder %s301, %s303
      %p310 = scmp.eq.s32.totalorder %s120, 1
      %p311 = por %p309, %p310
      %p312 = scmp.ne.s32.totalorder %s303, %s304
      %p313 = scmp.eq.s32.totalorder %s120, 0
      %p314 = por %p312, %p313
      %p315 = scmp.ne.s32.totalorder %s303, %s304
      %p316 = scmp.eq.s32.totalorder %s121, 1
      %p317 = por %p315, %p316
      %p319 = scmp.ne.s32.totalorder %s304, %s318
      %p320 = scmp.eq.s32.totalorder %s121, 0
      %p321 = por %p319, %p320
      %s323 = sadd.s32 %s322, 1
      %p326 = scmp.eq.s32.totalorder %s115, 1
      %p327 = scmp.ne.s32.totalorder %s322, %s324
      %p328 = scmp.eq.s32.totalorder %s115, 0
      %p329 = por %p327, %p328
      %p330 = scmp.ne.s32.totalorder %s322, %s324
      %p331 = scmp.eq.s32.totalorder %s120, 1
      %p332 = por %p330, %p331
      %p333 = scmp.ne.s32.totalorder %s324, %s325
      %p334 = scmp.eq.s32.totalorder %s120, 0
      %p335 = por %p333, %p334
      %p336 = scmp.ne.s32.totalorder %s324, %s325
      %p337 = scmp.eq.s32.totalorder %s121, 1
      %p338 = por %p336, %p337
      %p340 = scmp.ne.s32.totalorder %s325, %s339
      %p341 = scmp.eq.s32.totalorder %s121, 0
      %p342 = por %p340, %p341
      %s344 = sadd.s32 %s343, 1
      %p347 = scmp.eq.s32.totalorder %s115, 1
      %p348 = scmp.ne.s32.totalorder %s343, %s345
      %p349 = scmp.eq.s32.totalorder %s115, 0
      %p350 = por %p348, %p349
      %p351 = scmp.ne.s32.totalorder %s343, %s345
      %p352 = scmp.eq.s32.totalorder %s120, 1
      %p353 = por %p351, %p352
      %p354 = scmp.ne.s32.totalorder %s345, %s346
      %p355 = scmp.eq.s32.totalorder %s120, 0
      %p356 = por %p354, %p355
      %p357 = scmp.ne.s32.totalorder %s345, %s346
      %p358 = scmp.eq.s32.totalorder %s121, 1
      %p359 = por %p357, %p358
      %p361 = scmp.ne.s32.totalorder %s346, %s360
      %p362 = scmp.eq.s32.totalorder %s121, 0
      %p363 = por %p361, %p362
      %s365 = sadd.s32 %s364, 1
      %p368 = scmp.eq.s32.totalorder %s115, 1
      %p369 = scmp.ne.s32.totalorder %s364, %s366
      %p370 = scmp.eq.s32.totalorder %s115, 0
      %p371 = por %p369, %p370
      %p372 = scmp.ne.s32.totalorder %s364, %s366
      %p373 = scmp.eq.s32.totalorder %s120, 1
      %p374 = por %p372, %p373
      %p375 = scmp.ne.s32.totalorder %s366, %s367
      %p376 = scmp.eq.s32.totalorder %s120, 0
      %p377 = por %p375, %p376
      %p378 = scmp.ne.s32.totalorder %s366, %s367
      %p379 = scmp.eq.s32.totalorder %s121, 1
      %p380 = por %p378, %p379
      %p382 = scmp.ne.s32.totalorder %s367, %s381
      %p383 = scmp.eq.s32.totalorder %s121, 0
      %p384 = por %p382, %p383
      %s386 = sadd.s32 %s385, 1
      %p389 = scmp.eq.s32.totalorder %s115, 1
      %p390 = scmp.ne.s32.totalorder %s385, %s387
      %p391 = scmp.eq.s32.totalorder %s115, 0
      %p392 = por %p390, %p391
      %p393 = scmp.ne.s32.totalorder %s385, %s387
      %p394 = scmp.eq.s32.totalorder %s120, 1
      %p395 = por %p393, %p394
      %p396 = scmp.ne.s32.totalorder %s387, %s388
      %p397 = scmp.eq.s32.totalorder %s120, 0
      %p398 = por %p396, %p397
      %p399 = scmp.ne.s32.totalorder %s387, %s388
      %p400 = scmp.eq.s32.totalorder %s121, 1
      %p401 = por %p399, %p400
      %p403 = scmp.ne.s32.totalorder %s388, %s402
      %p404 = scmp.eq.s32.totalorder %s121, 0
      %p405 = por %p403, %p404
      %s407 = sadd.s32 %s406, 1
      %p410 = scmp.eq.s32.totalorder %s115, 1
      %p411 = scmp.ne.s32.totalorder %s406, %s408
      %p412 = scmp.eq.s32.totalorder %s115, 0
      %p413 = por %p411, %p412
      %p414 = scmp.ne.s32.totalorder %s406, %s408
      %p415 = scmp.eq.s32.totalorder %s120, 1
      %p416 = por %p414, %p415
      %p417 = scmp.ne.s32.totalorder %s408, %s409
      %p418 = scmp.eq.s32.totalorder %s120, 0
      %p419 = por %p417, %p418
      %p420 = scmp.ne.s32.totalorder %s408, %s409
      %p421 = scmp.eq.s32.totalorder %s121, 1
      %p422 = por %p420, %p421
      %p424 = scmp.ne.s32.totalorder %s409, %s423
      %p425 = scmp.eq.s32.totalorder %s121, 0
      %p426 = por %p424, %p425
      %s428 = sadd.s32 %s427, 1
      %p431 = scmp.eq.s32.totalorder %s115, 1
      %p432 = scmp.ne.s32.totalorder %s427, %s429
      %p433 = scmp.eq.s32.totalorder %s115, 0
      %p434 = por %p432, %p433
      %p435 = scmp.ne.s32.totalorder %s427, %s429
      %p436 = scmp.eq.s32.totalorder %s120, 1
      %p437 = por %p435, %p436
      %p438 = scmp.ne.s32.totalorder %s429, %s430
      %p439 = scmp.eq.s32.totalorder %s120, 0
      %p440 = por %p438, %p439
      %p441 = scmp.ne.s32.totalorder %s429, %s430
      %p442 = scmp.eq.s32.totalorder %s121, 1
      %p443 = por %p441, %p442
      %p445 = scmp.ne.s32.totalorder %s430, %s444
      %p446 = scmp.eq.s32.totalorder %s121, 0
      %p447 = por %p445, %p446
      %s449 = sadd.s32 %s448, 1
      %p452 = scmp.eq.s32.totalorder %s115, 1
      %p453 = scmp.ne.s32.totalorder %s448, %s450
      %p454 = scmp.eq.s32.totalorder %s115, 0
      %p455 = por %p453, %p454
      %p456 = scmp.ne.s32.totalorder %s448, %s450
      %p457 = scmp.eq.s32.totalorder %s120, 1
      %p458 = por %p456, %p457
      %p459 = scmp.ne.s32.totalorder %s450, %s451
      %p460 = scmp.eq.s32.totalorder %s120, 0
      %p461 = por %p459, %p460
      %p462 = scmp.ne.s32.totalorder %s450, %s451
      %p463 = scmp.eq.s32.totalorder %s121, 1
      %p464 = por %p462, %p463
      %p466 = scmp.ne.s32.totalorder %s451, %s465
      %p467 = scmp.eq.s32.totalorder %s121, 0
      %p468 = por %p466, %p467
      %s470 = sadd.s32 %s469, 1
      %p473 = scmp.eq.s32.totalorder %s115, 1
      %p474 = scmp.ne.s32.totalorder %s469, %s471
      %p475 = scmp.eq.s32.totalorder %s115, 0
      %p476 = por %p474, %p475
      %p477 = scmp.ne.s32.totalorder %s469, %s471
      %p478 = scmp.eq.s32.totalorder %s120, 1
      %p479 = por %p477, %p478
      %p480 = scmp.ne.s32.totalorder %s471, %s472
      %p481 = scmp.eq.s32.totalorder %s120, 0
      %p482 = por %p480, %p481
      %p483 = scmp.ne.s32.totalorder %s471, %s472
      %p484 = scmp.eq.s32.totalorder %s121, 1
      %p485 = por %p483, %p484
      %p487 = scmp.ne.s32.totalorder %s472, %s486
      %p488 = scmp.eq.s32.totalorder %s121, 0
      %p489 = por %p487, %p488
      %s491 = sadd.s32 %s490, 1
      %p494 = scmp.eq.s32.totalorder %s115, 1
      %p495 = scmp.ne.s32.totalorder %s490, %s492
      %p496 = scmp.eq.s32.totalorder %s115, 0
      %p497 = por %p495, %p496
      %p498 = scmp.ne.s32.totalorder %s490, %s492
      %p499 = scmp.eq.s32.totalorder %s120, 1
      %p500 = por %p498, %p499
      %p501 = scmp.ne.s32.totalorder %s492, %s493
      %p502 = scmp.eq.s32.totalorder %s120, 0
      %p503 = por %p501, %p502
      %p504 = scmp.ne.s32.totalorder %s492, %s493
      %p505 = scmp.eq.s32.totalorder %s121, 1
      %p506 = por %p504, %p505
      %p508 = scmp.ne.s32.totalorder %s493, %s507
      %p509 = scmp.eq.s32.totalorder %s121, 0
      %p510 = por %p508, %p509
      %s512 = sadd.s32 %s511, 1
      %p515 = scmp.eq.s32.totalorder %s115, 1
      %p516 = scmp.ne.s32.totalorder %s511, %s513
      %p517 = scmp.eq.s32.totalorder %s115, 0
      %p518 = por %p516, %p517
      %p519 = scmp.ne.s32.totalorder %s511, %s513
      %p520 = scmp.eq.s32.totalorder %s120, 1
      %p521 = por %p519, %p520
      %p522 = scmp.ne.s32.totalorder %s513, %s514
      %p523 = scmp.eq.s32.totalorder %s120, 0
      %p524 = por %p522, %p523
      %p525 = scmp.ne.s32.totalorder %s513, %s514
      %p526 = scmp.eq.s32.totalorder %s121, 1
      %p527 = por %p525, %p526
      %p529 = scmp.ne.s32.totalorder %s514, %s528
      %p530 = scmp.eq.s32.totalorder %s121, 0
      %p531 = por %p529, %p530
      %s533 = sadd.s32 %s532, 1
      %p536 = scmp.eq.s32.totalorder %s115, 1
      %p537 = scmp.ne.s32.totalorder %s532, %s534
      %p538 = scmp.eq.s32.totalorder %s115, 0
      %p539 = por %p537, %p538
      %p540 = scmp.ne.s32.totalorder %s532, %s534
      %p541 = scmp.eq.s32.totalorder %s120, 1
      %p542 = por %p540, %p541
      %p543 = scmp.ne.s32.totalorder %s534, %s535
      %p544 = scmp.eq.s32.totalorder %s120, 0
      %p545 = por %p543, %p544
      %p546 = scmp.ne.s32.totalorder %s534, %s535
      %p547 = scmp.eq.s32.totalorder %s121, 1
      %p548 = por %p546, %p547
      %p550 = scmp.ne.s32.totalorder %s535, %s549
      %p551 = scmp.eq.s32.totalorder %s121, 0
      %p552 = por %p550, %p551
      %s554 = sadd.s32 %s553, 1
      %p557 = scmp.eq.s32.totalorder %s115, 1
      %p558 = scmp.ne.s32.totalorder %s553, %s555
      %p559 = scmp.eq.s32.totalorder %s115, 0
      %p560 = por %p558, %p559
      %p561 = scmp.ne.s32.totalorder %s553, %s555
      %p562 = scmp.eq.s32.totalorder %s120, 1
      %p563 = por %p561, %p562
      %p564 = scmp.ne.s32.totalorder %s555, %s556
      %p565 = scmp.eq.s32.totalorder %s120, 0
      %p566 = por %p564, %p565
      %p567 = scmp.ne.s32.totalorder %s555, %s556
      %p568 = scmp.eq.s32.totalorder %s121, 1
      %p569 = por %p567, %p568
      %p571 = scmp.ne.s32.totalorder %s556, %s570
      %p572 = scmp.eq.s32.totalorder %s121, 0
      %p573 = por %p571, %p572
      %s575 = sadd.s32 %s574, 1
      %p578 = scmp.eq.s32.totalorder %s115, 1
      %p579 = scmp.ne.s32.totalorder %s574, %s576
      %p580 = scmp.eq.s32.totalorder %s115, 0
      %p581 = por %p579, %p580
      %p582 = scmp.ne.s32.totalorder %s574, %s576
      %p583 = scmp.eq.s32.totalorder %s120, 1
      %p584 = por %p582, %p583
      %p585 = scmp.ne.s32.totalorder %s576, %s577
      %p586 = scmp.eq.s32.totalorder %s120, 0
      %p587 = por %p585, %p586
      %p588 = scmp.ne.s32.totalorder %s576, %s577
      %p589 = scmp.eq.s32.totalorder %s121, 1
      %p590 = por %p588, %p589
      %p592 = scmp.ne.s32.totalorder %s577, %s591
      %p593 = scmp.eq.s32.totalorder %s121, 0
      %p594 = por %p592, %p593
      %s596 = sadd.s32 %s595, 1
      %p599 = scmp.eq.s32.totalorder %s115, 1
      %p600 = scmp.ne.s32.totalorder %s595, %s597
      %p601 = scmp.eq.s32.totalorder %s115, 0
      %p602 = por %p600, %p601
      %p603 = scmp.ne.s32.totalorder %s595, %s597
      %p604 = scmp.eq.s32.totalorder %s120, 1
      %p605 = por %p603, %p604
      %p606 = scmp.ne.s32.totalorder %s597, %s598
      %p607 = scmp.eq.s32.totalorder %s120, 0
      %p608 = por %p606, %p607
      %p609 = scmp.ne.s32.totalorder %s597, %s598
      %p610 = scmp.eq.s32.totalorder %s121, 1
      %p611 = por %p609, %p610
      %p613 = scmp.ne.s32.totalorder %s598, %s612
      %p614 = scmp.eq.s32.totalorder %s121, 0
      %p615 = por %p613, %p614
      %s617 = sadd.s32 %s616, 1
      %p620 = scmp.eq.s32.totalorder %s115, 1
      %p621 = scmp.ne.s32.totalorder %s616, %s618
      %p622 = scmp.eq.s32.totalorder %s115, 0
      %p623 = por %p621, %p622
      %p624 = scmp.ne.s32.totalorder %s616, %s618
      %p625 = scmp.eq.s32.totalorder %s120, 1
      %p626 = por %p624, %p625
      %p627 = scmp.ne.s32.totalorder %s618, %s619
      %p628 = scmp.eq.s32.totalorder %s120, 0
      %p629 = por %p627, %p628
      %p630 = scmp.ne.s32.totalorder %s618, %s619
      %p631 = scmp.eq.s32.totalorder %s121, 1
      %p632 = por %p630, %p631
      %p634 = scmp.ne.s32.totalorder %s619, %s633
      %p635 = scmp.eq.s32.totalorder %s121, 0
      %p636 = por %p634, %p635
      %s638 = sadd.s32 %s637, 1
      %p641 = scmp.eq.s32.totalorder %s115, 1
      %p642 = scmp.ne.s32.totalorder %s637, %s639
      %p643 = scmp.eq.s32.totalorder %s115, 0
      %p644 = por %p642, %p643
      %p645 = scmp.ne.s32.totalorder %s637, %s639
      %p646 = scmp.eq.s32.totalorder %s120, 1
      %p647 = por %p645, %p646
      %p648 = scmp.ne.s32.totalorder %s639, %s640
      %p649 = scmp.eq.s32.totalorder %s120, 0
      %p650 = por %p648, %p649
      %p651 = scmp.ne.s32.totalorder %s639, %s640
      %p652 = scmp.eq.s32.totalorder %s121, 1
      %p653 = por %p651, %p652
      %p655 = scmp.ne.s32.totalorder %s640, %s654
      %p656 = scmp.eq.s32.totalorder %s121, 0
      %p657 = por %p655, %p656
      %s659 = sadd.s32 %s658, 1
      %p662 = scmp.eq.s32.totalorder %s115, 1
      %p663 = scmp.ne.s32.totalorder %s658, %s660
      %p664 = scmp.eq.s32.totalorder %s115, 0
      %p665 = por %p663, %p664
      %p666 = scmp.ne.s32.totalorder %s658, %s660
      %p667 = scmp.eq.s32.totalorder %s120, 1
      %p668 = por %p666, %p667
      %p669 = scmp.ne.s32.totalorder %s660, %s661
      %p670 = scmp.eq.s32.totalorder %s120, 0
      %p671 = por %p669, %p670
      %p672 = scmp.ne.s32.totalorder %s660, %s661
      %p673 = scmp.eq.s32.totalorder %s121, 1
      %p674 = por %p672, %p673
      %p676 = scmp.ne.s32.totalorder %s661, %s675
      %p677 = scmp.eq.s32.totalorder %s121, 0
      %p678 = por %p676, %p677
      %s680 = sadd.s32 %s679, 1
      %p683 = scmp.eq.s32.totalorder %s115, 1
      %p684 = scmp.ne.s32.totalorder %s679, %s681
      %p685 = scmp.eq.s32.totalorder %s115, 0
      %p686 = por %p684, %p685
      %p687 = scmp.ne.s32.totalorder %s679, %s681
      %p688 = scmp.eq.s32.totalorder %s120, 1
      %p689 = por %p687, %p688
      %p690 = scmp.ne.s32.totalorder %s681, %s682
      %p691 = scmp.eq.s32.totalorder %s120, 0
      %p692 = por %p690, %p691
      %p693 = scmp.ne.s32.totalorder %s681, %s682
      %p694 = scmp.eq.s32.totalorder %s121, 1
      %p695 = por %p693, %p694
      %p697 = scmp.ne.s32.totalorder %s682, %s696
      %p698 = scmp.eq.s32.totalorder %s121, 0
      %p699 = por %p697, %p698
      %s701 = sadd.s32 %s700, 1
      %p704 = scmp.eq.s32.totalorder %s115, 1
      %p705 = scmp.ne.s32.totalorder %s700, %s702
      %p706 = scmp.eq.s32.totalorder %s115, 0
      %p707 = por %p705, %p706
      %p708 = scmp.ne.s32.totalorder %s700, %s702
      %p709 = scmp.eq.s32.totalorder %s120, 1
      %p710 = por %p708, %p709
      %p711 = scmp.ne.s32.totalorder %s702, %s703
      %p712 = scmp.eq.s32.totalorder %s120, 0
      %p713 = por %p711, %p712
      %p714 = scmp.ne.s32.totalorder %s702, %s703
      %p715 = scmp.eq.s32.totalorder %s121, 1
      %p716 = por %p714, %p715
      %p718 = scmp.ne.s32.totalorder %s703, %s717
      %p719 = scmp.eq.s32.totalorder %s121, 0
      %p720 = por %p718, %p719
      %s722 = sadd.s32 %s721, 1
      %p725 = scmp.eq.s32.totalorder %s115, 1
      %p726 = scmp.ne.s32.totalorder %s721, %s723
      %p727 = scmp.eq.s32.totalorder %s115, 0
      %p728 = por %p726, %p727
      %p729 = scmp.ne.s32.totalorder %s721, %s723
      %p730 = scmp.eq.s32.totalorder %s120, 1
      %p731 = por %p729, %p730
      %p732 = scmp.ne.s32.totalorder %s723, %s724
      %p733 = scmp.eq.s32.totalorder %s120, 0
      %p734 = por %p732, %p733
      %p735 = scmp.ne.s32.totalorder %s723, %s724
      %p736 = scmp.eq.s32.totalorder %s121, 1
      %p737 = por %p735, %p736
      %p739 = scmp.ne.s32.totalorder %s724, %s738
      %p740 = scmp.eq.s32.totalorder %s121, 0
      %p741 = por %p739, %p740
      %s743 = sadd.s32 %s742, 1
      %p746 = scmp.eq.s32.totalorder %s115, 1
      %p747 = scmp.ne.s32.totalorder %s742, %s744
      %p748 = scmp.eq.s32.totalorder %s115, 0
      %p749 = por %p747, %p748
      %p750 = scmp.ne.s32.totalorder %s742, %s744
      %p751 = scmp.eq.s32.totalorder %s120, 1
      %p752 = por %p750, %p751
      %p753 = scmp.ne.s32.totalorder %s744, %s745
      %p754 = scmp.eq.s32.totalorder %s120, 0
      %p755 = por %p753, %p754
      %p756 = scmp.ne.s32.totalorder %s744, %s745
      %p757 = scmp.eq.s32.totalorder %s121, 1
      %p758 = por %p756, %p757
      %p760 = scmp.ne.s32.totalorder %s745, %s759
      %p761 = scmp.eq.s32.totalorder %s121, 0
      %p762 = por %p760, %p761
      %s764 = sadd.s32 %s763, 1
      %p767 = scmp.eq.s32.totalorder %s115, 1
      %p768 = scmp.ne.s32.totalorder %s763, %s765
      %p769 = scmp.eq.s32.totalorder %s115, 0
      %p770 = por %p768, %p769
      %p771 = scmp.ne.s32.totalorder %s763, %s765
      %p772 = scmp.eq.s32.totalorder %s120, 1
      %p773 = por %p771, %p772
      %p774 = scmp.ne.s32.totalorder %s765, %s766
      %p775 = scmp.eq.s32.totalorder %s120, 0
      %p776 = por %p774, %p775
      %p777 = scmp.ne.s32.totalorder %s765, %s766
      %p778 = scmp.eq.s32.totalorder %s121, 1
      %p779 = por %p777, %p778
      %p781 = scmp.ne.s32.totalorder %s766, %s780
      %p782 = scmp.eq.s32.totalorder %s121, 0
      %p783 = por %p781, %p782
      %s785 = sadd.s32 %s784, 1
      %p788 = scmp.eq.s32.totalorder %s115, 1
      %p789 = scmp.ne.s32.totalorder %s784, %s786
      %p790 = scmp.eq.s32.totalorder %s115, 0
      %p791 = por %p789, %p790
      %p792 = scmp.ne.s32.totalorder %s784, %s786
      %p793 = scmp.eq.s32.totalorder %s120, 1
      %p794 = por %p792, %p793
      %p795 = scmp.ne.s32.totalorder %s786, %s787
      %p796 = scmp.eq.s32.totalorder %s120, 0
      %p797 = por %p795, %p796
      %p798 = scmp.ne.s32.totalorder %s786, %s787
      %p799 = scmp.eq.s32.totalorder %s121, 1
      %p800 = por %p798, %p799
      %p802 = scmp.ne.s32.totalorder %s787, %s801
      %p803 = scmp.eq.s32.totalorder %s121, 0
      %p804 = por %p802, %p803
      %s806 = sadd.s32 %s805, 1
      %p809 = scmp.eq.s32.totalorder %s115, 1
      %p810 = scmp.ne.s32.totalorder %s805, %s807
      %p811 = scmp.eq.s32.totalorder %s115, 0
      %p812 = por %p810, %p811
      %p813 = scmp.ne.s32.totalorder %s805, %s807
      %p814 = scmp.eq.s32.totalorder %s120, 1
      %p815 = por %p813, %p814
      %p816 = scmp.ne.s32.totalorder %s807, %s808
      %p817 = scmp.eq.s32.totalorder %s120, 0
      %p818 = por %p816, %p817
      %p819 = scmp.ne.s32.totalorder %s807, %s808
      %p820 = scmp.eq.s32.totalorder %s121, 1
      %p821 = por %p819, %p820
      %p823 = scmp.ne.s32.totalorder %s808, %s822
      %p824 = scmp.eq.s32.totalorder %s121, 0
      %p825 = por %p823, %p824
      %s827 = sadd.s32 %s826, 1
      %p830 = scmp.eq.s32.totalorder %s115, 1
      %p831 = scmp.ne.s32.totalorder %s826, %s828
      %p832 = scmp.eq.s32.totalorder %s115, 0
      %p833 = por %p831, %p832
      %p834 = scmp.ne.s32.totalorder %s826, %s828
      %p835 = scmp.eq.s32.totalorder %s120, 1
      %p836 = por %p834, %p835
      %p837 = scmp.ne.s32.totalorder %s828, %s829
      %p838 = scmp.eq.s32.totalorder %s120, 0
      %p839 = por %p837, %p838
      %p840 = scmp.ne.s32.totalorder %s828, %s829
      %p841 = scmp.eq.s32.totalorder %s121, 1
      %p842 = por %p840, %p841
      %p844 = scmp.ne.s32.totalorder %s829, %s843
      %p845 = scmp.eq.s32.totalorder %s121, 0
      %p846 = por %p844, %p845
      %s848 = sadd.s32 %s847, 1
      %p851 = scmp.eq.s32.totalorder %s115, 1
      %p852 = scmp.ne.s32.totalorder %s847, %s849
      %p853 = scmp.eq.s32.totalorder %s115, 0
      %p854 = por %p852, %p853
      %p855 = scmp.ne.s32.totalorder %s847, %s849
      %p856 = scmp.eq.s32.totalorder %s120, 1
      %p857 = por %p855, %p856
      %p858 = scmp.ne.s32.totalorder %s849, %s850
      %p859 = scmp.eq.s32.totalorder %s120, 0
      %p860 = por %p858, %p859
      %p861 = scmp.ne.s32.totalorder %s849, %s850
      %p862 = scmp.eq.s32.totalorder %s121, 1
      %p863 = por %p861, %p862
      %p865 = scmp.ne.s32.totalorder %s850, %s864
      %p866 = scmp.eq.s32.totalorder %s121, 0
      %p867 = por %p865, %p866
      %s869 = sadd.s32 %s868, 1
      %p872 = scmp.eq.s32.totalorder %s115, 1
      %p873 = scmp.ne.s32.totalorder %s868, %s870
      %p874 = scmp.eq.s32.totalorder %s115, 0
      %p875 = por %p873, %p874
      %p876 = scmp.ne.s32.totalorder %s868, %s870
      %p877 = scmp.eq.s32.totalorder %s120, 1
      %p878 = por %p876, %p877
      %p879 = scmp.ne.s32.totalorder %s870, %s871
      %p880 = scmp.eq.s32.totalorder %s120, 0
      %p881 = por %p879, %p880
      %p882 = scmp.ne.s32.totalorder %s870, %s871
      %p883 = scmp.eq.s32.totalorder %s121, 1
      %p884 = por %p882, %p883
      %p886 = scmp.ne.s32.totalorder %s871, %s885
      %p887 = scmp.eq.s32.totalorder %s121, 0
      %p888 = por %p886, %p887
      %s890 = sadd.s32 %s889, 1
      %p893 = scmp.eq.s32.totalorder %s115, 1
      %p894 = scmp.ne.s32.totalorder %s889, %s891
      %p895 = scmp.eq.s32.totalorder %s115, 0
      %p896 = por %p894, %p895
      %p897 = scmp.ne.s32.totalorder %s889, %s891
      %p898 = scmp.eq.s32.totalorder %s120, 1
      %p899 = por %p897, %p898
      %p900 = scmp.ne.s32.totalorder %s891, %s892
      %p901 = scmp.eq.s32.totalorder %s120, 0
      %p902 = por %p900, %p901
      %p903 = scmp.ne.s32.totalorder %s891, %s892
      %p904 = scmp.eq.s32.totalorder %s121, 1
      %p905 = por %p903, %p904
      %p907 = scmp.ne.s32.totalorder %s892, %s906
      %p908 = scmp.eq.s32.totalorder %s121, 0
      %p909 = por %p907, %p908
      %s911 = sadd.s32 %s910, 1
      %p914 = scmp.eq.s32.totalorder %s115, 1
      %p915 = scmp.ne.s32.totalorder %s910, %s912
      %p916 = scmp.eq.s32.totalorder %s115, 0
      %p917 = por %p915, %p916
      %p918 = scmp.ne.s32.totalorder %s910, %s912
      %p919 = scmp.eq.s32.totalorder %s120, 1
      %p920 = por %p918, %p919
      %p921 = scmp.ne.s32.totalorder %s912, %s913
      %p922 = scmp.eq.s32.totalorder %s120, 0
      %p923 = por %p921, %p922
      %p924 = scmp.ne.s32.totalorder %s912, %s913
      %p925 = scmp.eq.s32.totalorder %s121, 1
      %p926 = por %p924, %p925
      %p928 = scmp.ne.s32.totalorder %s913, %s927
      %p929 = scmp.eq.s32.totalorder %s121, 0
      %p930 = por %p928, %p929
      %s932 = sadd.s32 %s931, 1
      %p935 = scmp.eq.s32.totalorder %s115, 1
      %p936 = scmp.ne.s32.totalorder %s931, %s933
      %p937 = scmp.eq.s32.totalorder %s115, 0
      %p938 = por %p936, %p937
      %p939 = scmp.ne.s32.totalorder %s931, %s933
      %p940 = scmp.eq.s32.totalorder %s120, 1
      %p941 = por %p939, %p940
      %p942 = scmp.ne.s32.totalorder %s933, %s934
      %p943 = scmp.eq.s32.totalorder %s120, 0
      %p944 = por %p942, %p943
      %p945 = scmp.ne.s32.totalorder %s933, %s934
      %p946 = scmp.eq.s32.totalorder %s121, 1
      %p947 = por %p945, %p946
      %p949 = scmp.ne.s32.totalorder %s934, %s948
      %p950 = scmp.eq.s32.totalorder %s121, 0
      %p951 = por %p949, %p950
      %s953 = sadd.s32 %s952, 1
      %p956 = scmp.eq.s32.totalorder %s115, 1
      %p957 = scmp.ne.s32.totalorder %s952, %s954
      %p958 = scmp.eq.s32.totalorder %s115, 0
      %p959 = por %p957, %p958
      %p960 = scmp.ne.s32.totalorder %s952, %s954
      %p961 = scmp.eq.s32.totalorder %s120, 1
      %p962 = por %p960, %p961
      %p963 = scmp.ne.s32.totalorder %s954, %s955
      %p964 = scmp.eq.s32.totalorder %s120, 0
      %p965 = por %p963, %p964
      %p966 = scmp.ne.s32.totalorder %s954, %s955
      %p967 = scmp.eq.s32.totalorder %s121, 1
      %p968 = por %p966, %p967
      %p970 = scmp.ne.s32.totalorder %s955, %s969
      %p971 = scmp.eq.s32.totalorder %s121, 0
      %p972 = por %p970, %p971
      %s974 = sadd.s32 %s973, 1
      %p977 = scmp.eq.s32.totalorder %s115, 1
      %p978 = scmp.ne.s32.totalorder %s973, %s975
      %p979 = scmp.eq.s32.totalorder %s115, 0
      %p980 = por %p978, %p979
      %p981 = scmp.ne.s32.totalorder %s973, %s975
      %p982 = scmp.eq.s32.totalorder %s120, 1
      %p983 = por %p981, %p982
      %p984 = scmp.ne.s32.totalorder %s975, %s976
      %p985 = scmp.eq.s32.totalorder %s120, 0
      %p986 = por %p984, %p985
      %p987 = scmp.ne.s32.totalorder %s975, %s976
      %p988 = scmp.eq.s32.totalorder %s121, 1
      %p989 = por %p987, %p988
      %p991 = scmp.ne.s32.totalorder %s976, %s990
      %p992 = scmp.eq.s32.totalorder %s121, 0
      %p993 = por %p991, %p992
      %s995 = sadd.s32 %s994, 1
      %p998 = scmp.eq.s32.totalorder %s115, 1
      %p999 = scmp.ne.s32.totalorder %s994, %s996
      %p1000 = scmp.eq.s32.totalorder %s115, 0
      %p1001 = por %p999, %p1000
      %p1002 = scmp.ne.s32.totalorder %s994, %s996
      %p1003 = scmp.eq.s32.totalorder %s120, 1
      %p1004 = por %p1002, %p1003
      %p1005 = scmp.ne.s32.totalorder %s996, %s997
      %p1006 = scmp.eq.s32.totalorder %s120, 0
      %p1007 = por %p1005, %p1006
      %p1008 = scmp.ne.s32.totalorder %s996, %s997
      %p1009 = scmp.eq.s32.totalorder %s121, 1
      %p1010 = por %p1008, %p1009
      %p1012 = scmp.ne.s32.totalorder %s997, %s1011
      %p1013 = scmp.eq.s32.totalorder %s121, 0
      %p1014 = por %p1012, %p1013
      %s1016 = sadd.s32 %s1015, 1
      %p1019 = scmp.eq.s32.totalorder %s115, 1
      %p1020 = scmp.ne.s32.totalorder %s1015, %s1017
      %p1021 = scmp.eq.s32.totalorder %s115, 0
      %p1022 = por %p1020, %p1021
      %p1023 = scmp.ne.s32.totalorder %s1015, %s1017
      %p1024 = scmp.eq.s32.totalorder %s120, 1
      %p1025 = por %p1023, %p1024
      %p1026 = scmp.ne.s32.totalorder %s1017, %s1018
      %p1027 = scmp.eq.s32.totalorder %s120, 0
      %p1028 = por %p1026, %p1027
      %p1029 = scmp.ne.s32.totalorder %s1017, %s1018
      %p1030 = scmp.eq.s32.totalorder %s121, 1
      %p1031 = por %p1029, %p1030
      %p1033 = scmp.ne.s32.totalorder %s1018, %s1032
      %p1034 = scmp.eq.s32.totalorder %s121, 0
      %p1035 = por %p1033, %p1034
      %s1037 = sadd.s32 %s1036, 1
      %p1040 = scmp.eq.s32.totalorder %s115, 1
      %p1041 = scmp.ne.s32.totalorder %s1036, %s1038
      %p1042 = scmp.eq.s32.totalorder %s115, 0
      %p1043 = por %p1041, %p1042
      %p1044 = scmp.ne.s32.totalorder %s1036, %s1038
      %p1045 = scmp.eq.s32.totalorder %s120, 1
      %p1046 = por %p1044, %p1045
      %p1047 = scmp.ne.s32.totalorder %s1038, %s1039
      %p1048 = scmp.eq.s32.totalorder %s120, 0
      %p1049 = por %p1047, %p1048
      %p1050 = scmp.ne.s32.totalorder %s1038, %s1039
      %p1051 = scmp.eq.s32.totalorder %s121, 1
      %p1052 = por %p1050, %p1051
      %p1054 = scmp.ne.s32.totalorder %s1039, %s1053
      %p1055 = scmp.eq.s32.totalorder %s121, 0
      %p1056 = por %p1054, %p1055
      %s1058 = sadd.s32 %s1057, 1
      %p1061 = scmp.eq.s32.totalorder %s115, 1
      %p1062 = scmp.ne.s32.totalorder %s1057, %s1059
      %p1063 = scmp.eq.s32.totalorder %s115, 0
      %p1064 = por %p1062, %p1063
      %p1065 = scmp.ne.s32.totalorder %s1057, %s1059
      %p1066 = scmp.eq.s32.totalorder %s120, 1
      %p1067 = por %p1065, %p1066
      %p1068 = scmp.ne.s32.totalorder %s1059, %s1060
      %p1069 = scmp.eq.s32.totalorder %s120, 0
      %p1070 = por %p1068, %p1069
      %p1071 = scmp.ne.s32.totalorder %s1059, %s1060
      %p1072 = scmp.eq.s32.totalorder %s121, 1
      %p1073 = por %p1071, %p1072
      %p1075 = scmp.ne.s32.totalorder %s1060, %s1074
      %p1076 = scmp.eq.s32.totalorder %s121, 0
      %p1077 = por %p1075, %p1076
      %s1079 = sadd.s32 %s1078, 1
      %p1082 = scmp.eq.s32.totalorder %s115, 1
      %p1083 = scmp.ne.s32.totalorder %s1078, %s1080
      %p1084 = scmp.eq.s32.totalorder %s115, 0
      %p1085 = por %p1083, %p1084
      %p1086 = scmp.ne.s32.totalorder %s1078, %s1080
      %p1087 = scmp.eq.s32.totalorder %s120, 1
      %p1088 = por %p1086, %p1087
      %p1089 = scmp.ne.s32.totalorder %s1080, %s1081
      %p1090 = scmp.eq.s32.totalorder %s120, 0
      %p1091 = por %p1089, %p1090
      %p1092 = scmp.ne.s32.totalorder %s1080, %s1081
      %p1093 = scmp.eq.s32.totalorder %s121, 1
      %p1094 = por %p1092, %p1093
      %p1096 = scmp.ne.s32.totalorder %s1081, %s1095
      %p1097 = scmp.eq.s32.totalorder %s121, 0
      %p1098 = por %p1096, %p1097
      %s1100 = sadd.s32 %s1099, 1
      %p1103 = scmp.eq.s32.totalorder %s115, 1
      %p1104 = scmp.ne.s32.totalorder %s1099, %s1101
      %p1105 = scmp.eq.s32.totalorder %s115, 0
      %p1106 = por %p1104, %p1105
      %p1107 = scmp.ne.s32.totalorder %s1099, %s1101
      %p1108 = scmp.eq.s32.totalorder %s120, 1
      %p1109 = por %p1107, %p1108
      %p1110 = scmp.ne.s32.totalorder %s1101, %s1102
      %p1111 = scmp.eq.s32.totalorder %s120, 0
      %p1112 = por %p1110, %p1111
      %p1113 = scmp.ne.s32.totalorder %s1101, %s1102
      %p1114 = scmp.eq.s32.totalorder %s121, 1
      %p1115 = por %p1113, %p1114
      %p1117 = scmp.ne.s32.totalorder %s1102, %s1116
      %p1118 = scmp.eq.s32.totalorder %s121, 0
      %p1119 = por %p1117, %p1118
      %s1121 = sadd.s32 %s1120, 1
      %p1124 = scmp.eq.s32.totalorder %s115, 1
      %p1125 = scmp.ne.s32.totalorder %s1120, %s1122
      %p1126 = scmp.eq.s32.totalorder %s115, 0
      %p1127 = por %p1125, %p1126
      %p1128 = scmp.ne.s32.totalorder %s1120, %s1122
      %p1129 = scmp.eq.s32.totalorder %s120, 1
      %p1130 = por %p1128, %p1129
      %p1131 = scmp.ne.s32.totalorder %s1122, %s1123
      %p1132 = scmp.eq.s32.totalorder %s120, 0
      %p1133 = por %p1131, %p1132
      %p1134 = scmp.ne.s32.totalorder %s1122, %s1123
      %p1135 = scmp.eq.s32.totalorder %s121, 1
      %p1136 = por %p1134, %p1135
      %p1138 = scmp.ne.s32.totalorder %s1123, %s1137
      %p1139 = scmp.eq.s32.totalorder %s121, 0
      %p1140 = por %p1138, %p1139
      %s1142 = sadd.s32 %s1141, 1
      %p1145 = scmp.eq.s32.totalorder %s115, 1
      %p1146 = scmp.ne.s32.totalorder %s1141, %s1143
      %p1147 = scmp.eq.s32.totalorder %s115, 0
      %p1148 = por %p1146, %p1147
      %p1149 = scmp.ne.s32.totalorder %s1141, %s1143
      %p1150 = scmp.eq.s32.totalorder %s120, 1
      %p1151 = por %p1149, %p1150
      %p1152 = scmp.ne.s32.totalorder %s1143, %s1144
      %p1153 = scmp.eq.s32.totalorder %s120, 0
      %p1154 = por %p1152, %p1153
      %p1155 = scmp.ne.s32.totalorder %s1143, %s1144
      %p1156 = scmp.eq.s32.totalorder %s121, 1
      %p1157 = por %p1155, %p1156
      %p1159 = scmp.ne.s32.totalorder %s1144, %s1158
      %p1160 = scmp.eq.s32.totalorder %s121, 0
      %p1161 = por %p1159, %p1160
      %s1163 = sadd.s32 %s1162, 1
      %p1166 = scmp.eq.s32.totalorder %s115, 1
      %p1167 = scmp.ne.s32.totalorder %s1162, %s1164
      %p1168 = scmp.eq.s32.totalorder %s115, 0
      %p1169 = por %p1167, %p1168
      %p1170 = scmp.ne.s32.totalorder %s1162, %s1164
      %p1171 = scmp.eq.s32.totalorder %s120, 1
      %p1172 = por %p1170, %p1171
      %p1173 = scmp.ne.s32.totalorder %s1164, %s1165
      %p1174 = scmp.eq.s32.totalorder %s120, 0
      %p1175 = por %p1173, %p1174
      %p1176 = scmp.ne.s32.totalorder %s1164, %s1165
      %p1177 = scmp.eq.s32.totalorder %s121, 1
      %p1178 = por %p1176, %p1177
      %p1180 = scmp.ne.s32.totalorder %s1165, %s1179
      %p1181 = scmp.eq.s32.totalorder %s121, 0
      %p1182 = por %p1180, %p1181
      %s1183 = ssub.s32 %s115, %s122
      %p1184 = scmp.eq.s32.totalorder %s1183, 0
      %s1186 = sadd.s32 %s1185, 1
      %s1187 = scalar_select %p1184, %s1185, %s1186
      %p1190 = pneg %p1184
      %p1191 = scmp.eq.s32.totalorder %s115, 1
      %p1192 = por %p1190, %p1191
      %p1193 = scmp.ne.s32.totalorder %s1185, %s1188
      %p1194 = scmp.eq.s32.totalorder %s115, 0
      %p1195 = por %p1193, %p1194
      %p1196 = scmp.ne.s32.totalorder %s1185, %s1188
      %p1197 = scmp.eq.s32.totalorder %s120, 1
      %p1198 = por %p1196, %p1197
      %p1199 = scmp.ne.s32.totalorder %s1188, %s1189
      %p1200 = scmp.eq.s32.totalorder %s120, 0
      %p1201 = por %p1199, %p1200
      %p1202 = scmp.ne.s32.totalorder %s1188, %s1189
      %p1203 = scmp.eq.s32.totalorder %s121, 1
      %p1204 = por %p1202, %p1203
      %p1206 = scmp.ne.s32.totalorder %s1189, %s1205
      %p1207 = scmp.eq.s32.totalorder %s121, 0
      %p1208 = por %p1206, %p1207
      %p1209 = scmp.le.s32.totalorder 1, %s115
      %p1210 = scmp.lt.s32.totalorder %s115, 3
      %p1211 = pnand %p1209, %p1210
      %p1212 = pneg %p1211
      // Predicated region
      $region9: #{course_progress_classifier.1} parent=5 // pred_check
        _
      $region10: #{course_progress_classifier.1} parent=5 // pred_check_branch
        %1214 = sbr.rel (%p1211) target = $region12
      $region11: #{course_progress_classifier.1} parent=5 // pred_region
        %s1215 = ssub.s32 %s115, 1
        // Predicated region
        $region13: #{course_progress_classifier.1} parent=11 // pred_check
          %p1216 = pneg %p188
        $region14: #{course_progress_classifier.1} parent=11 // pred_check_branch
          %1218 = sbr.rel (%p1216) target = $region16
        $region15: #{course_progress_classifier.1} parent=11 // pred_region
          _
        $region16: #{course_progress_classifier.1} parent=11 // pred_fallthru
          _
        // Predicated region
        $region17: #{course_progress_classifier.1} parent=11 // pred_check
          %p1219 = pneg %p209
        $region18: #{course_progress_classifier.1} parent=11 // pred_check_branch
          %1221 = sbr.rel (%p1219) target = $region20
        $region19: #{course_progress_classifier.1} parent=11 // pred_region
          _
        $region20: #{course_progress_classifier.1} parent=11 // pred_fallthru
          _
        // Predicated region
        $region21: #{course_progress_classifier.1} parent=11 // pred_check
          %p1222 = pneg %p230
        $region22: #{course_progress_classifier.1} parent=11 // pred_check_branch
          %1224 = sbr.rel (%p1222) target = $region24
        $region23: #{course_progress_classifier.1} parent=11 // pred_region
          _
        $region24: #{course_progress_classifier.1} parent=11 // pred_fallthru
          _
        // Predicated region
        $region25: #{course_progress_classifier.1} parent=11 // pred_check
          %p1225 = pneg %p251
        $region26: #{course_progress_classifier.1} parent=11 // pred_check_branch
          %1227 = sbr.rel (%p1225) target = $region28
        $region27: #{course_progress_classifier.1} parent=11 // pred_region
          _
        $region28: #{course_progress_classifier.1} parent=11 // pred_fallthru
          _
        // Predicated region
        $region29: #{course_progress_classifier.1} parent=11 // pred_check
          %p1228 = pneg %p272
        $region30: #{course_progress_classifier.1} parent=11 // pred_check_branch
          %1230 = sbr.rel (%p1228) target = $region32
        $region31: #{course_progress_classifier.1} parent=11 // pred_region
          _
        $region32: #{course_progress_classifier.1} parent=11 // pred_fallthru
          _
        // Predicated region
        $region33: #{course_progress_classifier.1} parent=11 // pred_check
          %p1231 = pneg %p293
        $region34: #{course_progress_classifier.1} parent=11 // pred_check_branch
          %1233 = sbr.rel (%p1231) target = $region36
        $region35: #{course_progress_classifier.1} parent=11 // pred_region
          _
        $region36: #{course_progress_classifier.1} parent=11 // pred_fallthru
          _
        // Predicated region
        $region37: #{course_progress_classifier.1} parent=11 // pred_check
          %p1234 = pneg %p314
        $region38: #{course_progress_classifier.1} parent=11 // pred_check_branch
          %1236 = sbr.rel (%p1234) target = $region40
        $region39: #{course_progress_classifier.1} parent=11 // pred_region
          _
        $region40: #{course_progress_classifier.1} parent=11 // pred_fallthru
          _
        // Predicated region
        $region41: #{course_progress_classifier.1} parent=11 // pred_check
          %p1237 = pneg %p335
        $region42: #{course_progress_classifier.1} parent=11 // pred_check_branch
          %1239 = sbr.rel (%p1237) target = $region44
        $region43: #{course_progress_classifier.1} parent=11 // pred_region
          _
        $region44: #{course_progress_classifier.1} parent=11 // pred_fallthru
          _
        // Predicated region
        $region45: #{course_progress_classifier.1} parent=11 // pred_check
          %p1240 = pneg %p356
        $region46: #{course_progress_classifier.1} parent=11 // pred_check_branch
          %1242 = sbr.rel (%p1240) target = $region48
        $region47: #{course_progress_classifier.1} parent=11 // pred_region
          _
        $region48: #{course_progress_classifier.1} parent=11 // pred_fallthru
          _
        // Predicated region
        $region49: #{course_progress_classifier.1} parent=11 // pred_check
          %p1243 = pneg %p377
        $region50: #{course_progress_classifier.1} parent=11 // pred_check_branch
          %1245 = sbr.rel (%p1243) target = $region52
        $region51: #{course_progress_classifier.1} parent=11 // pred_region
          _
        $region52: #{course_progress_classifier.1} parent=11 // pred_fallthru
          _
        // Predicated region
        $region53: #{course_progress_classifier.1} parent=11 // pred_check
          %p1246 = pneg %p398
        $region54: #{course_progress_classifier.1} parent=11 // pred_check_branch
          %1248 = sbr.rel (%p1246) target = $region56
        $region55: #{course_progress_classifier.1} parent=11 // pred_region
          _
        $region56: #{course_progress_classifier.1} parent=11 // pred_fallthru
          _
        // Predicated region
        $region57: #{course_progress_classifier.1} parent=11 // pred_check
          %p1249 = pneg %p419
        $region58: #{course_progress_classifier.1} parent=11 // pred_check_branch
          %1251 = sbr.rel (%p1249) target = $region60
        $region59: #{course_progress_classifier.1} parent=11 // pred_region
          _
        $region60: #{course_progress_classifier.1} parent=11 // pred_fallthru
          _
        // Predicated region
        $region61: #{course_progress_classifier.1} parent=11 // pred_check
          %p1252 = pneg %p440
        $region62: #{course_progress_classifier.1} parent=11 // pred_check_branch
          %1254 = sbr.rel (%p1252) target = $region64
        $region63: #{course_progress_classifier.1} parent=11 // pred_region
          _
        $region64: #{course_progress_classifier.1} parent=11 // pred_fallthru
          _
        // Predicated region
        $region65: #{course_progress_classifier.1} parent=11 // pred_check
          %p1255 = pneg %p461
        $region66: #{course_progress_classifier.1} parent=11 // pred_check_branch
          %1257 = sbr.rel (%p1255) target = $region68
        $region67: #{course_progress_classifier.1} parent=11 // pred_region
          %s1259 = ssub.s32 16, 16
          %1260 = vsyncadd [#allocation3], %s1259
          %s1262 = sshll.u32 [#allocation2], 4
          %s1263 = int_to_ptr.vmem [resolvable:$true] %s1262
          %1265 = dma.hbm_to_vmem [thread:$0]  %s31, 16, %s1263, [#allocation3]
        $region68: #{course_progress_classifier.1} parent=11 // pred_fallthru
          _
        // Predicated region
        $region69: #{course_progress_classifier.1} parent=11 // pred_check
          %p1266 = pneg %p482
        $region70: #{course_progress_classifier.1} parent=11 // pred_check_branch
          %1268 = sbr.rel (%p1266) target = $region72
        $region71: #{course_progress_classifier.1} parent=11 // pred_region
          _
        $region72: #{course_progress_classifier.1} parent=11 // pred_fallthru
          _
        // Predicated region
        $region73: #{course_progress_classifier.1} parent=11 // pred_check
          %p1269 = pneg %p503
        $region74: #{course_progress_classifier.1} parent=11 // pred_check_branch
          %1271 = sbr.rel (%p1269) target = $region76
        $region75: #{course_progress_classifier.1} parent=11 // pred_region
          _
        $region76: #{course_progress_classifier.1} parent=11 // pred_fallthru
          _
        // Predicated region
        $region77: #{course_progress_classifier.1} parent=11 // pred_check
          %p1272 = pneg %p524
        $region78: #{course_progress_classifier.1} parent=11 // pred_check_branch
          %1274 = sbr.rel (%p1272) target = $region80
        $region79: #{course_progress_classifier.1} parent=11 // pred_region
          _
        $region80: #{course_progress_classifier.1} parent=11 // pred_fallthru
          _
        // Predicated region
        $region81: #{course_progress_classifier.1} parent=11 // pred_check
          %p1275 = pneg %p545
        $region82: #{course_progress_classifier.1} parent=11 // pred_check_branch
          %1277 = sbr.rel (%p1275) target = $region84
        $region83: #{course_progress_classifier.1} parent=11 // pred_region
          _
        $region84: #{course_progress_classifier.1} parent=11 // pred_fallthru
          _
        // Predicated region
        $region85: #{course_progress_classifier.1} parent=11 // pred_check
          %p1278 = pneg %p566
        $region86: #{course_progress_classifier.1} parent=11 // pred_check_branch
          %1280 = sbr.rel (%p1278) target = $region88
        $region87: #{course_progress_classifier.1} parent=11 // pred_region
          _
        $region88: #{course_progress_classifier.1} parent=11 // pred_fallthru
          _
        // Predicated region
        $region89: #{course_progress_classifier.1} parent=11 // pred_check
          %p1281 = pneg %p587
        $region90: #{course_progress_classifier.1} parent=11 // pred_check_branch
          %1283 = sbr.rel (%p1281) target = $region92
        $region91: #{course_progress_classifier.1} parent=11 // pred_region
          _
        $region92: #{course_progress_classifier.1} parent=11 // pred_fallthru
          _
        // Predicated region
        $region93: #{course_progress_classifier.1} parent=11 // pred_check
          %p1284 = pneg %p608
        $region94: #{course_progress_classifier.1} parent=11 // pred_check_branch
          %1286 = sbr.rel (%p1284) target = $region96
        $region95: #{course_progress_classifier.1} parent=11 // pred_region
          _
        $region96: #{course_progress_classifier.1} parent=11 // pred_fallthru
          _
        // Predicated region
        $region97: #{course_progress_classifier.1} parent=11 // pred_check
          %p1287 = pneg %p629
        $region98: #{course_progress_classifier.1} parent=11 // pred_check_branch
          %1289 = sbr.rel (%p1287) target = $region100
        $region99: #{course_progress_classifier.1} parent=11 // pred_region
          _
        $region100: #{course_progress_classifier.1} parent=11 // pred_fallthru
          _
        // Predicated region
        $region101: #{course_progress_classifier.1} parent=11 // pred_check
          %p1290 = pneg %p650
        $region102: #{course_progress_classifier.1} parent=11 // pred_check_branch
          %1292 = sbr.rel (%p1290) target = $region104
        $region103: #{course_progress_classifier.1} parent=11 // pred_region
          %s1294 = ssub.s32 16, 16
          %1295 = vsyncadd [#allocation6], %s1294
          %s1297 = sshll.u32 [#allocation5], 4
          %s1298 = int_to_ptr.vmem [resolvable:$true] %s1297
          %1300 = dma.hbm_to_vmem [thread:$0]  %s49, 16, %s1298, [#allocation6]
        $region104: #{course_progress_classifier.1} parent=11 // pred_fallthru
          _
        // Predicated region
        $region105: #{course_progress_classifier.1} parent=11 // pred_check
          %p1301 = pneg %p671
        $region106: #{course_progress_classifier.1} parent=11 // pred_check_branch
          %1303 = sbr.rel (%p1301) target = $region108
        $region107: #{course_progress_classifier.1} parent=11 // pred_region
          _
        $region108: #{course_progress_classifier.1} parent=11 // pred_fallthru
          _
        // Predicated region
        $region109: #{course_progress_classifier.1} parent=11 // pred_check
          %p1304 = pneg %p692
        $region110: #{course_progress_classifier.1} parent=11 // pred_check_branch
          %1306 = sbr.rel (%p1304) target = $region112
        $region111: #{course_progress_classifier.1} parent=11 // pred_region
          _
        $region112: #{course_progress_classifier.1} parent=11 // pred_fallthru
          _
        // Predicated region
        $region113: #{course_progress_classifier.1} parent=11 // pred_check
          %p1307 = pneg %p713
        $region114: #{course_progress_classifier.1} parent=11 // pred_check_branch
          %1309 = sbr.rel (%p1307) target = $region116
        $region115: #{course_progress_classifier.1} parent=11 // pred_region
          _
        $region116: #{course_progress_classifier.1} parent=11 // pred_fallthru
          _
        // Predicated region
        $region117: #{course_progress_classifier.1} parent=11 // pred_check
          %p1310 = pneg %p734
        $region118: #{course_progress_classifier.1} parent=11 // pred_check_branch
          %1312 = sbr.rel (%p1310) target = $region120
        $region119: #{course_progress_classifier.1} parent=11 // pred_region
          %s1314 = ssub.s32 16, 16
          %1315 = vsyncadd [#allocation6], %s1314
          %s1317 = sshll.u32 [#allocation7], 4
          %s1318 = int_to_ptr.vmem [resolvable:$true] %s1317
          %1320 = dma.hbm_to_vmem [thread:$0]  %s57, 16, %s1318, [#allocation6]
        $region120: #{course_progress_classifier.1} parent=11 // pred_fallthru
          _
        // Predicated region
        $region121: #{course_progress_classifier.1} parent=11 // pred_check
          %p1321 = pneg %p755
        $region122: #{course_progress_classifier.1} parent=11 // pred_check_branch
          %1323 = sbr.rel (%p1321) target = $region124
        $region123: #{course_progress_classifier.1} parent=11 // pred_region
          %s1325 = ssub.s32 16, 16
          %1326 = vsyncadd [#allocation9], %s1325
          %s1328 = sshll.u32 [#allocation8], 4
          %s1329 = int_to_ptr.vmem [resolvable:$true] %s1328
          %1331 = dma.hbm_to_vmem [thread:$0]  %s59, 16, %s1329, [#allocation9]
        $region124: #{course_progress_classifier.1} parent=11 // pred_fallthru
          _
        // Predicated region
        $region125: #{course_progress_classifier.1} parent=11 // pred_check
          %p1332 = pneg %p776
        $region126: #{course_progress_classifier.1} parent=11 // pred_check_branch
          %1334 = sbr.rel (%p1332) target = $region128
        $region127: #{course_progress_classifier.1} parent=11 // pred_region
          _
        $region128: #{course_progress_classifier.1} parent=11 // pred_fallthru
          _
        // Predicated region
        $region129: #{course_progress_classifier.1} parent=11 // pred_check
          %p1335 = pneg %p797
        $region130: #{course_progress_classifier.1} parent=11 // pred_check_branch
          %1337 = sbr.rel (%p1335) target = $region132
        $region131: #{course_progress_classifier.1} parent=11 // pred_region
          _
        $region132: #{course_progress_classifier.1} parent=11 // pred_fallthru
          _
        // Predicated region
        $region133: #{course_progress_classifier.1} parent=11 // pred_check
          %p1338 = pneg %p818
        $region134: #{course_progress_classifier.1} parent=11 // pred_check_branch
          %1340 = sbr.rel (%p1338) target = $region136
        $region135: #{course_progress_classifier.1} parent=11 // pred_region
          _
        $region136: #{course_progress_classifier.1} parent=11 // pred_fallthru
          _
        // Predicated region
        $region137: #{course_progress_classifier.1} parent=11 // pred_check
          %p1341 = pneg %p839
        $region138: #{course_progress_classifier.1} parent=11 // pred_check_branch
          %1343 = sbr.rel (%p1341) target = $region140
        $region139: #{course_progress_classifier.1} parent=11 // pred_region
          _
        $region140: #{course_progress_classifier.1} parent=11 // pred_fallthru
          _
        // Predicated region
        $region141: #{course_progress_classifier.1} parent=11 // pred_check
          %p1344 = pneg %p860
        $region142: #{course_progress_classifier.1} parent=11 // pred_check_branch
          %1346 = sbr.rel (%p1344) target = $region144
        $region143: #{course_progress_classifier.1} parent=11 // pred_region
          _
        $region144: #{course_progress_classifier.1} parent=11 // pred_fallthru
          _
        // Predicated region
        $region145: #{course_progress_classifier.1} parent=11 // pred_check
          %p1347 = pneg %p881
        $region146: #{course_progress_classifier.1} parent=11 // pred_check_branch
          %1349 = sbr.rel (%p1347) target = $region148
        $region147: #{course_progress_classifier.1} parent=11 // pred_region
          _
        $region148: #{course_progress_classifier.1} parent=11 // pred_fallthru
          _
        // Predicated region
        $region149: #{course_progress_classifier.1} parent=11 // pred_check
          %p1350 = pneg %p902
        $region150: #{course_progress_classifier.1} parent=11 // pred_check_branch
          %1352 = sbr.rel (%p1350) target = $region152
        $region151: #{course_progress_classifier.1} parent=11 // pred_region
          _
        $region152: #{course_progress_classifier.1} parent=11 // pred_fallthru
          _
        // Predicated region
        $region153: #{course_progress_classifier.1} parent=11 // pred_check
          %p1353 = pneg %p923
        $region154: #{course_progress_classifier.1} parent=11 // pred_check_branch
          %1355 = sbr.rel (%p1353) target = $region156
        $region155: #{course_progress_classifier.1} parent=11 // pred_region
          _
        $region156: #{course_progress_classifier.1} parent=11 // pred_fallthru
          _
        // Predicated region
        $region157: #{course_progress_classifier.1} parent=11 // pred_check
          %p1356 = pneg %p944
        $region158: #{course_progress_classifier.1} parent=11 // pred_check_branch
          %1358 = sbr.rel (%p1356) target = $region160
        $region159: #{course_progress_classifier.1} parent=11 // pred_region
          %s1360 = ssub.s32 16, 16
          %1361 = vsyncadd [#allocation9], %s1360
          %s1363 = sshll.u32 [#allocation10], 4
          %s1364 = int_to_ptr.vmem [resolvable:$true] %s1363
          %1366 = dma.hbm_to_vmem [thread:$0]  %s77, 16, %s1364, [#allocation9]
        $region160: #{course_progress_classifier.1} parent=11 // pred_fallthru
          _
        // Predicated region
        $region161: #{course_progress_classifier.1} parent=11 // pred_check
          %p1367 = pneg %p965
        $region162: #{course_progress_classifier.1} parent=11 // pred_check_branch
          %1369 = sbr.rel (%p1367) target = $region164
        $region163: #{course_progress_classifier.1} parent=11 // pred_region
          _
        $region164: #{course_progress_classifier.1} parent=11 // pred_fallthru
          _
        // Predicated region
        $region165: #{course_progress_classifier.1} parent=11 // pred_check
          %p1370 = pneg %p986
        $region166: #{course_progress_classifier.1} parent=11 // pred_check_branch
          %1372 = sbr.rel (%p1370) target = $region168
        $region167: #{course_progress_classifier.1} parent=11 // pred_region
          _
        $region168: #{course_progress_classifier.1} parent=11 // pred_fallthru
          _
        // Predicated region
        $region169: #{course_progress_classifier.1} parent=11 // pred_check
          %p1373 = pneg %p1007
        $region170: #{course_progress_classifier.1} parent=11 // pred_check_branch
          %1375 = sbr.rel (%p1373) target = $region172
        $region171: #{course_progress_classifier.1} parent=11 // pred_region
          _
        $region172: #{course_progress_classifier.1} parent=11 // pred_fallthru
          _
        // Predicated region
        $region173: #{course_progress_classifier.1} parent=11 // pred_check
          %p1376 = pneg %p1028
        $region174: #{course_progress_classifier.1} parent=11 // pred_check_branch
          %1378 = sbr.rel (%p1376) target = $region176
        $region175: #{course_progress_classifier.1} parent=11 // pred_region
          %s1380 = ssub.s32 16, 16
          %1381 = vsyncadd [#allocation12], %s1380
          %s1383 = sshll.u32 [#allocation11], 4
          %s1384 = int_to_ptr.vmem [resolvable:$true] %s1383
          %1386 = dma.hbm_to_vmem [thread:$0]  %s85, 16, %s1384, [#allocation12]
        $region176: #{course_progress_classifier.1} parent=11 // pred_fallthru
          _
        // Predicated region
        $region177: #{course_progress_classifier.1} parent=11 // pred_check
          %p1387 = pneg %p1049
        $region178: #{course_progress_classifier.1} parent=11 // pred_check_branch
          %1389 = sbr.rel (%p1387) target = $region180
        $region179: #{course_progress_classifier.1} parent=11 // pred_region
          %s1391 = ssub.s32 16, 16
          %1392 = vsyncadd [#allocation12], %s1391
          %s1394 = sshll.u32 [#allocation13], 4
          %s1395 = int_to_ptr.vmem [resolvable:$true] %s1394
          %1397 = dma.hbm_to_vmem [thread:$0]  %s87, 16, %s1395, [#allocation12]
        $region180: #{course_progress_classifier.1} parent=11 // pred_fallthru
          _
        // Predicated region
        $region181: #{course_progress_classifier.1} parent=11 // pred_check
          %p1398 = pneg %p1070
        $region182: #{course_progress_classifier.1} parent=11 // pred_check_branch
          %1400 = sbr.rel (%p1398) target = $region184
        $region183: #{course_progress_classifier.1} parent=11 // pred_region
          _
        $region184: #{course_progress_classifier.1} parent=11 // pred_fallthru
          _
        // Predicated region
        $region185: #{course_progress_classifier.1} parent=11 // pred_check
          %p1401 = pneg %p1091
        $region186: #{course_progress_classifier.1} parent=11 // pred_check_branch
          %1403 = sbr.rel (%p1401) target = $region188
        $region187: #{course_progress_classifier.1} parent=11 // pred_region
          _
        $region188: #{course_progress_classifier.1} parent=11 // pred_fallthru
          _
        // Predicated region
        $region189: #{course_progress_classifier.1} parent=11 // pred_check
          %p1404 = pneg %p1112
        $region190: #{course_progress_classifier.1} parent=11 // pred_check_branch
          %1406 = sbr.rel (%p1404) target = $region192
        $region191: #{course_progress_classifier.1} parent=11 // pred_region
          _
        $region192: #{course_progress_classifier.1} parent=11 // pred_fallthru
          _
        // Predicated region
        $region193: #{course_progress_classifier.1} parent=11 // pred_check
          %p1407 = pneg %p1133
        $region194: #{course_progress_classifier.1} parent=11 // pred_check_branch
          %1409 = sbr.rel (%p1407) target = $region196
        $region195: #{course_progress_classifier.1} parent=11 // pred_region
          _
        $region196: #{course_progress_classifier.1} parent=11 // pred_fallthru
          _
        // Predicated region
        $region197: #{course_progress_classifier.1} parent=11 // pred_check
          %p1410 = pneg %p1154
        $region198: #{course_progress_classifier.1} parent=11 // pred_check_branch
          %1412 = sbr.rel (%p1410) target = $region200
        $region199: #{course_progress_classifier.1} parent=11 // pred_region
          _
        $region200: #{course_progress_classifier.1} parent=11 // pred_fallthru
          _
        // Predicated region
        $region201: #{course_progress_classifier.1} parent=11 // pred_check
          %p1413 = pneg %p1175
        $region202: #{course_progress_classifier.1} parent=11 // pred_check_branch
          %1415 = sbr.rel (%p1413) target = $region204
        $region203: #{course_progress_classifier.1} parent=11 // pred_region
          %s1417 = ssub.s32 16, 16
          %1418 = vsyncadd [#allocation15], %s1417
          %s1420 = sshll.u32 [#allocation14], 4
          %s1421 = int_to_ptr.vmem [resolvable:$true] %s1420
          %1423 = dma.hbm_to_vmem [thread:$0]  %s99, 16, %s1421, [#allocation15]
        $region204: #{course_progress_classifier.1} parent=11 // pred_fallthru
          _
      $region12: #{course_progress_classifier.1} parent=5 // pred_fallthru
        _
      %p1424 = scmp.lt.s32.totalorder %s115, 2
      // Predicated region
      $region205: #{course_progress_classifier.1} parent=5 // pred_check
        %p1425 = pneg %p1424
      $region206: #{course_progress_classifier.1} parent=5 // pred_check_branch
        %1427 = sbr.rel (%p1425) target = $region208
      $region207: #{course_progress_classifier.1} parent=5 // pred_region
        // Predicated region
        $region209: #{course_progress_classifier.1} parent=207 // pred_check
          %p1428 = pneg %p135
        $region210: #{course_progress_classifier.1} parent=207 // pred_check_branch
          %1430 = sbr.rel (%p1428) target = $region212
        $region211: #{course_progress_classifier.1} parent=207 // pred_region
          %p1431 = scmp.lt.s32.totalorder %s115, 1
          %s1432 = scalar_select %p1431, %s115, 1
          %s1433 = smul.addr %s1432, 96
          %s1434 = smul.addr %s1433, 8
          %s1435 = scalar_lea.vmem %s1, %s1434
        $region212: #{course_progress_classifier.1} parent=207 // pred_fallthru
          _
        // Predicated region
        $region213: #{course_progress_classifier.1} parent=207 // pred_check
          %p1436 = pneg %p161
        $region214: #{course_progress_classifier.1} parent=207 // pred_check_branch
          %1438 = sbr.rel (%p1436) target = $region216
        $region215: #{course_progress_classifier.1} parent=207 // pred_region
          %p1439 = scmp.lt.s32.totalorder %s115, 1
          %s1440 = scalar_select %p1439, %s115, 1
          %s1441 = smul.addr %s1440, 8
          %s1442 = smul.addr %s1441, 8
          %s1443 = scalar_lea.vmem %s3, %s1442
        $region216: #{course_progress_classifier.1} parent=207 // pred_fallthru
          _
      $region208: #{course_progress_classifier.1} parent=5 // pred_fallthru
        _
      %p1444 = scmp.le.s32.totalorder 1, %s115
      %p1445 = scmp.lt.s32.totalorder %s115, 3
      %p1446 = pnand %p1444, %p1445
      %p1447 = pneg %p1446
      // Predicated region
      $region217: #{course_progress_classifier.1} parent=5 // pred_check
        _
      $region218: #{course_progress_classifier.1} parent=5 // pred_check_branch
        %1449 = sbr.rel (%p1446) target = $region220
      $region219: #{course_progress_classifier.1} parent=5 // pred_region
        %s1450 = ssub.s32 %s115, 1
        // Predicated region
        $region221: #{course_progress_classifier.1} parent=219 // pred_check
          %p1451 = pneg %p461
        $region222: #{course_progress_classifier.1} parent=219 // pred_check_branch
          %1453 = sbr.rel (%p1451) target = $region224
        $region223: #{course_progress_classifier.1} parent=219 // pred_region
          %1454 = dma.done [#allocation3], 16
        $region224: #{course_progress_classifier.1} parent=219 // pred_fallthru
          _
        // Predicated region
        $region225: #{course_progress_classifier.1} parent=219 // pred_check
          %p1455 = pneg %p650
        $region226: #{course_progress_classifier.1} parent=219 // pred_check_branch
          %1457 = sbr.rel (%p1455) target = $region228
        $region227: #{course_progress_classifier.1} parent=219 // pred_region
          %1458 = dma.done [#allocation6], 16
        $region228: #{course_progress_classifier.1} parent=219 // pred_fallthru
          _
        // Predicated region
        $region229: #{course_progress_classifier.1} parent=219 // pred_check
          %p1459 = pneg %p734
        $region230: #{course_progress_classifier.1} parent=219 // pred_check_branch
          %1461 = sbr.rel (%p1459) target = $region232
        $region231: #{course_progress_classifier.1} parent=219 // pred_region
          %1462 = dma.done [#allocation6], 16
        $region232: #{course_progress_classifier.1} parent=219 // pred_fallthru
          _
        // Predicated region
        $region233: #{course_progress_classifier.1} parent=219 // pred_check
          %p1463 = pneg %p755
        $region234: #{course_progress_classifier.1} parent=219 // pred_check_branch
          %1465 = sbr.rel (%p1463) target = $region236
        $region235: #{course_progress_classifier.1} parent=219 // pred_region
          %1466 = dma.done [#allocation9], 16
        $region236: #{course_progress_classifier.1} parent=219 // pred_fallthru
          _
        // Predicated region
        $region237: #{course_progress_classifier.1} parent=219 // pred_check
          %p1467 = pneg %p944
        $region238: #{course_progress_classifier.1} parent=219 // pred_check_branch
          %1469 = sbr.rel (%p1467) target = $region240
        $region239: #{course_progress_classifier.1} parent=219 // pred_region
          %1470 = dma.done [#allocation9], 16
        $region240: #{course_progress_classifier.1} parent=219 // pred_fallthru
          _
        // Predicated region
        $region241: #{course_progress_classifier.1} parent=219 // pred_check
          %p1471 = pneg %p1028
        $region242: #{course_progress_classifier.1} parent=219 // pred_check_branch
          %1473 = sbr.rel (%p1471) target = $region244
        $region243: #{course_progress_classifier.1} parent=219 // pred_region
          %1474 = dma.done [#allocation12], 16
        $region244: #{course_progress_classifier.1} parent=219 // pred_fallthru
          _
        // Predicated region
        $region245: #{course_progress_classifier.1} parent=219 // pred_check
          %p1475 = pneg %p1049
        $region246: #{course_progress_classifier.1} parent=219 // pred_check_branch
          %1477 = sbr.rel (%p1475) target = $region248
        $region247: #{course_progress_classifier.1} parent=219 // pred_region
          %1478 = dma.done [#allocation12], 16
        $region248: #{course_progress_classifier.1} parent=219 // pred_fallthru
          _
        // Predicated region
        $region249: #{course_progress_classifier.1} parent=219 // pred_check
          %p1479 = pneg %p1175
        $region250: #{course_progress_classifier.1} parent=219 // pred_check_branch
          %1481 = sbr.rel (%p1479) target = $region252
        $region251: #{course_progress_classifier.1} parent=219 // pred_region
          %1482 = dma.done [#allocation15], 16
        $region252: #{course_progress_classifier.1} parent=219 // pred_fallthru
          _
        %p1483 = scmp.lt.s32.totalorder %s120, 1
        %s1484 = scalar_select %p1483, %s120, 1
        %s1485 = smul.addr %s1484, 96
        %s1486 = smul.addr %s1485, 8
        %s1487 = scalar_lea.vmem %s1, %s1486
        %p1488 = pneg %p141
        %p1489 = pneg %p138
        %p1490 = scmp.lt.s32.totalorder %s120, 1
        %s1491 = scalar_select %p1490, %s120, 1
        %s1492 = smul.addr %s1491, 8
        %s1493 = smul.addr %s1492, 8
        %s1494 = scalar_lea.vmem %s3, %s1493
        %p1495 = pneg %p167
        %p1496 = pneg %p164
        %p1497 = pneg %p188
        %p1498 = pneg %p185
        %p1499 = pneg %p209
        %p1500 = pneg %p206
        %p1501 = pneg %p230
        %p1502 = pneg %p227
        %p1503 = pneg %p251
        %p1504 = pneg %p248
        %p1505 = pneg %p272
        %p1506 = pneg %p269
        %p1507 = pneg %p293
        %p1508 = pneg %p290
        %p1509 = pneg %p314
        %p1510 = pneg %p311
        %p1511 = pneg %p335
        %p1512 = pneg %p332
        %p1513 = pneg %p356
        %p1514 = pneg %p353
        %p1515 = pneg %p377
        %p1516 = pneg %p374
        %p1517 = pneg %p398
        %p1518 = pneg %p395
        %p1519 = pneg %p419
        %p1520 = pneg %p416
        %p1521 = pneg %p440
        %p1522 = pneg %p437
        %p1523 = pneg %p461
        %p1524 = pneg %p458
        %p1525 = pneg %p482
        %p1526 = pneg %p479
        %p1527 = pneg %p503
        %p1528 = pneg %p500
        %p1529 = pneg %p524
        %p1530 = pneg %p521
        %p1531 = pneg %p545
        %p1532 = pneg %p542
        %p1533 = pneg %p566
        %p1534 = pneg %p563
        %p1535 = pneg %p587
        %p1536 = pneg %p584
        %p1537 = pneg %p608
        %p1538 = pneg %p605
        %p1539 = pneg %p629
        %p1540 = pneg %p626
        %p1541 = pneg %p650
        %p1542 = pneg %p647
        %p1543 = pneg %p671
        %p1544 = pneg %p668
        %p1545 = pneg %p692
        %p1546 = pneg %p689
        %p1547 = pneg %p713
        %p1548 = pneg %p710
        %p1549 = pneg %p734
        %p1550 = pneg %p731
        %p1551 = pneg %p755
        %p1552 = pneg %p752
        %p1553 = pneg %p776
        %p1554 = pneg %p773
        %p1555 = pneg %p797
        %p1556 = pneg %p794
        %p1557 = pneg %p818
        %p1558 = pneg %p815
        %p1559 = pneg %p839
        %p1560 = pneg %p836
        %p1561 = pneg %p860
        %p1562 = pneg %p857
        %p1563 = pneg %p881
        %p1564 = pneg %p878
        %p1565 = pneg %p902
        %p1566 = pneg %p899
        %p1567 = pneg %p923
        %p1568 = pneg %p920
        %p1569 = pneg %p944
        %p1570 = pneg %p941
        %p1571 = pneg %p965
        %p1572 = pneg %p962
        %p1573 = pneg %p986
        %p1574 = pneg %p983
        %p1575 = pneg %p1007
        %p1576 = pneg %p1004
        %p1577 = pneg %p1028
        %p1578 = pneg %p1025
        %p1579 = pneg %p1049
        %p1580 = pneg %p1046
        %p1581 = pneg %p1070
        %p1582 = pneg %p1067
        %p1583 = pneg %p1091
        %p1584 = pneg %p1088
        %p1585 = pneg %p1112
        %p1586 = pneg %p1109
        %p1587 = pneg %p1133
        %p1588 = pneg %p1130
        %p1589 = pneg %p1154
        %p1590 = pneg %p1151
        %p1591 = pneg %p1175
        %p1592 = pneg %p1172
        %p1593 = pneg %p1201
        %p1594 = pneg %p1198
        %s1595 = sand.u32 %s1188, 1
        %s1596 = scalar_lea.sflag [#allocation4], %s1595
        %s1597 = sand.u32 %s1188, 1
        %s1598 = scalar_lea.vmem [#allocation16], %s1597
        %p1599 = scmp.lt.s32.totalorder %s120, 1
        %s1600 = scalar_select %p1599, %s120, 1
        %s1601 = smul.addr %s1600, 96
        %s1602 = smul.addr %s1601, 8
        %s1603 = scalar_lea.vmem %s1, %s1602
        %p1604 = scmp.lt.s32.totalorder %s120, 1
        %s1605 = scalar_select %p1604, %s120, 1
        %s1606 = smul.addr %s1605, 8
        %s1607 = smul.addr %s1606, 8
        %s1608 = scalar_lea.vmem %s3, %s1607
        %v1610 = vld [vmem:[%s1603] sm:$0xff]
        %v1611 = vld [vmem:[%s1603 + $0x8] sm:$0xff]
        %v1612 = vld [vmem:[%s1603 + $0x10] sm:$0xff]
        %v1613 = vld [vmem:[%s1603 + $0x18] sm:$0xff]
        %v1614 = vld [vmem:[%s1603 + $0x20] sm:$0xff]
        %v1615 = vld [vmem:[%s1603 + $0x28] sm:$0xff]
        %v1616 = vld [vmem:[%s1603 + $0x30] sm:$0xff]
        %v1617 = vld [vmem:[%s1603 + $0x38] sm:$0xff]
        %v1618 = vld [vmem:[%s1603 + $0x40] sm:$0xff]
        %v1619 = vld [vmem:[%s1603 + $0x48] sm:$0xff]
        %v1620 = vld [vmem:[%s1603 + $0x50] sm:$0xff]
        %v1621 = vld [vmem:[%s1603 + $0x58] sm:$0xff]
        %v1622 = vld [vmem:[%s1603 + $0x60] sm:$0xff]
        %v1623 = vld [vmem:[%s1603 + $0x68] sm:$0xff]
        %v1624 = vld [vmem:[%s1603 + $0x70] sm:$0xff]
        %v1625 = vld [vmem:[%s1603 + $0x78] sm:$0xff]
        %v1626 = vld [vmem:[%s1603 + $0x80] sm:$0xff]
        %v1627 = vld [vmem:[%s1603 + $0x88] sm:$0xff]
        %v1628 = vld [vmem:[%s1603 + $0x90] sm:$0xff]
        %v1629 = vld [vmem:[%s1603 + $0x98] sm:$0xff]
        %v1630 = vld [vmem:[%s1603 + $0xa0] sm:$0xff]
        %v1631 = vld [vmem:[%s1603 + $0xa8] sm:$0xff]
        %v1632 = vld [vmem:[%s1603 + $0xb0] sm:$0xff]
        %v1633 = vld [vmem:[%s1603 + $0xb8] sm:$0xff]
        %v1634 = vld [vmem:[%s1603 + $0xc0] sm:$0xff]
        %v1635 = vld [vmem:[%s1603 + $0xc8] sm:$0xff]
        %v1636 = vld [vmem:[%s1603 + $0xd0] sm:$0xff]
        %v1637 = vld [vmem:[%s1603 + $0xd8] sm:$0xff]
        %v1638 = vld [vmem:[%s1603 + $0xe0] sm:$0xff]
        %v1639 = vld [vmem:[%s1603 + $0xe8] sm:$0xff]
        %v1640 = vld [vmem:[%s1603 + $0xf0] sm:$0xff]
        %v1641 = vld [vmem:[%s1603 + $0xf8] sm:$0xff]
        %v1642 = vld [vmem:[%s1603 + $0x100] sm:$0xff]
        %v1643 = vld [vmem:[%s1603 + $0x108] sm:$0xff]
        %v1644 = vld [vmem:[%s1603 + $0x110] sm:$0xff]
        %v1645 = vld [vmem:[%s1603 + $0x118] sm:$0xff]
        %v1646 = vld [vmem:[%s1603 + $0x120] sm:$0xff]
        %v1647 = vld [vmem:[%s1603 + $0x128] sm:$0xff]
        %v1648 = vld [vmem:[%s1603 + $0x130] sm:$0xff]
        %v1649 = vld [vmem:[%s1603 + $0x138] sm:$0xff]
        %v1650 = vld [vmem:[%s1603 + $0x140] sm:$0xff]
        %v1651 = vld [vmem:[%s1603 + $0x148] sm:$0xff]
        %v1652 = vld [vmem:[%s1603 + $0x150] sm:$0xff]
        %v1653 = vld [vmem:[%s1603 + $0x158] sm:$0xff]
        %v1654 = vld [vmem:[%s1603 + $0x160] sm:$0xff]
        %v1655 = vld [vmem:[%s1603 + $0x168] sm:$0xff]
        %v1656 = vld [vmem:[%s1603 + $0x170] sm:$0xff]
        %v1657 = vld [vmem:[%s1603 + $0x178] sm:$0xff]
        %v1658 = vld [vmem:[%s1603 + $0x180] sm:$0xff]
        %v1659 = vld [vmem:[%s1603 + $0x188] sm:$0xff]
        %v1660 = vld [vmem:[%s1603 + $0x190] sm:$0xff]
        %v1661 = vld [vmem:[%s1603 + $0x198] sm:$0xff]
        %v1662 = vld [vmem:[%s1603 + $0x1a0] sm:$0xff]
        %v1663 = vld [vmem:[%s1603 + $0x1a8] sm:$0xff]
        %v1664 = vld [vmem:[%s1603 + $0x1b0] sm:$0xff]
        %v1665 = vld [vmem:[%s1603 + $0x1b8] sm:$0xff]
        %v1666 = vld [vmem:[%s1603 + $0x1c0] sm:$0xff]
        %v1667 = vld [vmem:[%s1603 + $0x1c8] sm:$0xff]
        %v1668 = vld [vmem:[%s1603 + $0x1d0] sm:$0xff]
        %v1669 = vld [vmem:[%s1603 + $0x1d8] sm:$0xff]
        %v1670 = vld [vmem:[%s1603 + $0x1e0] sm:$0xff]
        %v1671 = vld [vmem:[%s1603 + $0x1e8] sm:$0xff]
        %v1672 = vld [vmem:[%s1603 + $0x1f0] sm:$0xff]
        %v1673 = vld [vmem:[%s1603 + $0x1f8] sm:$0xff]
        %v1674 = vld [vmem:[%s1603 + $0x200] sm:$0xff]
        %v1675 = vld [vmem:[%s1603 + $0x208] sm:$0xff]
        %v1676 = vld [vmem:[%s1603 + $0x210] sm:$0xff]
        %v1677 = vld [vmem:[%s1603 + $0x218] sm:$0xff]
        %v1678 = vld [vmem:[%s1603 + $0x220] sm:$0xff]
        %v1679 = vld [vmem:[%s1603 + $0x228] sm:$0xff]
        %v1680 = vld [vmem:[%s1603 + $0x230] sm:$0xff]
        %v1681 = vld [vmem:[%s1603 + $0x238] sm:$0xff]
        %v1682 = vld [vmem:[%s1603 + $0x240] sm:$0xff]
        %v1683 = vld [vmem:[%s1603 + $0x248] sm:$0xff]
        %v1684 = vld [vmem:[%s1603 + $0x250] sm:$0xff]
        %v1685 = vld [vmem:[%s1603 + $0x258] sm:$0xff]
        %v1686 = vld [vmem:[%s1603 + $0x260] sm:$0xff]
        %v1687 = vld [vmem:[%s1603 + $0x268] sm:$0xff]
        %v1688 = vld [vmem:[%s1603 + $0x270] sm:$0xff]
        %v1689 = vld [vmem:[%s1603 + $0x278] sm:$0xff]
        %v1690 = vld [vmem:[%s1603 + $0x280] sm:$0xff]
        %v1691 = vld [vmem:[%s1603 + $0x288] sm:$0xff]
        %v1692 = vld [vmem:[%s1603 + $0x290] sm:$0xff]
        %v1693 = vld [vmem:[%s1603 + $0x298] sm:$0xff]
        %v1694 = vld [vmem:[%s1603 + $0x2a0] sm:$0xff]
        %v1695 = vld [vmem:[%s1603 + $0x2a8] sm:$0xff]
        %v1696 = vld [vmem:[%s1603 + $0x2b0] sm:$0xff]
        %v1697 = vld [vmem:[%s1603 + $0x2b8] sm:$0xff]
        %v1698 = vld [vmem:[%s1603 + $0x2c0] sm:$0xff]
        %v1699 = vld [vmem:[%s1603 + $0x2c8] sm:$0xff]
        %v1700 = vld [vmem:[%s1603 + $0x2d0] sm:$0xff]
        %v1701 = vld [vmem:[%s1603 + $0x2d8] sm:$0xff]
        %v1702 = vld [vmem:[%s1603 + $0x2e0] sm:$0xff]
        %v1703 = vld [vmem:[%s1603 + $0x2e8] sm:$0xff]
        %v1704 = vld [vmem:[%s1603 + $0x2f0] sm:$0xff]
        %v1705 = vld [vmem:[%s1603 + $0x2f8] sm:$0xff]
        %v1706 = vld [vmem:[%s1608] sm:$0xff]
        %v1707 = vld [vmem:[%s1608 + $0x8] sm:$0xff]
        %v1708 = vld [vmem:[%s1608 + $0x10] sm:$0xff]
        %v1709 = vld [vmem:[%s1608 + $0x18] sm:$0xff]
        %v1710 = vld [vmem:[%s1608 + $0x20] sm:$0xff]
        %v1711 = vld [vmem:[%s1608 + $0x28] sm:$0xff]
        %v1712 = vld [vmem:[%s1608 + $0x30] sm:$0xff]
        %v1713 = vld [vmem:[%s1608 + $0x38] sm:$0xff]
        %v1714 = vld [vmem:[%s5] sm:$0x3]
        %1716 = vset.pattern.permute.xlu0 0
        %1717 = vperm.xlu0 %1716, %v1610
        %v1718 = vpop.permute.xlu0 %1717
        %1721 = vset.pattern.permute.xlu0 0
        %1722 = vperm.xlu0 %1721, %v1611
        %v1723 = vpop.permute.xlu0 %1722
        %1726 = vset.pattern.permute.xlu0 0
        %1727 = vperm.xlu0 %1726, %v1612
        %v1728 = vpop.permute.xlu0 %1727
        %1731 = vset.pattern.permute.xlu0 0
        %1732 = vperm.xlu0 %1731, %v1613
        %v1733 = vpop.permute.xlu0 %1732
        %1736 = vset.pattern.permute.xlu0 0
        %1737 = vperm.xlu0 %1736, %v1614
        %v1738 = vpop.permute.xlu0 %1737
        %1741 = vset.pattern.permute.xlu0 0
        %1742 = vperm.xlu0 %1741, %v1615
        %v1743 = vpop.permute.xlu0 %1742
        %1746 = vset.pattern.permute.xlu0 0
        %1747 = vperm.xlu0 %1746, %v1616
        %v1748 = vpop.permute.xlu0 %1747
        %1751 = vset.pattern.permute.xlu0 0
        %1752 = vperm.xlu0 %1751, %v1617
        %v1753 = vpop.permute.xlu0 %1752
        %1756 = vset.pattern.permute.xlu0 0
        %1757 = vperm.xlu0 %1756, %v1618
        %v1758 = vpop.permute.xlu0 %1757
        %1761 = vset.pattern.permute.xlu0 0
        %1762 = vperm.xlu0 %1761, %v1619
        %v1763 = vpop.permute.xlu0 %1762
        %1766 = vset.pattern.permute.xlu0 0
        %1767 = vperm.xlu0 %1766, %v1620
        %v1768 = vpop.permute.xlu0 %1767
        %1771 = vset.pattern.permute.xlu0 0
        %1772 = vperm.xlu0 %1771, %v1621
        %v1773 = vpop.permute.xlu0 %1772
        %1776 = vset.pattern.permute.xlu0 0
        %1777 = vperm.xlu0 %1776, %v1622
        %v1778 = vpop.permute.xlu0 %1777
        %1781 = vset.pattern.permute.xlu0 0
        %1782 = vperm.xlu0 %1781, %v1623
        %v1783 = vpop.permute.xlu0 %1782
        %1786 = vset.pattern.permute.xlu0 0
        %1787 = vperm.xlu0 %1786, %v1624
        %v1788 = vpop.permute.xlu0 %1787
        %1791 = vset.pattern.permute.xlu0 0
        %1792 = vperm.xlu0 %1791, %v1625
        %v1793 = vpop.permute.xlu0 %1792
        %1796 = vset.pattern.permute.xlu0 0
        %1797 = vperm.xlu0 %1796, %v1626
        %v1798 = vpop.permute.xlu0 %1797
        %1801 = vset.pattern.permute.xlu0 0
        %1802 = vperm.xlu0 %1801, %v1627
        %v1803 = vpop.permute.xlu0 %1802
        %1806 = vset.pattern.permute.xlu0 0
        %1807 = vperm.xlu0 %1806, %v1628
        %v1808 = vpop.permute.xlu0 %1807
        %1811 = vset.pattern.permute.xlu0 0
        %1812 = vperm.xlu0 %1811, %v1629
        %v1813 = vpop.permute.xlu0 %1812
        %1816 = vset.pattern.permute.xlu0 0
        %1817 = vperm.xlu0 %1816, %v1630
        %v1818 = vpop.permute.xlu0 %1817
        %1821 = vset.pattern.permute.xlu0 0
        %1822 = vperm.xlu0 %1821, %v1631
        %v1823 = vpop.permute.xlu0 %1822
        %1826 = vset.pattern.permute.xlu0 0
        %1827 = vperm.xlu0 %1826, %v1632
        %v1828 = vpop.permute.xlu0 %1827
        %1831 = vset.pattern.permute.xlu0 0
        %1832 = vperm.xlu0 %1831, %v1633
        %v1833 = vpop.permute.xlu0 %1832
        %1836 = vset.pattern.permute.xlu0 0
        %1837 = vperm.xlu0 %1836, %v1634
        %v1838 = vpop.permute.xlu0 %1837
        %1841 = vset.pattern.permute.xlu0 0
        %1842 = vperm.xlu0 %1841, %v1635
        %v1843 = vpop.permute.xlu0 %1842
        %1846 = vset.pattern.permute.xlu0 0
        %1847 = vperm.xlu0 %1846, %v1636
        %v1848 = vpop.permute.xlu0 %1847
        %1851 = vset.pattern.permute.xlu0 0
        %1852 = vperm.xlu0 %1851, %v1637
        %v1853 = vpop.permute.xlu0 %1852
        %1856 = vset.pattern.permute.xlu0 0
        %1857 = vperm.xlu0 %1856, %v1638
        %v1858 = vpop.permute.xlu0 %1857
        %1861 = vset.pattern.permute.xlu0 0
        %1862 = vperm.xlu0 %1861, %v1639
        %v1863 = vpop.permute.xlu0 %1862
        %1866 = vset.pattern.permute.xlu0 0
        %1867 = vperm.xlu0 %1866, %v1640
        %v1868 = vpop.permute.xlu0 %1867
        %1871 = vset.pattern.permute.xlu0 0
        %1872 = vperm.xlu0 %1871, %v1641
        %v1873 = vpop.permute.xlu0 %1872
        %v1876 = vlaneseq
        %v1877 = vshrl.u32 %v1876, 7
        %v1878 = vsub.s32 0, %v1877
        %v1879 = vrot.slane %v1714, %v1878
        %v1880 = vlaneseq
        %v1881 = vshrl.u32 %v1880, 7
        %v1882 = vsub.s32 1, %v1881
        %v1883 = vrot.slane %v1714, %v1882
        %v1886 = vmul.f32 %v1718, %v1879
        %v1887 = vmul.f32 %v1718, %v1883
        %v1888 = vmul.f32 %v1723, %v1879
        %v1889 = vmul.f32 %v1723, %v1883
        %v1890 = vmul.f32 %v1728, %v1879
        %v1891 = vmul.f32 %v1728, %v1883
        %v1892 = vmul.f32 %v1733, %v1879
        %v1893 = vmul.f32 %v1733, %v1883
        %v1894 = vmul.f32 %v1738, %v1879
        %v1895 = vmul.f32 %v1738, %v1883
        %v1896 = vmul.f32 %v1743, %v1879
        %v1897 = vmul.f32 %v1743, %v1883
        %v1898 = vmul.f32 %v1748, %v1879
        %v1899 = vmul.f32 %v1748, %v1883
        %v1900 = vmul.f32 %v1753, %v1879
        %v1901 = vmul.f32 %v1753, %v1883
        %v1902 = vmul.f32 %v1758, %v1879
        %v1903 = vmul.f32 %v1758, %v1883
        %v1904 = vmul.f32 %v1763, %v1879
        %v1905 = vmul.f32 %v1763, %v1883
        %v1906 = vmul.f32 %v1768, %v1879
        %v1907 = vmul.f32 %v1768, %v1883
        %v1908 = vmul.f32 %v1773, %v1879
        %v1909 = vmul.f32 %v1773, %v1883
        %v1910 = vmul.f32 %v1778, %v1879
        %v1911 = vmul.f32 %v1778, %v1883
        %v1912 = vmul.f32 %v1783, %v1879
        %v1913 = vmul.f32 %v1783, %v1883
        %v1914 = vmul.f32 %v1788, %v1879
        %v1915 = vmul.f32 %v1788, %v1883
        %v1916 = vmul.f32 %v1793, %v1879
        %v1917 = vmul.f32 %v1793, %v1883
        %v1918 = vmul.f32 %v1798, %v1879
        %v1919 = vmul.f32 %v1798, %v1883
        %v1920 = vmul.f32 %v1803, %v1879
        %v1921 = vmul.f32 %v1803, %v1883
        %v1922 = vmul.f32 %v1808, %v1879
        %v1923 = vmul.f32 %v1808, %v1883
        %v1924 = vmul.f32 %v1813, %v1879
        %v1925 = vmul.f32 %v1813, %v1883
        %v1926 = vmul.f32 %v1818, %v1879
        %v1927 = vmul.f32 %v1818, %v1883
        %v1928 = vmul.f32 %v1823, %v1879
        %v1929 = vmul.f32 %v1823, %v1883
        %v1930 = vmul.f32 %v1828, %v1879
        %v1931 = vmul.f32 %v1828, %v1883
        %v1932 = vmul.f32 %v1833, %v1879
        %v1933 = vmul.f32 %v1833, %v1883
        %v1934 = vmul.f32 %v1838, %v1879
        %v1935 = vmul.f32 %v1838, %v1883
        %v1936 = vmul.f32 %v1843, %v1879
        %v1937 = vmul.f32 %v1843, %v1883
        %v1938 = vmul.f32 %v1848, %v1879
        %v1939 = vmul.f32 %v1848, %v1883
        %v1940 = vmul.f32 %v1853, %v1879
        %v1941 = vmul.f32 %v1853, %v1883
        %v1942 = vmul.f32 %v1858, %v1879
        %v1943 = vmul.f32 %v1858, %v1883
        %v1944 = vmul.f32 %v1863, %v1879
        %v1945 = vmul.f32 %v1863, %v1883
        %v1946 = vmul.f32 %v1868, %v1879
        %v1947 = vmul.f32 %v1868, %v1883
        %v1948 = vmul.f32 %v1873, %v1879
        %v1949 = vmul.f32 %v1873, %v1883
        %s1950 = scalar_lea.vmem %s5, 2
        %v1951 = vld [vmem:[%s1950] sm:$0x3]
        %1953 = vset.pattern.permute.xlu0 0
        %1954 = vperm.xlu0 %1953, %v1642
        %v1955 = vpop.permute.xlu0 %1954
        %1958 = vset.pattern.permute.xlu0 0
        %1959 = vperm.xlu0 %1958, %v1643
        %v1960 = vpop.permute.xlu0 %1959
        %1963 = vset.pattern.permute.xlu0 0
        %1964 = vperm.xlu0 %1963, %v1644
        %v1965 = vpop.permute.xlu0 %1964
        %1968 = vset.pattern.permute.xlu0 0
        %1969 = vperm.xlu0 %1968, %v1645
        %v1970 = vpop.permute.xlu0 %1969
        %1973 = vset.pattern.permute.xlu0 0
        %1974 = vperm.xlu0 %1973, %v1646
        %v1975 = vpop.permute.xlu0 %1974
        %1978 = vset.pattern.permute.xlu0 0
        %1979 = vperm.xlu0 %1978, %v1647
        %v1980 = vpop.permute.xlu0 %1979
        %1983 = vset.pattern.permute.xlu0 0
        %1984 = vperm.xlu0 %1983, %v1648
        %v1985 = vpop.permute.xlu0 %1984
        %1988 = vset.pattern.permute.xlu0 0
        %1989 = vperm.xlu0 %1988, %v1649
        %v1990 = vpop.permute.xlu0 %1989
        %1993 = vset.pattern.permute.xlu0 0
        %1994 = vperm.xlu0 %1993, %v1650
        %v1995 = vpop.permute.xlu0 %1994
        %1998 = vset.pattern.permute.xlu0 0
        %1999 = vperm.xlu0 %1998, %v1651
        %v2000 = vpop.permute.xlu0 %1999
        %2003 = vset.pattern.permute.xlu0 0
        %2004 = vperm.xlu0 %2003, %v1652
        %v2005 = vpop.permute.xlu0 %2004
        %2008 = vset.pattern.permute.xlu0 0
        %2009 = vperm.xlu0 %2008, %v1653
        %v2010 = vpop.permute.xlu0 %2009
        %2013 = vset.pattern.permute.xlu0 0
        %2014 = vperm.xlu0 %2013, %v1654
        %v2015 = vpop.permute.xlu0 %2014
        %2018 = vset.pattern.permute.xlu0 0
        %2019 = vperm.xlu0 %2018, %v1655
        %v2020 = vpop.permute.xlu0 %2019
        %2023 = vset.pattern.permute.xlu0 0
        %2024 = vperm.xlu0 %2023, %v1656
        %v2025 = vpop.permute.xlu0 %2024
        %2028 = vset.pattern.permute.xlu0 0
        %2029 = vperm.xlu0 %2028, %v1657
        %v2030 = vpop.permute.xlu0 %2029
        %2033 = vset.pattern.permute.xlu0 0
        %2034 = vperm.xlu0 %2033, %v1658
        %v2035 = vpop.permute.xlu0 %2034
        %2038 = vset.pattern.permute.xlu0 0
        %2039 = vperm.xlu0 %2038, %v1659
        %v2040 = vpop.permute.xlu0 %2039
        %2043 = vset.pattern.permute.xlu0 0
        %2044 = vperm.xlu0 %2043, %v1660
        %v2045 = vpop.permute.xlu0 %2044
        %2048 = vset.pattern.permute.xlu0 0
        %2049 = vperm.xlu0 %2048, %v1661
        %v2050 = vpop.permute.xlu0 %2049
        %2053 = vset.pattern.permute.xlu0 0
        %2054 = vperm.xlu0 %2053, %v1662
        %v2055 = vpop.permute.xlu0 %2054
        %2058 = vset.pattern.permute.xlu0 0
        %2059 = vperm.xlu0 %2058, %v1663
        %v2060 = vpop.permute.xlu0 %2059
        %2063 = vset.pattern.permute.xlu0 0
        %2064 = vperm.xlu0 %2063, %v1664
        %v2065 = vpop.permute.xlu0 %2064
        %2068 = vset.pattern.permute.xlu0 0
        %2069 = vperm.xlu0 %2068, %v1665
        %v2070 = vpop.permute.xlu0 %2069
        %2073 = vset.pattern.permute.xlu0 0
        %2074 = vperm.xlu0 %2073, %v1666
        %v2075 = vpop.permute.xlu0 %2074
        %2078 = vset.pattern.permute.xlu0 0
        %2079 = vperm.xlu0 %2078, %v1667
        %v2080 = vpop.permute.xlu0 %2079
        %2083 = vset.pattern.permute.xlu0 0
        %2084 = vperm.xlu0 %2083, %v1668
        %v2085 = vpop.permute.xlu0 %2084
        %2088 = vset.pattern.permute.xlu0 0
        %2089 = vperm.xlu0 %2088, %v1669
        %v2090 = vpop.permute.xlu0 %2089
        %2093 = vset.pattern.permute.xlu0 0
        %2094 = vperm.xlu0 %2093, %v1670
        %v2095 = vpop.permute.xlu0 %2094
        %2098 = vset.pattern.permute.xlu0 0
        %2099 = vperm.xlu0 %2098, %v1671
        %v2100 = vpop.permute.xlu0 %2099
        %2103 = vset.pattern.permute.xlu0 0
        %2104 = vperm.xlu0 %2103, %v1672
        %v2105 = vpop.permute.xlu0 %2104
        %2108 = vset.pattern.permute.xlu0 0
        %2109 = vperm.xlu0 %2108, %v1673
        %v2110 = vpop.permute.xlu0 %2109
        %v2113 = vlaneseq
        %v2114 = vshrl.u32 %v2113, 7
        %v2115 = vsub.s32 0, %v2114
        %v2116 = vrot.slane %v1951, %v2115
        %v2117 = vlaneseq
        %v2118 = vshrl.u32 %v2117, 7
        %v2119 = vsub.s32 1, %v2118
        %v2120 = vrot.slane %v1951, %v2119
        %v2123 = vmul.f32 %v1955, %v2116
        %v2124 = vmul.f32 %v1955, %v2120
        %v2125 = vmul.f32 %v1960, %v2116
        %v2126 = vmul.f32 %v1960, %v2120
        %v2127 = vmul.f32 %v1965, %v2116
        %v2128 = vmul.f32 %v1965, %v2120
        %v2129 = vmul.f32 %v1970, %v2116
        %v2130 = vmul.f32 %v1970, %v2120
        %v2131 = vmul.f32 %v1975, %v2116
        %v2132 = vmul.f32 %v1975, %v2120
        %v2133 = vmul.f32 %v1980, %v2116
        %v2134 = vmul.f32 %v1980, %v2120
        %v2135 = vmul.f32 %v1985, %v2116
        %v2136 = vmul.f32 %v1985, %v2120
        %v2137 = vmul.f32 %v1990, %v2116
        %v2138 = vmul.f32 %v1990, %v2120
        %v2139 = vmul.f32 %v1995, %v2116
        %v2140 = vmul.f32 %v1995, %v2120
        %v2141 = vmul.f32 %v2000, %v2116
        %v2142 = vmul.f32 %v2000, %v2120
        %v2143 = vmul.f32 %v2005, %v2116
        %v2144 = vmul.f32 %v2005, %v2120
        %v2145 = vmul.f32 %v2010, %v2116
        %v2146 = vmul.f32 %v2010, %v2120
        %v2147 = vmul.f32 %v2015, %v2116
        %v2148 = vmul.f32 %v2015, %v2120
        %v2149 = vmul.f32 %v2020, %v2116
        %v2150 = vmul.f32 %v2020, %v2120
        %v2151 = vmul.f32 %v2025, %v2116
        %v2152 = vmul.f32 %v2025, %v2120
        %v2153 = vmul.f32 %v2030, %v2116
        %v2154 = vmul.f32 %v2030, %v2120
        %v2155 = vmul.f32 %v2035, %v2116
        %v2156 = vmul.f32 %v2035, %v2120
        %v2157 = vmul.f32 %v2040, %v2116
        %v2158 = vmul.f32 %v2040, %v2120
        %v2159 = vmul.f32 %v2045, %v2116
        %v2160 = vmul.f32 %v2045, %v2120
        %v2161 = vmul.f32 %v2050, %v2116
        %v2162 = vmul.f32 %v2050, %v2120
        %v2163 = vmul.f32 %v2055, %v2116
        %v2164 = vmul.f32 %v2055, %v2120
        %v2165 = vmul.f32 %v2060, %v2116
        %v2166 = vmul.f32 %v2060, %v2120
        %v2167 = vmul.f32 %v2065, %v2116
        %v2168 = vmul.f32 %v2065, %v2120
        %v2169 = vmul.f32 %v2070, %v2116
        %v2170 = vmul.f32 %v2070, %v2120
        %v2171 = vmul.f32 %v2075, %v2116
        %v2172 = vmul.f32 %v2075, %v2120
        %v2173 = vmul.f32 %v2080, %v2116
        %v2174 = vmul.f32 %v2080, %v2120
        %v2175 = vmul.f32 %v2085, %v2116
        %v2176 = vmul.f32 %v2085, %v2120
        %v2177 = vmul.f32 %v2090, %v2116
        %v2178 = vmul.f32 %v2090, %v2120
        %v2179 = vmul.f32 %v2095, %v2116
        %v2180 = vmul.f32 %v2095, %v2120
        %v2181 = vmul.f32 %v2100, %v2116
        %v2182 = vmul.f32 %v2100, %v2120
        %v2183 = vmul.f32 %v2105, %v2116
        %v2184 = vmul.f32 %v2105, %v2120
        %v2185 = vmul.f32 %v2110, %v2116
        %v2186 = vmul.f32 %v2110, %v2120
        %v2187 = vadd.f32 %v1886, %v2123
        %v2188 = vadd.f32 %v1887, %v2124
        %v2189 = vadd.f32 %v1888, %v2125
        %v2190 = vadd.f32 %v1889, %v2126
        %v2191 = vadd.f32 %v1890, %v2127
        %v2192 = vadd.f32 %v1891, %v2128
        %v2193 = vadd.f32 %v1892, %v2129
        %v2194 = vadd.f32 %v1893, %v2130
        %v2195 = vadd.f32 %v1894, %v2131
        %v2196 = vadd.f32 %v1895, %v2132
        %v2197 = vadd.f32 %v1896, %v2133
        %v2198 = vadd.f32 %v1897, %v2134
        %v2199 = vadd.f32 %v1898, %v2135
        %v2200 = vadd.f32 %v1899, %v2136
        %v2201 = vadd.f32 %v1900, %v2137
        %v2202 = vadd.f32 %v1901, %v2138
        %v2203 = vadd.f32 %v1902, %v2139
        %v2204 = vadd.f32 %v1903, %v2140
        %v2205 = vadd.f32 %v1904, %v2141
        %v2206 = vadd.f32 %v1905, %v2142
        %v2207 = vadd.f32 %v1906, %v2143
        %v2208 = vadd.f32 %v1907, %v2144
        %v2209 = vadd.f32 %v1908, %v2145
        %v2210 = vadd.f32 %v1909, %v2146
        %v2211 = vadd.f32 %v1910, %v2147
        %v2212 = vadd.f32 %v1911, %v2148
        %v2213 = vadd.f32 %v1912, %v2149
        %v2214 = vadd.f32 %v1913, %v2150
        %v2215 = vadd.f32 %v1914, %v2151
        %v2216 = vadd.f32 %v1915, %v2152
        %v2217 = vadd.f32 %v1916, %v2153
        %v2218 = vadd.f32 %v1917, %v2154
        %v2219 = vadd.f32 %v1918, %v2155
        %v2220 = vadd.f32 %v1919, %v2156
        %v2221 = vadd.f32 %v1920, %v2157
        %v2222 = vadd.f32 %v1921, %v2158
        %v2223 = vadd.f32 %v1922, %v2159
        %v2224 = vadd.f32 %v1923, %v2160
        %v2225 = vadd.f32 %v1924, %v2161
        %v2226 = vadd.f32 %v1925, %v2162
        %v2227 = vadd.f32 %v1926, %v2163
        %v2228 = vadd.f32 %v1927, %v2164
        %v2229 = vadd.f32 %v1928, %v2165
        %v2230 = vadd.f32 %v1929, %v2166
        %v2231 = vadd.f32 %v1930, %v2167
        %v2232 = vadd.f32 %v1931, %v2168
        %v2233 = vadd.f32 %v1932, %v2169
        %v2234 = vadd.f32 %v1933, %v2170
        %v2235 = vadd.f32 %v1934, %v2171
        %v2236 = vadd.f32 %v1935, %v2172
        %v2237 = vadd.f32 %v1936, %v2173
        %v2238 = vadd.f32 %v1937, %v2174
        %v2239 = vadd.f32 %v1938, %v2175
        %v2240 = vadd.f32 %v1939, %v2176
        %v2241 = vadd.f32 %v1940, %v2177
        %v2242 = vadd.f32 %v1941, %v2178
        %v2243 = vadd.f32 %v1942, %v2179
        %v2244 = vadd.f32 %v1943, %v2180
        %v2245 = vadd.f32 %v1944, %v2181
        %v2246 = vadd.f32 %v1945, %v2182
        %v2247 = vadd.f32 %v1946, %v2183
        %v2248 = vadd.f32 %v1947, %v2184
        %v2249 = vadd.f32 %v1948, %v2185
        %v2250 = vadd.f32 %v1949, %v2186
        %s2251 = scalar_lea.vmem %s5, 4
        %v2252 = vld [vmem:[%s2251] sm:$0x3]
        %2254 = vset.pattern.permute.xlu0 0
        %2255 = vperm.xlu0 %2254, %v1674
        %v2256 = vpop.permute.xlu0 %2255
        %2259 = vset.pattern.permute.xlu0 0
        %2260 = vperm.xlu0 %2259, %v1675
        %v2261 = vpop.permute.xlu0 %2260
        %2264 = vset.pattern.permute.xlu0 0
        %2265 = vperm.xlu0 %2264, %v1676
        %v2266 = vpop.permute.xlu0 %2265
        %2269 = vset.pattern.permute.xlu0 0
        %2270 = vperm.xlu0 %2269, %v1677
        %v2271 = vpop.permute.xlu0 %2270
        %2274 = vset.pattern.permute.xlu0 0
        %2275 = vperm.xlu0 %2274, %v1678
        %v2276 = vpop.permute.xlu0 %2275
        %2279 = vset.pattern.permute.xlu0 0
        %2280 = vperm.xlu0 %2279, %v1679
        %v2281 = vpop.permute.xlu0 %2280
        %2284 = vset.pattern.permute.xlu0 0
        %2285 = vperm.xlu0 %2284, %v1680
        %v2286 = vpop.permute.xlu0 %2285
        %2289 = vset.pattern.permute.xlu0 0
        %2290 = vperm.xlu0 %2289, %v1681
        %v2291 = vpop.permute.xlu0 %2290
        %2294 = vset.pattern.permute.xlu0 0
        %2295 = vperm.xlu0 %2294, %v1682
        %v2296 = vpop.permute.xlu0 %2295
        %2299 = vset.pattern.permute.xlu0 0
        %2300 = vperm.xlu0 %2299, %v1683
        %v2301 = vpop.permute.xlu0 %2300
        %2304 = vset.pattern.permute.xlu0 0
        %2305 = vperm.xlu0 %2304, %v1684
        %v2306 = vpop.permute.xlu0 %2305
        %2309 = vset.pattern.permute.xlu0 0
        %2310 = vperm.xlu0 %2309, %v1685
        %v2311 = vpop.permute.xlu0 %2310
        %2314 = vset.pattern.permute.xlu0 0
        %2315 = vperm.xlu0 %2314, %v1686
        %v2316 = vpop.permute.xlu0 %2315
        %2319 = vset.pattern.permute.xlu0 0
        %2320 = vperm.xlu0 %2319, %v1687
        %v2321 = vpop.permute.xlu0 %2320
        %2324 = vset.pattern.permute.xlu0 0
        %2325 = vperm.xlu0 %2324, %v1688
        %v2326 = vpop.permute.xlu0 %2325
        %2329 = vset.pattern.permute.xlu0 0
        %2330 = vperm.xlu0 %2329, %v1689
        %v2331 = vpop.permute.xlu0 %2330
        %2334 = vset.pattern.permute.xlu0 0
        %2335 = vperm.xlu0 %2334, %v1690
        %v2336 = vpop.permute.xlu0 %2335
        %2339 = vset.pattern.permute.xlu0 0
        %2340 = vperm.xlu0 %2339, %v1691
        %v2341 = vpop.permute.xlu0 %2340
        %2344 = vset.pattern.permute.xlu0 0
        %2345 = vperm.xlu0 %2344, %v1692
        %v2346 = vpop.permute.xlu0 %2345
        %2349 = vset.pattern.permute.xlu0 0
        %2350 = vperm.xlu0 %2349, %v1693
        %v2351 = vpop.permute.xlu0 %2350
        %2354 = vset.pattern.permute.xlu0 0
        %2355 = vperm.xlu0 %2354, %v1694
        %v2356 = vpop.permute.xlu0 %2355
        %2359 = vset.pattern.permute.xlu0 0
        %2360 = vperm.xlu0 %2359, %v1695
        %v2361 = vpop.permute.xlu0 %2360
        %2364 = vset.pattern.permute.xlu0 0
        %2365 = vperm.xlu0 %2364, %v1696
        %v2366 = vpop.permute.xlu0 %2365
        %2369 = vset.pattern.permute.xlu0 0
        %2370 = vperm.xlu0 %2369, %v1697
        %v2371 = vpop.permute.xlu0 %2370
        %2374 = vset.pattern.permute.xlu0 0
        %2375 = vperm.xlu0 %2374, %v1698
        %v2376 = vpop.permute.xlu0 %2375
        %2379 = vset.pattern.permute.xlu0 0
        %2380 = vperm.xlu0 %2379, %v1699
        %v2381 = vpop.permute.xlu0 %2380
        %2384 = vset.pattern.permute.xlu0 0
        %2385 = vperm.xlu0 %2384, %v1700
        %v2386 = vpop.permute.xlu0 %2385
        %2389 = vset.pattern.permute.xlu0 0
        %2390 = vperm.xlu0 %2389, %v1701
        %v2391 = vpop.permute.xlu0 %2390
        %2394 = vset.pattern.permute.xlu0 0
        %2395 = vperm.xlu0 %2394, %v1702
        %v2396 = vpop.permute.xlu0 %2395
        %2399 = vset.pattern.permute.xlu0 0
        %2400 = vperm.xlu0 %2399, %v1703
        %v2401 = vpop.permute.xlu0 %2400
        %2404 = vset.pattern.permute.xlu0 0
        %2405 = vperm.xlu0 %2404, %v1704
        %v2406 = vpop.permute.xlu0 %2405
        %2409 = vset.pattern.permute.xlu0 0
        %2410 = vperm.xlu0 %2409, %v1705
        %v2411 = vpop.permute.xlu0 %2410
        %v2414 = vlaneseq
        %v2415 = vshrl.u32 %v2414, 7
        %v2416 = vsub.s32 0, %v2415
        %v2417 = vrot.slane %v2252, %v2416
        %v2418 = vlaneseq
        %v2419 = vshrl.u32 %v2418, 7
        %v2420 = vsub.s32 1, %v2419
        %v2421 = vrot.slane %v2252, %v2420
        %v2424 = vmul.f32 %v2256, %v2417
        %v2425 = vmul.f32 %v2256, %v2421
        %v2426 = vmul.f32 %v2261, %v2417
        %v2427 = vmul.f32 %v2261, %v2421
        %v2428 = vmul.f32 %v2266, %v2417
        %v2429 = vmul.f32 %v2266, %v2421
        %v2430 = vmul.f32 %v2271, %v2417
        %v2431 = vmul.f32 %v2271, %v2421
        %v2432 = vmul.f32 %v2276, %v2417
        %v2433 = vmul.f32 %v2276, %v2421
        %v2434 = vmul.f32 %v2281, %v2417
        %v2435 = vmul.f32 %v2281, %v2421
        %v2436 = vmul.f32 %v2286, %v2417
        %v2437 = vmul.f32 %v2286, %v2421
        %v2438 = vmul.f32 %v2291, %v2417
        %v2439 = vmul.f32 %v2291, %v2421
        %v2440 = vmul.f32 %v2296, %v2417
        %v2441 = vmul.f32 %v2296, %v2421
        %v2442 = vmul.f32 %v2301, %v2417
        %v2443 = vmul.f32 %v2301, %v2421
        %v2444 = vmul.f32 %v2306, %v2417
        %v2445 = vmul.f32 %v2306, %v2421
        %v2446 = vmul.f32 %v2311, %v2417
        %v2447 = vmul.f32 %v2311, %v2421
        %v2448 = vmul.f32 %v2316, %v2417
        %v2449 = vmul.f32 %v2316, %v2421
        %v2450 = vmul.f32 %v2321, %v2417
        %v2451 = vmul.f32 %v2321, %v2421
        %v2452 = vmul.f32 %v2326, %v2417
        %v2453 = vmul.f32 %v2326, %v2421
        %v2454 = vmul.f32 %v2331, %v2417
        %v2455 = vmul.f32 %v2331, %v2421
        %v2456 = vmul.f32 %v2336, %v2417
        %v2457 = vmul.f32 %v2336, %v2421
        %v2458 = vmul.f32 %v2341, %v2417
        %v2459 = vmul.f32 %v2341, %v2421
        %v2460 = vmul.f32 %v2346, %v2417
        %v2461 = vmul.f32 %v2346, %v2421
        %v2462 = vmul.f32 %v2351, %v2417
        %v2463 = vmul.f32 %v2351, %v2421
        %v2464 = vmul.f32 %v2356, %v2417
        %v2465 = vmul.f32 %v2356, %v2421
        %v2466 = vmul.f32 %v2361, %v2417
        %v2467 = vmul.f32 %v2361, %v2421
        %v2468 = vmul.f32 %v2366, %v2417
        %v2469 = vmul.f32 %v2366, %v2421
        %v2470 = vmul.f32 %v2371, %v2417
        %v2471 = vmul.f32 %v2371, %v2421
        %v2472 = vmul.f32 %v2376, %v2417
        %v2473 = vmul.f32 %v2376, %v2421
        %v2474 = vmul.f32 %v2381, %v2417
        %v2475 = vmul.f32 %v2381, %v2421
        %v2476 = vmul.f32 %v2386, %v2417
        %v2477 = vmul.f32 %v2386, %v2421
        %v2478 = vmul.f32 %v2391, %v2417
        %v2479 = vmul.f32 %v2391, %v2421
        %v2480 = vmul.f32 %v2396, %v2417
        %v2481 = vmul.f32 %v2396, %v2421
        %v2482 = vmul.f32 %v2401, %v2417
        %v2483 = vmul.f32 %v2401, %v2421
        %v2484 = vmul.f32 %v2406, %v2417
        %v2485 = vmul.f32 %v2406, %v2421
        %v2486 = vmul.f32 %v2411, %v2417
        %v2487 = vmul.f32 %v2411, %v2421
        %v2488 = vadd.f32 %v2187, %v2424
        %v2489 = vadd.f32 %v2188, %v2425
        %v2490 = vadd.f32 %v2189, %v2426
        %v2491 = vadd.f32 %v2190, %v2427
        %v2492 = vadd.f32 %v2191, %v2428
        %v2493 = vadd.f32 %v2192, %v2429
        %v2494 = vadd.f32 %v2193, %v2430
        %v2495 = vadd.f32 %v2194, %v2431
        %v2496 = vadd.f32 %v2195, %v2432
        %v2497 = vadd.f32 %v2196, %v2433
        %v2498 = vadd.f32 %v2197, %v2434
        %v2499 = vadd.f32 %v2198, %v2435
        %v2500 = vadd.f32 %v2199, %v2436
        %v2501 = vadd.f32 %v2200, %v2437
        %v2502 = vadd.f32 %v2201, %v2438
        %v2503 = vadd.f32 %v2202, %v2439
        %v2504 = vadd.f32 %v2203, %v2440
        %v2505 = vadd.f32 %v2204, %v2441
        %v2506 = vadd.f32 %v2205, %v2442
        %v2507 = vadd.f32 %v2206, %v2443
        %v2508 = vadd.f32 %v2207, %v2444
        %v2509 = vadd.f32 %v2208, %v2445
        %v2510 = vadd.f32 %v2209, %v2446
        %v2511 = vadd.f32 %v2210, %v2447
        %v2512 = vadd.f32 %v2211, %v2448
        %v2513 = vadd.f32 %v2212, %v2449
        %v2514 = vadd.f32 %v2213, %v2450
        %v2515 = vadd.f32 %v2214, %v2451
        %v2516 = vadd.f32 %v2215, %v2452
        %v2517 = vadd.f32 %v2216, %v2453
        %v2518 = vadd.f32 %v2217, %v2454
        %v2519 = vadd.f32 %v2218, %v2455
        %v2520 = vadd.f32 %v2219, %v2456
        %v2521 = vadd.f32 %v2220, %v2457
        %v2522 = vadd.f32 %v2221, %v2458
        %v2523 = vadd.f32 %v2222, %v2459
        %v2524 = vadd.f32 %v2223, %v2460
        %v2525 = vadd.f32 %v2224, %v2461
        %v2526 = vadd.f32 %v2225, %v2462
        %v2527 = vadd.f32 %v2226, %v2463
        %v2528 = vadd.f32 %v2227, %v2464
        %v2529 = vadd.f32 %v2228, %v2465
        %v2530 = vadd.f32 %v2229, %v2466
        %v2531 = vadd.f32 %v2230, %v2467
        %v2532 = vadd.f32 %v2231, %v2468
        %v2533 = vadd.f32 %v2232, %v2469
        %v2534 = vadd.f32 %v2233, %v2470
        %v2535 = vadd.f32 %v2234, %v2471
        %v2536 = vadd.f32 %v2235, %v2472
        %v2537 = vadd.f32 %v2236, %v2473
        %v2538 = vadd.f32 %v2237, %v2474
        %v2539 = vadd.f32 %v2238, %v2475
        %v2540 = vadd.f32 %v2239, %v2476
        %v2541 = vadd.f32 %v2240, %v2477
        %v2542 = vadd.f32 %v2241, %v2478
        %v2543 = vadd.f32 %v2242, %v2479
        %v2544 = vadd.f32 %v2243, %v2480
        %v2545 = vadd.f32 %v2244, %v2481
        %v2546 = vadd.f32 %v2245, %v2482
        %v2547 = vadd.f32 %v2246, %v2483
        %v2548 = vadd.f32 %v2247, %v2484
        %v2549 = vadd.f32 %v2248, %v2485
        %v2550 = vadd.f32 %v2249, %v2486
        %v2551 = vadd.f32 %v2250, %v2487
        %v2552 = vld [vmem:[%s7] sm:$0x3]
        %v2554 = vlaneseq
        %v2555 = vshrl.u32 %v2554, 7
        %v2556 = vsub.s32 0, %v2555
        %v2557 = vrot.slane %v2552, %v2556
        %v2558 = vlaneseq
        %v2559 = vshrl.u32 %v2558, 7
        %v2560 = vsub.s32 1, %v2559
        %v2561 = vrot.slane %v2552, %v2560
        %v2564 = vmul.f32 %v2488, %v2557
        %v2565 = vmul.f32 %v2489, %v2561
        %v2566 = vmul.f32 %v2490, %v2557
        %v2567 = vmul.f32 %v2491, %v2561
        %v2568 = vmul.f32 %v2492, %v2557
        %v2569 = vmul.f32 %v2493, %v2561
        %v2570 = vmul.f32 %v2494, %v2557
        %v2571 = vmul.f32 %v2495, %v2561
        %v2572 = vmul.f32 %v2496, %v2557
        %v2573 = vmul.f32 %v2497, %v2561
        %v2574 = vmul.f32 %v2498, %v2557
        %v2575 = vmul.f32 %v2499, %v2561
        %v2576 = vmul.f32 %v2500, %v2557
        %v2577 = vmul.f32 %v2501, %v2561
        %v2578 = vmul.f32 %v2502, %v2557
        %v2579 = vmul.f32 %v2503, %v2561
        %v2580 = vmul.f32 %v2504, %v2557
        %v2581 = vmul.f32 %v2505, %v2561
        %v2582 = vmul.f32 %v2506, %v2557
        %v2583 = vmul.f32 %v2507, %v2561
        %v2584 = vmul.f32 %v2508, %v2557
        %v2585 = vmul.f32 %v2509, %v2561
        %v2586 = vmul.f32 %v2510, %v2557
        %v2587 = vmul.f32 %v2511, %v2561
        %v2588 = vmul.f32 %v2512, %v2557
        %v2589 = vmul.f32 %v2513, %v2561
        %v2590 = vmul.f32 %v2514, %v2557
        %v2591 = vmul.f32 %v2515, %v2561
        %v2592 = vmul.f32 %v2516, %v2557
        %v2593 = vmul.f32 %v2517, %v2561
        %v2594 = vmul.f32 %v2518, %v2557
        %v2595 = vmul.f32 %v2519, %v2561
        %v2596 = vmul.f32 %v2520, %v2557
        %v2597 = vmul.f32 %v2521, %v2561
        %v2598 = vmul.f32 %v2522, %v2557
        %v2599 = vmul.f32 %v2523, %v2561
        %v2600 = vmul.f32 %v2524, %v2557
        %v2601 = vmul.f32 %v2525, %v2561
        %v2602 = vmul.f32 %v2526, %v2557
        %v2603 = vmul.f32 %v2527, %v2561
        %v2604 = vmul.f32 %v2528, %v2557
        %v2605 = vmul.f32 %v2529, %v2561
        %v2606 = vmul.f32 %v2530, %v2557
        %v2607 = vmul.f32 %v2531, %v2561
        %v2608 = vmul.f32 %v2532, %v2557
        %v2609 = vmul.f32 %v2533, %v2561
        %v2610 = vmul.f32 %v2534, %v2557
        %v2611 = vmul.f32 %v2535, %v2561
        %v2612 = vmul.f32 %v2536, %v2557
        %v2613 = vmul.f32 %v2537, %v2561
        %v2614 = vmul.f32 %v2538, %v2557
        %v2615 = vmul.f32 %v2539, %v2561
        %v2616 = vmul.f32 %v2540, %v2557
        %v2617 = vmul.f32 %v2541, %v2561
        %v2618 = vmul.f32 %v2542, %v2557
        %v2619 = vmul.f32 %v2543, %v2561
        %v2620 = vmul.f32 %v2544, %v2557
        %v2621 = vmul.f32 %v2545, %v2561
        %v2622 = vmul.f32 %v2546, %v2557
        %v2623 = vmul.f32 %v2547, %v2561
        %v2624 = vmul.f32 %v2548, %v2557
        %v2625 = vmul.f32 %v2549, %v2561
        %v2626 = vmul.f32 %v2550, %v2557
        %v2627 = vmul.f32 %v2551, %v2561
        %v2628 = vld [vmem:[%s9] sm:$0x3]
        %v2630 = vlaneseq
        %v2631 = vshrl.u32 %v2630, 7
        %v2632 = vsub.s32 0, %v2631
        %v2633 = vrot.slane %v2628, %v2632
        %v2634 = vlaneseq
        %v2635 = vshrl.u32 %v2634, 7
        %v2636 = vsub.s32 1, %v2635
        %v2637 = vrot.slane %v2628, %v2636
        %v2640 = vadd.f32 %v2564, %v2633
        %v2641 = vadd.f32 %v2565, %v2637
        %v2642 = vadd.f32 %v2566, %v2633
        %v2643 = vadd.f32 %v2567, %v2637
        %v2644 = vadd.f32 %v2568, %v2633
        %v2645 = vadd.f32 %v2569, %v2637
        %v2646 = vadd.f32 %v2570, %v2633
        %v2647 = vadd.f32 %v2571, %v2637
        %v2648 = vadd.f32 %v2572, %v2633
        %v2649 = vadd.f32 %v2573, %v2637
        %v2650 = vadd.f32 %v2574, %v2633
        %v2651 = vadd.f32 %v2575, %v2637
        %v2652 = vadd.f32 %v2576, %v2633
        %v2653 = vadd.f32 %v2577, %v2637
        %v2654 = vadd.f32 %v2578, %v2633
        %v2655 = vadd.f32 %v2579, %v2637
        %v2656 = vadd.f32 %v2580, %v2633
        %v2657 = vadd.f32 %v2581, %v2637
        %v2658 = vadd.f32 %v2582, %v2633
        %v2659 = vadd.f32 %v2583, %v2637
        %v2660 = vadd.f32 %v2584, %v2633
        %v2661 = vadd.f32 %v2585, %v2637
        %v2662 = vadd.f32 %v2586, %v2633
        %v2663 = vadd.f32 %v2587, %v2637
        %v2664 = vadd.f32 %v2588, %v2633
        %v2665 = vadd.f32 %v2589, %v2637
        %v2666 = vadd.f32 %v2590, %v2633
        %v2667 = vadd.f32 %v2591, %v2637
        %v2668 = vadd.f32 %v2592, %v2633
        %v2669 = vadd.f32 %v2593, %v2637
        %v2670 = vadd.f32 %v2594, %v2633
        %v2671 = vadd.f32 %v2595, %v2637
        %v2672 = vadd.f32 %v2596, %v2633
        %v2673 = vadd.f32 %v2597, %v2637
        %v2674 = vadd.f32 %v2598, %v2633
        %v2675 = vadd.f32 %v2599, %v2637
        %v2676 = vadd.f32 %v2600, %v2633
        %v2677 = vadd.f32 %v2601, %v2637
        %v2678 = vadd.f32 %v2602, %v2633
        %v2679 = vadd.f32 %v2603, %v2637
        %v2680 = vadd.f32 %v2604, %v2633
        %v2681 = vadd.f32 %v2605, %v2637
        %v2682 = vadd.f32 %v2606, %v2633
        %v2683 = vadd.f32 %v2607, %v2637
        %v2684 = vadd.f32 %v2608, %v2633
        %v2685 = vadd.f32 %v2609, %v2637
        %v2686 = vadd.f32 %v2610, %v2633
        %v2687 = vadd.f32 %v2611, %v2637
        %v2688 = vadd.f32 %v2612, %v2633
        %v2689 = vadd.f32 %v2613, %v2637
        %v2690 = vadd.f32 %v2614, %v2633
        %v2691 = vadd.f32 %v2615, %v2637
        %v2692 = vadd.f32 %v2616, %v2633
        %v2693 = vadd.f32 %v2617, %v2637
        %v2694 = vadd.f32 %v2618, %v2633
        %v2695 = vadd.f32 %v2619, %v2637
        %v2696 = vadd.f32 %v2620, %v2633
        %v2697 = vadd.f32 %v2621, %v2637
        %v2698 = vadd.f32 %v2622, %v2633
        %v2699 = vadd.f32 %v2623, %v2637
        %v2700 = vadd.f32 %v2624, %v2633
        %v2701 = vadd.f32 %v2625, %v2637
        %v2702 = vadd.f32 %v2626, %v2633
        %v2703 = vadd.f32 %v2627, %v2637
        %vm2704 = vcmp.gt.f32.partialorder %v2640, 0.0
        %vm2705 = vcmp.gt.f32.partialorder %v2641, 0.0
        %vm2706 = vcmp.gt.f32.partialorder %v2642, 0.0
        %vm2707 = vcmp.gt.f32.partialorder %v2643, 0.0
        %vm2708 = vcmp.gt.f32.partialorder %v2644, 0.0
        %vm2709 = vcmp.gt.f32.partialorder %v2645, 0.0
        %vm2710 = vcmp.gt.f32.partialorder %v2646, 0.0
        %vm2711 = vcmp.gt.f32.partialorder %v2647, 0.0
        %vm2712 = vcmp.gt.f32.partialorder %v2648, 0.0
        %vm2713 = vcmp.gt.f32.partialorder %v2649, 0.0
        %vm2714 = vcmp.gt.f32.partialorder %v2650, 0.0
        %vm2715 = vcmp.gt.f32.partialorder %v2651, 0.0
        %vm2716 = vcmp.gt.f32.partialorder %v2652, 0.0
        %vm2717 = vcmp.gt.f32.partialorder %v2653, 0.0
        %vm2718 = vcmp.gt.f32.partialorder %v2654, 0.0
        %vm2719 = vcmp.gt.f32.partialorder %v2655, 0.0
        %vm2720 = vcmp.gt.f32.partialorder %v2656, 0.0
        %vm2721 = vcmp.gt.f32.partialorder %v2657, 0.0
        %vm2722 = vcmp.gt.f32.partialorder %v2658, 0.0
        %vm2723 = vcmp.gt.f32.partialorder %v2659, 0.0
        %vm2724 = vcmp.gt.f32.partialorder %v2660, 0.0
        %vm2725 = vcmp.gt.f32.partialorder %v2661, 0.0
        %vm2726 = vcmp.gt.f32.partialorder %v2662, 0.0
        %vm2727 = vcmp.gt.f32.partialorder %v2663, 0.0
        %vm2728 = vcmp.gt.f32.partialorder %v2664, 0.0
        %vm2729 = vcmp.gt.f32.partialorder %v2665, 0.0
        %vm2730 = vcmp.gt.f32.partialorder %v2666, 0.0
        %vm2731 = vcmp.gt.f32.partialorder %v2667, 0.0
        %vm2732 = vcmp.gt.f32.partialorder %v2668, 0.0
        %vm2733 = vcmp.gt.f32.partialorder %v2669, 0.0
        %vm2734 = vcmp.gt.f32.partialorder %v2670, 0.0
        %vm2735 = vcmp.gt.f32.partialorder %v2671, 0.0
        %vm2736 = vcmp.gt.f32.partialorder %v2672, 0.0
        %vm2737 = vcmp.gt.f32.partialorder %v2673, 0.0
        %vm2738 = vcmp.gt.f32.partialorder %v2674, 0.0
        %vm2739 = vcmp.gt.f32.partialorder %v2675, 0.0
        %vm2740 = vcmp.gt.f32.partialorder %v2676, 0.0
        %vm2741 = vcmp.gt.f32.partialorder %v2677, 0.0
        %vm2742 = vcmp.gt.f32.partialorder %v2678, 0.0
        %vm2743 = vcmp.gt.f32.partialorder %v2679, 0.0
        %vm2744 = vcmp.gt.f32.partialorder %v2680, 0.0
        %vm2745 = vcmp.gt.f32.partialorder %v2681, 0.0
        %vm2746 = vcmp.gt.f32.partialorder %v2682, 0.0
        %vm2747 = vcmp.gt.f32.partialorder %v2683, 0.0
        %vm2748 = vcmp.gt.f32.partialorder %v2684, 0.0
        %vm2749 = vcmp.gt.f32.partialorder %v2685, 0.0
        %vm2750 = vcmp.gt.f32.partialorder %v2686, 0.0
        %vm2751 = vcmp.gt.f32.partialorder %v2687, 0.0
        %vm2752 = vcmp.gt.f32.partialorder %v2688, 0.0
        %vm2753 = vcmp.gt.f32.partialorder %v2689, 0.0
        %vm2754 = vcmp.gt.f32.partialorder %v2690, 0.0
        %vm2755 = vcmp.gt.f32.partialorder %v2691, 0.0
        %vm2756 = vcmp.gt.f32.partialorder %v2692, 0.0
        %vm2757 = vcmp.gt.f32.partialorder %v2693, 0.0
        %vm2758 = vcmp.gt.f32.partialorder %v2694, 0.0
        %vm2759 = vcmp.gt.f32.partialorder %v2695, 0.0
        %vm2760 = vcmp.gt.f32.partialorder %v2696, 0.0
        %vm2761 = vcmp.gt.f32.partialorder %v2697, 0.0
        %vm2762 = vcmp.gt.f32.partialorder %v2698, 0.0
        %vm2763 = vcmp.gt.f32.partialorder %v2699, 0.0
        %vm2764 = vcmp.gt.f32.partialorder %v2700, 0.0
        %vm2765 = vcmp.gt.f32.partialorder %v2701, 0.0
        %vm2766 = vcmp.gt.f32.partialorder %v2702, 0.0
        %vm2767 = vcmp.gt.f32.partialorder %v2703, 0.0
        %v2768 = vmul.f32 %v2640, 0.3
        %v2769 = vmul.f32 %v2641, 0.3
        %v2770 = vmul.f32 %v2642, 0.3
        %v2771 = vmul.f32 %v2643, 0.3
        %v2772 = vmul.f32 %v2644, 0.3
        %v2773 = vmul.f32 %v2645, 0.3
        %v2774 = vmul.f32 %v2646, 0.3
        %v2775 = vmul.f32 %v2647, 0.3
        %v2776 = vmul.f32 %v2648, 0.3
        %v2777 = vmul.f32 %v2649, 0.3
        %v2778 = vmul.f32 %v2650, 0.3
        %v2779 = vmul.f32 %v2651, 0.3
        %v2780 = vmul.f32 %v2652, 0.3
        %v2781 = vmul.f32 %v2653, 0.3
        %v2782 = vmul.f32 %v2654, 0.3
        %v2783 = vmul.f32 %v2655, 0.3
        %v2784 = vmul.f32 %v2656, 0.3
        %v2785 = vmul.f32 %v2657, 0.3
        %v2786 = vmul.f32 %v2658, 0.3
        %v2787 = vmul.f32 %v2659, 0.3
        %v2788 = vmul.f32 %v2660, 0.3
        %v2789 = vmul.f32 %v2661, 0.3
        %v2790 = vmul.f32 %v2662, 0.3
        %v2791 = vmul.f32 %v2663, 0.3
        %v2792 = vmul.f32 %v2664, 0.3
        %v2793 = vmul.f32 %v2665, 0.3
        %v2794 = vmul.f32 %v2666, 0.3
        %v2795 = vmul.f32 %v2667, 0.3
        %v2796 = vmul.f32 %v2668, 0.3
        %v2797 = vmul.f32 %v2669, 0.3
        %v2798 = vmul.f32 %v2670, 0.3
        %v2799 = vmul.f32 %v2671, 0.3
        %v2800 = vmul.f32 %v2672, 0.3
        %v2801 = vmul.f32 %v2673, 0.3
        %v2802 = vmul.f32 %v2674, 0.3
        %v2803 = vmul.f32 %v2675, 0.3
        %v2804 = vmul.f32 %v2676, 0.3
        %v2805 = vmul.f32 %v2677, 0.3
        %v2806 = vmul.f32 %v2678, 0.3
        %v2807 = vmul.f32 %v2679, 0.3
        %v2808 = vmul.f32 %v2680, 0.3
        %v2809 = vmul.f32 %v2681, 0.3
        %v2810 = vmul.f32 %v2682, 0.3
        %v2811 = vmul.f32 %v2683, 0.3
        %v2812 = vmul.f32 %v2684, 0.3
        %v2813 = vmul.f32 %v2685, 0.3
        %v2814 = vmul.f32 %v2686, 0.3
        %v2815 = vmul.f32 %v2687, 0.3
        %v2816 = vmul.f32 %v2688, 0.3
        %v2817 = vmul.f32 %v2689, 0.3
        %v2818 = vmul.f32 %v2690, 0.3
        %v2819 = vmul.f32 %v2691, 0.3
        %v2820 = vmul.f32 %v2692, 0.3
        %v2821 = vmul.f32 %v2693, 0.3
        %v2822 = vmul.f32 %v2694, 0.3
        %v2823 = vmul.f32 %v2695, 0.3
        %v2824 = vmul.f32 %v2696, 0.3
        %v2825 = vmul.f32 %v2697, 0.3
        %v2826 = vmul.f32 %v2698, 0.3
        %v2827 = vmul.f32 %v2699, 0.3
        %v2828 = vmul.f32 %v2700, 0.3
        %v2829 = vmul.f32 %v2701, 0.3
        %v2830 = vmul.f32 %v2702, 0.3
        %v2831 = vmul.f32 %v2703, 0.3
        %v2832 = vsel %vm2704, %v2640, %v2768
        %v2833 = vsel %vm2705, %v2641, %v2769
        %v2834 = vsel %vm2706, %v2642, %v2770
        %v2835 = vsel %vm2707, %v2643, %v2771
        %v2836 = vsel %vm2708, %v2644, %v2772
        %v2837 = vsel %vm2709, %v2645, %v2773
        %v2838 = vsel %vm2710, %v2646, %v2774
        %v2839 = vsel %vm2711, %v2647, %v2775
        %v2840 = vsel %vm2712, %v2648, %v2776
        %v2841 = vsel %vm2713, %v2649, %v2777
        %v2842 = vsel %vm2714, %v2650, %v2778
        %v2843 = vsel %vm2715, %v2651, %v2779
        %v2844 = vsel %vm2716, %v2652, %v2780
        %v2845 = vsel %vm2717, %v2653, %v2781
        %v2846 = vsel %vm2718, %v2654, %v2782
        %v2847 = vsel %vm2719, %v2655, %v2783
        %v2848 = vsel %vm2720, %v2656, %v2784
        %v2849 = vsel %vm2721, %v2657, %v2785
        %v2850 = vsel %vm2722, %v2658, %v2786
        %v2851 = vsel %vm2723, %v2659, %v2787
        %v2852 = vsel %vm2724, %v2660, %v2788
        %v2853 = vsel %vm2725, %v2661, %v2789
        %v2854 = vsel %vm2726, %v2662, %v2790
        %v2855 = vsel %vm2727, %v2663, %v2791
        %v2856 = vsel %vm2728, %v2664, %v2792
        %v2857 = vsel %vm2729, %v2665, %v2793
        %v2858 = vsel %vm2730, %v2666, %v2794
        %v2859 = vsel %vm2731, %v2667, %v2795
        %v2860 = vsel %vm2732, %v2668, %v2796
        %v2861 = vsel %vm2733, %v2669, %v2797
        %v2862 = vsel %vm2734, %v2670, %v2798
        %v2863 = vsel %vm2735, %v2671, %v2799
        %v2864 = vsel %vm2736, %v2672, %v2800
        %v2865 = vsel %vm2737, %v2673, %v2801
        %v2866 = vsel %vm2738, %v2674, %v2802
        %v2867 = vsel %vm2739, %v2675, %v2803
        %v2868 = vsel %vm2740, %v2676, %v2804
        %v2869 = vsel %vm2741, %v2677, %v2805
        %v2870 = vsel %vm2742, %v2678, %v2806
        %v2871 = vsel %vm2743, %v2679, %v2807
        %v2872 = vsel %vm2744, %v2680, %v2808
        %v2873 = vsel %vm2745, %v2681, %v2809
        %v2874 = vsel %vm2746, %v2682, %v2810
        %v2875 = vsel %vm2747, %v2683, %v2811
        %v2876 = vsel %vm2748, %v2684, %v2812
        %v2877 = vsel %vm2749, %v2685, %v2813
        %v2878 = vsel %vm2750, %v2686, %v2814
        %v2879 = vsel %vm2751, %v2687, %v2815
        %v2880 = vsel %vm2752, %v2688, %v2816
        %v2881 = vsel %vm2753, %v2689, %v2817
        %v2882 = vsel %vm2754, %v2690, %v2818
        %v2883 = vsel %vm2755, %v2691, %v2819
        %v2884 = vsel %vm2756, %v2692, %v2820
        %v2885 = vsel %vm2757, %v2693, %v2821
        %v2886 = vsel %vm2758, %v2694, %v2822
        %v2887 = vsel %vm2759, %v2695, %v2823
        %v2888 = vsel %vm2760, %v2696, %v2824
        %v2889 = vsel %vm2761, %v2697, %v2825
        %v2890 = vsel %vm2762, %v2698, %v2826
        %v2891 = vsel %vm2763, %v2699, %v2827
        %v2892 = vsel %vm2764, %v2700, %v2828
        %v2893 = vsel %vm2765, %v2701, %v2829
        %v2894 = vsel %vm2766, %v2702, %v2830
        %v2895 = vsel %vm2767, %v2703, %v2831
        %v2896 = vpack.c.bf16 %v2834, %v2832
        %v2897 = vpack.c.bf16 %v2835, %v2833
        %v2898 = vpack.c.bf16 %v2838, %v2836
        %v2899 = vpack.c.bf16 %v2839, %v2837
        %v2900 = vpack.c.bf16 %v2842, %v2840
        %v2901 = vpack.c.bf16 %v2843, %v2841
        %v2902 = vpack.c.bf16 %v2846, %v2844
        %v2903 = vpack.c.bf16 %v2847, %v2845
        %v2904 = vpack.c.bf16 %v2850, %v2848
        %v2905 = vpack.c.bf16 %v2851, %v2849
        %v2906 = vpack.c.bf16 %v2854, %v2852
        %v2907 = vpack.c.bf16 %v2855, %v2853
        %v2908 = vpack.c.bf16 %v2858, %v2856
        %v2909 = vpack.c.bf16 %v2859, %v2857
        %v2910 = vpack.c.bf16 %v2862, %v2860
        %v2911 = vpack.c.bf16 %v2863, %v2861
        %v2912 = vpack.c.bf16 %v2866, %v2864
        %v2913 = vpack.c.bf16 %v2867, %v2865
        %v2914 = vpack.c.bf16 %v2870, %v2868
        %v2915 = vpack.c.bf16 %v2871, %v2869
        %v2916 = vpack.c.bf16 %v2874, %v2872
        %v2917 = vpack.c.bf16 %v2875, %v2873
        %v2918 = vpack.c.bf16 %v2878, %v2876
        %v2919 = vpack.c.bf16 %v2879, %v2877
        %v2920 = vpack.c.bf16 %v2882, %v2880
        %v2921 = vpack.c.bf16 %v2883, %v2881
        %v2922 = vpack.c.bf16 %v2886, %v2884
        %v2923 = vpack.c.bf16 %v2887, %v2885
        %v2924 = vpack.c.bf16 %v2890, %v2888
        %v2925 = vpack.c.bf16 %v2891, %v2889
        %v2926 = vpack.c.bf16 %v2894, %v2892
        %v2927 = vpack.c.bf16 %v2895, %v2893
        %v2928 = vld [vmem:[%s11] sm:$0xff]
        %v2929 = vld [vmem:[%s11 + $0x8] sm:$0xff]
        %v2930 = vld [vmem:[%s11 + $0x10] sm:$0xff]
        %v2931 = vld [vmem:[%s11 + $0x18] sm:$0xff]
        %v2932 = vld [vmem:[%s11 + $0x20] sm:$0xff]
        %v2933 = vld [vmem:[%s11 + $0x28] sm:$0xff]
        %v2934 = vld [vmem:[%s11 + $0x30] sm:$0xff]
        %v2935 = vld [vmem:[%s11 + $0x38] sm:$0xff]
        %v2944 = vunpack.c.l.b16 %v2928
        %v2945 = vunpack.c.h.b16 %v2928
        %v2946 = vunpack.c.l.b16 %v2929
        %v2947 = vunpack.c.h.b16 %v2929
        %v2948 = vunpack.c.l.b16 %v2930
        %v2949 = vunpack.c.h.b16 %v2930
        %v2950 = vunpack.c.l.b16 %v2931
        %v2951 = vunpack.c.h.b16 %v2931
        %v2952 = vunpack.c.l.b16 %v2932
        %v2953 = vunpack.c.h.b16 %v2932
        %v2954 = vunpack.c.l.b16 %v2933
        %v2955 = vunpack.c.h.b16 %v2933
        %v2956 = vunpack.c.l.b16 %v2934
        %v2957 = vunpack.c.h.b16 %v2934
        %v2958 = vunpack.c.l.b16 %v2935
        %v2959 = vunpack.c.h.b16 %v2935
        %v2960 = vpack.c.b16 %v2946, %v2944
        %v2961 = vpack.c.b16 %v2947, %v2945
        %v2962 = vpack.c.b16 %v2950, %v2948
        %v2963 = vpack.c.b16 %v2951, %v2949
        %v2964 = vpack.c.b16 %v2954, %v2952
        %v2965 = vpack.c.b16 %v2955, %v2953
        %v2966 = vpack.c.b16 %v2958, %v2956
        %v2967 = vpack.c.b16 %v2959, %v2957
        %2976 = vmatprep.subr.bf16.mxu0 %v2897
        %2977 = vmatpush1.bf16.msra.mxu0 %v2896
        %2978 = vmatprep.subr.bf16.mxu0 %v2899
        %2979 = vmatpush1.bf16.msra.mxu0 %v2898
        %2980 = vmatprep.subr.bf16.mxu0 %v2901
        %2981 = vmatpush1.bf16.msra.mxu0 %v2900
        %2982 = vmatprep.subr.bf16.mxu0 %v2903
        %2983 = vmatpush1.bf16.msra.mxu0 %v2902
        %2984 = vmatprep.subr.bf16.mxu0 %v2905
        %2985 = vmatpush1.bf16.msra.mxu0 %v2904
        %2986 = vmatprep.subr.bf16.mxu0 %v2907
        %2987 = vmatpush1.bf16.msra.mxu0 %v2906
        %2988 = vmatprep.subr.bf16.mxu0 %v2909
        %2989 = vmatpush1.bf16.msra.mxu0 %v2908
        %2990 = vmatprep.subr.bf16.mxu0 %v2911
        %2991 = vmatpush1.bf16.msra.mxu0 %v2910
        %2992 = vmatprep.subr.bf16.mxu0 %v2913
        %2993 = vmatpush1.bf16.msra.mxu0 %v2912
        %2994 = vmatprep.subr.bf16.mxu0 %v2915
        %2995 = vmatpush1.bf16.msra.mxu0 %v2914
        %2996 = vmatprep.subr.bf16.mxu0 %v2917
        %2997 = vmatpush1.bf16.msra.mxu0 %v2916
        %2998 = vmatprep.subr.bf16.mxu0 %v2919
        %2999 = vmatpush1.bf16.msra.mxu0 %v2918
        %3000 = vmatprep.subr.bf16.mxu0 %v2921
        %3001 = vmatpush1.bf16.msra.mxu0 %v2920
        %3002 = vmatprep.subr.bf16.mxu0 %v2923
        %3003 = vmatpush1.bf16.msra.mxu0 %v2922
        %3004 = vmatprep.subr.bf16.mxu0 %v2925
        %3005 = vmatpush1.bf16.msra.mxu0 %v2924
        %3006 = vmatprep.subr.bf16.mxu0 %v2927
        %3007 = vmatpush1.bf16.msra.mxu0 %v2926
        %3008 = vmatprep.mubr.bf16.mxu0 %v2961
        %3009 = vmatmul.mubr.bf16.gmra.mrb[0].mxu0 %v2960
        %v3010 = vpop.f32.mrb[0].mxu0
        %v3011 = vadd.f32 0.0, %v3010
        %v3012 = vpop.f32.mrb[0].mxu0
        %v3013 = vadd.f32 0.0, %v3012
        %v3014 = vpop.f32.mrb[0].mxu0
        %v3015 = vadd.f32 0.0, %v3014
        %v3016 = vpop.f32.mrb[0].mxu0
        %v3017 = vadd.f32 0.0, %v3016
        %3018 = vmatprep.mubr.bf16.mxu0 %v2963
        %3019 = vmatmul.mubr.bf16.gmra.mrb[0].mxu0 %v2962
        %v3020 = vpop.f32.mrb[0].mxu0
        %v3021 = vadd.f32 0.0, %v3020
        %v3022 = vpop.f32.mrb[0].mxu0
        %v3023 = vadd.f32 0.0, %v3022
        %v3024 = vpop.f32.mrb[0].mxu0
        %v3025 = vadd.f32 0.0, %v3024
        %v3026 = vpop.f32.mrb[0].mxu0
        %v3027 = vadd.f32 0.0, %v3026
        %3028 = vmatprep.mubr.bf16.mxu0 %v2965
        %3029 = vmatmul.mubr.bf16.gmra.mrb[0].mxu0 %v2964
        %v3030 = vpop.f32.mrb[0].mxu0
        %v3031 = vadd.f32 0.0, %v3030
        %v3032 = vpop.f32.mrb[0].mxu0
        %v3033 = vadd.f32 0.0, %v3032
        %v3034 = vpop.f32.mrb[0].mxu0
        %v3035 = vadd.f32 0.0, %v3034
        %v3036 = vpop.f32.mrb[0].mxu0
        %v3037 = vadd.f32 0.0, %v3036
        %3038 = vmatprep.mubr.bf16.mxu0 %v2967
        %3039 = vmatmul.mubr.bf16.gmra.mrb[0].mxu0 %v2966
        %v3040 = vpop.f32.mrb[0].mxu0
        %v3041 = vadd.f32 0.0, %v3040
        %v3042 = vpop.f32.mrb[0].mxu0
        %v3043 = vadd.f32 0.0, %v3042
        %v3044 = vpop.f32.mrb[0].mxu0
        %v3045 = vadd.f32 0.0, %v3044
        %v3046 = vpop.f32.mrb[0].mxu0
        %v3047 = vadd.f32 0.0, %v3046
        %3048 = vdwg.mxu0
        %v3049 = vld [vmem:[%s13] sm:$0x3]
        %v3051 = vlaneseq
        %v3052 = vshrl.u32 %v3051, 7
        %v3053 = vsub.s32 0, %v3052
        %v3054 = vrot.slane %v3049, %v3053
        %v3055 = vlaneseq
        %v3056 = vshrl.u32 %v3055, 7
        %v3057 = vsub.s32 1, %v3056
        %v3058 = vrot.slane %v3049, %v3057
        %v3061 = vmul.f32 %v3011, %v3054
        %v3062 = vmul.f32 %v3013, %v3058
        %v3063 = vmul.f32 %v3015, %v3054
        %v3064 = vmul.f32 %v3017, %v3058
        %v3065 = vmul.f32 %v3021, %v3054
        %v3066 = vmul.f32 %v3023, %v3058
        %v3067 = vmul.f32 %v3025, %v3054
        %v3068 = vmul.f32 %v3027, %v3058
        %v3069 = vmul.f32 %v3031, %v3054
        %v3070 = vmul.f32 %v3033, %v3058
        %v3071 = vmul.f32 %v3035, %v3054
        %v3072 = vmul.f32 %v3037, %v3058
        %v3073 = vmul.f32 %v3041, %v3054
        %v3074 = vmul.f32 %v3043, %v3058
        %v3075 = vmul.f32 %v3045, %v3054
        %v3076 = vmul.f32 %v3047, %v3058
        %s3077 = scalar_lea.vmem %s11, 64
        %v3078 = vld [vmem:[%s3077] sm:$0xff]
        %v3079 = vld [vmem:[%s3077 + $0x8] sm:$0xff]
        %v3080 = vld [vmem:[%s3077 + $0x10] sm:$0xff]
        %v3081 = vld [vmem:[%s3077 + $0x18] sm:$0xff]
        %v3082 = vld [vmem:[%s3077 + $0x20] sm:$0xff]
        %v3083 = vld [vmem:[%s3077 + $0x28] sm:$0xff]
        %v3084 = vld [vmem:[%s3077 + $0x30] sm:$0xff]
        %v3085 = vld [vmem:[%s3077 + $0x38] sm:$0xff]
        %v3094 = vunpack.c.l.b16 %v3078
        %v3095 = vunpack.c.h.b16 %v3078
        %v3096 = vunpack.c.l.b16 %v3079
        %v3097 = vunpack.c.h.b16 %v3079
        %v3098 = vunpack.c.l.b16 %v3080
        %v3099 = vunpack.c.h.b16 %v3080
        %v3100 = vunpack.c.l.b16 %v3081
        %v3101 = vunpack.c.h.b16 %v3081
        %v3102 = vunpack.c.l.b16 %v3082
        %v3103 = vunpack.c.h.b16 %v3082
        %v3104 = vunpack.c.l.b16 %v3083
        %v3105 = vunpack.c.h.b16 %v3083
        %v3106 = vunpack.c.l.b16 %v3084
        %v3107 = vunpack.c.h.b16 %v3084
        %v3108 = vunpack.c.l.b16 %v3085
        %v3109 = vunpack.c.h.b16 %v3085
        %v3110 = vpack.c.b16 %v3096, %v3094
        %v3111 = vpack.c.b16 %v3097, %v3095
        %v3112 = vpack.c.b16 %v3100, %v3098
        %v3113 = vpack.c.b16 %v3101, %v3099
        %v3114 = vpack.c.b16 %v3104, %v3102
        %v3115 = vpack.c.b16 %v3105, %v3103
        %v3116 = vpack.c.b16 %v3108, %v3106
        %v3117 = vpack.c.b16 %v3109, %v3107
        %3126 = vmatprep.subr.bf16.mxu0 %v2897
        %3127 = vmatpush1.bf16.msra.mxu0 %v2896
        %3128 = vmatprep.subr.bf16.mxu0 %v2899
        %3129 = vmatpush1.bf16.msra.mxu0 %v2898
        %3130 = vmatprep.subr.bf16.mxu0 %v2901
        %3131 = vmatpush1.bf16.msra.mxu0 %v2900
        %3132 = vmatprep.subr.bf16.mxu0 %v2903
        %3133 = vmatpush1.bf16.msra.mxu0 %v2902
        %3134 = vmatprep.subr.bf16.mxu0 %v2905
        %3135 = vmatpush1.bf16.msra.mxu0 %v2904
        %3136 = vmatprep.subr.bf16.mxu0 %v2907
        %3137 = vmatpush1.bf16.msra.mxu0 %v2906
        %3138 = vmatprep.subr.bf16.mxu0 %v2909
        %3139 = vmatpush1.bf16.msra.mxu0 %v2908
        %3140 = vmatprep.subr.bf16.mxu0 %v2911
        %3141 = vmatpush1.bf16.msra.mxu0 %v2910
        %3142 = vmatprep.subr.bf16.mxu0 %v2913
        %3143 = vmatpush1.bf16.msra.mxu0 %v2912
        %3144 = vmatprep.subr.bf16.mxu0 %v2915
        %3145 = vmatpush1.bf16.msra.mxu0 %v2914
        %3146 = vmatprep.subr.bf16.mxu0 %v2917
        %3147 = vmatpush1.bf16.msra.mxu0 %v2916
        %3148 = vmatprep.subr.bf16.mxu0 %v2919
        %3149 = vmatpush1.bf16.msra.mxu0 %v2918
        %3150 = vmatprep.subr.bf16.mxu0 %v2921
        %3151 = vmatpush1.bf16.msra.mxu0 %v2920
        %3152 = vmatprep.subr.bf16.mxu0 %v2923
        %3153 = vmatpush1.bf16.msra.mxu0 %v2922
        %3154 = vmatprep.subr.bf16.mxu0 %v2925
        %3155 = vmatpush1.bf16.msra.mxu0 %v2924
        %3156 = vmatprep.subr.bf16.mxu0 %v2927
        %3157 = vmatpush1.bf16.msra.mxu0 %v2926
        %3158 = vmatprep.mubr.bf16.mxu0 %v3111
        %3159 = vmatmul.mubr.bf16.gmra.mrb[0].mxu0 %v3110
        %v3160 = vpop.f32.mrb[0].mxu0
        %v3161 = vadd.f32 0.0, %v3160
        %v3162 = vpop.f32.mrb[0].mxu0
        %v3163 = vadd.f32 0.0, %v3162
        %v3164 = vpop.f32.mrb[0].mxu0
        %v3165 = vadd.f32 0.0, %v3164
        %v3166 = vpop.f32.mrb[0].mxu0
        %v3167 = vadd.f32 0.0, %v3166
        %3168 = vmatprep.mubr.bf16.mxu0 %v3113
        %3169 = vmatmul.mubr.bf16.gmra.mrb[0].mxu0 %v3112
        %v3170 = vpop.f32.mrb[0].mxu0
        %v3171 = vadd.f32 0.0, %v3170
        %v3172 = vpop.f32.mrb[0].mxu0
        %v3173 = vadd.f32 0.0, %v3172
        %v3174 = vpop.f32.mrb[0].mxu0
        %v3175 = vadd.f32 0.0, %v3174
        %v3176 = vpop.f32.mrb[0].mxu0
        %v3177 = vadd.f32 0.0, %v3176
        %3178 = vmatprep.mubr.bf16.mxu0 %v3115
        %3179 = vmatmul.mubr.bf16.gmra.mrb[0].mxu0 %v3114
        %v3180 = vpop.f32.mrb[0].mxu0
        %v3181 = vadd.f32 0.0, %v3180
        %v3182 = vpop.f32.mrb[0].mxu0
        %v3183 = vadd.f32 0.0, %v3182
        %v3184 = vpop.f32.mrb[0].mxu0
        %v3185 = vadd.f32 0.0, %v3184
        %v3186 = vpop.f32.mrb[0].mxu0
        %v3187 = vadd.f32 0.0, %v3186
        %3188 = vmatprep.mubr.bf16.mxu0 %v3117
        %3189 = vmatmul.mubr.bf16.gmra.mrb[0].mxu0 %v3116
        %v3190 = vpop.f32.mrb[0].mxu0
        %v3191 = vadd.f32 0.0, %v3190
        %v3192 = vpop.f32.mrb[0].mxu0
        %v3193 = vadd.f32 0.0, %v3192
        %v3194 = vpop.f32.mrb[0].mxu0
        %v3195 = vadd.f32 0.0, %v3194
        %v3196 = vpop.f32.mrb[0].mxu0
        %v3197 = vadd.f32 0.0, %v3196
        %3198 = vdwg.mxu0
        %s3199 = scalar_lea.vmem %s13, 2
        %v3200 = vld [vmem:[%s3199] sm:$0x3]
        %v3202 = vlaneseq
        %v3203 = vshrl.u32 %v3202, 7
        %v3204 = vsub.s32 0, %v3203
        %v3205 = vrot.slane %v3200, %v3204
        %v3206 = vlaneseq
        %v3207 = vshrl.u32 %v3206, 7
        %v3208 = vsub.s32 1, %v3207
        %v3209 = vrot.slane %v3200, %v3208
        %v3212 = vmul.f32 %v3161, %v3205
        %v3213 = vmul.f32 %v3163, %v3209
        %v3214 = vmul.f32 %v3165, %v3205
        %v3215 = vmul.f32 %v3167, %v3209
        %v3216 = vmul.f32 %v3171, %v3205
        %v3217 = vmul.f32 %v3173, %v3209
        %v3218 = vmul.f32 %v3175, %v3205
        %v3219 = vmul.f32 %v3177, %v3209
        %v3220 = vmul.f32 %v3181, %v3205
        %v3221 = vmul.f32 %v3183, %v3209
        %v3222 = vmul.f32 %v3185, %v3205
        %v3223 = vmul.f32 %v3187, %v3209
        %v3224 = vmul.f32 %v3191, %v3205
        %v3225 = vmul.f32 %v3193, %v3209
        %v3226 = vmul.f32 %v3195, %v3205
        %v3227 = vmul.f32 %v3197, %v3209
        %v3228 = vadd.f32 %v3061, %v3212
        %v3229 = vadd.f32 %v3062, %v3213
        %v3230 = vadd.f32 %v3063, %v3214
        %v3231 = vadd.f32 %v3064, %v3215
        %v3232 = vadd.f32 %v3065, %v3216
        %v3233 = vadd.f32 %v3066, %v3217
        %v3234 = vadd.f32 %v3067, %v3218
        %v3235 = vadd.f32 %v3068, %v3219
        %v3236 = vadd.f32 %v3069, %v3220
        %v3237 = vadd.f32 %v3070, %v3221
        %v3238 = vadd.f32 %v3071, %v3222
        %v3239 = vadd.f32 %v3072, %v3223
        %v3240 = vadd.f32 %v3073, %v3224
        %v3241 = vadd.f32 %v3074, %v3225
        %v3242 = vadd.f32 %v3075, %v3226
        %v3243 = vadd.f32 %v3076, %v3227
        %s3244 = scalar_lea.vmem %s11, 128
        %v3245 = vld [vmem:[%s3244] sm:$0xff]
        %v3246 = vld [vmem:[%s3244 + $0x8] sm:$0xff]
        %v3247 = vld [vmem:[%s3244 + $0x10] sm:$0xff]
        %v3248 = vld [vmem:[%s3244 + $0x18] sm:$0xff]
        %v3249 = vld [vmem:[%s3244 + $0x20] sm:$0xff]
        %v3250 = vld [vmem:[%s3244 + $0x28] sm:$0xff]
        %v3251 = vld [vmem:[%s3244 + $0x30] sm:$0xff]
        %v3252 = vld [vmem:[%s3244 + $0x38] sm:$0xff]
        %v3261 = vunpack.c.l.b16 %v3245
        %v3262 = vunpack.c.h.b16 %v3245
        %v3263 = vunpack.c.l.b16 %v3246
        %v3264 = vunpack.c.h.b16 %v3246
        %v3265 = vunpack.c.l.b16 %v3247
        %v3266 = vunpack.c.h.b16 %v3247
        %v3267 = vunpack.c.l.b16 %v3248
        %v3268 = vunpack.c.h.b16 %v3248
        %v3269 = vunpack.c.l.b16 %v3249
        %v3270 = vunpack.c.h.b16 %v3249
        %v3271 = vunpack.c.l.b16 %v3250
        %v3272 = vunpack.c.h.b16 %v3250
        %v3273 = vunpack.c.l.b16 %v3251
        %v3274 = vunpack.c.h.b16 %v3251
        %v3275 = vunpack.c.l.b16 %v3252
        %v3276 = vunpack.c.h.b16 %v3252
        %v3277 = vpack.c.b16 %v3263, %v3261
        %v3278 = vpack.c.b16 %v3264, %v3262
        %v3279 = vpack.c.b16 %v3267, %v3265
        %v3280 = vpack.c.b16 %v3268, %v3266
        %v3281 = vpack.c.b16 %v3271, %v3269
        %v3282 = vpack.c.b16 %v3272, %v3270
        %v3283 = vpack.c.b16 %v3275, %v3273
        %v3284 = vpack.c.b16 %v3276, %v3274
        %3293 = vmatprep.subr.bf16.mxu0 %v2897
        %3294 = vmatpush1.bf16.msra.mxu0 %v2896
        %3295 = vmatprep.subr.bf16.mxu0 %v2899
        %3296 = vmatpush1.bf16.msra.mxu0 %v2898
        %3297 = vmatprep.subr.bf16.mxu0 %v2901
        %3298 = vmatpush1.bf16.msra.mxu0 %v2900
        %3299 = vmatprep.subr.bf16.mxu0 %v2903
        %3300 = vmatpush1.bf16.msra.mxu0 %v2902
        %3301 = vmatprep.subr.bf16.mxu0 %v2905
        %3302 = vmatpush1.bf16.msra.mxu0 %v2904
        %3303 = vmatprep.subr.bf16.mxu0 %v2907
        %3304 = vmatpush1.bf16.msra.mxu0 %v2906
        %3305 = vmatprep.subr.bf16.mxu0 %v2909
        %3306 = vmatpush1.bf16.msra.mxu0 %v2908
        %3307 = vmatprep.subr.bf16.mxu0 %v2911
        %3308 = vmatpush1.bf16.msra.mxu0 %v2910
        %3309 = vmatprep.subr.bf16.mxu0 %v2913
        %3310 = vmatpush1.bf16.msra.mxu0 %v2912
        %3311 = vmatprep.subr.bf16.mxu0 %v2915
        %3312 = vmatpush1.bf16.msra.mxu0 %v2914
        %3313 = vmatprep.subr.bf16.mxu0 %v2917
        %3314 = vmatpush1.bf16.msra.mxu0 %v2916
        %3315 = vmatprep.subr.bf16.mxu0 %v2919
        %3316 = vmatpush1.bf16.msra.mxu0 %v2918
        %3317 = vmatprep.subr.bf16.mxu0 %v2921
        %3318 = vmatpush1.bf16.msra.mxu0 %v2920
        %3319 = vmatprep.subr.bf16.mxu0 %v2923
        %3320 = vmatpush1.bf16.msra.mxu0 %v2922
        %3321 = vmatprep.subr.bf16.mxu0 %v2925
        %3322 = vmatpush1.bf16.msra.mxu0 %v2924
        %3323 = vmatprep.subr.bf16.mxu0 %v2927
        %3324 = vmatpush1.bf16.msra.mxu0 %v2926
        %3325 = vmatprep.mubr.bf16.mxu0 %v3278
        %3326 = vmatmul.mubr.bf16.gmra.mrb[0].mxu0 %v3277
        %v3327 = vpop.f32.mrb[0].mxu0
        %v3328 = vadd.f32 0.0, %v3327
        %v3329 = vpop.f32.mrb[0].mxu0
        %v3330 = vadd.f32 0.0, %v3329
        %v3331 = vpop.f32.mrb[0].mxu0
        %v3332 = vadd.f32 0.0, %v3331
        %v3333 = vpop.f32.mrb[0].mxu0
        %v3334 = vadd.f32 0.0, %v3333
        %3335 = vmatprep.mubr.bf16.mxu0 %v3280
        %3336 = vmatmul.mubr.bf16.gmra.mrb[0].mxu0 %v3279
        %v3337 = vpop.f32.mrb[0].mxu0
        %v3338 = vadd.f32 0.0, %v3337
        %v3339 = vpop.f32.mrb[0].mxu0
        %v3340 = vadd.f32 0.0, %v3339
        %v3341 = vpop.f32.mrb[0].mxu0
        %v3342 = vadd.f32 0.0, %v3341
        %v3343 = vpop.f32.mrb[0].mxu0
        %v3344 = vadd.f32 0.0, %v3343
        %3345 = vmatprep.mubr.bf16.mxu0 %v3282
        %3346 = vmatmul.mubr.bf16.gmra.mrb[0].mxu0 %v3281
        %v3347 = vpop.f32.mrb[0].mxu0
        %v3348 = vadd.f32 0.0, %v3347
        %v3349 = vpop.f32.mrb[0].mxu0
        %v3350 = vadd.f32 0.0, %v3349
        %v3351 = vpop.f32.mrb[0].mxu0
        %v3352 = vadd.f32 0.0, %v3351
        %v3353 = vpop.f32.mrb[0].mxu0
        %v3354 = vadd.f32 0.0, %v3353
        %3355 = vmatprep.mubr.bf16.mxu0 %v3284
        %3356 = vmatmul.mubr.bf16.gmra.mrb[0].mxu0 %v3283
        %v3357 = vpop.f32.mrb[0].mxu0
        %v3358 = vadd.f32 0.0, %v3357
        %v3359 = vpop.f32.mrb[0].mxu0
        %v3360 = vadd.f32 0.0, %v3359
        %v3361 = vpop.f32.mrb[0].mxu0
        %v3362 = vadd.f32 0.0, %v3361
        %v3363 = vpop.f32.mrb[0].mxu0
        %v3364 = vadd.f32 0.0, %v3363
        %3365 = vdwg.mxu0
        %s3366 = scalar_lea.vmem %s13, 4
        %v3367 = vld [vmem:[%s3366] sm:$0x3]
        %v3369 = vlaneseq
        %v3370 = vshrl.u32 %v3369, 7
        %v3371 = vsub.s32 0, %v3370
        %v3372 = vrot.slane %v3367, %v3371
        %v3373 = vlaneseq
        %v3374 = vshrl.u32 %v3373, 7
        %v3375 = vsub.s32 1, %v3374
        %v3376 = vrot.slane %v3367, %v3375
        %v3379 = vmul.f32 %v3328, %v3372
        %v3380 = vmul.f32 %v3330, %v3376
        %v3381 = vmul.f32 %v3332, %v3372
        %v3382 = vmul.f32 %v3334, %v3376
        %v3383 = vmul.f32 %v3338, %v3372
        %v3384 = vmul.f32 %v3340, %v3376
        %v3385 = vmul.f32 %v3342, %v3372
        %v3386 = vmul.f32 %v3344, %v3376
        %v3387 = vmul.f32 %v3348, %v3372
        %v3388 = vmul.f32 %v3350, %v3376
        %v3389 = vmul.f32 %v3352, %v3372
        %v3390 = vmul.f32 %v3354, %v3376
        %v3391 = vmul.f32 %v3358, %v3372
        %v3392 = vmul.f32 %v3360, %v3376
        %v3393 = vmul.f32 %v3362, %v3372
        %v3394 = vmul.f32 %v3364, %v3376
        %v3395 = vadd.f32 %v3228, %v3379
        %v3396 = vadd.f32 %v3229, %v3380
        %v3397 = vadd.f32 %v3230, %v3381
        %v3398 = vadd.f32 %v3231, %v3382
        %v3399 = vadd.f32 %v3232, %v3383
        %v3400 = vadd.f32 %v3233, %v3384
        %v3401 = vadd.f32 %v3234, %v3385
        %v3402 = vadd.f32 %v3235, %v3386
        %v3403 = vadd.f32 %v3236, %v3387
        %v3404 = vadd.f32 %v3237, %v3388
        %v3405 = vadd.f32 %v3238, %v3389
        %v3406 = vadd.f32 %v3239, %v3390
        %v3407 = vadd.f32 %v3240, %v3391
        %v3408 = vadd.f32 %v3241, %v3392
        %v3409 = vadd.f32 %v3242, %v3393
        %v3410 = vadd.f32 %v3243, %v3394
        %s3411 = scalar_lea.vmem %s11, 192
        %v3412 = vld [vmem:[%s3411] sm:$0xff]
        %v3413 = vld [vmem:[%s3411 + $0x8] sm:$0xff]
        %v3414 = vld [vmem:[%s3411 + $0x10] sm:$0xff]
        %v3415 = vld [vmem:[%s3411 + $0x18] sm:$0xff]
        %v3416 = vld [vmem:[%s3411 + $0x20] sm:$0xff]
        %v3417 = vld [vmem:[%s3411 + $0x28] sm:$0xff]
        %v3418 = vld [vmem:[%s3411 + $0x30] sm:$0xff]
        %v3419 = vld [vmem:[%s3411 + $0x38] sm:$0xff]
        %v3428 = vunpack.c.l.b16 %v3412
        %v3429 = vunpack.c.h.b16 %v3412
        %v3430 = vunpack.c.l.b16 %v3413
        %v3431 = vunpack.c.h.b16 %v3413
        %v3432 = vunpack.c.l.b16 %v3414
        %v3433 = vunpack.c.h.b16 %v3414
        %v3434 = vunpack.c.l.b16 %v3415
        %v3435 = vunpack.c.h.b16 %v3415
        %v3436 = vunpack.c.l.b16 %v3416
        %v3437 = vunpack.c.h.b16 %v3416
        %v3438 = vunpack.c.l.b16 %v3417
        %v3439 = vunpack.c.h.b16 %v3417
        %v3440 = vunpack.c.l.b16 %v3418
        %v3441 = vunpack.c.h.b16 %v3418
        %v3442 = vunpack.c.l.b16 %v3419
        %v3443 = vunpack.c.h.b16 %v3419
        %v3444 = vpack.c.b16 %v3430, %v3428
        %v3445 = vpack.c.b16 %v3431, %v3429
        %v3446 = vpack.c.b16 %v3434, %v3432
        %v3447 = vpack.c.b16 %v3435, %v3433
        %v3448 = vpack.c.b16 %v3438, %v3436
        %v3449 = vpack.c.b16 %v3439, %v3437
        %v3450 = vpack.c.b16 %v3442, %v3440
        %v3451 = vpack.c.b16 %v3443, %v3441
        %3460 = vmatprep.subr.bf16.mxu0 %v2897
        %3461 = vmatpush1.bf16.msra.mxu0 %v2896
        %3462 = vmatprep.subr.bf16.mxu0 %v2899
        %3463 = vmatpush1.bf16.msra.mxu0 %v2898
        %3464 = vmatprep.subr.bf16.mxu0 %v2901
        %3465 = vmatpush1.bf16.msra.mxu0 %v2900
        %3466 = vmatprep.subr.bf16.mxu0 %v2903
        %3467 = vmatpush1.bf16.msra.mxu0 %v2902
        %3468 = vmatprep.subr.bf16.mxu0 %v2905
        %3469 = vmatpush1.bf16.msra.mxu0 %v2904
        %3470 = vmatprep.subr.bf16.mxu0 %v2907
        %3471 = vmatpush1.bf16.msra.mxu0 %v2906
        %3472 = vmatprep.subr.bf16.mxu0 %v2909
        %3473 = vmatpush1.bf16.msra.mxu0 %v2908
        %3474 = vmatprep.subr.bf16.mxu0 %v2911
        %3475 = vmatpush1.bf16.msra.mxu0 %v2910
        %3476 = vmatprep.subr.bf16.mxu0 %v2913
        %3477 = vmatpush1.bf16.msra.mxu0 %v2912
        %3478 = vmatprep.subr.bf16.mxu0 %v2915
        %3479 = vmatpush1.bf16.msra.mxu0 %v2914
        %3480 = vmatprep.subr.bf16.mxu0 %v2917
        %3481 = vmatpush1.bf16.msra.mxu0 %v2916
        %3482 = vmatprep.subr.bf16.mxu0 %v2919
        %3483 = vmatpush1.bf16.msra.mxu0 %v2918
        %3484 = vmatprep.subr.bf16.mxu0 %v2921
        %3485 = vmatpush1.bf16.msra.mxu0 %v2920
        %3486 = vmatprep.subr.bf16.mxu0 %v2923
        %3487 = vmatpush1.bf16.msra.mxu0 %v2922
        %3488 = vmatprep.subr.bf16.mxu0 %v2925
        %3489 = vmatpush1.bf16.msra.mxu0 %v2924
        %3490 = vmatprep.subr.bf16.mxu0 %v2927
        %3491 = vmatpush1.bf16.msra.mxu0 %v2926
        %3492 = vmatprep.mubr.bf16.mxu0 %v3445
        %3493 = vmatmul.mubr.bf16.gmra.mrb[0].mxu0 %v3444
        %v3494 = vpop.f32.mrb[0].mxu0
        %v3495 = vadd.f32 0.0, %v3494
        %v3496 = vpop.f32.mrb[0].mxu0
        %v3497 = vadd.f32 0.0, %v3496
        %v3498 = vpop.f32.mrb[0].mxu0
        %v3499 = vadd.f32 0.0, %v3498
        %v3500 = vpop.f32.mrb[0].mxu0
        %v3501 = vadd.f32 0.0, %v3500
        %3502 = vmatprep.mubr.bf16.mxu0 %v3447
        %3503 = vmatmul.mubr.bf16.gmra.mrb[0].mxu0 %v3446
        %v3504 = vpop.f32.mrb[0].mxu0
        %v3505 = vadd.f32 0.0, %v3504
        %v3506 = vpop.f32.mrb[0].mxu0
        %v3507 = vadd.f32 0.0, %v3506
        %v3508 = vpop.f32.mrb[0].mxu0
        %v3509 = vadd.f32 0.0, %v3508
        %v3510 = vpop.f32.mrb[0].mxu0
        %v3511 = vadd.f32 0.0, %v3510
        %3512 = vmatprep.mubr.bf16.mxu0 %v3449
        %3513 = vmatmul.mubr.bf16.gmra.mrb[0].mxu0 %v3448
        %v3514 = vpop.f32.mrb[0].mxu0
        %v3515 = vadd.f32 0.0, %v3514
        %v3516 = vpop.f32.mrb[0].mxu0
        %v3517 = vadd.f32 0.0, %v3516
        %v3518 = vpop.f32.mrb[0].mxu0
        %v3519 = vadd.f32 0.0, %v3518
        %v3520 = vpop.f32.mrb[0].mxu0
        %v3521 = vadd.f32 0.0, %v3520
        %3522 = vmatprep.mubr.bf16.mxu0 %v3451
        %3523 = vmatmul.mubr.bf16.gmra.mrb[0].mxu0 %v3450
        %v3524 = vpop.f32.mrb[0].mxu0
        %v3525 = vadd.f32 0.0, %v3524
        %v3526 = vpop.f32.mrb[0].mxu0
        %v3527 = vadd.f32 0.0, %v3526
        %v3528 = vpop.f32.mrb[0].mxu0
        %v3529 = vadd.f32 0.0, %v3528
        %v3530 = vpop.f32.mrb[0].mxu0
        %v3531 = vadd.f32 0.0, %v3530
        %3532 = vdwg.mxu0
        %s3533 = scalar_lea.vmem %s13, 6
        %v3534 = vld [vmem:[%s3533] sm:$0x3]
        %v3536 = vlaneseq
        %v3537 = vshrl.u32 %v3536, 7
        %v3538 = vsub.s32 0, %v3537
        %v3539 = vrot.slane %v3534, %v3538
        %v3540 = vlaneseq
        %v3541 = vshrl.u32 %v3540, 7
        %v3542 = vsub.s32 1, %v3541
        %v3543 = vrot.slane %v3534, %v3542
        %v3546 = vmul.f32 %v3495, %v3539
        %v3547 = vmul.f32 %v3497, %v3543
        %v3548 = vmul.f32 %v3499, %v3539
        %v3549 = vmul.f32 %v3501, %v3543
        %v3550 = vmul.f32 %v3505, %v3539
        %v3551 = vmul.f32 %v3507, %v3543
        %v3552 = vmul.f32 %v3509, %v3539
        %v3553 = vmul.f32 %v3511, %v3543
        %v3554 = vmul.f32 %v3515, %v3539
        %v3555 = vmul.f32 %v3517, %v3543
        %v3556 = vmul.f32 %v3519, %v3539
        %v3557 = vmul.f32 %v3521, %v3543
        %v3558 = vmul.f32 %v3525, %v3539
        %v3559 = vmul.f32 %v3527, %v3543
        %v3560 = vmul.f32 %v3529, %v3539
        %v3561 = vmul.f32 %v3531, %v3543
        %v3562 = vadd.f32 %v3395, %v3546
        %v3563 = vadd.f32 %v3396, %v3547
        %v3564 = vadd.f32 %v3397, %v3548
        %v3565 = vadd.f32 %v3398, %v3549
        %v3566 = vadd.f32 %v3399, %v3550
        %v3567 = vadd.f32 %v3400, %v3551
        %v3568 = vadd.f32 %v3401, %v3552
        %v3569 = vadd.f32 %v3402, %v3553
        %v3570 = vadd.f32 %v3403, %v3554
        %v3571 = vadd.f32 %v3404, %v3555
        %v3572 = vadd.f32 %v3405, %v3556
        %v3573 = vadd.f32 %v3406, %v3557
        %v3574 = vadd.f32 %v3407, %v3558
        %v3575 = vadd.f32 %v3408, %v3559
        %v3576 = vadd.f32 %v3409, %v3560
        %v3577 = vadd.f32 %v3410, %v3561
        %s3578 = scalar_lea.vmem %s11, 256
        %v3579 = vld [vmem:[%s3578] sm:$0xff]
        %v3580 = vld [vmem:[%s3578 + $0x8] sm:$0xff]
        %v3581 = vld [vmem:[%s3578 + $0x10] sm:$0xff]
        %v3582 = vld [vmem:[%s3578 + $0x18] sm:$0xff]
        %v3583 = vld [vmem:[%s3578 + $0x20] sm:$0xff]
        %v3584 = vld [vmem:[%s3578 + $0x28] sm:$0xff]
        %v3585 = vld [vmem:[%s3578 + $0x30] sm:$0xff]
        %v3586 = vld [vmem:[%s3578 + $0x38] sm:$0xff]
        %v3595 = vunpack.c.l.b16 %v3579
        %v3596 = vunpack.c.h.b16 %v3579
        %v3597 = vunpack.c.l.b16 %v3580
        %v3598 = vunpack.c.h.b16 %v3580
        %v3599 = vunpack.c.l.b16 %v3581
        %v3600 = vunpack.c.h.b16 %v3581
        %v3601 = vunpack.c.l.b16 %v3582
        %v3602 = vunpack.c.h.b16 %v3582
        %v3603 = vunpack.c.l.b16 %v3583
        %v3604 = vunpack.c.h.b16 %v3583
        %v3605 = vunpack.c.l.b16 %v3584
        %v3606 = vunpack.c.h.b16 %v3584
        %v3607 = vunpack.c.l.b16 %v3585
        %v3608 = vunpack.c.h.b16 %v3585
        %v3609 = vunpack.c.l.b16 %v3586
        %v3610 = vunpack.c.h.b16 %v3586
        %v3611 = vpack.c.b16 %v3597, %v3595
        %v3612 = vpack.c.b16 %v3598, %v3596
        %v3613 = vpack.c.b16 %v3601, %v3599
        %v3614 = vpack.c.b16 %v3602, %v3600
        %v3615 = vpack.c.b16 %v3605, %v3603
        %v3616 = vpack.c.b16 %v3606, %v3604
        %v3617 = vpack.c.b16 %v3609, %v3607
        %v3618 = vpack.c.b16 %v3610, %v3608
        %3627 = vmatprep.subr.bf16.mxu0 %v2897
        %3628 = vmatpush1.bf16.msra.mxu0 %v2896
        %3629 = vmatprep.subr.bf16.mxu0 %v2899
        %3630 = vmatpush1.bf16.msra.mxu0 %v2898
        %3631 = vmatprep.subr.bf16.mxu0 %v2901
        %3632 = vmatpush1.bf16.msra.mxu0 %v2900
        %3633 = vmatprep.subr.bf16.mxu0 %v2903
        %3634 = vmatpush1.bf16.msra.mxu0 %v2902
        %3635 = vmatprep.subr.bf16.mxu0 %v2905
        %3636 = vmatpush1.bf16.msra.mxu0 %v2904
        %3637 = vmatprep.subr.bf16.mxu0 %v2907
        %3638 = vmatpush1.bf16.msra.mxu0 %v2906
        %3639 = vmatprep.subr.bf16.mxu0 %v2909
        %3640 = vmatpush1.bf16.msra.mxu0 %v2908
        %3641 = vmatprep.subr.bf16.mxu0 %v2911
        %3642 = vmatpush1.bf16.msra.mxu0 %v2910
        %3643 = vmatprep.subr.bf16.mxu0 %v2913
        %3644 = vmatpush1.bf16.msra.mxu0 %v2912
        %3645 = vmatprep.subr.bf16.mxu0 %v2915
        %3646 = vmatpush1.bf16.msra.mxu0 %v2914
        %3647 = vmatprep.subr.bf16.mxu0 %v2917
        %3648 = vmatpush1.bf16.msra.mxu0 %v2916
        %3649 = vmatprep.subr.bf16.mxu0 %v2919
        %3650 = vmatpush1.bf16.msra.mxu0 %v2918
        %3651 = vmatprep.subr.bf16.mxu0 %v2921
        %3652 = vmatpush1.bf16.msra.mxu0 %v2920
        %3653 = vmatprep.subr.bf16.mxu0 %v2923
        %3654 = vmatpush1.bf16.msra.mxu0 %v2922
        %3655 = vmatprep.subr.bf16.mxu0 %v2925
        %3656 = vmatpush1.bf16.msra.mxu0 %v2924
        %3657 = vmatprep.subr.bf16.mxu0 %v2927
        %3658 = vmatpush1.bf16.msra.mxu0 %v2926
        %3659 = vmatprep.mubr.bf16.mxu0 %v3612
        %3660 = vmatmul.mubr.bf16.gmra.mrb[0].mxu0 %v3611
        %v3661 = vpop.f32.mrb[0].mxu0
        %v3662 = vadd.f32 0.0, %v3661
        %v3663 = vpop.f32.mrb[0].mxu0
        %v3664 = vadd.f32 0.0, %v3663
        %v3665 = vpop.f32.mrb[0].mxu0
        %v3666 = vadd.f32 0.0, %v3665
        %v3667 = vpop.f32.mrb[0].mxu0
        %v3668 = vadd.f32 0.0, %v3667
        %3669 = vmatprep.mubr.bf16.mxu0 %v3614
        %3670 = vmatmul.mubr.bf16.gmra.mrb[0].mxu0 %v3613
        %v3671 = vpop.f32.mrb[0].mxu0
        %v3672 = vadd.f32 0.0, %v3671
        %v3673 = vpop.f32.mrb[0].mxu0
        %v3674 = vadd.f32 0.0, %v3673
        %v3675 = vpop.f32.mrb[0].mxu0
        %v3676 = vadd.f32 0.0, %v3675
        %v3677 = vpop.f32.mrb[0].mxu0
        %v3678 = vadd.f32 0.0, %v3677
        %3679 = vmatprep.mubr.bf16.mxu0 %v3616
        %3680 = vmatmul.mubr.bf16.gmra.mrb[0].mxu0 %v3615
        %v3681 = vpop.f32.mrb[0].mxu0
        %v3682 = vadd.f32 0.0, %v3681
        %v3683 = vpop.f32.mrb[0].mxu0
        %v3684 = vadd.f32 0.0, %v3683
        %v3685 = vpop.f32.mrb[0].mxu0
        %v3686 = vadd.f32 0.0, %v3685
        %v3687 = vpop.f32.mrb[0].mxu0
        %v3688 = vadd.f32 0.0, %v3687
        %3689 = vmatprep.mubr.bf16.mxu0 %v3618
        %3690 = vmatmul.mubr.bf16.gmra.mrb[0].mxu0 %v3617
        %v3691 = vpop.f32.mrb[0].mxu0
        %v3692 = vadd.f32 0.0, %v3691
        %v3693 = vpop.f32.mrb[0].mxu0
        %v3694 = vadd.f32 0.0, %v3693
        %v3695 = vpop.f32.mrb[0].mxu0
        %v3696 = vadd.f32 0.0, %v3695
        %v3697 = vpop.f32.mrb[0].mxu0
        %v3698 = vadd.f32 0.0, %v3697
        %3699 = vdwg.mxu0
        %s3700 = scalar_lea.vmem %s13, 8
        %v3701 = vld [vmem:[%s3700] sm:$0x3]
        %v3703 = vlaneseq
        %v3704 = vshrl.u32 %v3703, 7
        %v3705 = vsub.s32 0, %v3704
        %v3706 = vrot.slane %v3701, %v3705
        %v3707 = vlaneseq
        %v3708 = vshrl.u32 %v3707, 7
        %v3709 = vsub.s32 1, %v3708
        %v3710 = vrot.slane %v3701, %v3709
        %v3713 = vmul.f32 %v3662, %v3706
        %v3714 = vmul.f32 %v3664, %v3710
        %v3715 = vmul.f32 %v3666, %v3706
        %v3716 = vmul.f32 %v3668, %v3710
        %v3717 = vmul.f32 %v3672, %v3706
        %v3718 = vmul.f32 %v3674, %v3710
        %v3719 = vmul.f32 %v3676, %v3706
        %v3720 = vmul.f32 %v3678, %v3710
        %v3721 = vmul.f32 %v3682, %v3706
        %v3722 = vmul.f32 %v3684, %v3710
        %v3723 = vmul.f32 %v3686, %v3706
        %v3724 = vmul.f32 %v3688, %v3710
        %v3725 = vmul.f32 %v3692, %v3706
        %v3726 = vmul.f32 %v3694, %v3710
        %v3727 = vmul.f32 %v3696, %v3706
        %v3728 = vmul.f32 %v3698, %v3710
        %v3729 = vadd.f32 %v3562, %v3713
        %v3730 = vadd.f32 %v3563, %v3714
        %v3731 = vadd.f32 %v3564, %v3715
        %v3732 = vadd.f32 %v3565, %v3716
        %v3733 = vadd.f32 %v3566, %v3717
        %v3734 = vadd.f32 %v3567, %v3718
        %v3735 = vadd.f32 %v3568, %v3719
        %v3736 = vadd.f32 %v3569, %v3720
        %v3737 = vadd.f32 %v3570, %v3721
        %v3738 = vadd.f32 %v3571, %v3722
        %v3739 = vadd.f32 %v3572, %v3723
        %v3740 = vadd.f32 %v3573, %v3724
        %v3741 = vadd.f32 %v3574, %v3725
        %v3742 = vadd.f32 %v3575, %v3726
        %v3743 = vadd.f32 %v3576, %v3727
        %v3744 = vadd.f32 %v3577, %v3728
        %s3745 = scalar_lea.vmem %s11, 320
        %v3746 = vld [vmem:[%s3745] sm:$0xff]
        %v3747 = vld [vmem:[%s3745 + $0x8] sm:$0xff]
        %v3748 = vld [vmem:[%s3745 + $0x10] sm:$0xff]
        %v3749 = vld [vmem:[%s3745 + $0x18] sm:$0xff]
        %v3750 = vld [vmem:[%s3745 + $0x20] sm:$0xff]
        %v3751 = vld [vmem:[%s3745 + $0x28] sm:$0xff]
        %v3752 = vld [vmem:[%s3745 + $0x30] sm:$0xff]
        %v3753 = vld [vmem:[%s3745 + $0x38] sm:$0xff]
        %v3762 = vunpack.c.l.b16 %v3746
        %v3763 = vunpack.c.h.b16 %v3746
        %v3764 = vunpack.c.l.b16 %v3747
        %v3765 = vunpack.c.h.b16 %v3747
        %v3766 = vunpack.c.l.b16 %v3748
        %v3767 = vunpack.c.h.b16 %v3748
        %v3768 = vunpack.c.l.b16 %v3749
        %v3769 = vunpack.c.h.b16 %v3749
        %v3770 = vunpack.c.l.b16 %v3750
        %v3771 = vunpack.c.h.b16 %v3750
        %v3772 = vunpack.c.l.b16 %v3751
        %v3773 = vunpack.c.h.b16 %v3751
        %v3774 = vunpack.c.l.b16 %v3752
        %v3775 = vunpack.c.h.b16 %v3752
        %v3776 = vunpack.c.l.b16 %v3753
        %v3777 = vunpack.c.h.b16 %v3753
        %v3778 = vpack.c.b16 %v3764, %v3762
        %v3779 = vpack.c.b16 %v3765, %v3763
        %v3780 = vpack.c.b16 %v3768, %v3766
        %v3781 = vpack.c.b16 %v3769, %v3767
        %v3782 = vpack.c.b16 %v3772, %v3770
        %v3783 = vpack.c.b16 %v3773, %v3771
        %v3784 = vpack.c.b16 %v3776, %v3774
        %v3785 = vpack.c.b16 %v3777, %v3775
        %3794 = vmatprep.subr.bf16.mxu0 %v2897
        %3795 = vmatpush1.bf16.msra.mxu0 %v2896
        %3796 = vmatprep.subr.bf16.mxu0 %v2899
        %3797 = vmatpush1.bf16.msra.mxu0 %v2898
        %3798 = vmatprep.subr.bf16.mxu0 %v2901
        %3799 = vmatpush1.bf16.msra.mxu0 %v2900
        %3800 = vmatprep.subr.bf16.mxu0 %v2903
        %3801 = vmatpush1.bf16.msra.mxu0 %v2902
        %3802 = vmatprep.subr.bf16.mxu0 %v2905
        %3803 = vmatpush1.bf16.msra.mxu0 %v2904
        %3804 = vmatprep.subr.bf16.mxu0 %v2907
        %3805 = vmatpush1.bf16.msra.mxu0 %v2906
        %3806 = vmatprep.subr.bf16.mxu0 %v2909
        %3807 = vmatpush1.bf16.msra.mxu0 %v2908
        %3808 = vmatprep.subr.bf16.mxu0 %v2911
        %3809 = vmatpush1.bf16.msra.mxu0 %v2910
        %3810 = vmatprep.subr.bf16.mxu0 %v2913
        %3811 = vmatpush1.bf16.msra.mxu0 %v2912
        %3812 = vmatprep.subr.bf16.mxu0 %v2915
        %3813 = vmatpush1.bf16.msra.mxu0 %v2914
        %3814 = vmatprep.subr.bf16.mxu0 %v2917
        %3815 = vmatpush1.bf16.msra.mxu0 %v2916
        %3816 = vmatprep.subr.bf16.mxu0 %v2919
        %3817 = vmatpush1.bf16.msra.mxu0 %v2918
        %3818 = vmatprep.subr.bf16.mxu0 %v2921
        %3819 = vmatpush1.bf16.msra.mxu0 %v2920
        %3820 = vmatprep.subr.bf16.mxu0 %v2923
        %3821 = vmatpush1.bf16.msra.mxu0 %v2922
        %3822 = vmatprep.subr.bf16.mxu0 %v2925
        %3823 = vmatpush1.bf16.msra.mxu0 %v2924
        %3824 = vmatprep.subr.bf16.mxu0 %v2927
        %3825 = vmatpush1.bf16.msra.mxu0 %v2926
        %3826 = vmatprep.mubr.bf16.mxu0 %v3779
        %3827 = vmatmul.mubr.bf16.gmra.mrb[0].mxu0 %v3778
        %v3828 = vpop.f32.mrb[0].mxu0
        %v3829 = vadd.f32 0.0, %v3828
        %v3830 = vpop.f32.mrb[0].mxu0
        %v3831 = vadd.f32 0.0, %v3830
        %v3832 = vpop.f32.mrb[0].mxu0
        %v3833 = vadd.f32 0.0, %v3832
        %v3834 = vpop.f32.mrb[0].mxu0
        %v3835 = vadd.f32 0.0, %v3834
        %3836 = vmatprep.mubr.bf16.mxu0 %v3781
        %3837 = vmatmul.mubr.bf16.gmra.mrb[0].mxu0 %v3780
        %v3838 = vpop.f32.mrb[0].mxu0
        %v3839 = vadd.f32 0.0, %v3838
        %v3840 = vpop.f32.mrb[0].mxu0
        %v3841 = vadd.f32 0.0, %v3840
        %v3842 = vpop.f32.mrb[0].mxu0
        %v3843 = vadd.f32 0.0, %v3842
        %v3844 = vpop.f32.mrb[0].mxu0
        %v3845 = vadd.f32 0.0, %v3844
        %3846 = vmatprep.mubr.bf16.mxu0 %v3783
        %3847 = vmatmul.mubr.bf16.gmra.mrb[0].mxu0 %v3782
        %v3848 = vpop.f32.mrb[0].mxu0
        %v3849 = vadd.f32 0.0, %v3848
        %v3850 = vpop.f32.mrb[0].mxu0
        %v3851 = vadd.f32 0.0, %v3850
        %v3852 = vpop.f32.mrb[0].mxu0
        %v3853 = vadd.f32 0.0, %v3852
        %v3854 = vpop.f32.mrb[0].mxu0
        %v3855 = vadd.f32 0.0, %v3854
        %3856 = vmatprep.mubr.bf16.mxu0 %v3785
        %3857 = vmatmul.mubr.bf16.gmra.mrb[0].mxu0 %v3784
        %v3858 = vpop.f32.mrb[0].mxu0
        %v3859 = vadd.f32 0.0, %v3858
        %v3860 = vpop.f32.mrb[0].mxu0
        %v3861 = vadd.f32 0.0, %v3860
        %v3862 = vpop.f32.mrb[0].mxu0
        %v3863 = vadd.f32 0.0, %v3862
        %v3864 = vpop.f32.mrb[0].mxu0
        %v3865 = vadd.f32 0.0, %v3864
        %3866 = vdwg.mxu0
        %s3867 = scalar_lea.vmem %s13, 10
        %v3868 = vld [vmem:[%s3867] sm:$0x3]
        %v3870 = vlaneseq
        %v3871 = vshrl.u32 %v3870, 7
        %v3872 = vsub.s32 0, %v3871
        %v3873 = vrot.slane %v3868, %v3872
        %v3874 = vlaneseq
        %v3875 = vshrl.u32 %v3874, 7
        %v3876 = vsub.s32 1, %v3875
        %v3877 = vrot.slane %v3868, %v3876
        %v3880 = vmul.f32 %v3829, %v3873
        %v3881 = vmul.f32 %v3831, %v3877
        %v3882 = vmul.f32 %v3833, %v3873
        %v3883 = vmul.f32 %v3835, %v3877
        %v3884 = vmul.f32 %v3839, %v3873
        %v3885 = vmul.f32 %v3841, %v3877
        %v3886 = vmul.f32 %v3843, %v3873
        %v3887 = vmul.f32 %v3845, %v3877
        %v3888 = vmul.f32 %v3849, %v3873
        %v3889 = vmul.f32 %v3851, %v3877
        %v3890 = vmul.f32 %v3853, %v3873
        %v3891 = vmul.f32 %v3855, %v3877
        %v3892 = vmul.f32 %v3859, %v3873
        %v3893 = vmul.f32 %v3861, %v3877
        %v3894 = vmul.f32 %v3863, %v3873
        %v3895 = vmul.f32 %v3865, %v3877
        %v3896 = vadd.f32 %v3729, %v3880
        %v3897 = vadd.f32 %v3730, %v3881
        %v3898 = vadd.f32 %v3731, %v3882
        %v3899 = vadd.f32 %v3732, %v3883
        %v3900 = vadd.f32 %v3733, %v3884
        %v3901 = vadd.f32 %v3734, %v3885
        %v3902 = vadd.f32 %v3735, %v3886
        %v3903 = vadd.f32 %v3736, %v3887
        %v3904 = vadd.f32 %v3737, %v3888
        %v3905 = vadd.f32 %v3738, %v3889
        %v3906 = vadd.f32 %v3739, %v3890
        %v3907 = vadd.f32 %v3740, %v3891
        %v3908 = vadd.f32 %v3741, %v3892
        %v3909 = vadd.f32 %v3742, %v3893
        %v3910 = vadd.f32 %v3743, %v3894
        %v3911 = vadd.f32 %v3744, %v3895
        %s3912 = scalar_lea.vmem %s11, 384
        %v3913 = vld [vmem:[%s3912] sm:$0xff]
        %v3914 = vld [vmem:[%s3912 + $0x8] sm:$0xff]
        %v3915 = vld [vmem:[%s3912 + $0x10] sm:$0xff]
        %v3916 = vld [vmem:[%s3912 + $0x18] sm:$0xff]
        %v3917 = vld [vmem:[%s3912 + $0x20] sm:$0xff]
        %v3918 = vld [vmem:[%s3912 + $0x28] sm:$0xff]
        %v3919 = vld [vmem:[%s3912 + $0x30] sm:$0xff]
        %v3920 = vld [vmem:[%s3912 + $0x38] sm:$0xff]
        %v3929 = vunpack.c.l.b16 %v3913
        %v3930 = vunpack.c.h.b16 %v3913
        %v3931 = vunpack.c.l.b16 %v3914
        %v3932 = vunpack.c.h.b16 %v3914
        %v3933 = vunpack.c.l.b16 %v3915
        %v3934 = vunpack.c.h.b16 %v3915
        %v3935 = vunpack.c.l.b16 %v3916
        %v3936 = vunpack.c.h.b16 %v3916
        %v3937 = vunpack.c.l.b16 %v3917
        %v3938 = vunpack.c.h.b16 %v3917
        %v3939 = vunpack.c.l.b16 %v3918
        %v3940 = vunpack.c.h.b16 %v3918
        %v3941 = vunpack.c.l.b16 %v3919
        %v3942 = vunpack.c.h.b16 %v3919
        %v3943 = vunpack.c.l.b16 %v3920
        %v3944 = vunpack.c.h.b16 %v3920
        %v3945 = vpack.c.b16 %v3931, %v3929
        %v3946 = vpack.c.b16 %v3932, %v3930
        %v3947 = vpack.c.b16 %v3935, %v3933
        %v3948 = vpack.c.b16 %v3936, %v3934
        %v3949 = vpack.c.b16 %v3939, %v3937
        %v3950 = vpack.c.b16 %v3940, %v3938
        %v3951 = vpack.c.b16 %v3943, %v3941
        %v3952 = vpack.c.b16 %v3944, %v3942
        %3961 = vmatprep.subr.bf16.mxu0 %v2897
        %3962 = vmatpush1.bf16.msra.mxu0 %v2896
        %3963 = vmatprep.subr.bf16.mxu0 %v2899
        %3964 = vmatpush1.bf16.msra.mxu0 %v2898
        %3965 = vmatprep.subr.bf16.mxu0 %v2901
        %3966 = vmatpush1.bf16.msra.mxu0 %v2900
        %3967 = vmatprep.subr.bf16.mxu0 %v2903
        %3968 = vmatpush1.bf16.msra.mxu0 %v2902
        %3969 = vmatprep.subr.bf16.mxu0 %v2905
        %3970 = vmatpush1.bf16.msra.mxu0 %v2904
        %3971 = vmatprep.subr.bf16.mxu0 %v2907
        %3972 = vmatpush1.bf16.msra.mxu0 %v2906
        %3973 = vmatprep.subr.bf16.mxu0 %v2909
        %3974 = vmatpush1.bf16.msra.mxu0 %v2908
        %3975 = vmatprep.subr.bf16.mxu0 %v2911
        %3976 = vmatpush1.bf16.msra.mxu0 %v2910
        %3977 = vmatprep.subr.bf16.mxu0 %v2913
        %3978 = vmatpush1.bf16.msra.mxu0 %v2912
        %3979 = vmatprep.subr.bf16.mxu0 %v2915
        %3980 = vmatpush1.bf16.msra.mxu0 %v2914
        %3981 = vmatprep.subr.bf16.mxu0 %v2917
        %3982 = vmatpush1.bf16.msra.mxu0 %v2916
        %3983 = vmatprep.subr.bf16.mxu0 %v2919
        %3984 = vmatpush1.bf16.msra.mxu0 %v2918
        %3985 = vmatprep.subr.bf16.mxu0 %v2921
        %3986 = vmatpush1.bf16.msra.mxu0 %v2920
        %3987 = vmatprep.subr.bf16.mxu0 %v2923
        %3988 = vmatpush1.bf16.msra.mxu0 %v2922
        %3989 = vmatprep.subr.bf16.mxu0 %v2925
        %3990 = vmatpush1.bf16.msra.mxu0 %v2924
        %3991 = vmatprep.subr.bf16.mxu0 %v2927
        %3992 = vmatpush1.bf16.msra.mxu0 %v2926
        %3993 = vmatprep.mubr.bf16.mxu0 %v3946
        %3994 = vmatmul.mubr.bf16.gmra.mrb[0].mxu0 %v3945
        %v3995 = vpop.f32.mrb[0].mxu0
        %v3996 = vadd.f32 0.0, %v3995
        %v3997 = vpop.f32.mrb[0].mxu0
        %v3998 = vadd.f32 0.0, %v3997
        %v3999 = vpop.f32.mrb[0].mxu0
        %v4000 = vadd.f32 0.0, %v3999
        %v4001 = vpop.f32.mrb[0].mxu0
        %v4002 = vadd.f32 0.0, %v4001
        %4003 = vmatprep.mubr.bf16.mxu0 %v3948
        %4004 = vmatmul.mubr.bf16.gmra.mrb[0].mxu0 %v3947
        %v4005 = vpop.f32.mrb[0].mxu0
        %v4006 = vadd.f32 0.0, %v4005
        %v4007 = vpop.f32.mrb[0].mxu0
        %v4008 = vadd.f32 0.0, %v4007
        %v4009 = vpop.f32.mrb[0].mxu0
        %v4010 = vadd.f32 0.0, %v4009
        %v4011 = vpop.f32.mrb[0].mxu0
        %v4012 = vadd.f32 0.0, %v4011
        %4013 = vmatprep.mubr.bf16.mxu0 %v3950
        %4014 = vmatmul.mubr.bf16.gmra.mrb[0].mxu0 %v3949
        %v4015 = vpop.f32.mrb[0].mxu0
        %v4016 = vadd.f32 0.0, %v4015
        %v4017 = vpop.f32.mrb[0].mxu0
        %v4018 = vadd.f32 0.0, %v4017
        %v4019 = vpop.f32.mrb[0].mxu0
        %v4020 = vadd.f32 0.0, %v4019
        %v4021 = vpop.f32.mrb[0].mxu0
        %v4022 = vadd.f32 0.0, %v4021
        %4023 = vmatprep.mubr.bf16.mxu0 %v3952
        %4024 = vmatmul.mubr.bf16.gmra.mrb[0].mxu0 %v3951
        %v4025 = vpop.f32.mrb[0].mxu0
        %v4026 = vadd.f32 0.0, %v4025
        %v4027 = vpop.f32.mrb[0].mxu0
        %v4028 = vadd.f32 0.0, %v4027
        %v4029 = vpop.f32.mrb[0].mxu0
        %v4030 = vadd.f32 0.0, %v4029
        %v4031 = vpop.f32.mrb[0].mxu0
        %v4032 = vadd.f32 0.0, %v4031
        %4033 = vdwg.mxu0
        %s4034 = scalar_lea.vmem %s13, 12
        %v4035 = vld [vmem:[%s4034] sm:$0x3]
        %v4037 = vlaneseq
        %v4038 = vshrl.u32 %v4037, 7
        %v4039 = vsub.s32 0, %v4038
        %v4040 = vrot.slane %v4035, %v4039
        %v4041 = vlaneseq
        %v4042 = vshrl.u32 %v4041, 7
        %v4043 = vsub.s32 1, %v4042
        %v4044 = vrot.slane %v4035, %v4043
        %v4047 = vmul.f32 %v3996, %v4040
        %v4048 = vmul.f32 %v3998, %v4044
        %v4049 = vmul.f32 %v4000, %v4040
        %v4050 = vmul.f32 %v4002, %v4044
        %v4051 = vmul.f32 %v4006, %v4040
        %v4052 = vmul.f32 %v4008, %v4044
        %v4053 = vmul.f32 %v4010, %v4040
        %v4054 = vmul.f32 %v4012, %v4044
        %v4055 = vmul.f32 %v4016, %v4040
        %v4056 = vmul.f32 %v4018, %v4044
        %v4057 = vmul.f32 %v4020, %v4040
        %v4058 = vmul.f32 %v4022, %v4044
        %v4059 = vmul.f32 %v4026, %v4040
        %v4060 = vmul.f32 %v4028, %v4044
        %v4061 = vmul.f32 %v4030, %v4040
        %v4062 = vmul.f32 %v4032, %v4044
        %v4063 = vadd.f32 %v3896, %v4047
        %v4064 = vadd.f32 %v3897, %v4048
        %v4065 = vadd.f32 %v3898, %v4049
        %v4066 = vadd.f32 %v3899, %v4050
        %v4067 = vadd.f32 %v3900, %v4051
        %v4068 = vadd.f32 %v3901, %v4052
        %v4069 = vadd.f32 %v3902, %v4053
        %v4070 = vadd.f32 %v3903, %v4054
        %v4071 = vadd.f32 %v3904, %v4055
        %v4072 = vadd.f32 %v3905, %v4056
        %v4073 = vadd.f32 %v3906, %v4057
        %v4074 = vadd.f32 %v3907, %v4058
        %v4075 = vadd.f32 %v3908, %v4059
        %v4076 = vadd.f32 %v3909, %v4060
        %v4077 = vadd.f32 %v3910, %v4061
        %v4078 = vadd.f32 %v3911, %v4062
        %s4079 = scalar_lea.vmem %s11, 448
        %v4080 = vld [vmem:[%s4079] sm:$0xff]
        %v4081 = vld [vmem:[%s4079 + $0x8] sm:$0xff]
        %v4082 = vld [vmem:[%s4079 + $0x10] sm:$0xff]
        %v4083 = vld [vmem:[%s4079 + $0x18] sm:$0xff]
        %v4084 = vld [vmem:[%s4079 + $0x20] sm:$0xff]
        %v4085 = vld [vmem:[%s4079 + $0x28] sm:$0xff]
        %v4086 = vld [vmem:[%s4079 + $0x30] sm:$0xff]
        %v4087 = vld [vmem:[%s4079 + $0x38] sm:$0xff]
        %v4096 = vunpack.c.l.b16 %v4080
        %v4097 = vunpack.c.h.b16 %v4080
        %v4098 = vunpack.c.l.b16 %v4081
        %v4099 = vunpack.c.h.b16 %v4081
        %v4100 = vunpack.c.l.b16 %v4082
        %v4101 = vunpack.c.h.b16 %v4082
        %v4102 = vunpack.c.l.b16 %v4083
        %v4103 = vunpack.c.h.b16 %v4083
        %v4104 = vunpack.c.l.b16 %v4084
        %v4105 = vunpack.c.h.b16 %v4084
        %v4106 = vunpack.c.l.b16 %v4085
        %v4107 = vunpack.c.h.b16 %v4085
        %v4108 = vunpack.c.l.b16 %v4086
        %v4109 = vunpack.c.h.b16 %v4086
        %v4110 = vunpack.c.l.b16 %v4087
        %v4111 = vunpack.c.h.b16 %v4087
        %v4112 = vpack.c.b16 %v4098, %v4096
        %v4113 = vpack.c.b16 %v4099, %v4097
        %v4114 = vpack.c.b16 %v4102, %v4100
        %v4115 = vpack.c.b16 %v4103, %v4101
        %v4116 = vpack.c.b16 %v4106, %v4104
        %v4117 = vpack.c.b16 %v4107, %v4105
        %v4118 = vpack.c.b16 %v4110, %v4108
        %v4119 = vpack.c.b16 %v4111, %v4109
        %4128 = vmatprep.subr.bf16.mxu0 %v2897
        %4129 = vmatpush1.bf16.msra.mxu0 %v2896
        %4130 = vmatprep.subr.bf16.mxu0 %v2899
        %4131 = vmatpush1.bf16.msra.mxu0 %v2898
        %4132 = vmatprep.subr.bf16.mxu0 %v2901
        %4133 = vmatpush1.bf16.msra.mxu0 %v2900
        %4134 = vmatprep.subr.bf16.mxu0 %v2903
        %4135 = vmatpush1.bf16.msra.mxu0 %v2902
        %4136 = vmatprep.subr.bf16.mxu0 %v2905
        %4137 = vmatpush1.bf16.msra.mxu0 %v2904
        %4138 = vmatprep.subr.bf16.mxu0 %v2907
        %4139 = vmatpush1.bf16.msra.mxu0 %v2906
        %4140 = vmatprep.subr.bf16.mxu0 %v2909
        %4141 = vmatpush1.bf16.msra.mxu0 %v2908
        %4142 = vmatprep.subr.bf16.mxu0 %v2911
        %4143 = vmatpush1.bf16.msra.mxu0 %v2910
        %4144 = vmatprep.subr.bf16.mxu0 %v2913
        %4145 = vmatpush1.bf16.msra.mxu0 %v2912
        %4146 = vmatprep.subr.bf16.mxu0 %v2915
        %4147 = vmatpush1.bf16.msra.mxu0 %v2914
        %4148 = vmatprep.subr.bf16.mxu0 %v2917
        %4149 = vmatpush1.bf16.msra.mxu0 %v2916
        %4150 = vmatprep.subr.bf16.mxu0 %v2919
        %4151 = vmatpush1.bf16.msra.mxu0 %v2918
        %4152 = vmatprep.subr.bf16.mxu0 %v2921
        %4153 = vmatpush1.bf16.msra.mxu0 %v2920
        %4154 = vmatprep.subr.bf16.mxu0 %v2923
        %4155 = vmatpush1.bf16.msra.mxu0 %v2922
        %4156 = vmatprep.subr.bf16.mxu0 %v2925
        %4157 = vmatpush1.bf16.msra.mxu0 %v2924
        %4158 = vmatprep.subr.bf16.mxu0 %v2927
        %4159 = vmatpush1.bf16.msra.mxu0 %v2926
        %4160 = vmatprep.mubr.bf16.mxu0 %v4113
        %4161 = vmatmul.mubr.bf16.gmra.mrb[0].mxu0 %v4112
        %v4162 = vpop.f32.mrb[0].mxu0
        %v4163 = vadd.f32 0.0, %v4162
        %v4164 = vpop.f32.mrb[0].mxu0
        %v4165 = vadd.f32 0.0, %v4164
        %v4166 = vpop.f32.mrb[0].mxu0
        %v4167 = vadd.f32 0.0, %v4166
        %v4168 = vpop.f32.mrb[0].mxu0
        %v4169 = vadd.f32 0.0, %v4168
        %4170 = vmatprep.mubr.bf16.mxu0 %v4115
        %4171 = vmatmul.mubr.bf16.gmra.mrb[0].mxu0 %v4114
        %v4172 = vpop.f32.mrb[0].mxu0
        %v4173 = vadd.f32 0.0, %v4172
        %v4174 = vpop.f32.mrb[0].mxu0
        %v4175 = vadd.f32 0.0, %v4174
        %v4176 = vpop.f32.mrb[0].mxu0
        %v4177 = vadd.f32 0.0, %v4176
        %v4178 = vpop.f32.mrb[0].mxu0
        %v4179 = vadd.f32 0.0, %v4178
        %4180 = vmatprep.mubr.bf16.mxu0 %v4117
        %4181 = vmatmul.mubr.bf16.gmra.mrb[0].mxu0 %v4116
        %v4182 = vpop.f32.mrb[0].mxu0
        %v4183 = vadd.f32 0.0, %v4182
        %v4184 = vpop.f32.mrb[0].mxu0
        %v4185 = vadd.f32 0.0, %v4184
        %v4186 = vpop.f32.mrb[0].mxu0
        %v4187 = vadd.f32 0.0, %v4186
        %v4188 = vpop.f32.mrb[0].mxu0
        %v4189 = vadd.f32 0.0, %v4188
        %4190 = vmatprep.mubr.bf16.mxu0 %v4119
        %4191 = vmatmul.mubr.bf16.gmra.mrb[0].mxu0 %v4118
        %v4192 = vpop.f32.mrb[0].mxu0
        %v4193 = vadd.f32 0.0, %v4192
        %v4194 = vpop.f32.mrb[0].mxu0
        %v4195 = vadd.f32 0.0, %v4194
        %v4196 = vpop.f32.mrb[0].mxu0
        %v4197 = vadd.f32 0.0, %v4196
        %v4198 = vpop.f32.mrb[0].mxu0
        %v4199 = vadd.f32 0.0, %v4198
        %4200 = vdwg.mxu0
        %s4201 = scalar_lea.vmem %s13, 14
        %v4202 = vld [vmem:[%s4201] sm:$0x3]
        %v4204 = vlaneseq
        %v4205 = vshrl.u32 %v4204, 7
        %v4206 = vsub.s32 0, %v4205
        %v4207 = vrot.slane %v4202, %v4206
        %v4208 = vlaneseq
        %v4209 = vshrl.u32 %v4208, 7
        %v4210 = vsub.s32 1, %v4209
        %v4211 = vrot.slane %v4202, %v4210
        %v4214 = vmul.f32 %v4163, %v4207
        %v4215 = vmul.f32 %v4165, %v4211
        %v4216 = vmul.f32 %v4167, %v4207
        %v4217 = vmul.f32 %v4169, %v4211
        %v4218 = vmul.f32 %v4173, %v4207
        %v4219 = vmul.f32 %v4175, %v4211
        %v4220 = vmul.f32 %v4177, %v4207
        %v4221 = vmul.f32 %v4179, %v4211
        %v4222 = vmul.f32 %v4183, %v4207
        %v4223 = vmul.f32 %v4185, %v4211
        %v4224 = vmul.f32 %v4187, %v4207
        %v4225 = vmul.f32 %v4189, %v4211
        %v4226 = vmul.f32 %v4193, %v4207
        %v4227 = vmul.f32 %v4195, %v4211
        %v4228 = vmul.f32 %v4197, %v4207
        %v4229 = vmul.f32 %v4199, %v4211
        %v4230 = vadd.f32 %v4063, %v4214
        %v4231 = vadd.f32 %v4064, %v4215
        %v4232 = vadd.f32 %v4065, %v4216
        %v4233 = vadd.f32 %v4066, %v4217
        %v4234 = vadd.f32 %v4067, %v4218
        %v4235 = vadd.f32 %v4068, %v4219
        %v4236 = vadd.f32 %v4069, %v4220
        %v4237 = vadd.f32 %v4070, %v4221
        %v4238 = vadd.f32 %v4071, %v4222
        %v4239 = vadd.f32 %v4072, %v4223
        %v4240 = vadd.f32 %v4073, %v4224
        %v4241 = vadd.f32 %v4074, %v4225
        %v4242 = vadd.f32 %v4075, %v4226
        %v4243 = vadd.f32 %v4076, %v4227
        %v4244 = vadd.f32 %v4077, %v4228
        %v4245 = vadd.f32 %v4078, %v4229
        %s4246 = scalar_lea.vmem %s11, 512
        %v4247 = vld [vmem:[%s4246] sm:$0xff]
        %v4248 = vld [vmem:[%s4246 + $0x8] sm:$0xff]
        %v4249 = vld [vmem:[%s4246 + $0x10] sm:$0xff]
        %v4250 = vld [vmem:[%s4246 + $0x18] sm:$0xff]
        %v4251 = vld [vmem:[%s4246 + $0x20] sm:$0xff]
        %v4252 = vld [vmem:[%s4246 + $0x28] sm:$0xff]
        %v4253 = vld [vmem:[%s4246 + $0x30] sm:$0xff]
        %v4254 = vld [vmem:[%s4246 + $0x38] sm:$0xff]
        %v4263 = vunpack.c.l.b16 %v4247
        %v4264 = vunpack.c.h.b16 %v4247
        %v4265 = vunpack.c.l.b16 %v4248
        %v4266 = vunpack.c.h.b16 %v4248
        %v4267 = vunpack.c.l.b16 %v4249
        %v4268 = vunpack.c.h.b16 %v4249
        %v4269 = vunpack.c.l.b16 %v4250
        %v4270 = vunpack.c.h.b16 %v4250
        %v4271 = vunpack.c.l.b16 %v4251
        %v4272 = vunpack.c.h.b16 %v4251
        %v4273 = vunpack.c.l.b16 %v4252
        %v4274 = vunpack.c.h.b16 %v4252
        %v4275 = vunpack.c.l.b16 %v4253
        %v4276 = vunpack.c.h.b16 %v4253
        %v4277 = vunpack.c.l.b16 %v4254
        %v4278 = vunpack.c.h.b16 %v4254
        %v4279 = vpack.c.b16 %v4265, %v4263
        %v4280 = vpack.c.b16 %v4266, %v4264
        %v4281 = vpack.c.b16 %v4269, %v4267
        %v4282 = vpack.c.b16 %v4270, %v4268
        %v4283 = vpack.c.b16 %v4273, %v4271
        %v4284 = vpack.c.b16 %v4274, %v4272
        %v4285 = vpack.c.b16 %v4277, %v4275
        %v4286 = vpack.c.b16 %v4278, %v4276
        %4295 = vmatprep.subr.bf16.mxu0 %v2897
        %4296 = vmatpush1.bf16.msra.mxu0 %v2896
        %4297 = vmatprep.subr.bf16.mxu0 %v2899
        %4298 = vmatpush1.bf16.msra.mxu0 %v2898
        %4299 = vmatprep.subr.bf16.mxu0 %v2901
        %4300 = vmatpush1.bf16.msra.mxu0 %v2900
        %4301 = vmatprep.subr.bf16.mxu0 %v2903
        %4302 = vmatpush1.bf16.msra.mxu0 %v2902
        %4303 = vmatprep.subr.bf16.mxu0 %v2905
        %4304 = vmatpush1.bf16.msra.mxu0 %v2904
        %4305 = vmatprep.subr.bf16.mxu0 %v2907
        %4306 = vmatpush1.bf16.msra.mxu0 %v2906
        %4307 = vmatprep.subr.bf16.mxu0 %v2909
        %4308 = vmatpush1.bf16.msra.mxu0 %v2908
        %4309 = vmatprep.subr.bf16.mxu0 %v2911
        %4310 = vmatpush1.bf16.msra.mxu0 %v2910
        %4311 = vmatprep.subr.bf16.mxu0 %v2913
        %4312 = vmatpush1.bf16.msra.mxu0 %v2912
        %4313 = vmatprep.subr.bf16.mxu0 %v2915
        %4314 = vmatpush1.bf16.msra.mxu0 %v2914
        %4315 = vmatprep.subr.bf16.mxu0 %v2917
        %4316 = vmatpush1.bf16.msra.mxu0 %v2916
        %4317 = vmatprep.subr.bf16.mxu0 %v2919
        %4318 = vmatpush1.bf16.msra.mxu0 %v2918
        %4319 = vmatprep.subr.bf16.mxu0 %v2921
        %4320 = vmatpush1.bf16.msra.mxu0 %v2920
        %4321 = vmatprep.subr.bf16.mxu0 %v2923
        %4322 = vmatpush1.bf16.msra.mxu0 %v2922
        %4323 = vmatprep.subr.bf16.mxu0 %v2925
        %4324 = vmatpush1.bf16.msra.mxu0 %v2924
        %4325 = vmatprep.subr.bf16.mxu0 %v2927
        %4326 = vmatpush1.bf16.msra.mxu0 %v2926
        %4327 = vmatprep.mubr.bf16.mxu0 %v4280
        %4328 = vmatmul.mubr.bf16.gmra.mrb[0].mxu0 %v4279
        %v4329 = vpop.f32.mrb[0].mxu0
        %v4330 = vadd.f32 0.0, %v4329
        %v4331 = vpop.f32.mrb[0].mxu0
        %v4332 = vadd.f32 0.0, %v4331
        %v4333 = vpop.f32.mrb[0].mxu0
        %v4334 = vadd.f32 0.0, %v4333
        %v4335 = vpop.f32.mrb[0].mxu0
        %v4336 = vadd.f32 0.0, %v4335
        %4337 = vmatprep.mubr.bf16.mxu0 %v4282
        %4338 = vmatmul.mubr.bf16.gmra.mrb[0].mxu0 %v4281
        %v4339 = vpop.f32.mrb[0].mxu0
        %v4340 = vadd.f32 0.0, %v4339
        %v4341 = vpop.f32.mrb[0].mxu0
        %v4342 = vadd.f32 0.0, %v4341
        %v4343 = vpop.f32.mrb[0].mxu0
        %v4344 = vadd.f32 0.0, %v4343
        %v4345 = vpop.f32.mrb[0].mxu0
        %v4346 = vadd.f32 0.0, %v4345
        %4347 = vmatprep.mubr.bf16.mxu0 %v4284
        %4348 = vmatmul.mubr.bf16.gmra.mrb[0].mxu0 %v4283
        %v4349 = vpop.f32.mrb[0].mxu0
        %v4350 = vadd.f32 0.0, %v4349
        %v4351 = vpop.f32.mrb[0].mxu0
        %v4352 = vadd.f32 0.0, %v4351
        %v4353 = vpop.f32.mrb[0].mxu0
        %v4354 = vadd.f32 0.0, %v4353
        %v4355 = vpop.f32.mrb[0].mxu0
        %v4356 = vadd.f32 0.0, %v4355
        %4357 = vmatprep.mubr.bf16.mxu0 %v4286
        %4358 = vmatmul.mubr.bf16.gmra.mrb[0].mxu0 %v4285
        %v4359 = vpop.f32.mrb[0].mxu0
        %v4360 = vadd.f32 0.0, %v4359
        %v4361 = vpop.f32.mrb[0].mxu0
        %v4362 = vadd.f32 0.0, %v4361
        %v4363 = vpop.f32.mrb[0].mxu0
        %v4364 = vadd.f32 0.0, %v4363
        %v4365 = vpop.f32.mrb[0].mxu0
        %v4366 = vadd.f32 0.0, %v4365
        %4367 = vdwg.mxu0
        %s4368 = scalar_lea.vmem %s13, 16
        %v4369 = vld [vmem:[%s4368] sm:$0x3]
        %v4371 = vlaneseq
        %v4372 = vshrl.u32 %v4371, 7
        %v4373 = vsub.s32 0, %v4372
        %v4374 = vrot.slane %v4369, %v4373
        %v4375 = vlaneseq
        %v4376 = vshrl.u32 %v4375, 7
        %v4377 = vsub.s32 1, %v4376
        %v4378 = vrot.slane %v4369, %v4377
        %v4381 = vmul.f32 %v4330, %v4374
        %v4382 = vmul.f32 %v4332, %v4378
        %v4383 = vmul.f32 %v4334, %v4374
        %v4384 = vmul.f32 %v4336, %v4378
        %v4385 = vmul.f32 %v4340, %v4374
        %v4386 = vmul.f32 %v4342, %v4378
        %v4387 = vmul.f32 %v4344, %v4374
        %v4388 = vmul.f32 %v4346, %v4378
        %v4389 = vmul.f32 %v4350, %v4374
        %v4390 = vmul.f32 %v4352, %v4378
        %v4391 = vmul.f32 %v4354, %v4374
        %v4392 = vmul.f32 %v4356, %v4378
        %v4393 = vmul.f32 %v4360, %v4374
        %v4394 = vmul.f32 %v4362, %v4378
        %v4395 = vmul.f32 %v4364, %v4374
        %v4396 = vmul.f32 %v4366, %v4378
        %v4397 = vadd.f32 %v4230, %v4381
        %v4398 = vadd.f32 %v4231, %v4382
        %v4399 = vadd.f32 %v4232, %v4383
        %v4400 = vadd.f32 %v4233, %v4384
        %v4401 = vadd.f32 %v4234, %v4385
        %v4402 = vadd.f32 %v4235, %v4386
        %v4403 = vadd.f32 %v4236, %v4387
        %v4404 = vadd.f32 %v4237, %v4388
        %v4405 = vadd.f32 %v4238, %v4389
        %v4406 = vadd.f32 %v4239, %v4390
        %v4407 = vadd.f32 %v4240, %v4391
        %v4408 = vadd.f32 %v4241, %v4392
        %v4409 = vadd.f32 %v4242, %v4393
        %v4410 = vadd.f32 %v4243, %v4394
        %v4411 = vadd.f32 %v4244, %v4395
        %v4412 = vadd.f32 %v4245, %v4396
        %v4413 = vld [vmem:[%s15] sm:$0x3]
        %v4415 = vlaneseq
        %v4416 = vshrl.u32 %v4415, 7
        %v4417 = vsub.s32 0, %v4416
        %v4418 = vrot.slane %v4413, %v4417
        %v4419 = vlaneseq
        %v4420 = vshrl.u32 %v4419, 7
        %v4421 = vsub.s32 1, %v4420
        %v4422 = vrot.slane %v4413, %v4421
        %v4425 = vmul.f32 %v4397, %v4418
        %v4426 = vmul.f32 %v4398, %v4422
        %v4427 = vmul.f32 %v4399, %v4418
        %v4428 = vmul.f32 %v4400, %v4422
        %v4429 = vmul.f32 %v4401, %v4418
        %v4430 = vmul.f32 %v4402, %v4422
        %v4431 = vmul.f32 %v4403, %v4418
        %v4432 = vmul.f32 %v4404, %v4422
        %v4433 = vmul.f32 %v4405, %v4418
        %v4434 = vmul.f32 %v4406, %v4422
        %v4435 = vmul.f32 %v4407, %v4418
        %v4436 = vmul.f32 %v4408, %v4422
        %v4437 = vmul.f32 %v4409, %v4418
        %v4438 = vmul.f32 %v4410, %v4422
        %v4439 = vmul.f32 %v4411, %v4418
        %v4440 = vmul.f32 %v4412, %v4422
        %v4441 = vld [vmem:[%s17] sm:$0x3]
        %v4443 = vlaneseq
        %v4444 = vshrl.u32 %v4443, 7
        %v4445 = vsub.s32 0, %v4444
        %v4446 = vrot.slane %v4441, %v4445
        %v4447 = vlaneseq
        %v4448 = vshrl.u32 %v4447, 7
        %v4449 = vsub.s32 1, %v4448
        %v4450 = vrot.slane %v4441, %v4449
        %v4453 = vadd.f32 %v4425, %v4446
        %v4454 = vadd.f32 %v4426, %v4450
        %v4455 = vadd.f32 %v4427, %v4446
        %v4456 = vadd.f32 %v4428, %v4450
        %v4457 = vadd.f32 %v4429, %v4446
        %v4458 = vadd.f32 %v4430, %v4450
        %v4459 = vadd.f32 %v4431, %v4446
        %v4460 = vadd.f32 %v4432, %v4450
        %v4461 = vadd.f32 %v4433, %v4446
        %v4462 = vadd.f32 %v4434, %v4450
        %v4463 = vadd.f32 %v4435, %v4446
        %v4464 = vadd.f32 %v4436, %v4450
        %v4465 = vadd.f32 %v4437, %v4446
        %v4466 = vadd.f32 %v4438, %v4450
        %v4467 = vadd.f32 %v4439, %v4446
        %v4468 = vadd.f32 %v4440, %v4450
        %vm4469 = vcmp.gt.f32.partialorder %v4453, 0.0
        %vm4470 = vcmp.gt.f32.partialorder %v4454, 0.0
        %vm4471 = vcmp.gt.f32.partialorder %v4455, 0.0
        %vm4472 = vcmp.gt.f32.partialorder %v4456, 0.0
        %vm4473 = vcmp.gt.f32.partialorder %v4457, 0.0
        %vm4474 = vcmp.gt.f32.partialorder %v4458, 0.0
        %vm4475 = vcmp.gt.f32.partialorder %v4459, 0.0
        %vm4476 = vcmp.gt.f32.partialorder %v4460, 0.0
        %vm4477 = vcmp.gt.f32.partialorder %v4461, 0.0
        %vm4478 = vcmp.gt.f32.partialorder %v4462, 0.0
        %vm4479 = vcmp.gt.f32.partialorder %v4463, 0.0
        %vm4480 = vcmp.gt.f32.partialorder %v4464, 0.0
        %vm4481 = vcmp.gt.f32.partialorder %v4465, 0.0
        %vm4482 = vcmp.gt.f32.partialorder %v4466, 0.0
        %vm4483 = vcmp.gt.f32.partialorder %v4467, 0.0
        %vm4484 = vcmp.gt.f32.partialorder %v4468, 0.0
        %v4485 = vmul.f32 %v4453, 0.3
        %v4486 = vmul.f32 %v4454, 0.3
        %v4487 = vmul.f32 %v4455, 0.3
        %v4488 = vmul.f32 %v4456, 0.3
        %v4489 = vmul.f32 %v4457, 0.3
        %v4490 = vmul.f32 %v4458, 0.3
        %v4491 = vmul.f32 %v4459, 0.3
        %v4492 = vmul.f32 %v4460, 0.3
        %v4493 = vmul.f32 %v4461, 0.3
        %v4494 = vmul.f32 %v4462, 0.3
        %v4495 = vmul.f32 %v4463, 0.3
        %v4496 = vmul.f32 %v4464, 0.3
        %v4497 = vmul.f32 %v4465, 0.3
        %v4498 = vmul.f32 %v4466, 0.3
        %v4499 = vmul.f32 %v4467, 0.3
        %v4500 = vmul.f32 %v4468, 0.3
        %v4501 = vsel %vm4469, %v4453, %v4485
        %v4502 = vsel %vm4470, %v4454, %v4486
        %v4503 = vsel %vm4471, %v4455, %v4487
        %v4504 = vsel %vm4472, %v4456, %v4488
        %v4505 = vsel %vm4473, %v4457, %v4489
        %v4506 = vsel %vm4474, %v4458, %v4490
        %v4507 = vsel %vm4475, %v4459, %v4491
        %v4508 = vsel %vm4476, %v4460, %v4492
        %v4509 = vsel %vm4477, %v4461, %v4493
        %v4510 = vsel %vm4478, %v4462, %v4494
        %v4511 = vsel %vm4479, %v4463, %v4495
        %v4512 = vsel %vm4480, %v4464, %v4496
        %v4513 = vsel %vm4481, %v4465, %v4497
        %v4514 = vsel %vm4482, %v4466, %v4498
        %v4515 = vsel %vm4483, %v4467, %v4499
        %v4516 = vsel %vm4484, %v4468, %v4500
        %v4517 = vadd.f32 %v4501, %v4503
        %v4518 = vadd.f32 %v4517, %v4505
        %v4519 = vadd.f32 %v4518, %v4507
        %v4520 = vadd.f32 %v4519, %v4509
        %v4521 = vadd.f32 %v4520, %v4511
        %v4522 = vadd.f32 %v4521, %v4513
        %v4523 = vadd.f32 %v4522, %v4515
        %v4524 = vrot.slane %v4523, 4
        %v4525 = vadd.f32 %v4523, %v4524
        %v4526 = vrot.slane %v4525, 2
        %v4527 = vadd.f32 %v4525, %v4526
        %v4528 = vrot.slane %v4527, 1
        %v4529 = vadd.f32 %v4527, %v4528
        %vm4530 = vcmask 523264
        %v4531 = vsel %vm4530, %v4502, 0.0
        %v4532 = vsel %vm4530, %v4504, 0.0
        %v4533 = vadd.f32 %v4531, %v4532
        %v4534 = vsel %vm4530, %v4506, 0.0
        %v4535 = vadd.f32 %v4533, %v4534
        %v4536 = vsel %vm4530, %v4508, 0.0
        %v4537 = vadd.f32 %v4535, %v4536
        %v4538 = vsel %vm4530, %v4510, 0.0
        %v4539 = vadd.f32 %v4537, %v4538
        %v4540 = vsel %vm4530, %v4512, 0.0
        %v4541 = vadd.f32 %v4539, %v4540
        %v4542 = vsel %vm4530, %v4514, 0.0
        %v4543 = vadd.f32 %v4541, %v4542
        %v4544 = vsel %vm4530, %v4516, 0.0
        %v4545 = vadd.f32 %v4543, %v4544
        %v4546 = vrot.slane %v4545, 4
        %v4547 = vadd.f32 %v4545, %v4546
        %v4548 = vrot.slane %v4547, 2
        %v4549 = vadd.f32 %v4547, %v4548
        %v4550 = vrot.slane %v4549, 1
        %v4551 = vadd.f32 %v4549, %v4550
        %v4552 = vrcp.pop 64.0
        %v4553 = vmul.f32 %v4529, %v4552
        %v4554 = vmul.f32 %v4551, %v4552
        %v4555 = vld [vmem:[%s19] sm:$0xf]
        %v4556 = vld [vmem:[%s19 + $0x4] sm:$0xf]
        %v4557 = vld [vmem:[%s19 + $0x8] sm:$0xf]
        %v4558 = vld [vmem:[%s19 + $0xc] sm:$0xf]
        %v4559 = vld [vmem:[%s19 + $0x10] sm:$0xf]
        %v4560 = vld [vmem:[%s19 + $0x14] sm:$0xf]
        %v4561 = vld [vmem:[%s19 + $0x18] sm:$0xf]
        %v4562 = vld [vmem:[%s19 + $0x1c] sm:$0xf]
        %v4563 = vld [vmem:[%s19 + $0x20] sm:$0xf]
        %v4564 = vld [vmem:[%s19 + $0x24] sm:$0xf]
        %v4565 = vld [vmem:[%s19 + $0x28] sm:$0xf]
        %v4566 = vld [vmem:[%s19 + $0x2c] sm:$0xf]
        %v4567 = vld [vmem:[%s19 + $0x30] sm:$0xf]
        %v4568 = vld [vmem:[%s19 + $0x34] sm:$0xf]
        %v4569 = vld [vmem:[%s19 + $0x38] sm:$0xf]
        %v4570 = vld [vmem:[%s19 + $0x3c] sm:$0xf]
        %v4571 = vld [vmem:[%s19 + $0x40] sm:$0xf]
        %v4572 = vld [vmem:[%s19 + $0x44] sm:$0xf]
        %v4573 = vld [vmem:[%s19 + $0x48] sm:$0xf]
        %v4574 = vld [vmem:[%s19 + $0x4c] sm:$0xf]
        %v4575 = vld [vmem:[%s19 + $0x50] sm:$0xf]
        %v4576 = vld [vmem:[%s19 + $0x54] sm:$0xf]
        %v4577 = vld [vmem:[%s19 + $0x58] sm:$0xf]
        %v4578 = vld [vmem:[%s19 + $0x5c] sm:$0xf]
        %v4579 = vpack.c.bf16 %v4553, %v4553
        %v4580 = vpack.c.bf16 %v4554, %v4554
        %v4581 = vld [vmem:[%s21] sm:$0x1]
        %v4606 = vunpack.c.l.b16 %v4555
        %v4607 = vunpack.c.l.b16 %v4556
        %v4608 = vunpack.c.l.b16 %v4557
        %v4609 = vunpack.c.l.b16 %v4558
        %v4610 = vunpack.c.l.b16 %v4559
        %v4611 = vunpack.c.l.b16 %v4560
        %v4612 = vunpack.c.l.b16 %v4561
        %v4613 = vunpack.c.l.b16 %v4562
        %v4614 = vunpack.c.l.b16 %v4563
        %v4615 = vunpack.c.l.b16 %v4564
        %v4616 = vunpack.c.l.b16 %v4565
        %v4617 = vunpack.c.l.b16 %v4566
        %v4618 = vunpack.c.l.b16 %v4567
        %v4619 = vunpack.c.l.b16 %v4568
        %v4620 = vunpack.c.l.b16 %v4569
        %v4621 = vunpack.c.l.b16 %v4570
        %v4622 = vunpack.c.l.b16 %v4571
        %v4623 = vunpack.c.l.b16 %v4572
        %v4624 = vunpack.c.l.b16 %v4573
        %v4625 = vunpack.c.l.b16 %v4574
        %v4626 = vunpack.c.l.b16 %v4575
        %v4627 = vunpack.c.l.b16 %v4576
        %v4628 = vunpack.c.l.b16 %v4577
        %v4629 = vunpack.c.l.b16 %v4578
        %v4630 = vpack.c.b16 %v4607, %v4606
        %v4631 = vpack.c.b16 %v4609, %v4608
        %v4632 = vpack.c.b16 %v4611, %v4610
        %v4633 = vpack.c.b16 %v4613, %v4612
        %v4634 = vpack.c.b16 %v4615, %v4614
        %v4635 = vpack.c.b16 %v4617, %v4616
        %v4636 = vpack.c.b16 %v4619, %v4618
        %v4637 = vpack.c.b16 %v4621, %v4620
        %v4638 = vpack.c.b16 %v4623, %v4622
        %v4639 = vpack.c.b16 %v4625, %v4624
        %v4640 = vpack.c.b16 %v4627, %v4626
        %v4641 = vpack.c.b16 %v4629, %v4628
        %v4655 = vsel %vm4530, %v4580, 0
        %4657 = vmatprep.subr.bf16.mxu0 0
        %4658 = vmatpush1.bf16.msra.mxu0 %v4630
        %4659 = vmatprep.subr.bf16.mxu0 0
        %4660 = vmatpush1.bf16.msra.mxu0 %v4631
        %4661 = vmatprep.subr.bf16.mxu0 0
        %4662 = vmatpush1.bf16.msra.mxu0 %v4632
        %4663 = vmatprep.subr.bf16.mxu0 0
        %4664 = vmatpush1.bf16.msra.mxu0 %v4633
        %4665 = vmatprep.subr.bf16.mxu0 0
        %4666 = vmatpush1.bf16.msra.mxu0 %v4634
        %4667 = vmatprep.subr.bf16.mxu0 0
        %4668 = vmatpush1.bf16.msra.mxu0 %v4635
        %4669 = vmatprep.subr.bf16.mxu0 0
        %4670 = vmatpush1.bf16.msra.mxu0 %v4636
        %4671 = vmatprep.subr.bf16.mxu0 0
        %4672 = vmatpush1.bf16.msra.mxu0 %v4637
        %4673 = vmatprep.subr.bf16.mxu0 0
        %4674 = vmatpush1.bf16.msra.mxu0 %v4638
        %4675 = vmatprep.subr.bf16.mxu0 0
        %4676 = vmatpush1.bf16.msra.mxu0 %v4639
        %4677 = vmatprep.subr.bf16.mxu0 0
        %4678 = vmatpush1.bf16.msra.mxu0 %v4640
        %4679 = vmatprep.subr.bf16.mxu0 0
        %4680 = vmatpush1.bf16.msra.mxu0 %v4641
        %4681 = vmatprep.subr.bf16.mxu0 0
        %4682 = vmatpush1.bf16.msra.mxu0 0
        %4683 = vmatprep.subr.bf16.mxu0 0
        %4684 = vmatpush1.bf16.msra.mxu0 0
        %4685 = vmatprep.subr.bf16.mxu0 0
        %4686 = vmatpush1.bf16.msra.mxu0 0
        %4687 = vmatprep.subr.bf16.mxu0 0
        %4688 = vmatpush1.bf16.msra.mxu0 0
        %4689 = vmatprep.mubr.bf16.mxu0 %v4655
        %4690 = vmatmul.mubr.bf16.gmra.mrb[0].mxu0 %v4579
        %v4691 = vpop.f32.mrb[0].mxu0
        %v4692 = vadd.f32 %v4581, %v4691
        %v4693 = vpop.f32.mrb[0].mxu0
        %v4694 = vpop.f32.mrb[0].mxu0
        %v4695 = vpop.f32.mrb[0].mxu0
        %4696 = vdwg.mxu0
        %vm4697 = vcmp.gt.f32.partialorder %v4692, 0.0
        %v4698 = vmul.f32 %v4692, 0.3
        %v4699 = vsel %vm4697, %v4692, %v4698
        %v4700 = vld [vmem:[%s23] sm:$0xff]
        %v4701 = vld [vmem:[%s23 + $0x8] sm:$0xff]
        %v4702 = vld [vmem:[%s23 + $0x10] sm:$0xff]
        %v4703 = vld [vmem:[%s23 + $0x18] sm:$0xff]
        %v4704 = vld [vmem:[%s23 + $0x20] sm:$0xff]
        %v4705 = vld [vmem:[%s23 + $0x28] sm:$0xff]
        %v4706 = vpack.c.bf16 %v4699, %v4699
        %v4707 = vld [vmem:[%s25] sm:$0x3]
        %v4714 = vunpack.c.l.b16 %v4700
        %v4715 = vunpack.c.h.b16 %v4700
        %v4716 = vunpack.c.l.b16 %v4701
        %v4717 = vunpack.c.h.b16 %v4701
        %v4718 = vunpack.c.l.b16 %v4702
        %v4719 = vunpack.c.h.b16 %v4702
        %v4720 = vunpack.c.l.b16 %v4703
        %v4721 = vunpack.c.h.b16 %v4703
        %v4722 = vunpack.c.l.b16 %v4704
        %v4723 = vunpack.c.h.b16 %v4704
        %v4724 = vunpack.c.l.b16 %v4705
        %v4725 = vunpack.c.h.b16 %v4705
        %v4726 = vpack.c.b16 %v4716, %v4714
        %v4727 = vpack.c.b16 %v4717, %v4715
        %v4728 = vpack.c.b16 %v4720, %v4718
        %v4729 = vpack.c.b16 %v4721, %v4719
        %v4730 = vpack.c.b16 %v4724, %v4722
        %v4731 = vpack.c.b16 %v4725, %v4723
        %v4739 = vlaneseq
        %v4740 = vshrl.u32 %v4739, 7
        %v4741 = vsub.s32 0, %v4740
        %v4742 = vrot.slane %v4707, %v4741
        %v4743 = vlaneseq
        %v4744 = vshrl.u32 %v4743, 7
        %v4745 = vsub.s32 1, %v4744
        %v4746 = vrot.slane %v4707, %v4745
        %vm4749 = vcmask 392192
        %v4751 = vsel %vm4749, %v4706, 0
        %4753 = vmatprep.subr.bf16.mxu0 %v4727
        %4754 = vmatpush1.bf16.msra.mxu0 %v4726
        %4755 = vmatprep.subr.bf16.mxu0 %v4729
        %4756 = vmatpush1.bf16.msra.mxu0 %v4728
        %4757 = vmatprep.subr.bf16.mxu0 %v4731
        %4758 = vmatpush1.bf16.msra.mxu0 %v4730
        %4759 = vmatprep.subr.bf16.mxu0 0
        %4760 = vmatpush1.bf16.msra.mxu0 0
        %4761 = vmatprep.subr.bf16.mxu0 0
        %4762 = vmatpush1.bf16.msra.mxu0 0
        %4763 = vmatprep.subr.bf16.mxu0 0
        %4764 = vmatpush1.bf16.msra.mxu0 0
        %4765 = vmatprep.subr.bf16.mxu0 0
        %4766 = vmatpush1.bf16.msra.mxu0 0
        %4767 = vmatprep.subr.bf16.mxu0 0
        %4768 = vmatpush1.bf16.msra.mxu0 0
        %4769 = vmatprep.subr.bf16.mxu0 0
        %4770 = vmatpush1.bf16.msra.mxu0 0
        %4771 = vmatprep.subr.bf16.mxu0 0
        %4772 = vmatpush1.bf16.msra.mxu0 0
        %4773 = vmatprep.subr.bf16.mxu0 0
        %4774 = vmatpush1.bf16.msra.mxu0 0
        %4775 = vmatprep.subr.bf16.mxu0 0
        %4776 = vmatpush1.bf16.msra.mxu0 0
        %4777 = vmatprep.subr.bf16.mxu0 0
        %4778 = vmatpush1.bf16.msra.mxu0 0
        %4779 = vmatprep.subr.bf16.mxu0 0
        %4780 = vmatpush1.bf16.msra.mxu0 0
        %4781 = vmatprep.subr.bf16.mxu0 0
        %4782 = vmatpush1.bf16.msra.mxu0 0
        %4783 = vmatprep.subr.bf16.mxu0 0
        %4784 = vmatpush1.bf16.msra.mxu0 0
        %4785 = vmatprep.mubr.bf16.mxu0 0
        %4786 = vmatmul.mubr.bf16.gmra.mrb[0].mxu0 %v4751
        %v4787 = vpop.f32.mrb[0].mxu0
        %v4788 = vadd.f32 %v4742, %v4787
        %v4789 = vpop.f32.mrb[0].mxu0
        %v4790 = vadd.f32 %v4746, %v4789
        %v4791 = vpop.f32.mrb[0].mxu0
        %v4792 = vpop.f32.mrb[0].mxu0
        %4793 = vdwg.mxu0
        %v4794 = vxor.u32 %v4788, 2147483648
        %v4795 = vxor.u32 %v4790, 2147483648
        %v4796 = vmul.f32 %v4794, 1.442695
        %v4797 = vpow.pop %v4796
        %v4798 = vmul.f32 %v4795, 1.442695
        %v4799 = vpow.pop %v4798
        %v4800 = vadd.f32 %v4797, 1.0
        %v4801 = vadd.f32 %v4799, 1.0
        %v4802 = vrcp.pop %v4800
        %v4803 = vmul.f32 1.0, %v4802
        %v4804 = vrcp.pop %v4801
        %v4805 = vmul.f32 1.0, %v4804
        %v4806 = vlaneseq
        %v4807 = vshrl.u32 %v4806, 7
        %v4808 = vsub.s32 0, %v4807
        %v4809 = vrot.slane %v4803, %v4808
        %v4810 = vlaneseq
        %v4811 = vshrl.u32 %v4810, 7
        %v4812 = vsub.s32 0, %v4811
        %v4813 = vrot.slane %v4805, %v4812
        %v4814 = vmul.f32 %v4501, %v4809
        %v4815 = vmul.f32 %v4502, %v4813
        %v4816 = vmul.f32 %v4503, %v4809
        %v4817 = vmul.f32 %v4504, %v4813
        %v4818 = vmul.f32 %v4505, %v4809
        %v4819 = vmul.f32 %v4506, %v4813
        %v4820 = vmul.f32 %v4507, %v4809
        %v4821 = vmul.f32 %v4508, %v4813
        %v4822 = vmul.f32 %v4509, %v4809
        %v4823 = vmul.f32 %v4510, %v4813
        %v4824 = vmul.f32 %v4511, %v4809
        %v4825 = vmul.f32 %v4512, %v4813
        %v4826 = vmul.f32 %v4513, %v4809
        %v4827 = vmul.f32 %v4514, %v4813
        %v4828 = vmul.f32 %v4515, %v4809
        %v4829 = vmul.f32 %v4516, %v4813
        %v4830 = vld [vmem:[%s27] sm:$0xf]
        %v4831 = vld [vmem:[%s27 + $0x4] sm:$0xf]
        %v4832 = vld [vmem:[%s27 + $0x8] sm:$0xf]
        %v4833 = vld [vmem:[%s27 + $0xc] sm:$0xf]
        %v4834 = vld [vmem:[%s27 + $0x10] sm:$0xf]
        %v4835 = vld [vmem:[%s27 + $0x14] sm:$0xf]
        %v4836 = vld [vmem:[%s27 + $0x18] sm:$0xf]
        %v4837 = vld [vmem:[%s27 + $0x1c] sm:$0xf]
        %v4838 = vld [vmem:[%s27 + $0x20] sm:$0xf]
        %v4839 = vld [vmem:[%s27 + $0x24] sm:$0xf]
        %v4840 = vld [vmem:[%s27 + $0x28] sm:$0xf]
        %v4841 = vld [vmem:[%s27 + $0x2c] sm:$0xf]
        %v4842 = vld [vmem:[%s27 + $0x30] sm:$0xf]
        %v4843 = vld [vmem:[%s27 + $0x34] sm:$0xf]
        %v4844 = vld [vmem:[%s27 + $0x38] sm:$0xf]
        %v4845 = vld [vmem:[%s27 + $0x3c] sm:$0xf]
        %v4846 = vld [vmem:[%s27 + $0x40] sm:$0xf]
        %v4847 = vld [vmem:[%s27 + $0x44] sm:$0xf]
        %v4848 = vld [vmem:[%s27 + $0x48] sm:$0xf]
        %v4849 = vld [vmem:[%s27 + $0x4c] sm:$0xf]
        %v4850 = vld [vmem:[%s27 + $0x50] sm:$0xf]
        %v4851 = vld [vmem:[%s27 + $0x54] sm:$0xf]
        %v4852 = vld [vmem:[%s27 + $0x58] sm:$0xf]
        %v4853 = vld [vmem:[%s27 + $0x5c] sm:$0xf]
        %v4854 = vpack.c.bf16 %v4816, %v4814
        %v4855 = vpack.c.bf16 %v4817, %v4815
        %v4856 = vpack.c.bf16 %v4820, %v4818
        %v4857 = vpack.c.bf16 %v4821, %v4819
        %v4858 = vpack.c.bf16 %v4824, %v4822
        %v4859 = vpack.c.bf16 %v4825, %v4823
        %v4860 = vpack.c.bf16 %v4828, %v4826
        %v4861 = vpack.c.bf16 %v4829, %v4827
        %v4886 = vunpack.c.l.b16 %v4830
        %v4887 = vunpack.c.l.b16 %v4831
        %v4888 = vunpack.c.l.b16 %v4832
        %v4889 = vunpack.c.l.b16 %v4833
        %v4890 = vunpack.c.l.b16 %v4834
        %v4891 = vunpack.c.l.b16 %v4835
        %v4892 = vunpack.c.l.b16 %v4836
        %v4893 = vunpack.c.l.b16 %v4837
        %v4894 = vunpack.c.l.b16 %v4838
        %v4895 = vunpack.c.l.b16 %v4839
        %v4896 = vunpack.c.l.b16 %v4840
        %v4897 = vunpack.c.l.b16 %v4841
        %v4898 = vunpack.c.l.b16 %v4842
        %v4899 = vunpack.c.l.b16 %v4843
        %v4900 = vunpack.c.l.b16 %v4844
        %v4901 = vunpack.c.l.b16 %v4845
        %v4902 = vunpack.c.l.b16 %v4846
        %v4903 = vunpack.c.l.b16 %v4847
        %v4904 = vunpack.c.l.b16 %v4848
        %v4905 = vunpack.c.l.b16 %v4849
        %v4906 = vunpack.c.l.b16 %v4850
        %v4907 = vunpack.c.l.b16 %v4851
        %v4908 = vunpack.c.l.b16 %v4852
        %v4909 = vunpack.c.l.b16 %v4853
        %v4910 = vpack.c.b16 %v4887, %v4886
        %v4911 = vpack.c.b16 %v4889, %v4888
        %v4912 = vpack.c.b16 %v4891, %v4890
        %v4913 = vpack.c.b16 %v4893, %v4892
        %v4914 = vpack.c.b16 %v4895, %v4894
        %v4915 = vpack.c.b16 %v4897, %v4896
        %v4916 = vpack.c.b16 %v4899, %v4898
        %v4917 = vpack.c.b16 %v4901, %v4900
        %v4918 = vpack.c.b16 %v4903, %v4902
        %v4919 = vpack.c.b16 %v4905, %v4904
        %v4920 = vpack.c.b16 %v4907, %v4906
        %v4921 = vpack.c.b16 %v4909, %v4908
        %v4935 = vsel %vm4530, %v4855, 0
        %v4938 = vsel %vm4530, %v4857, 0
        %v4941 = vsel %vm4530, %v4859, 0
        %v4944 = vsel %vm4530, %v4861, 0
        %4946 = vmatprep.subr.bf16.mxu0 0
        %4947 = vmatpush1.bf16.msra.mxu0 %v4910
        %4948 = vmatprep.subr.bf16.mxu0 0
        %4949 = vmatpush1.bf16.msra.mxu0 %v4911
        %4950 = vmatprep.subr.bf16.mxu0 0
        %4951 = vmatpush1.bf16.msra.mxu0 %v4912
        %4952 = vmatprep.subr.bf16.mxu0 0
        %4953 = vmatpush1.bf16.msra.mxu0 %v4913
        %4954 = vmatprep.subr.bf16.mxu0 0
        %4955 = vmatpush1.bf16.msra.mxu0 %v4914
        %4956 = vmatprep.subr.bf16.mxu0 0
        %4957 = vmatpush1.bf16.msra.mxu0 %v4915
        %4958 = vmatprep.subr.bf16.mxu0 0
        %4959 = vmatpush1.bf16.msra.mxu0 %v4916
        %4960 = vmatprep.subr.bf16.mxu0 0
        %4961 = vmatpush1.bf16.msra.mxu0 %v4917
        %4962 = vmatprep.subr.bf16.mxu0 0
        %4963 = vmatpush1.bf16.msra.mxu0 %v4918
        %4964 = vmatprep.subr.bf16.mxu0 0
        %4965 = vmatpush1.bf16.msra.mxu0 %v4919
        %4966 = vmatprep.subr.bf16.mxu0 0
        %4967 = vmatpush1.bf16.msra.mxu0 %v4920
        %4968 = vmatprep.subr.bf16.mxu0 0
        %4969 = vmatpush1.bf16.msra.mxu0 %v4921
        %4970 = vmatprep.subr.bf16.mxu0 0
        %4971 = vmatpush1.bf16.msra.mxu0 0
        %4972 = vmatprep.subr.bf16.mxu0 0
        %4973 = vmatpush1.bf16.msra.mxu0 0
        %4974 = vmatprep.subr.bf16.mxu0 0
        %4975 = vmatpush1.bf16.msra.mxu0 0
        %4976 = vmatprep.subr.bf16.mxu0 0
        %4977 = vmatpush1.bf16.msra.mxu0 0
        %4978 = vmatprep.mubr.bf16.mxu0 %v4935
        %4979 = vmatmul.mubr.bf16.gmra.mrb[0].mxu0 %v4854
        %v4980 = vpop.f32.mrb[0].mxu0
        %v4981 = vadd.f32 0.0, %v4980
        %v4982 = vpop.f32.mrb[0].mxu0
        %v4983 = vpop.f32.mrb[0].mxu0
        %v4984 = vadd.f32 0.0, %v4983
        %v4985 = vpop.f32.mrb[0].mxu0
        %4986 = vmatprep.mubr.bf16.mxu0 %v4938
        %4987 = vmatmul.mubr.bf16.gmra.mrb[0].mxu0 %v4856
        %v4988 = vpop.f32.mrb[0].mxu0
        %v4989 = vadd.f32 0.0, %v4988
        %v4990 = vpop.f32.mrb[0].mxu0
        %v4991 = vpop.f32.mrb[0].mxu0
        %v4992 = vadd.f32 0.0, %v4991
        %v4993 = vpop.f32.mrb[0].mxu0
        %4994 = vmatprep.mubr.bf16.mxu0 %v4941
        %4995 = vmatmul.mubr.bf16.gmra.mrb[0].mxu0 %v4858
        %v4996 = vpop.f32.mrb[0].mxu0
        %v4997 = vadd.f32 0.0, %v4996
        %v4998 = vpop.f32.mrb[0].mxu0
        %v4999 = vpop.f32.mrb[0].mxu0
        %v5000 = vadd.f32 0.0, %v4999
        %v5001 = vpop.f32.mrb[0].mxu0
        %5002 = vmatprep.mubr.bf16.mxu0 %v4944
        %5003 = vmatmul.mubr.bf16.gmra.mrb[0].mxu0 %v4860
        %v5004 = vpop.f32.mrb[0].mxu0
        %v5005 = vadd.f32 0.0, %v5004
        %v5006 = vpop.f32.mrb[0].mxu0
        %v5007 = vpop.f32.mrb[0].mxu0
        %v5008 = vadd.f32 0.0, %v5007
        %v5009 = vpop.f32.mrb[0].mxu0
        %5010 = vdwg.mxu0
        %v5011 = vld [vmem:[%s29] sm:$0x1]
        %v5013 = vlaneseq
        %v5014 = vshrl.u32 %v5013, 7
        %v5015 = vsub.s32 0, %v5014
        %v5016 = vrot.slane %v5011, %v5015
        %v5018 = vmul.f32 %v4981, %v5016
        %v5019 = vmul.f32 %v4984, %v5016
        %v5020 = vmul.f32 %v4989, %v5016
        %v5021 = vmul.f32 %v4992, %v5016
        %v5022 = vmul.f32 %v4997, %v5016
        %v5023 = vmul.f32 %v5000, %v5016
        %v5024 = vmul.f32 %v5005, %v5016
        %v5025 = vmul.f32 %v5008, %v5016
        %v5026 = vld [vmem:[#allocation2] sm:$0x1]
        %v5028 = vlaneseq
        %v5029 = vshrl.u32 %v5028, 7
        %v5030 = vsub.s32 0, %v5029
        %v5031 = vrot.slane %v5026, %v5030
        %v5033 = vadd.f32 %v5018, %v5031
        %v5034 = vadd.f32 %v5019, %v5031
        %v5035 = vadd.f32 %v5020, %v5031
        %v5036 = vadd.f32 %v5021, %v5031
        %v5037 = vadd.f32 %v5022, %v5031
        %v5038 = vadd.f32 %v5023, %v5031
        %v5039 = vadd.f32 %v5024, %v5031
        %v5040 = vadd.f32 %v5025, %v5031
        %v5041 = vlaneseq
        %v5042 = vand.u32 %v5041, 127
        %vm5043 = vcmp.eq.s32.totalorder %v5042, 63
        %5045 = vset.pattern.permute.xlu0 0
        %5046 = vperm.xlu0 %5045, %v1706
        %v5047 = vpop.permute.xlu0 %5046
        %5050 = vset.pattern.permute.xlu0 0
        %5051 = vperm.xlu0 %5050, %v1707
        %v5052 = vpop.permute.xlu0 %5051
        %5055 = vset.pattern.permute.xlu0 0
        %5056 = vperm.xlu0 %5055, %v1708
        %v5057 = vpop.permute.xlu0 %5056
        %5060 = vset.pattern.permute.xlu0 0
        %5061 = vperm.xlu0 %5060, %v1709
        %v5062 = vpop.permute.xlu0 %5061
        %5065 = vset.pattern.permute.xlu0 0
        %5066 = vperm.xlu0 %5065, %v1710
        %v5067 = vpop.permute.xlu0 %5066
        %5070 = vset.pattern.permute.xlu0 0
        %5071 = vperm.xlu0 %5070, %v1711
        %v5072 = vpop.permute.xlu0 %5071
        %5075 = vset.pattern.permute.xlu0 0
        %5076 = vperm.xlu0 %5075, %v1712
        %v5077 = vpop.permute.xlu0 %5076
        %5080 = vset.pattern.permute.xlu0 0
        %5081 = vperm.xlu0 %5080, %v1713
        %v5082 = vpop.permute.xlu0 %5081
        %v5084 = vsel %vm5043, %v5047, %v5033
        %v5085 = vsel %vm5043, %v5052, %v5034
        %v5086 = vsel %vm5043, %v5057, %v5035
        %v5087 = vsel %vm5043, %v5062, %v5036
        %v5088 = vsel %vm5043, %v5067, %v5037
        %v5089 = vsel %vm5043, %v5072, %v5038
        %v5090 = vsel %vm5043, %v5077, %v5039
        %v5091 = vsel %vm5043, %v5082, %v5040
        %v5092 = vld [vmem:[%s33] sm:$0xff]
        %v5093 = vld [vmem:[%s33 + $0x8] sm:$0xff]
        %v5094 = vld [vmem:[%s33 + $0x10] sm:$0xff]
        %v5095 = vld [vmem:[%s33 + $0x18] sm:$0xff]
        %v5096 = vld [vmem:[%s33 + $0x20] sm:$0xff]
        %v5097 = vld [vmem:[%s33 + $0x28] sm:$0xff]
        %v5098 = vld [vmem:[%s33 + $0x30] sm:$0xff]
        %v5099 = vld [vmem:[%s33 + $0x38] sm:$0xff]
        %v5100 = vpack.c.bf16 %v5085, %v5084
        %v5101 = vpack.c.bf16 %v5087, %v5086
        %v5102 = vpack.c.bf16 %v5089, %v5088
        %v5103 = vpack.c.bf16 %v5091, %v5090
        %v5112 = vunpack.c.l.b16 %v5092
        %v5113 = vunpack.c.h.b16 %v5092
        %v5114 = vunpack.c.l.b16 %v5093
        %v5115 = vunpack.c.h.b16 %v5093
        %v5116 = vunpack.c.l.b16 %v5094
        %v5117 = vunpack.c.h.b16 %v5094
        %v5118 = vunpack.c.l.b16 %v5095
        %v5119 = vunpack.c.h.b16 %v5095
        %v5120 = vunpack.c.l.b16 %v5096
        %v5121 = vunpack.c.h.b16 %v5096
        %v5122 = vunpack.c.l.b16 %v5097
        %v5123 = vunpack.c.h.b16 %v5097
        %v5124 = vunpack.c.l.b16 %v5098
        %v5125 = vunpack.c.h.b16 %v5098
        %v5126 = vunpack.c.l.b16 %v5099
        %v5127 = vunpack.c.h.b16 %v5099
        %v5128 = vpack.c.b16 %v5114, %v5112
        %v5129 = vpack.c.b16 %v5115, %v5113
        %v5130 = vpack.c.b16 %v5118, %v5116
        %v5131 = vpack.c.b16 %v5119, %v5117
        %v5132 = vpack.c.b16 %v5122, %v5120
        %v5133 = vpack.c.b16 %v5123, %v5121
        %v5134 = vpack.c.b16 %v5126, %v5124
        %v5135 = vpack.c.b16 %v5127, %v5125
        %v5145 = vsel %vm4530, %v5100, 0
        %v5148 = vsel %vm4530, %v5101, 0
        %v5151 = vsel %vm4530, %v5102, 0
        %v5154 = vsel %vm4530, %v5103, 0
        %5156 = vmatprep.subr.bf16.mxu0 %v5129
        %5157 = vmatpush1.bf16.msra.mxu0 %v5128
        %5158 = vmatprep.subr.bf16.mxu0 %v5131
        %5159 = vmatpush1.bf16.msra.mxu0 %v5130
        %5160 = vmatprep.subr.bf16.mxu0 %v5133
        %5161 = vmatpush1.bf16.msra.mxu0 %v5132
        %5162 = vmatprep.subr.bf16.mxu0 %v5135
        %5163 = vmatpush1.bf16.msra.mxu0 %v5134
        %5164 = vmatprep.subr.bf16.mxu0 0
        %5165 = vmatpush1.bf16.msra.mxu0 0
        %5166 = vmatprep.subr.bf16.mxu0 0
        %5167 = vmatpush1.bf16.msra.mxu0 0
        %5168 = vmatprep.subr.bf16.mxu0 0
        %5169 = vmatpush1.bf16.msra.mxu0 0
        %5170 = vmatprep.subr.bf16.mxu0 0
        %5171 = vmatpush1.bf16.msra.mxu0 0
        %5172 = vmatprep.subr.bf16.mxu0 0
        %5173 = vmatpush1.bf16.msra.mxu0 0
        %5174 = vmatprep.subr.bf16.mxu0 0
        %5175 = vmatpush1.bf16.msra.mxu0 0
        %5176 = vmatprep.subr.bf16.mxu0 0
        %5177 = vmatpush1.bf16.msra.mxu0 0
        %5178 = vmatprep.subr.bf16.mxu0 0
        %5179 = vmatpush1.bf16.msra.mxu0 0
        %5180 = vmatprep.subr.bf16.mxu0 0
        %5181 = vmatpush1.bf16.msra.mxu0 0
        %5182 = vmatprep.subr.bf16.mxu0 0
        %5183 = vmatpush1.bf16.msra.mxu0 0
        %5184 = vmatprep.subr.bf16.mxu0 0
        %5185 = vmatpush1.bf16.msra.mxu0 0
        %5186 = vmatprep.subr.bf16.mxu0 0
        %5187 = vmatpush1.bf16.msra.mxu0 0
        %5188 = vmatprep.mubr.bf16.mxu0 0
        %5189 = vmatmul.mubr.bf16.gmra.mrb[0].mxu0 %v5145
        %v5190 = vpop.f32.mrb[0].mxu0
        %v5191 = vadd.f32 0.0, %v5190
        %v5192 = vpop.f32.mrb[0].mxu0
        %v5193 = vadd.f32 0.0, %v5192
        %v5194 = vpop.f32.mrb[0].mxu0
        %v5195 = vadd.f32 0.0, %v5194
        %v5196 = vpop.f32.mrb[0].mxu0
        %v5197 = vadd.f32 0.0, %v5196
        %5198 = vmatprep.mubr.bf16.mxu0 0
        %5199 = vmatmul.mubr.bf16.gmra.mrb[0].mxu0 %v5148
        %v5200 = vpop.f32.mrb[0].mxu0
        %v5201 = vadd.f32 0.0, %v5200
        %v5202 = vpop.f32.mrb[0].mxu0
        %v5203 = vadd.f32 0.0, %v5202
        %v5204 = vpop.f32.mrb[0].mxu0
        %v5205 = vadd.f32 0.0, %v5204
        %v5206 = vpop.f32.mrb[0].mxu0
        %v5207 = vadd.f32 0.0, %v5206
        %5208 = vmatprep.mubr.bf16.mxu0 0
        %5209 = vmatmul.mubr.bf16.gmra.mrb[0].mxu0 %v5151
        %v5210 = vpop.f32.mrb[0].mxu0
        %v5211 = vadd.f32 0.0, %v5210
        %v5212 = vpop.f32.mrb[0].mxu0
        %v5213 = vadd.f32 0.0, %v5212
        %v5214 = vpop.f32.mrb[0].mxu0
        %v5215 = vadd.f32 0.0, %v5214
        %v5216 = vpop.f32.mrb[0].mxu0
        %v5217 = vadd.f32 0.0, %v5216
        %5218 = vmatprep.mubr.bf16.mxu0 0
        %5219 = vmatmul.mubr.bf16.gmra.mrb[0].mxu0 %v5154
        %v5220 = vpop.f32.mrb[0].mxu0
        %v5221 = vadd.f32 0.0, %v5220
        %v5222 = vpop.f32.mrb[0].mxu0
        %v5223 = vadd.f32 0.0, %v5222
        %v5224 = vpop.f32.mrb[0].mxu0
        %v5225 = vadd.f32 0.0, %v5224
        %v5226 = vpop.f32.mrb[0].mxu0
        %v5227 = vadd.f32 0.0, %v5226
        %5228 = vdwg.mxu0
        %v5229 = vld [vmem:[%s35] sm:$0x3]
        %v5231 = vlaneseq
        %v5232 = vshrl.u32 %v5231, 7
        %v5233 = vsub.s32 0, %v5232
        %v5234 = vrot.slane %v5229, %v5233
        %v5235 = vlaneseq
        %v5236 = vshrl.u32 %v5235, 7
        %v5237 = vsub.s32 1, %v5236
        %v5238 = vrot.slane %v5229, %v5237
        %v5241 = vmul.f32 %v5191, %v5234
        %v5242 = vmul.f32 %v5193, %v5238
        %v5243 = vmul.f32 %v5195, %v5234
        %v5244 = vmul.f32 %v5197, %v5238
        %v5245 = vmul.f32 %v5201, %v5234
        %v5246 = vmul.f32 %v5203, %v5238
        %v5247 = vmul.f32 %v5205, %v5234
        %v5248 = vmul.f32 %v5207, %v5238
        %v5249 = vmul.f32 %v5211, %v5234
        %v5250 = vmul.f32 %v5213, %v5238
        %v5251 = vmul.f32 %v5215, %v5234
        %v5252 = vmul.f32 %v5217, %v5238
        %v5253 = vmul.f32 %v5221, %v5234
        %v5254 = vmul.f32 %v5223, %v5238
        %v5255 = vmul.f32 %v5225, %v5234
        %v5256 = vmul.f32 %v5227, %v5238
        %v5257 = vld [vmem:[%s37] sm:$0x3]
        %v5259 = vlaneseq
        %v5260 = vshrl.u32 %v5259, 7
        %v5261 = vsub.s32 0, %v5260
        %v5262 = vrot.slane %v5257, %v5261
        %v5263 = vlaneseq
        %v5264 = vshrl.u32 %v5263, 7
        %v5265 = vsub.s32 1, %v5264
        %v5266 = vrot.slane %v5257, %v5265
        %v5269 = vadd.f32 %v5241, %v5262
        %v5270 = vadd.f32 %v5242, %v5266
        %v5271 = vadd.f32 %v5243, %v5262
        %v5272 = vadd.f32 %v5244, %v5266
        %v5273 = vadd.f32 %v5245, %v5262
        %v5274 = vadd.f32 %v5246, %v5266
        %v5275 = vadd.f32 %v5247, %v5262
        %v5276 = vadd.f32 %v5248, %v5266
        %v5277 = vadd.f32 %v5249, %v5262
        %v5278 = vadd.f32 %v5250, %v5266
        %v5279 = vadd.f32 %v5251, %v5262
        %v5280 = vadd.f32 %v5252, %v5266
        %v5281 = vadd.f32 %v5253, %v5262
        %v5282 = vadd.f32 %v5254, %v5266
        %v5283 = vadd.f32 %v5255, %v5262
        %v5284 = vadd.f32 %v5256, %v5266
        %vm5285 = vcmp.gt.f32.partialorder %v5269, 0.0
        %vm5286 = vcmp.gt.f32.partialorder %v5270, 0.0
        %vm5287 = vcmp.gt.f32.partialorder %v5271, 0.0
        %vm5288 = vcmp.gt.f32.partialorder %v5272, 0.0
        %vm5289 = vcmp.gt.f32.partialorder %v5273, 0.0
        %vm5290 = vcmp.gt.f32.partialorder %v5274, 0.0
        %vm5291 = vcmp.gt.f32.partialorder %v5275, 0.0
        %vm5292 = vcmp.gt.f32.partialorder %v5276, 0.0
        %vm5293 = vcmp.gt.f32.partialorder %v5277, 0.0
        %vm5294 = vcmp.gt.f32.partialorder %v5278, 0.0
        %vm5295 = vcmp.gt.f32.partialorder %v5279, 0.0
        %vm5296 = vcmp.gt.f32.partialorder %v5280, 0.0
        %vm5297 = vcmp.gt.f32.partialorder %v5281, 0.0
        %vm5298 = vcmp.gt.f32.partialorder %v5282, 0.0
        %vm5299 = vcmp.gt.f32.partialorder %v5283, 0.0
        %vm5300 = vcmp.gt.f32.partialorder %v5284, 0.0
        %v5301 = vmul.f32 %v5269, 0.3
        %v5302 = vmul.f32 %v5270, 0.3
        %v5303 = vmul.f32 %v5271, 0.3
        %v5304 = vmul.f32 %v5272, 0.3
        %v5305 = vmul.f32 %v5273, 0.3
        %v5306 = vmul.f32 %v5274, 0.3
        %v5307 = vmul.f32 %v5275, 0.3
        %v5308 = vmul.f32 %v5276, 0.3
        %v5309 = vmul.f32 %v5277, 0.3
        %v5310 = vmul.f32 %v5278, 0.3
        %v5311 = vmul.f32 %v5279, 0.3
        %v5312 = vmul.f32 %v5280, 0.3
        %v5313 = vmul.f32 %v5281, 0.3
        %v5314 = vmul.f32 %v5282, 0.3
        %v5315 = vmul.f32 %v5283, 0.3
        %v5316 = vmul.f32 %v5284, 0.3
        %v5317 = vsel %vm5285, %v5269, %v5301
        %v5318 = vsel %vm5286, %v5270, %v5302
        %v5319 = vsel %vm5287, %v5271, %v5303
        %v5320 = vsel %vm5288, %v5272, %v5304
        %v5321 = vsel %vm5289, %v5273, %v5305
        %v5322 = vsel %vm5290, %v5274, %v5306
        %v5323 = vsel %vm5291, %v5275, %v5307
        %v5324 = vsel %vm5292, %v5276, %v5308
        %v5325 = vsel %vm5293, %v5277, %v5309
        %v5326 = vsel %vm5294, %v5278, %v5310
        %v5327 = vsel %vm5295, %v5279, %v5311
        %v5328 = vsel %vm5296, %v5280, %v5312
        %v5329 = vsel %vm5297, %v5281, %v5313
        %v5330 = vsel %vm5298, %v5282, %v5314
        %v5331 = vsel %vm5299, %v5283, %v5315
        %v5332 = vsel %vm5300, %v5284, %v5316
        %v5333 = vpack.c.bf16 %v5319, %v5317
        %v5334 = vpack.c.bf16 %v5320, %v5318
        %v5335 = vpack.c.bf16 %v5323, %v5321
        %v5336 = vpack.c.bf16 %v5324, %v5322
        %v5337 = vpack.c.bf16 %v5327, %v5325
        %v5338 = vpack.c.bf16 %v5328, %v5326
        %v5339 = vpack.c.bf16 %v5331, %v5329
        %v5340 = vpack.c.bf16 %v5332, %v5330
        %v5341 = vld [vmem:[%s39] sm:$0xf]
        %v5342 = vld [vmem:[%s39 + $0x4] sm:$0xf]
        %v5345 = vunpack.c.l.b16 %v5341
        %v5346 = vunpack.c.l.b16 %v5342
        %v5347 = vpack.c.b16 %v5346, %v5345
        %v5349 = vsel %vm4530, %v5347, 0
        %5351 = vmatprep.subr.bf16.mxu0 %v5334
        %5352 = vmatpush1.bf16.msra.mxu0 %v5333
        %5353 = vmatprep.subr.bf16.mxu0 %v5336
        %5354 = vmatpush1.bf16.msra.mxu0 %v5335
        %5355 = vmatprep.subr.bf16.mxu0 %v5338
        %5356 = vmatpush1.bf16.msra.mxu0 %v5337
        %5357 = vmatprep.subr.bf16.mxu0 %v5340
        %5358 = vmatpush1.bf16.msra.mxu0 %v5339
        %5359 = vmatprep.subr.bf16.mxu0 0
        %5360 = vmatpush1.bf16.msra.mxu0 0
        %5361 = vmatprep.subr.bf16.mxu0 0
        %5362 = vmatpush1.bf16.msra.mxu0 0
        %5363 = vmatprep.subr.bf16.mxu0 0
        %5364 = vmatpush1.bf16.msra.mxu0 0
        %5365 = vmatprep.subr.bf16.mxu0 0
        %5366 = vmatpush1.bf16.msra.mxu0 0
        %5367 = vmatprep.subr.bf16.mxu0 0
        %5368 = vmatpush1.bf16.msra.mxu0 0
        %5369 = vmatprep.subr.bf16.mxu0 0
        %5370 = vmatpush1.bf16.msra.mxu0 0
        %5371 = vmatprep.subr.bf16.mxu0 0
        %5372 = vmatpush1.bf16.msra.mxu0 0
        %5373 = vmatprep.subr.bf16.mxu0 0
        %5374 = vmatpush1.bf16.msra.mxu0 0
        %5375 = vmatprep.subr.bf16.mxu0 0
        %5376 = vmatpush1.bf16.msra.mxu0 0
        %5377 = vmatprep.subr.bf16.mxu0 0
        %5378 = vmatpush1.bf16.msra.mxu0 0
        %5379 = vmatprep.subr.bf16.mxu0 0
        %5380 = vmatpush1.bf16.msra.mxu0 0
        %5381 = vmatprep.subr.bf16.mxu0 0
        %5382 = vmatpush1.bf16.msra.mxu0 0
        %5383 = vmatprep.mubr.bf16.mxu0 0
        %5384 = vmatmul.mubr.bf16.gmra.mrb[0].mxu0 %v5349
        %v5385 = vpop.f32.mrb[0].mxu0
        %v5386 = vadd.f32 0.0, %v5385
        %v5387 = vpop.f32.mrb[0].mxu0
        %v5388 = vadd.f32 0.0, %v5387
        %v5389 = vpop.f32.mrb[0].mxu0
        %v5390 = vadd.f32 0.0, %v5389
        %v5391 = vpop.f32.mrb[0].mxu0
        %v5392 = vadd.f32 0.0, %v5391
        %5393 = vdwg.mxu0
        %v5394 = vld [vmem:[%s41] sm:$0x3]
        %v5396 = vlaneseq
        %v5397 = vshrl.u32 %v5396, 7
        %v5398 = vsub.s32 0, %v5397
        %v5399 = vrot.slane %v5394, %v5398
        %v5400 = vlaneseq
        %v5401 = vshrl.u32 %v5400, 7
        %v5402 = vsub.s32 1, %v5401
        %v5403 = vrot.slane %v5394, %v5402
        %v5406 = vmul.f32 %v5386, %v5399
        %v5407 = vmul.f32 %v5388, %v5403
        %v5408 = vmul.f32 %v5390, %v5399
        %v5409 = vmul.f32 %v5392, %v5403
        %s5410 = scalar_lea.vmem %s39, 8
        %v5411 = vld [vmem:[%s5410] sm:$0xf]
        %v5412 = vld [vmem:[%s5410 + $0x4] sm:$0xf]
        %v5415 = vunpack.c.l.b16 %v5411
        %v5416 = vunpack.c.l.b16 %v5412
        %v5417 = vpack.c.b16 %v5416, %v5415
        %v5419 = vsel %vm4530, %v5417, 0
        %5421 = vmatprep.subr.bf16.mxu0 %v5334
        %5422 = vmatpush1.bf16.msra.mxu0 %v5333
        %5423 = vmatprep.subr.bf16.mxu0 %v5336
        %5424 = vmatpush1.bf16.msra.mxu0 %v5335
        %5425 = vmatprep.subr.bf16.mxu0 %v5338
        %5426 = vmatpush1.bf16.msra.mxu0 %v5337
        %5427 = vmatprep.subr.bf16.mxu0 %v5340
        %5428 = vmatpush1.bf16.msra.mxu0 %v5339
        %5429 = vmatprep.subr.bf16.mxu0 0
        %5430 = vmatpush1.bf16.msra.mxu0 0
        %5431 = vmatprep.subr.bf16.mxu0 0
        %5432 = vmatpush1.bf16.msra.mxu0 0
        %5433 = vmatprep.subr.bf16.mxu0 0
        %5434 = vmatpush1.bf16.msra.mxu0 0
        %5435 = vmatprep.subr.bf16.mxu0 0
        %5436 = vmatpush1.bf16.msra.mxu0 0
        %5437 = vmatprep.subr.bf16.mxu0 0
        %5438 = vmatpush1.bf16.msra.mxu0 0
        %5439 = vmatprep.subr.bf16.mxu0 0
        %5440 = vmatpush1.bf16.msra.mxu0 0
        %5441 = vmatprep.subr.bf16.mxu0 0
        %5442 = vmatpush1.bf16.msra.mxu0 0
        %5443 = vmatprep.subr.bf16.mxu0 0
        %5444 = vmatpush1.bf16.msra.mxu0 0
        %5445 = vmatprep.subr.bf16.mxu0 0
        %5446 = vmatpush1.bf16.msra.mxu0 0
        %5447 = vmatprep.subr.bf16.mxu0 0
        %5448 = vmatpush1.bf16.msra.mxu0 0
        %5449 = vmatprep.subr.bf16.mxu0 0
        %5450 = vmatpush1.bf16.msra.mxu0 0
        %5451 = vmatprep.subr.bf16.mxu0 0
        %5452 = vmatpush1.bf16.msra.mxu0 0
        %5453 = vmatprep.mubr.bf16.mxu0 0
        %5454 = vmatmul.mubr.bf16.gmra.mrb[0].mxu0 %v5419
        %v5455 = vpop.f32.mrb[0].mxu0
        %v5456 = vadd.f32 0.0, %v5455
        %v5457 = vpop.f32.mrb[0].mxu0
        %v5458 = vadd.f32 0.0, %v5457
        %v5459 = vpop.f32.mrb[0].mxu0
        %v5460 = vadd.f32 0.0, %v5459
        %v5461 = vpop.f32.mrb[0].mxu0
        %v5462 = vadd.f32 0.0, %v5461
        %5463 = vdwg.mxu0
        %s5464 = scalar_lea.vmem %s41, 2
        %v5465 = vld [vmem:[%s5464] sm:$0x3]
        %v5467 = vlaneseq
        %v5468 = vshrl.u32 %v5467, 7
        %v5469 = vsub.s32 0, %v5468
        %v5470 = vrot.slane %v5465, %v5469
        %v5471 = vlaneseq
        %v5472 = vshrl.u32 %v5471, 7
        %v5473 = vsub.s32 1, %v5472
        %v5474 = vrot.slane %v5465, %v5473
        %v5477 = vmul.f32 %v5456, %v5470
        %v5478 = vmul.f32 %v5458, %v5474
        %v5479 = vmul.f32 %v5460, %v5470
        %v5480 = vmul.f32 %v5462, %v5474
        %v5481 = vadd.f32 %v5406, %v5477
        %v5482 = vadd.f32 %v5407, %v5478
        %v5483 = vadd.f32 %v5408, %v5479
        %v5484 = vadd.f32 %v5409, %v5480
        %s5485 = scalar_lea.vmem %s39, 16
        %v5486 = vld [vmem:[%s5485] sm:$0xf]
        %v5487 = vld [vmem:[%s5485 + $0x4] sm:$0xf]
        %v5490 = vunpack.c.l.b16 %v5486
        %v5491 = vunpack.c.l.b16 %v5487
        %v5492 = vpack.c.b16 %v5491, %v5490
        %v5494 = vsel %vm4530, %v5492, 0
        %5496 = vmatprep.subr.bf16.mxu0 %v5334
        %5497 = vmatpush1.bf16.msra.mxu0 %v5333
        %5498 = vmatprep.subr.bf16.mxu0 %v5336
        %5499 = vmatpush1.bf16.msra.mxu0 %v5335
        %5500 = vmatprep.subr.bf16.mxu0 %v5338
        %5501 = vmatpush1.bf16.msra.mxu0 %v5337
        %5502 = vmatprep.subr.bf16.mxu0 %v5340
        %5503 = vmatpush1.bf16.msra.mxu0 %v5339
        %5504 = vmatprep.subr.bf16.mxu0 0
        %5505 = vmatpush1.bf16.msra.mxu0 0
        %5506 = vmatprep.subr.bf16.mxu0 0
        %5507 = vmatpush1.bf16.msra.mxu0 0
        %5508 = vmatprep.subr.bf16.mxu0 0
        %5509 = vmatpush1.bf16.msra.mxu0 0
        %5510 = vmatprep.subr.bf16.mxu0 0
        %5511 = vmatpush1.bf16.msra.mxu0 0
        %5512 = vmatprep.subr.bf16.mxu0 0
        %5513 = vmatpush1.bf16.msra.mxu0 0
        %5514 = vmatprep.subr.bf16.mxu0 0
        %5515 = vmatpush1.bf16.msra.mxu0 0
        %5516 = vmatprep.subr.bf16.mxu0 0
        %5517 = vmatpush1.bf16.msra.mxu0 0
        %5518 = vmatprep.subr.bf16.mxu0 0
        %5519 = vmatpush1.bf16.msra.mxu0 0
        %5520 = vmatprep.subr.bf16.mxu0 0
        %5521 = vmatpush1.bf16.msra.mxu0 0
        %5522 = vmatprep.subr.bf16.mxu0 0
        %5523 = vmatpush1.bf16.msra.mxu0 0
        %5524 = vmatprep.subr.bf16.mxu0 0
        %5525 = vmatpush1.bf16.msra.mxu0 0
        %5526 = vmatprep.subr.bf16.mxu0 0
        %5527 = vmatpush1.bf16.msra.mxu0 0
        %5528 = vmatprep.mubr.bf16.mxu0 0
        %5529 = vmatmul.mubr.bf16.gmra.mrb[0].mxu0 %v5494
        %v5530 = vpop.f32.mrb[0].mxu0
        %v5531 = vadd.f32 0.0, %v5530
        %v5532 = vpop.f32.mrb[0].mxu0
        %v5533 = vadd.f32 0.0, %v5532
        %v5534 = vpop.f32.mrb[0].mxu0
        %v5535 = vadd.f32 0.0, %v5534
        %v5536 = vpop.f32.mrb[0].mxu0
        %v5537 = vadd.f32 0.0, %v5536
        %5538 = vdwg.mxu0
        %s5539 = scalar_lea.vmem %s41, 4
        %v5540 = vld [vmem:[%s5539] sm:$0x3]
        %v5542 = vlaneseq
        %v5543 = vshrl.u32 %v5542, 7
        %v5544 = vsub.s32 0, %v5543
        %v5545 = vrot.slane %v5540, %v5544
        %v5546 = vlaneseq
        %v5547 = vshrl.u32 %v5546, 7
        %v5548 = vsub.s32 1, %v5547
        %v5549 = vrot.slane %v5540, %v5548
        %v5552 = vmul.f32 %v5531, %v5545
        %v5553 = vmul.f32 %v5533, %v5549
        %v5554 = vmul.f32 %v5535, %v5545
        %v5555 = vmul.f32 %v5537, %v5549
        %v5556 = vadd.f32 %v5481, %v5552
        %v5557 = vadd.f32 %v5482, %v5553
        %v5558 = vadd.f32 %v5483, %v5554
        %v5559 = vadd.f32 %v5484, %v5555
        %s5560 = scalar_lea.vmem %s39, 24
        %v5561 = vld [vmem:[%s5560] sm:$0xf]
        %v5562 = vld [vmem:[%s5560 + $0x4] sm:$0xf]
        %v5565 = vunpack.c.l.b16 %v5561
        %v5566 = vunpack.c.l.b16 %v5562
        %v5567 = vpack.c.b16 %v5566, %v5565
        %v5569 = vsel %vm4530, %v5567, 0
        %5571 = vmatprep.subr.bf16.mxu0 %v5334
        %5572 = vmatpush1.bf16.msra.mxu0 %v5333
        %5573 = vmatprep.subr.bf16.mxu0 %v5336
        %5574 = vmatpush1.bf16.msra.mxu0 %v5335
        %5575 = vmatprep.subr.bf16.mxu0 %v5338
        %5576 = vmatpush1.bf16.msra.mxu0 %v5337
        %5577 = vmatprep.subr.bf16.mxu0 %v5340
        %5578 = vmatpush1.bf16.msra.mxu0 %v5339
        %5579 = vmatprep.subr.bf16.mxu0 0
        %5580 = vmatpush1.bf16.msra.mxu0 0
        %5581 = vmatprep.subr.bf16.mxu0 0
        %5582 = vmatpush1.bf16.msra.mxu0 0
        %5583 = vmatprep.subr.bf16.mxu0 0
        %5584 = vmatpush1.bf16.msra.mxu0 0
        %5585 = vmatprep.subr.bf16.mxu0 0
        %5586 = vmatpush1.bf16.msra.mxu0 0
        %5587 = vmatprep.subr.bf16.mxu0 0
        %5588 = vmatpush1.bf16.msra.mxu0 0
        %5589 = vmatprep.subr.bf16.mxu0 0
        %5590 = vmatpush1.bf16.msra.mxu0 0
        %5591 = vmatprep.subr.bf16.mxu0 0
        %5592 = vmatpush1.bf16.msra.mxu0 0
        %5593 = vmatprep.subr.bf16.mxu0 0
        %5594 = vmatpush1.bf16.msra.mxu0 0
        %5595 = vmatprep.subr.bf16.mxu0 0
        %5596 = vmatpush1.bf16.msra.mxu0 0
        %5597 = vmatprep.subr.bf16.mxu0 0
        %5598 = vmatpush1.bf16.msra.mxu0 0
        %5599 = vmatprep.subr.bf16.mxu0 0
        %5600 = vmatpush1.bf16.msra.mxu0 0
        %5601 = vmatprep.subr.bf16.mxu0 0
        %5602 = vmatpush1.bf16.msra.mxu0 0
        %5603 = vmatprep.mubr.bf16.mxu0 0
        %5604 = vmatmul.mubr.bf16.gmra.mrb[0].mxu0 %v5569
        %v5605 = vpop.f32.mrb[0].mxu0
        %v5606 = vadd.f32 0.0, %v5605
        %v5607 = vpop.f32.mrb[0].mxu0
        %v5608 = vadd.f32 0.0, %v5607
        %v5609 = vpop.f32.mrb[0].mxu0
        %v5610 = vadd.f32 0.0, %v5609
        %v5611 = vpop.f32.mrb[0].mxu0
        %v5612 = vadd.f32 0.0, %v5611
        %5613 = vdwg.mxu0
        %s5614 = scalar_lea.vmem %s41, 6
        %v5615 = vld [vmem:[%s5614] sm:$0x3]
        %v5617 = vlaneseq
        %v5618 = vshrl.u32 %v5617, 7
        %v5619 = vsub.s32 0, %v5618
        %v5620 = vrot.slane %v5615, %v5619
        %v5621 = vlaneseq
        %v5622 = vshrl.u32 %v5621, 7
        %v5623 = vsub.s32 1, %v5622
        %v5624 = vrot.slane %v5615, %v5623
        %v5627 = vmul.f32 %v5606, %v5620
        %v5628 = vmul.f32 %v5608, %v5624
        %v5629 = vmul.f32 %v5610, %v5620
        %v5630 = vmul.f32 %v5612, %v5624
        %v5631 = vadd.f32 %v5556, %v5627
        %v5632 = vadd.f32 %v5557, %v5628
        %v5633 = vadd.f32 %v5558, %v5629
        %v5634 = vadd.f32 %v5559, %v5630
        %s5635 = scalar_lea.vmem %s39, 32
        %v5636 = vld [vmem:[%s5635] sm:$0xf]
        %v5637 = vld [vmem:[%s5635 + $0x4] sm:$0xf]
        %v5640 = vunpack.c.l.b16 %v5636
        %v5641 = vunpack.c.l.b16 %v5637
        %v5642 = vpack.c.b16 %v5641, %v5640
        %v5644 = vsel %vm4530, %v5642, 0
        %5646 = vmatprep.subr.bf16.mxu0 %v5334
        %5647 = vmatpush1.bf16.msra.mxu0 %v5333
        %5648 = vmatprep.subr.bf16.mxu0 %v5336
        %5649 = vmatpush1.bf16.msra.mxu0 %v5335
        %5650 = vmatprep.subr.bf16.mxu0 %v5338
        %5651 = vmatpush1.bf16.msra.mxu0 %v5337
        %5652 = vmatprep.subr.bf16.mxu0 %v5340
        %5653 = vmatpush1.bf16.msra.mxu0 %v5339
        %5654 = vmatprep.subr.bf16.mxu0 0
        %5655 = vmatpush1.bf16.msra.mxu0 0
        %5656 = vmatprep.subr.bf16.mxu0 0
        %5657 = vmatpush1.bf16.msra.mxu0 0
        %5658 = vmatprep.subr.bf16.mxu0 0
        %5659 = vmatpush1.bf16.msra.mxu0 0
        %5660 = vmatprep.subr.bf16.mxu0 0
        %5661 = vmatpush1.bf16.msra.mxu0 0
        %5662 = vmatprep.subr.bf16.mxu0 0
        %5663 = vmatpush1.bf16.msra.mxu0 0
        %5664 = vmatprep.subr.bf16.mxu0 0
        %5665 = vmatpush1.bf16.msra.mxu0 0
        %5666 = vmatprep.subr.bf16.mxu0 0
        %5667 = vmatpush1.bf16.msra.mxu0 0
        %5668 = vmatprep.subr.bf16.mxu0 0
        %5669 = vmatpush1.bf16.msra.mxu0 0
        %5670 = vmatprep.subr.bf16.mxu0 0
        %5671 = vmatpush1.bf16.msra.mxu0 0
        %5672 = vmatprep.subr.bf16.mxu0 0
        %5673 = vmatpush1.bf16.msra.mxu0 0
        %5674 = vmatprep.subr.bf16.mxu0 0
        %5675 = vmatpush1.bf16.msra.mxu0 0
        %5676 = vmatprep.subr.bf16.mxu0 0
        %5677 = vmatpush1.bf16.msra.mxu0 0
        %5678 = vmatprep.mubr.bf16.mxu0 0
        %5679 = vmatmul.mubr.bf16.gmra.mrb[0].mxu0 %v5644
        %v5680 = vpop.f32.mrb[0].mxu0
        %v5681 = vadd.f32 0.0, %v5680
        %v5682 = vpop.f32.mrb[0].mxu0
        %v5683 = vadd.f32 0.0, %v5682
        %v5684 = vpop.f32.mrb[0].mxu0
        %v5685 = vadd.f32 0.0, %v5684
        %v5686 = vpop.f32.mrb[0].mxu0
        %v5687 = vadd.f32 0.0, %v5686
        %5688 = vdwg.mxu0
        %s5689 = scalar_lea.vmem %s41, 8
        %v5690 = vld [vmem:[%s5689] sm:$0x3]
        %v5692 = vlaneseq
        %v5693 = vshrl.u32 %v5692, 7
        %v5694 = vsub.s32 0, %v5693
        %v5695 = vrot.slane %v5690, %v5694
        %v5696 = vlaneseq
        %v5697 = vshrl.u32 %v5696, 7
        %v5698 = vsub.s32 1, %v5697
        %v5699 = vrot.slane %v5690, %v5698
        %v5702 = vmul.f32 %v5681, %v5695
        %v5703 = vmul.f32 %v5683, %v5699
        %v5704 = vmul.f32 %v5685, %v5695
        %v5705 = vmul.f32 %v5687, %v5699
        %v5706 = vadd.f32 %v5631, %v5702
        %v5707 = vadd.f32 %v5632, %v5703
        %v5708 = vadd.f32 %v5633, %v5704
        %v5709 = vadd.f32 %v5634, %v5705
        %s5710 = scalar_lea.vmem %s39, 40
        %v5711 = vld [vmem:[%s5710] sm:$0xf]
        %v5712 = vld [vmem:[%s5710 + $0x4] sm:$0xf]
        %v5715 = vunpack.c.l.b16 %v5711
        %v5716 = vunpack.c.l.b16 %v5712
        %v5717 = vpack.c.b16 %v5716, %v5715
        %v5719 = vsel %vm4530, %v5717, 0
        %5721 = vmatprep.subr.bf16.mxu0 %v5334
        %5722 = vmatpush1.bf16.msra.mxu0 %v5333
        %5723 = vmatprep.subr.bf16.mxu0 %v5336
        %5724 = vmatpush1.bf16.msra.mxu0 %v5335
        %5725 = vmatprep.subr.bf16.mxu0 %v5338
        %5726 = vmatpush1.bf16.msra.mxu0 %v5337
        %5727 = vmatprep.subr.bf16.mxu0 %v5340
        %5728 = vmatpush1.bf16.msra.mxu0 %v5339
        %5729 = vmatprep.subr.bf16.mxu0 0
        %5730 = vmatpush1.bf16.msra.mxu0 0
        %5731 = vmatprep.subr.bf16.mxu0 0
        %5732 = vmatpush1.bf16.msra.mxu0 0
        %5733 = vmatprep.subr.bf16.mxu0 0
        %5734 = vmatpush1.bf16.msra.mxu0 0
        %5735 = vmatprep.subr.bf16.mxu0 0
        %5736 = vmatpush1.bf16.msra.mxu0 0
        %5737 = vmatprep.subr.bf16.mxu0 0
        %5738 = vmatpush1.bf16.msra.mxu0 0
        %5739 = vmatprep.subr.bf16.mxu0 0
        %5740 = vmatpush1.bf16.msra.mxu0 0
        %5741 = vmatprep.subr.bf16.mxu0 0
        %5742 = vmatpush1.bf16.msra.mxu0 0
        %5743 = vmatprep.subr.bf16.mxu0 0
        %5744 = vmatpush1.bf16.msra.mxu0 0
        %5745 = vmatprep.subr.bf16.mxu0 0
        %5746 = vmatpush1.bf16.msra.mxu0 0
        %5747 = vmatprep.subr.bf16.mxu0 0
        %5748 = vmatpush1.bf16.msra.mxu0 0
        %5749 = vmatprep.subr.bf16.mxu0 0
        %5750 = vmatpush1.bf16.msra.mxu0 0
        %5751 = vmatprep.subr.bf16.mxu0 0
        %5752 = vmatpush1.bf16.msra.mxu0 0
        %5753 = vmatprep.mubr.bf16.mxu0 0
        %5754 = vmatmul.mubr.bf16.gmra.mrb[0].mxu0 %v5719
        %v5755 = vpop.f32.mrb[0].mxu0
        %v5756 = vadd.f32 0.0, %v5755
        %v5757 = vpop.f32.mrb[0].mxu0
        %v5758 = vadd.f32 0.0, %v5757
        %v5759 = vpop.f32.mrb[0].mxu0
        %v5760 = vadd.f32 0.0, %v5759
        %v5761 = vpop.f32.mrb[0].mxu0
        %v5762 = vadd.f32 0.0, %v5761
        %5763 = vdwg.mxu0
        %s5764 = scalar_lea.vmem %s41, 10
        %v5765 = vld [vmem:[%s5764] sm:$0x3]
        %v5767 = vlaneseq
        %v5768 = vshrl.u32 %v5767, 7
        %v5769 = vsub.s32 0, %v5768
        %v5770 = vrot.slane %v5765, %v5769
        %v5771 = vlaneseq
        %v5772 = vshrl.u32 %v5771, 7
        %v5773 = vsub.s32 1, %v5772
        %v5774 = vrot.slane %v5765, %v5773
        %v5777 = vmul.f32 %v5756, %v5770
        %v5778 = vmul.f32 %v5758, %v5774
        %v5779 = vmul.f32 %v5760, %v5770
        %v5780 = vmul.f32 %v5762, %v5774
        %v5781 = vadd.f32 %v5706, %v5777
        %v5782 = vadd.f32 %v5707, %v5778
        %v5783 = vadd.f32 %v5708, %v5779
        %v5784 = vadd.f32 %v5709, %v5780
        %s5785 = scalar_lea.vmem %s39, 48
        %v5786 = vld [vmem:[%s5785] sm:$0xf]
        %v5787 = vld [vmem:[%s5785 + $0x4] sm:$0xf]
        %v5790 = vunpack.c.l.b16 %v5786
        %v5791 = vunpack.c.l.b16 %v5787
        %v5792 = vpack.c.b16 %v5791, %v5790
        %v5794 = vsel %vm4530, %v5792, 0
        %5796 = vmatprep.subr.bf16.mxu0 %v5334
        %5797 = vmatpush1.bf16.msra.mxu0 %v5333
        %5798 = vmatprep.subr.bf16.mxu0 %v5336
        %5799 = vmatpush1.bf16.msra.mxu0 %v5335
        %5800 = vmatprep.subr.bf16.mxu0 %v5338
        %5801 = vmatpush1.bf16.msra.mxu0 %v5337
        %5802 = vmatprep.subr.bf16.mxu0 %v5340
        %5803 = vmatpush1.bf16.msra.mxu0 %v5339
        %5804 = vmatprep.subr.bf16.mxu0 0
        %5805 = vmatpush1.bf16.msra.mxu0 0
        %5806 = vmatprep.subr.bf16.mxu0 0
        %5807 = vmatpush1.bf16.msra.mxu0 0
        %5808 = vmatprep.subr.bf16.mxu0 0
        %5809 = vmatpush1.bf16.msra.mxu0 0
        %5810 = vmatprep.subr.bf16.mxu0 0
        %5811 = vmatpush1.bf16.msra.mxu0 0
        %5812 = vmatprep.subr.bf16.mxu0 0
        %5813 = vmatpush1.bf16.msra.mxu0 0
        %5814 = vmatprep.subr.bf16.mxu0 0
        %5815 = vmatpush1.bf16.msra.mxu0 0
        %5816 = vmatprep.subr.bf16.mxu0 0
        %5817 = vmatpush1.bf16.msra.mxu0 0
        %5818 = vmatprep.subr.bf16.mxu0 0
        %5819 = vmatpush1.bf16.msra.mxu0 0
        %5820 = vmatprep.subr.bf16.mxu0 0
        %5821 = vmatpush1.bf16.msra.mxu0 0
        %5822 = vmatprep.subr.bf16.mxu0 0
        %5823 = vmatpush1.bf16.msra.mxu0 0
        %5824 = vmatprep.subr.bf16.mxu0 0
        %5825 = vmatpush1.bf16.msra.mxu0 0
        %5826 = vmatprep.subr.bf16.mxu0 0
        %5827 = vmatpush1.bf16.msra.mxu0 0
        %5828 = vmatprep.mubr.bf16.mxu0 0
        %5829 = vmatmul.mubr.bf16.gmra.mrb[0].mxu0 %v5794
        %v5830 = vpop.f32.mrb[0].mxu0
        %v5831 = vadd.f32 0.0, %v5830
        %v5832 = vpop.f32.mrb[0].mxu0
        %v5833 = vadd.f32 0.0, %v5832
        %v5834 = vpop.f32.mrb[0].mxu0
        %v5835 = vadd.f32 0.0, %v5834
        %v5836 = vpop.f32.mrb[0].mxu0
        %v5837 = vadd.f32 0.0, %v5836
        %5838 = vdwg.mxu0
        %s5839 = scalar_lea.vmem %s41, 12
        %v5840 = vld [vmem:[%s5839] sm:$0x3]
        %v5842 = vlaneseq
        %v5843 = vshrl.u32 %v5842, 7
        %v5844 = vsub.s32 0, %v5843
        %v5845 = vrot.slane %v5840, %v5844
        %v5846 = vlaneseq
        %v5847 = vshrl.u32 %v5846, 7
        %v5848 = vsub.s32 1, %v5847
        %v5849 = vrot.slane %v5840, %v5848
        %v5852 = vmul.f32 %v5831, %v5845
        %v5853 = vmul.f32 %v5833, %v5849
        %v5854 = vmul.f32 %v5835, %v5845
        %v5855 = vmul.f32 %v5837, %v5849
        %v5856 = vadd.f32 %v5781, %v5852
        %v5857 = vadd.f32 %v5782, %v5853
        %v5858 = vadd.f32 %v5783, %v5854
        %v5859 = vadd.f32 %v5784, %v5855
        %s5860 = scalar_lea.vmem %s39, 56
        %v5861 = vld [vmem:[%s5860] sm:$0xf]
        %v5862 = vld [vmem:[%s5860 + $0x4] sm:$0xf]
        %v5865 = vunpack.c.l.b16 %v5861
        %v5866 = vunpack.c.l.b16 %v5862
        %v5867 = vpack.c.b16 %v5866, %v5865
        %v5869 = vsel %vm4530, %v5867, 0
        %5871 = vmatprep.subr.bf16.mxu0 %v5334
        %5872 = vmatpush1.bf16.msra.mxu0 %v5333
        %5873 = vmatprep.subr.bf16.mxu0 %v5336
        %5874 = vmatpush1.bf16.msra.mxu0 %v5335
        %5875 = vmatprep.subr.bf16.mxu0 %v5338
        %5876 = vmatpush1.bf16.msra.mxu0 %v5337
        %5877 = vmatprep.subr.bf16.mxu0 %v5340
        %5878 = vmatpush1.bf16.msra.mxu0 %v5339
        %5879 = vmatprep.subr.bf16.mxu0 0
        %5880 = vmatpush1.bf16.msra.mxu0 0
        %5881 = vmatprep.subr.bf16.mxu0 0
        %5882 = vmatpush1.bf16.msra.mxu0 0
        %5883 = vmatprep.subr.bf16.mxu0 0
        %5884 = vmatpush1.bf16.msra.mxu0 0
        %5885 = vmatprep.subr.bf16.mxu0 0
        %5886 = vmatpush1.bf16.msra.mxu0 0
        %5887 = vmatprep.subr.bf16.mxu0 0
        %5888 = vmatpush1.bf16.msra.mxu0 0
        %5889 = vmatprep.subr.bf16.mxu0 0
        %5890 = vmatpush1.bf16.msra.mxu0 0
        %5891 = vmatprep.subr.bf16.mxu0 0
        %5892 = vmatpush1.bf16.msra.mxu0 0
        %5893 = vmatprep.subr.bf16.mxu0 0
        %5894 = vmatpush1.bf16.msra.mxu0 0
        %5895 = vmatprep.subr.bf16.mxu0 0
        %5896 = vmatpush1.bf16.msra.mxu0 0
        %5897 = vmatprep.subr.bf16.mxu0 0
        %5898 = vmatpush1.bf16.msra.mxu0 0
        %5899 = vmatprep.subr.bf16.mxu0 0
        %5900 = vmatpush1.bf16.msra.mxu0 0
        %5901 = vmatprep.subr.bf16.mxu0 0
        %5902 = vmatpush1.bf16.msra.mxu0 0
        %5903 = vmatprep.mubr.bf16.mxu0 0
        %5904 = vmatmul.mubr.bf16.gmra.mrb[0].mxu0 %v5869
        %v5905 = vpop.f32.mrb[0].mxu0
        %v5906 = vadd.f32 0.0, %v5905
        %v5907 = vpop.f32.mrb[0].mxu0
        %v5908 = vadd.f32 0.0, %v5907
        %v5909 = vpop.f32.mrb[0].mxu0
        %v5910 = vadd.f32 0.0, %v5909
        %v5911 = vpop.f32.mrb[0].mxu0
        %v5912 = vadd.f32 0.0, %v5911
        %5913 = vdwg.mxu0
        %s5914 = scalar_lea.vmem %s41, 14
        %v5915 = vld [vmem:[%s5914] sm:$0x3]
        %v5917 = vlaneseq
        %v5918 = vshrl.u32 %v5917, 7
        %v5919 = vsub.s32 0, %v5918
        %v5920 = vrot.slane %v5915, %v5919
        %v5921 = vlaneseq
        %v5922 = vshrl.u32 %v5921, 7
        %v5923 = vsub.s32 1, %v5922
        %v5924 = vrot.slane %v5915, %v5923
        %v5927 = vmul.f32 %v5906, %v5920
        %v5928 = vmul.f32 %v5908, %v5924
        %v5929 = vmul.f32 %v5910, %v5920
        %v5930 = vmul.f32 %v5912, %v5924
        %v5931 = vadd.f32 %v5856, %v5927
        %v5932 = vadd.f32 %v5857, %v5928
        %v5933 = vadd.f32 %v5858, %v5929
        %v5934 = vadd.f32 %v5859, %v5930
        %s5935 = scalar_lea.vmem %s39, 64
        %v5936 = vld [vmem:[%s5935] sm:$0xf]
        %v5937 = vld [vmem:[%s5935 + $0x4] sm:$0xf]
        %v5940 = vunpack.c.l.b16 %v5936
        %v5941 = vunpack.c.l.b16 %v5937
        %v5942 = vpack.c.b16 %v5941, %v5940
        %v5944 = vsel %vm4530, %v5942, 0
        %5946 = vmatprep.subr.bf16.mxu0 %v5334
        %5947 = vmatpush1.bf16.msra.mxu0 %v5333
        %5948 = vmatprep.subr.bf16.mxu0 %v5336
        %5949 = vmatpush1.bf16.msra.mxu0 %v5335
        %5950 = vmatprep.subr.bf16.mxu0 %v5338
        %5951 = vmatpush1.bf16.msra.mxu0 %v5337
        %5952 = vmatprep.subr.bf16.mxu0 %v5340
        %5953 = vmatpush1.bf16.msra.mxu0 %v5339
        %5954 = vmatprep.subr.bf16.mxu0 0
        %5955 = vmatpush1.bf16.msra.mxu0 0
        %5956 = vmatprep.subr.bf16.mxu0 0
        %5957 = vmatpush1.bf16.msra.mxu0 0
        %5958 = vmatprep.subr.bf16.mxu0 0
        %5959 = vmatpush1.bf16.msra.mxu0 0
        %5960 = vmatprep.subr.bf16.mxu0 0
        %5961 = vmatpush1.bf16.msra.mxu0 0
        %5962 = vmatprep.subr.bf16.mxu0 0
        %5963 = vmatpush1.bf16.msra.mxu0 0
        %5964 = vmatprep.subr.bf16.mxu0 0
        %5965 = vmatpush1.bf16.msra.mxu0 0
        %5966 = vmatprep.subr.bf16.mxu0 0
        %5967 = vmatpush1.bf16.msra.mxu0 0
        %5968 = vmatprep.subr.bf16.mxu0 0
        %5969 = vmatpush1.bf16.msra.mxu0 0
        %5970 = vmatprep.subr.bf16.mxu0 0
        %5971 = vmatpush1.bf16.msra.mxu0 0
        %5972 = vmatprep.subr.bf16.mxu0 0
        %5973 = vmatpush1.bf16.msra.mxu0 0
        %5974 = vmatprep.subr.bf16.mxu0 0
        %5975 = vmatpush1.bf16.msra.mxu0 0
        %5976 = vmatprep.subr.bf16.mxu0 0
        %5977 = vmatpush1.bf16.msra.mxu0 0
        %5978 = vmatprep.mubr.bf16.mxu0 0
        %5979 = vmatmul.mubr.bf16.gmra.mrb[0].mxu0 %v5944
        %v5980 = vpop.f32.mrb[0].mxu0
        %v5981 = vadd.f32 0.0, %v5980
        %v5982 = vpop.f32.mrb[0].mxu0
        %v5983 = vadd.f32 0.0, %v5982
        %v5984 = vpop.f32.mrb[0].mxu0
        %v5985 = vadd.f32 0.0, %v5984
        %v5986 = vpop.f32.mrb[0].mxu0
        %v5987 = vadd.f32 0.0, %v5986
        %5988 = vdwg.mxu0
        %s5989 = scalar_lea.vmem %s41, 16
        %v5990 = vld [vmem:[%s5989] sm:$0x3]
        %v5992 = vlaneseq
        %v5993 = vshrl.u32 %v5992, 7
        %v5994 = vsub.s32 0, %v5993
        %v5995 = vrot.slane %v5990, %v5994
        %v5996 = vlaneseq
        %v5997 = vshrl.u32 %v5996, 7
        %v5998 = vsub.s32 1, %v5997
        %v5999 = vrot.slane %v5990, %v5998
        %v6002 = vmul.f32 %v5981, %v5995
        %v6003 = vmul.f32 %v5983, %v5999
        %v6004 = vmul.f32 %v5985, %v5995
        %v6005 = vmul.f32 %v5987, %v5999
        %v6006 = vadd.f32 %v5931, %v6002
        %v6007 = vadd.f32 %v5932, %v6003
        %v6008 = vadd.f32 %v5933, %v6004
        %v6009 = vadd.f32 %v5934, %v6005
        %v6010 = vld [vmem:[%s43] sm:$0x3]
        %v6012 = vlaneseq
        %v6013 = vshrl.u32 %v6012, 7
        %v6014 = vsub.s32 0, %v6013
        %v6015 = vrot.slane %v6010, %v6014
        %v6016 = vlaneseq
        %v6017 = vshrl.u32 %v6016, 7
        %v6018 = vsub.s32 1, %v6017
        %v6019 = vrot.slane %v6010, %v6018
        %v6022 = vmul.f32 %v6006, %v6015
        %v6023 = vmul.f32 %v6007, %v6019
        %v6024 = vmul.f32 %v6008, %v6015
        %v6025 = vmul.f32 %v6009, %v6019
        %v6026 = vld [vmem:[%s45] sm:$0x3]
        %v6028 = vlaneseq
        %v6029 = vshrl.u32 %v6028, 7
        %v6030 = vsub.s32 0, %v6029
        %v6031 = vrot.slane %v6026, %v6030
        %v6032 = vlaneseq
        %v6033 = vshrl.u32 %v6032, 7
        %v6034 = vsub.s32 1, %v6033
        %v6035 = vrot.slane %v6026, %v6034
        %v6038 = vadd.f32 %v6022, %v6031
        %v6039 = vadd.f32 %v6023, %v6035
        %v6040 = vadd.f32 %v6024, %v6031
        %v6041 = vadd.f32 %v6025, %v6035
        %vm6042 = vcmp.gt.f32.partialorder %v6038, 0.0
        %vm6043 = vcmp.gt.f32.partialorder %v6039, 0.0
        %vm6044 = vcmp.gt.f32.partialorder %v6040, 0.0
        %vm6045 = vcmp.gt.f32.partialorder %v6041, 0.0
        %v6046 = vmul.f32 %v6038, 0.3
        %v6047 = vmul.f32 %v6039, 0.3
        %v6048 = vmul.f32 %v6040, 0.3
        %v6049 = vmul.f32 %v6041, 0.3
        %v6050 = vsel %vm6042, %v6038, %v6046
        %v6051 = vsel %vm6043, %v6039, %v6047
        %v6052 = vsel %vm6044, %v6040, %v6048
        %v6053 = vsel %vm6045, %v6041, %v6049
        %v6054 = vadd.f32 %v6050, %v6052
        %v6055 = vrot.slane %v6054, 4
        %v6056 = vadd.f32 %v6054, %v6055
        %v6057 = vrot.slane %v6056, 2
        %v6058 = vadd.f32 %v6056, %v6057
        %v6059 = vrot.slane %v6058, 1
        %v6060 = vadd.f32 %v6058, %v6059
        %v6061 = vsel %vm4530, %v6051, 0.0
        %v6062 = vsel %vm4530, %v6053, 0.0
        %v6063 = vadd.f32 %v6061, %v6062
        %v6064 = vrot.slane %v6063, 4
        %v6065 = vadd.f32 %v6063, %v6064
        %v6066 = vrot.slane %v6065, 2
        %v6067 = vadd.f32 %v6065, %v6066
        %v6068 = vrot.slane %v6067, 1
        %v6069 = vadd.f32 %v6067, %v6068
        %v6070 = vrcp.pop 16.0
        %v6071 = vmul.f32 %v6060, %v6070
        %v6072 = vmul.f32 %v6069, %v6070
        %v6073 = vld [vmem:[%s47] sm:$0xf]
        %v6074 = vld [vmem:[%s47 + $0x4] sm:$0xf]
        %v6075 = vld [vmem:[%s47 + $0x8] sm:$0xf]
        %v6076 = vld [vmem:[%s47 + $0xc] sm:$0xf]
        %v6077 = vld [vmem:[%s47 + $0x10] sm:$0xf]
        %v6078 = vld [vmem:[%s47 + $0x14] sm:$0xf]
        %v6079 = vld [vmem:[%s47 + $0x18] sm:$0xf]
        %v6080 = vld [vmem:[%s47 + $0x1c] sm:$0xf]
        %v6081 = vld [vmem:[%s47 + $0x20] sm:$0xf]
        %v6082 = vld [vmem:[%s47 + $0x24] sm:$0xf]
        %v6083 = vld [vmem:[%s47 + $0x28] sm:$0xf]
        %v6084 = vld [vmem:[%s47 + $0x2c] sm:$0xf]
        %v6085 = vld [vmem:[%s47 + $0x30] sm:$0xf]
        %v6086 = vld [vmem:[%s47 + $0x34] sm:$0xf]
        %v6087 = vld [vmem:[%s47 + $0x38] sm:$0xf]
        %v6088 = vld [vmem:[%s47 + $0x3c] sm:$0xf]
        %v6089 = vld [vmem:[%s47 + $0x40] sm:$0xf]
        %v6090 = vld [vmem:[%s47 + $0x44] sm:$0xf]
        %v6091 = vld [vmem:[%s47 + $0x48] sm:$0xf]
        %v6092 = vld [vmem:[%s47 + $0x4c] sm:$0xf]
        %v6093 = vld [vmem:[%s47 + $0x50] sm:$0xf]
        %v6094 = vld [vmem:[%s47 + $0x54] sm:$0xf]
        %v6095 = vld [vmem:[%s47 + $0x58] sm:$0xf]
        %v6096 = vld [vmem:[%s47 + $0x5c] sm:$0xf]
        %v6097 = vpack.c.bf16 %v6071, %v6071
        %v6098 = vpack.c.bf16 %v6072, %v6072
        %v6099 = vld [vmem:[#allocation5] sm:$0x1]
        %v6124 = vunpack.c.l.b16 %v6073
        %v6125 = vunpack.c.l.b16 %v6074
        %v6126 = vunpack.c.l.b16 %v6075
        %v6127 = vunpack.c.l.b16 %v6076
        %v6128 = vunpack.c.l.b16 %v6077
        %v6129 = vunpack.c.l.b16 %v6078
        %v6130 = vunpack.c.l.b16 %v6079
        %v6131 = vunpack.c.l.b16 %v6080
        %v6132 = vunpack.c.l.b16 %v6081
        %v6133 = vunpack.c.l.b16 %v6082
        %v6134 = vunpack.c.l.b16 %v6083
        %v6135 = vunpack.c.l.b16 %v6084
        %v6136 = vunpack.c.l.b16 %v6085
        %v6137 = vunpack.c.l.b16 %v6086
        %v6138 = vunpack.c.l.b16 %v6087
        %v6139 = vunpack.c.l.b16 %v6088
        %v6140 = vunpack.c.l.b16 %v6089
        %v6141 = vunpack.c.l.b16 %v6090
        %v6142 = vunpack.c.l.b16 %v6091
        %v6143 = vunpack.c.l.b16 %v6092
        %v6144 = vunpack.c.l.b16 %v6093
        %v6145 = vunpack.c.l.b16 %v6094
        %v6146 = vunpack.c.l.b16 %v6095
        %v6147 = vunpack.c.l.b16 %v6096
        %v6148 = vpack.c.b16 %v6125, %v6124
        %v6149 = vpack.c.b16 %v6127, %v6126
        %v6150 = vpack.c.b16 %v6129, %v6128
        %v6151 = vpack.c.b16 %v6131, %v6130
        %v6152 = vpack.c.b16 %v6133, %v6132
        %v6153 = vpack.c.b16 %v6135, %v6134
        %v6154 = vpack.c.b16 %v6137, %v6136
        %v6155 = vpack.c.b16 %v6139, %v6138
        %v6156 = vpack.c.b16 %v6141, %v6140
        %v6157 = vpack.c.b16 %v6143, %v6142
        %v6158 = vpack.c.b16 %v6145, %v6144
        %v6159 = vpack.c.b16 %v6147, %v6146
        %v6173 = vsel %vm4530, %v6098, 0
        %6175 = vmatprep.subr.bf16.mxu0 0
        %6176 = vmatpush1.bf16.msra.mxu0 %v6148
        %6177 = vmatprep.subr.bf16.mxu0 0
        %6178 = vmatpush1.bf16.msra.mxu0 %v6149
        %6179 = vmatprep.subr.bf16.mxu0 0
        %6180 = vmatpush1.bf16.msra.mxu0 %v6150
        %6181 = vmatprep.subr.bf16.mxu0 0
        %6182 = vmatpush1.bf16.msra.mxu0 %v6151
        %6183 = vmatprep.subr.bf16.mxu0 0
        %6184 = vmatpush1.bf16.msra.mxu0 %v6152
        %6185 = vmatprep.subr.bf16.mxu0 0
        %6186 = vmatpush1.bf16.msra.mxu0 %v6153
        %6187 = vmatprep.subr.bf16.mxu0 0
        %6188 = vmatpush1.bf16.msra.mxu0 %v6154
        %6189 = vmatprep.subr.bf16.mxu0 0
        %6190 = vmatpush1.bf16.msra.mxu0 %v6155
        %6191 = vmatprep.subr.bf16.mxu0 0
        %6192 = vmatpush1.bf16.msra.mxu0 %v6156
        %6193 = vmatprep.subr.bf16.mxu0 0
        %6194 = vmatpush1.bf16.msra.mxu0 %v6157
        %6195 = vmatprep.subr.bf16.mxu0 0
        %6196 = vmatpush1.bf16.msra.mxu0 %v6158
        %6197 = vmatprep.subr.bf16.mxu0 0
        %6198 = vmatpush1.bf16.msra.mxu0 %v6159
        %6199 = vmatprep.subr.bf16.mxu0 0
        %6200 = vmatpush1.bf16.msra.mxu0 0
        %6201 = vmatprep.subr.bf16.mxu0 0
        %6202 = vmatpush1.bf16.msra.mxu0 0
        %6203 = vmatprep.subr.bf16.mxu0 0
        %6204 = vmatpush1.bf16.msra.mxu0 0
        %6205 = vmatprep.subr.bf16.mxu0 0
        %6206 = vmatpush1.bf16.msra.mxu0 0
        %6207 = vmatprep.mubr.bf16.mxu0 %v6173
        %6208 = vmatmul.mubr.bf16.gmra.mrb[0].mxu0 %v6097
        %v6209 = vpop.f32.mrb[0].mxu0
        %v6210 = vadd.f32 %v6099, %v6209
        %v6211 = vpop.f32.mrb[0].mxu0
        %v6212 = vpop.f32.mrb[0].mxu0
        %v6213 = vpop.f32.mrb[0].mxu0
        %6214 = vdwg.mxu0
        %vm6215 = vcmp.gt.f32.partialorder %v6210, 0.0
        %v6216 = vmul.f32 %v6210, 0.3
        %v6217 = vsel %vm6215, %v6210, %v6216
        %v6218 = vld [vmem:[%s51] sm:$0xff]
        %v6219 = vld [vmem:[%s51 + $0x8] sm:$0xff]
        %v6220 = vld [vmem:[%s51 + $0x10] sm:$0xff]
        %v6221 = vld [vmem:[%s51 + $0x18] sm:$0xff]
        %v6222 = vld [vmem:[%s51 + $0x20] sm:$0xff]
        %v6223 = vld [vmem:[%s51 + $0x28] sm:$0xff]
        %v6224 = vpack.c.bf16 %v6217, %v6217
        %v6225 = vld [vmem:[%s53] sm:$0x3]
        %v6232 = vunpack.c.l.b16 %v6218
        %v6233 = vunpack.c.h.b16 %v6218
        %v6234 = vunpack.c.l.b16 %v6219
        %v6235 = vunpack.c.h.b16 %v6219
        %v6236 = vunpack.c.l.b16 %v6220
        %v6237 = vunpack.c.h.b16 %v6220
        %v6238 = vunpack.c.l.b16 %v6221
        %v6239 = vunpack.c.h.b16 %v6221
        %v6240 = vunpack.c.l.b16 %v6222
        %v6241 = vunpack.c.h.b16 %v6222
        %v6242 = vunpack.c.l.b16 %v6223
        %v6243 = vunpack.c.h.b16 %v6223
        %v6244 = vpack.c.b16 %v6234, %v6232
        %v6245 = vpack.c.b16 %v6235, %v6233
        %v6246 = vpack.c.b16 %v6238, %v6236
        %v6247 = vpack.c.b16 %v6239, %v6237
        %v6248 = vpack.c.b16 %v6242, %v6240
        %v6249 = vpack.c.b16 %v6243, %v6241
        %v6257 = vlaneseq
        %v6258 = vshrl.u32 %v6257, 7
        %v6259 = vsub.s32 0, %v6258
        %v6260 = vrot.slane %v6225, %v6259
        %v6261 = vlaneseq
        %v6262 = vshrl.u32 %v6261, 7
        %v6263 = vsub.s32 1, %v6262
        %v6264 = vrot.slane %v6225, %v6263
        %v6268 = vsel %vm4749, %v6224, 0
        %6270 = vmatprep.subr.bf16.mxu0 %v6245
        %6271 = vmatpush1.bf16.msra.mxu0 %v6244
        %6272 = vmatprep.subr.bf16.mxu0 %v6247
        %6273 = vmatpush1.bf16.msra.mxu0 %v6246
        %6274 = vmatprep.subr.bf16.mxu0 %v6249
        %6275 = vmatpush1.bf16.msra.mxu0 %v6248
        %6276 = vmatprep.subr.bf16.mxu0 0
        %6277 = vmatpush1.bf16.msra.mxu0 0
        %6278 = vmatprep.subr.bf16.mxu0 0
        %6279 = vmatpush1.bf16.msra.mxu0 0
        %6280 = vmatprep.subr.bf16.mxu0 0
        %6281 = vmatpush1.bf16.msra.mxu0 0
        %6282 = vmatprep.subr.bf16.mxu0 0
        %6283 = vmatpush1.bf16.msra.mxu0 0
        %6284 = vmatprep.subr.bf16.mxu0 0
        %6285 = vmatpush1.bf16.msra.mxu0 0
        %6286 = vmatprep.subr.bf16.mxu0 0
        %6287 = vmatpush1.bf16.msra.mxu0 0
        %6288 = vmatprep.subr.bf16.mxu0 0
        %6289 = vmatpush1.bf16.msra.mxu0 0
        %6290 = vmatprep.subr.bf16.mxu0 0
        %6291 = vmatpush1.bf16.msra.mxu0 0
        %6292 = vmatprep.subr.bf16.mxu0 0
        %6293 = vmatpush1.bf16.msra.mxu0 0
        %6294 = vmatprep.subr.bf16.mxu0 0
        %6295 = vmatpush1.bf16.msra.mxu0 0
        %6296 = vmatprep.subr.bf16.mxu0 0
        %6297 = vmatpush1.bf16.msra.mxu0 0
        %6298 = vmatprep.subr.bf16.mxu0 0
        %6299 = vmatpush1.bf16.msra.mxu0 0
        %6300 = vmatprep.subr.bf16.mxu0 0
        %6301 = vmatpush1.bf16.msra.mxu0 0
        %6302 = vmatprep.mubr.bf16.mxu0 0
        %6303 = vmatmul.mubr.bf16.gmra.mrb[0].mxu0 %v6268
        %v6304 = vpop.f32.mrb[0].mxu0
        %v6305 = vadd.f32 %v6260, %v6304
        %v6306 = vpop.f32.mrb[0].mxu0
        %v6307 = vadd.f32 %v6264, %v6306
        %v6308 = vpop.f32.mrb[0].mxu0
        %v6309 = vpop.f32.mrb[0].mxu0
        %6310 = vdwg.mxu0
        %v6311 = vxor.u32 %v6305, 2147483648
        %v6312 = vxor.u32 %v6307, 2147483648
        %v6313 = vmul.f32 %v6311, 1.442695
        %v6314 = vpow.pop %v6313
        %v6315 = vmul.f32 %v6312, 1.442695
        %v6316 = vpow.pop %v6315
        %v6317 = vadd.f32 %v6314, 1.0
        %v6318 = vadd.f32 %v6316, 1.0
        %v6319 = vrcp.pop %v6317
        %v6320 = vmul.f32 1.0, %v6319
        %v6321 = vrcp.pop %v6318
        %v6322 = vmul.f32 1.0, %v6321
        %v6323 = vlaneseq
        %v6324 = vshrl.u32 %v6323, 7
        %v6325 = vsub.s32 0, %v6324
        %v6326 = vrot.slane %v6320, %v6325
        %v6327 = vlaneseq
        %v6328 = vshrl.u32 %v6327, 7
        %v6329 = vsub.s32 0, %v6328
        %v6330 = vrot.slane %v6322, %v6329
        %v6331 = vmul.f32 %v6050, %v6326
        %v6332 = vmul.f32 %v6051, %v6330
        %v6333 = vmul.f32 %v6052, %v6326
        %v6334 = vmul.f32 %v6053, %v6330
        %v6335 = vld [vmem:[%s55] sm:$0xf]
        %v6336 = vld [vmem:[%s55 + $0x4] sm:$0xf]
        %v6337 = vld [vmem:[%s55 + $0x8] sm:$0xf]
        %v6338 = vld [vmem:[%s55 + $0xc] sm:$0xf]
        %v6339 = vld [vmem:[%s55 + $0x10] sm:$0xf]
        %v6340 = vld [vmem:[%s55 + $0x14] sm:$0xf]
        %v6341 = vld [vmem:[%s55 + $0x18] sm:$0xf]
        %v6342 = vld [vmem:[%s55 + $0x1c] sm:$0xf]
        %v6343 = vld [vmem:[%s55 + $0x20] sm:$0xf]
        %v6344 = vld [vmem:[%s55 + $0x24] sm:$0xf]
        %v6345 = vld [vmem:[%s55 + $0x28] sm:$0xf]
        %v6346 = vld [vmem:[%s55 + $0x2c] sm:$0xf]
        %v6347 = vld [vmem:[%s55 + $0x30] sm:$0xf]
        %v6348 = vld [vmem:[%s55 + $0x34] sm:$0xf]
        %v6349 = vld [vmem:[%s55 + $0x38] sm:$0xf]
        %v6350 = vld [vmem:[%s55 + $0x3c] sm:$0xf]
        %v6351 = vld [vmem:[%s55 + $0x40] sm:$0xf]
        %v6352 = vld [vmem:[%s55 + $0x44] sm:$0xf]
        %v6353 = vld [vmem:[%s55 + $0x48] sm:$0xf]
        %v6354 = vld [vmem:[%s55 + $0x4c] sm:$0xf]
        %v6355 = vld [vmem:[%s55 + $0x50] sm:$0xf]
        %v6356 = vld [vmem:[%s55 + $0x54] sm:$0xf]
        %v6357 = vld [vmem:[%s55 + $0x58] sm:$0xf]
        %v6358 = vld [vmem:[%s55 + $0x5c] sm:$0xf]
        %v6359 = vpack.c.bf16 %v6333, %v6331
        %v6360 = vpack.c.bf16 %v6334, %v6332
        %v6385 = vunpack.c.l.b16 %v6335
        %v6386 = vunpack.c.l.b16 %v6336
        %v6387 = vunpack.c.l.b16 %v6337
        %v6388 = vunpack.c.l.b16 %v6338
        %v6389 = vunpack.c.l.b16 %v6339
        %v6390 = vunpack.c.l.b16 %v6340
        %v6391 = vunpack.c.l.b16 %v6341
        %v6392 = vunpack.c.l.b16 %v6342
        %v6393 = vunpack.c.l.b16 %v6343
        %v6394 = vunpack.c.l.b16 %v6344
        %v6395 = vunpack.c.l.b16 %v6345
        %v6396 = vunpack.c.l.b16 %v6346
        %v6397 = vunpack.c.l.b16 %v6347
        %v6398 = vunpack.c.l.b16 %v6348
        %v6399 = vunpack.c.l.b16 %v6349
        %v6400 = vunpack.c.l.b16 %v6350
        %v6401 = vunpack.c.l.b16 %v6351
        %v6402 = vunpack.c.l.b16 %v6352
        %v6403 = vunpack.c.l.b16 %v6353
        %v6404 = vunpack.c.l.b16 %v6354
        %v6405 = vunpack.c.l.b16 %v6355
        %v6406 = vunpack.c.l.b16 %v6356
        %v6407 = vunpack.c.l.b16 %v6357
        %v6408 = vunpack.c.l.b16 %v6358
        %v6409 = vpack.c.b16 %v6386, %v6385
        %v6410 = vpack.c.b16 %v6388, %v6387
        %v6411 = vpack.c.b16 %v6390, %v6389
        %v6412 = vpack.c.b16 %v6392, %v6391
        %v6413 = vpack.c.b16 %v6394, %v6393
        %v6414 = vpack.c.b16 %v6396, %v6395
        %v6415 = vpack.c.b16 %v6398, %v6397
        %v6416 = vpack.c.b16 %v6400, %v6399
        %v6417 = vpack.c.b16 %v6402, %v6401
        %v6418 = vpack.c.b16 %v6404, %v6403
        %v6419 = vpack.c.b16 %v6406, %v6405
        %v6420 = vpack.c.b16 %v6408, %v6407
        %v6434 = vsel %vm4530, %v6360, 0
        %6436 = vmatprep.subr.bf16.mxu0 0
        %6437 = vmatpush1.bf16.msra.mxu0 %v6409
        %6438 = vmatprep.subr.bf16.mxu0 0
        %6439 = vmatpush1.bf16.msra.mxu0 %v6410
        %6440 = vmatprep.subr.bf16.mxu0 0
        %6441 = vmatpush1.bf16.msra.mxu0 %v6411
        %6442 = vmatprep.subr.bf16.mxu0 0
        %6443 = vmatpush1.bf16.msra.mxu0 %v6412
        %6444 = vmatprep.subr.bf16.mxu0 0
        %6445 = vmatpush1.bf16.msra.mxu0 %v6413
        %6446 = vmatprep.subr.bf16.mxu0 0
        %6447 = vmatpush1.bf16.msra.mxu0 %v6414
        %6448 = vmatprep.subr.bf16.mxu0 0
        %6449 = vmatpush1.bf16.msra.mxu0 %v6415
        %6450 = vmatprep.subr.bf16.mxu0 0
        %6451 = vmatpush1.bf16.msra.mxu0 %v6416
        %6452 = vmatprep.subr.bf16.mxu0 0
        %6453 = vmatpush1.bf16.msra.mxu0 %v6417
        %6454 = vmatprep.subr.bf16.mxu0 0
        %6455 = vmatpush1.bf16.msra.mxu0 %v6418
        %6456 = vmatprep.subr.bf16.mxu0 0
        %6457 = vmatpush1.bf16.msra.mxu0 %v6419
        %6458 = vmatprep.subr.bf16.mxu0 0
        %6459 = vmatpush1.bf16.msra.mxu0 %v6420
        %6460 = vmatprep.subr.bf16.mxu0 0
        %6461 = vmatpush1.bf16.msra.mxu0 0
        %6462 = vmatprep.subr.bf16.mxu0 0
        %6463 = vmatpush1.bf16.msra.mxu0 0
        %6464 = vmatprep.subr.bf16.mxu0 0
        %6465 = vmatpush1.bf16.msra.mxu0 0
        %6466 = vmatprep.subr.bf16.mxu0 0
        %6467 = vmatpush1.bf16.msra.mxu0 0
        %6468 = vmatprep.mubr.bf16.mxu0 %v6434
        %6469 = vmatmul.mubr.bf16.gmra.mrb[0].mxu0 %v6359
        %v6470 = vpop.f32.mrb[0].mxu0
        %v6471 = vadd.f32 0.0, %v6470
        %v6472 = vpop.f32.mrb[0].mxu0
        %v6473 = vpop.f32.mrb[0].mxu0
        %v6474 = vadd.f32 0.0, %v6473
        %v6475 = vpop.f32.mrb[0].mxu0
        %6476 = vdwg.mxu0
        %v6477 = vld [vmem:[#allocation7] sm:$0x1]
        %v6479 = vlaneseq
        %v6480 = vshrl.u32 %v6479, 7
        %v6481 = vsub.s32 0, %v6480
        %v6482 = vrot.slane %v6477, %v6481
        %v6484 = vmul.f32 %v6471, %v6482
        %v6485 = vmul.f32 %v6474, %v6482
        %v6486 = vld [vmem:[#allocation8] sm:$0x1]
        %v6488 = vlaneseq
        %v6489 = vshrl.u32 %v6488, 7
        %v6490 = vsub.s32 0, %v6489
        %v6491 = vrot.slane %v6486, %v6490
        %v6493 = vadd.f32 %v6484, %v6491
        %v6494 = vadd.f32 %v6485, %v6491
        %v6495 = vld [vmem:[%s61] sm:$0xff]
        %v6496 = vld [vmem:[%s61 + $0x8] sm:$0xf]
        %v6497 = vld [vmem:[%s61 + $0xc] sm:$0xff]
        %v6498 = vld [vmem:[%s61 + $0x14] sm:$0xf]
        %v6499 = vld [vmem:[%s61 + $0x18] sm:$0xff]
        %v6500 = vld [vmem:[%s61 + $0x20] sm:$0xf]
        %v6501 = vld [vmem:[%s61 + $0x24] sm:$0xff]
        %v6502 = vld [vmem:[%s61 + $0x2c] sm:$0xf]
        %v6503 = vld [vmem:[%s61 + $0x30] sm:$0xff]
        %v6504 = vld [vmem:[%s61 + $0x38] sm:$0xf]
        %v6505 = vld [vmem:[%s61 + $0x3c] sm:$0xff]
        %v6506 = vld [vmem:[%s61 + $0x44] sm:$0xf]
        %v6507 = vld [vmem:[%s61 + $0x48] sm:$0xff]
        %v6508 = vld [vmem:[%s61 + $0x50] sm:$0xf]
        %v6509 = vld [vmem:[%s61 + $0x54] sm:$0xff]
        %v6510 = vld [vmem:[%s61 + $0x5c] sm:$0xf]
        %v6511 = vpack.c.bf16 %v6494, %v6493
        %v6528 = vunpack.c.l.b16 %v6495
        %v6529 = vunpack.c.h.b16 %v6495
        %v6530 = vunpack.c.l.b16 %v6496
        %v6531 = vunpack.c.l.b16 %v6497
        %v6532 = vunpack.c.h.b16 %v6497
        %v6533 = vunpack.c.l.b16 %v6498
        %v6534 = vunpack.c.l.b16 %v6499
        %v6535 = vunpack.c.h.b16 %v6499
        %v6536 = vunpack.c.l.b16 %v6500
        %v6537 = vunpack.c.l.b16 %v6501
        %v6538 = vunpack.c.h.b16 %v6501
        %v6539 = vunpack.c.l.b16 %v6502
        %v6540 = vunpack.c.l.b16 %v6503
        %v6541 = vunpack.c.h.b16 %v6503
        %v6542 = vunpack.c.l.b16 %v6504
        %v6543 = vunpack.c.l.b16 %v6505
        %v6544 = vunpack.c.h.b16 %v6505
        %v6545 = vunpack.c.l.b16 %v6506
        %v6546 = vunpack.c.l.b16 %v6507
        %v6547 = vunpack.c.h.b16 %v6507
        %v6548 = vunpack.c.l.b16 %v6508
        %v6549 = vunpack.c.l.b16 %v6509
        %v6550 = vunpack.c.h.b16 %v6509
        %v6551 = vunpack.c.l.b16 %v6510
        %v6552 = vpack.c.b16 %v6531, %v6528
        %v6553 = vpack.c.b16 %v6532, %v6529
        %v6554 = vpack.c.b16 %v6533, %v6530
        %v6555 = vpack.c.b16 %v6537, %v6534
        %v6556 = vpack.c.b16 %v6538, %v6535
        %v6557 = vpack.c.b16 %v6539, %v6536
        %v6558 = vpack.c.b16 %v6543, %v6540
        %v6559 = vpack.c.b16 %v6544, %v6541
        %v6560 = vpack.c.b16 %v6545, %v6542
        %v6561 = vpack.c.b16 %v6549, %v6546
        %v6562 = vpack.c.b16 %v6550, %v6547
        %v6563 = vpack.c.b16 %v6551, %v6548
        %v6577 = vsel %vm4530, %v6511, 0
        %6579 = vmatprep.subr.bf16.mxu0 %v6553
        %6580 = vmatpush1.bf16.msra.mxu0 %v6552
        %6581 = vmatprep.subr.bf16.mxu0 %v6556
        %6582 = vmatpush1.bf16.msra.mxu0 %v6555
        %6583 = vmatprep.subr.bf16.mxu0 %v6559
        %6584 = vmatpush1.bf16.msra.mxu0 %v6558
        %6585 = vmatprep.subr.bf16.mxu0 %v6562
        %6586 = vmatpush1.bf16.msra.mxu0 %v6561
        %6587 = vmatprep.subr.bf16.mxu0 0
        %6588 = vmatpush1.bf16.msra.mxu0 0
        %6589 = vmatprep.subr.bf16.mxu0 0
        %6590 = vmatpush1.bf16.msra.mxu0 0
        %6591 = vmatprep.subr.bf16.mxu0 0
        %6592 = vmatpush1.bf16.msra.mxu0 0
        %6593 = vmatprep.subr.bf16.mxu0 0
        %6594 = vmatpush1.bf16.msra.mxu0 0
        %6595 = vmatprep.subr.bf16.mxu0 0
        %6596 = vmatpush1.bf16.msra.mxu0 0
        %6597 = vmatprep.subr.bf16.mxu0 0
        %6598 = vmatpush1.bf16.msra.mxu0 0
        %6599 = vmatprep.subr.bf16.mxu0 0
        %6600 = vmatpush1.bf16.msra.mxu0 0
        %6601 = vmatprep.subr.bf16.mxu0 0
        %6602 = vmatpush1.bf16.msra.mxu0 0
        %6603 = vmatprep.subr.bf16.mxu0 0
        %6604 = vmatpush1.bf16.msra.mxu0 0
        %6605 = vmatprep.subr.bf16.mxu0 0
        %6606 = vmatpush1.bf16.msra.mxu0 0
        %6607 = vmatprep.subr.bf16.mxu0 0
        %6608 = vmatpush1.bf16.msra.mxu0 0
        %6609 = vmatprep.subr.bf16.mxu0 0
        %6610 = vmatpush1.bf16.msra.mxu0 0
        %6611 = vmatprep.mubr.bf16.mxu0 0
        %6612 = vmatmul.mubr.bf16.gmra.mrb[0].mxu0 %v6577
        %v6613 = vpop.f32.mrb[0].mxu0
        %v6614 = vadd.f32 0.0, %v6613
        %v6615 = vpop.f32.mrb[0].mxu0
        %v6616 = vadd.f32 0.0, %v6615
        %v6617 = vpop.f32.mrb[0].mxu0
        %v6618 = vadd.f32 0.0, %v6617
        %v6619 = vpop.f32.mrb[0].mxu0
        %v6620 = vadd.f32 0.0, %v6619
        %6621 = vdwg.mxu0
        %6622 = vmatprep.subr.bf16.mxu0 0
        %6623 = vmatpush1.bf16.msra.mxu0 %v6554
        %6624 = vmatprep.subr.bf16.mxu0 0
        %6625 = vmatpush1.bf16.msra.mxu0 %v6557
        %6626 = vmatprep.subr.bf16.mxu0 0
        %6627 = vmatpush1.bf16.msra.mxu0 %v6560
        %6628 = vmatprep.subr.bf16.mxu0 0
        %6629 = vmatpush1.bf16.msra.mxu0 %v6563
        %6630 = vmatprep.subr.bf16.mxu0 0
        %6631 = vmatpush1.bf16.msra.mxu0 0
        %6632 = vmatprep.subr.bf16.mxu0 0
        %6633 = vmatpush1.bf16.msra.mxu0 0
        %6634 = vmatprep.subr.bf16.mxu0 0
        %6635 = vmatpush1.bf16.msra.mxu0 0
        %6636 = vmatprep.subr.bf16.mxu0 0
        %6637 = vmatpush1.bf16.msra.mxu0 0
        %6638 = vmatprep.subr.bf16.mxu0 0
        %6639 = vmatpush1.bf16.msra.mxu0 0
        %6640 = vmatprep.subr.bf16.mxu0 0
        %6641 = vmatpush1.bf16.msra.mxu0 0
        %6642 = vmatprep.subr.bf16.mxu0 0
        %6643 = vmatpush1.bf16.msra.mxu0 0
        %6644 = vmatprep.subr.bf16.mxu0 0
        %6645 = vmatpush1.bf16.msra.mxu0 0
        %6646 = vmatprep.subr.bf16.mxu0 0
        %6647 = vmatpush1.bf16.msra.mxu0 0
        %6648 = vmatprep.subr.bf16.mxu0 0
        %6649 = vmatpush1.bf16.msra.mxu0 0
        %6650 = vmatprep.subr.bf16.mxu0 0
        %6651 = vmatpush1.bf16.msra.mxu0 0
        %6652 = vmatprep.subr.bf16.mxu0 0
        %6653 = vmatpush1.bf16.msra.mxu0 0
        %6654 = vmatprep.mubr.bf16.mxu0 0
        %6655 = vmatmul.mubr.bf16.gmra.mrb[0].mxu0 %v6577
        %v6656 = vpop.f32.mrb[0].mxu0
        %v6657 = vadd.f32 0.0, %v6656
        %v6658 = vpop.f32.mrb[0].mxu0
        %v6659 = vpop.f32.mrb[0].mxu0
        %v6660 = vadd.f32 0.0, %v6659
        %v6661 = vpop.f32.mrb[0].mxu0
        %6662 = vdwg.mxu0
        %v6663 = vld [vmem:[%s63] sm:$0x7]
        %v6665 = vlaneseq
        %v6666 = vshrl.u32 %v6665, 7
        %v6667 = vsub.s32 0, %v6666
        %v6668 = vrot.slane %v6663, %v6667
        %v6669 = vlaneseq
        %v6670 = vshrl.u32 %v6669, 7
        %v6671 = vsub.s32 1, %v6670
        %v6672 = vrot.slane %v6663, %v6671
        %v6673 = vlaneseq
        %v6674 = vshrl.u32 %v6673, 7
        %v6675 = vsub.s32 2, %v6674
        %v6676 = vrot.slane %v6663, %v6675
        %v6680 = vmul.f32 %v6614, %v6668
        %v6681 = vmul.f32 %v6616, %v6672
        %v6682 = vmul.f32 %v6657, %v6676
        %v6683 = vmul.f32 %v6618, %v6668
        %v6684 = vmul.f32 %v6620, %v6672
        %v6685 = vmul.f32 %v6660, %v6676
        %v6686 = vld [vmem:[%s65] sm:$0x7]
        %v6688 = vlaneseq
        %v6689 = vshrl.u32 %v6688, 7
        %v6690 = vsub.s32 0, %v6689
        %v6691 = vrot.slane %v6686, %v6690
        %v6692 = vlaneseq
        %v6693 = vshrl.u32 %v6692, 7
        %v6694 = vsub.s32 1, %v6693
        %v6695 = vrot.slane %v6686, %v6694
        %v6696 = vlaneseq
        %v6697 = vshrl.u32 %v6696, 7
        %v6698 = vsub.s32 2, %v6697
        %v6699 = vrot.slane %v6686, %v6698
        %v6703 = vadd.f32 %v6680, %v6691
        %v6704 = vadd.f32 %v6681, %v6695
        %v6705 = vadd.f32 %v6682, %v6699
        %v6706 = vadd.f32 %v6683, %v6691
        %v6707 = vadd.f32 %v6684, %v6695
        %v6708 = vadd.f32 %v6685, %v6699
        %vm6709 = vcmp.gt.f32.partialorder %v6703, 0.0
        %vm6710 = vcmp.gt.f32.partialorder %v6704, 0.0
        %vm6711 = vcmp.gt.f32.partialorder %v6705, 0.0
        %vm6712 = vcmp.gt.f32.partialorder %v6706, 0.0
        %vm6713 = vcmp.gt.f32.partialorder %v6707, 0.0
        %vm6714 = vcmp.gt.f32.partialorder %v6708, 0.0
        %v6715 = vmul.f32 %v6703, 0.3
        %v6716 = vmul.f32 %v6704, 0.3
        %v6717 = vmul.f32 %v6705, 0.3
        %v6718 = vmul.f32 %v6706, 0.3
        %v6719 = vmul.f32 %v6707, 0.3
        %v6720 = vmul.f32 %v6708, 0.3
        %v6721 = vsel %vm6709, %v6703, %v6715
        %v6722 = vsel %vm6710, %v6704, %v6716
        %v6723 = vsel %vm6711, %v6705, %v6717
        %v6724 = vsel %vm6712, %v6706, %v6718
        %v6725 = vsel %vm6713, %v6707, %v6719
        %v6726 = vsel %vm6714, %v6708, %v6720
        %v6727 = vpack.c.bf16 %v6724, %v6721
        %v6728 = vpack.c.bf16 %v6725, %v6722
        %v6729 = vpack.c.bf16 %v6726, %v6723
        %v6730 = vld [vmem:[%s67] sm:$0x3]
        %vm6731 = vcmask 130048
        %v6733 = vsel %vm6731, %v6730, 0
        %6735 = vmatprep.subr.bf16.mxu0 %v6728
        %6736 = vmatpush1.bf16.msra.mxu0 %v6727
        %6737 = vmatprep.subr.bf16.mxu0 0
        %6738 = vmatpush1.bf16.msra.mxu0 0
        %6739 = vmatprep.subr.bf16.mxu0 0
        %6740 = vmatpush1.bf16.msra.mxu0 0
        %6741 = vmatprep.subr.bf16.mxu0 0
        %6742 = vmatpush1.bf16.msra.mxu0 0
        %6743 = vmatprep.subr.bf16.mxu0 0
        %6744 = vmatpush1.bf16.msra.mxu0 0
        %6745 = vmatprep.subr.bf16.mxu0 0
        %6746 = vmatpush1.bf16.msra.mxu0 0
        %6747 = vmatprep.subr.bf16.mxu0 0
        %6748 = vmatpush1.bf16.msra.mxu0 0
        %6749 = vmatprep.subr.bf16.mxu0 0
        %6750 = vmatpush1.bf16.msra.mxu0 0
        %6751 = vmatprep.subr.bf16.mxu0 0
        %6752 = vmatpush1.bf16.msra.mxu0 0
        %6753 = vmatprep.subr.bf16.mxu0 0
        %6754 = vmatpush1.bf16.msra.mxu0 0
        %6755 = vmatprep.subr.bf16.mxu0 0
        %6756 = vmatpush1.bf16.msra.mxu0 0
        %6757 = vmatprep.subr.bf16.mxu0 0
        %6758 = vmatpush1.bf16.msra.mxu0 0
        %6759 = vmatprep.subr.bf16.mxu0 0
        %6760 = vmatpush1.bf16.msra.mxu0 0
        %6761 = vmatprep.subr.bf16.mxu0 0
        %6762 = vmatpush1.bf16.msra.mxu0 0
        %6763 = vmatprep.subr.bf16.mxu0 0
        %6764 = vmatpush1.bf16.msra.mxu0 0
        %6765 = vmatprep.subr.bf16.mxu0 0
        %6766 = vmatpush1.bf16.msra.mxu0 0
        %6767 = vmatprep.mubr.bf16.mxu0 0
        %6768 = vmatmul.mubr.bf16.gmra.mrb[0].mxu0 %v6733
        %v6769 = vpop.f32.mrb[0].mxu0
        %v6770 = vadd.f32 0.0, %v6769
        %v6771 = vpop.f32.mrb[0].mxu0
        %v6772 = vadd.f32 0.0, %v6771
        %v6773 = vpop.f32.mrb[0].mxu0
        %v6774 = vpop.f32.mrb[0].mxu0
        %6775 = vdwg.mxu0
        %6776 = vmatprep.subr.bf16.mxu0 0
        %6777 = vmatpush1.bf16.msra.mxu0 %v6729
        %6778 = vmatprep.subr.bf16.mxu0 0
        %6779 = vmatpush1.bf16.msra.mxu0 0
        %6780 = vmatprep.subr.bf16.mxu0 0
        %6781 = vmatpush1.bf16.msra.mxu0 0
        %6782 = vmatprep.subr.bf16.mxu0 0
        %6783 = vmatpush1.bf16.msra.mxu0 0
        %6784 = vmatprep.subr.bf16.mxu0 0
        %6785 = vmatpush1.bf16.msra.mxu0 0
        %6786 = vmatprep.subr.bf16.mxu0 0
        %6787 = vmatpush1.bf16.msra.mxu0 0
        %6788 = vmatprep.subr.bf16.mxu0 0
        %6789 = vmatpush1.bf16.msra.mxu0 0
        %6790 = vmatprep.subr.bf16.mxu0 0
        %6791 = vmatpush1.bf16.msra.mxu0 0
        %6792 = vmatprep.subr.bf16.mxu0 0
        %6793 = vmatpush1.bf16.msra.mxu0 0
        %6794 = vmatprep.subr.bf16.mxu0 0
        %6795 = vmatpush1.bf16.msra.mxu0 0
        %6796 = vmatprep.subr.bf16.mxu0 0
        %6797 = vmatpush1.bf16.msra.mxu0 0
        %6798 = vmatprep.subr.bf16.mxu0 0
        %6799 = vmatpush1.bf16.msra.mxu0 0
        %6800 = vmatprep.subr.bf16.mxu0 0
        %6801 = vmatpush1.bf16.msra.mxu0 0
        %6802 = vmatprep.subr.bf16.mxu0 0
        %6803 = vmatpush1.bf16.msra.mxu0 0
        %6804 = vmatprep.subr.bf16.mxu0 0
        %6805 = vmatpush1.bf16.msra.mxu0 0
        %6806 = vmatprep.subr.bf16.mxu0 0
        %6807 = vmatpush1.bf16.msra.mxu0 0
        %6808 = vmatprep.mubr.bf16.mxu0 0
        %6809 = vmatmul.mubr.bf16.gmra.mrb[0].mxu0 %v6733
        %v6810 = vpop.f32.mrb[0].mxu0
        %v6811 = vadd.f32 0.0, %v6810
        %v6812 = vpop.f32.mrb[0].mxu0
        %v6813 = vpop.f32.mrb[0].mxu0
        %v6814 = vpop.f32.mrb[0].mxu0
        %6815 = vdwg.mxu0
        %v6816 = vld [vmem:[%s69] sm:$0x7]
        %v6818 = vlaneseq
        %v6819 = vshrl.u32 %v6818, 7
        %v6820 = vsub.s32 0, %v6819
        %v6821 = vrot.slane %v6816, %v6820
        %v6822 = vlaneseq
        %v6823 = vshrl.u32 %v6822, 7
        %v6824 = vsub.s32 1, %v6823
        %v6825 = vrot.slane %v6816, %v6824
        %v6826 = vlaneseq
        %v6827 = vshrl.u32 %v6826, 7
        %v6828 = vsub.s32 2, %v6827
        %v6829 = vrot.slane %v6816, %v6828
        %v6833 = vmul.f32 %v6770, %v6821
        %v6834 = vmul.f32 %v6772, %v6825
        %v6835 = vmul.f32 %v6811, %v6829
        %s6836 = scalar_lea.vmem %s67, 2
        %v6837 = vld [vmem:[%s6836] sm:$0x3]
        %v6839 = vsel %vm6731, %v6837, 0
        %6841 = vmatprep.subr.bf16.mxu0 %v6728
        %6842 = vmatpush1.bf16.msra.mxu0 %v6727
        %6843 = vmatprep.subr.bf16.mxu0 0
        %6844 = vmatpush1.bf16.msra.mxu0 0
        %6845 = vmatprep.subr.bf16.mxu0 0
        %6846 = vmatpush1.bf16.msra.mxu0 0
        %6847 = vmatprep.subr.bf16.mxu0 0
        %6848 = vmatpush1.bf16.msra.mxu0 0
        %6849 = vmatprep.subr.bf16.mxu0 0
        %6850 = vmatpush1.bf16.msra.mxu0 0
        %6851 = vmatprep.subr.bf16.mxu0 0
        %6852 = vmatpush1.bf16.msra.mxu0 0
        %6853 = vmatprep.subr.bf16.mxu0 0
        %6854 = vmatpush1.bf16.msra.mxu0 0
        %6855 = vmatprep.subr.bf16.mxu0 0
        %6856 = vmatpush1.bf16.msra.mxu0 0
        %6857 = vmatprep.subr.bf16.mxu0 0
        %6858 = vmatpush1.bf16.msra.mxu0 0
        %6859 = vmatprep.subr.bf16.mxu0 0
        %6860 = vmatpush1.bf16.msra.mxu0 0
        %6861 = vmatprep.subr.bf16.mxu0 0
        %6862 = vmatpush1.bf16.msra.mxu0 0
        %6863 = vmatprep.subr.bf16.mxu0 0
        %6864 = vmatpush1.bf16.msra.mxu0 0
        %6865 = vmatprep.subr.bf16.mxu0 0
        %6866 = vmatpush1.bf16.msra.mxu0 0
        %6867 = vmatprep.subr.bf16.mxu0 0
        %6868 = vmatpush1.bf16.msra.mxu0 0
        %6869 = vmatprep.subr.bf16.mxu0 0
        %6870 = vmatpush1.bf16.msra.mxu0 0
        %6871 = vmatprep.subr.bf16.mxu0 0
        %6872 = vmatpush1.bf16.msra.mxu0 0
        %6873 = vmatprep.mubr.bf16.mxu0 0
        %6874 = vmatmul.mubr.bf16.gmra.mrb[0].mxu0 %v6839
        %v6875 = vpop.f32.mrb[0].mxu0
        %v6876 = vadd.f32 0.0, %v6875
        %v6877 = vpop.f32.mrb[0].mxu0
        %v6878 = vadd.f32 0.0, %v6877
        %v6879 = vpop.f32.mrb[0].mxu0
        %v6880 = vpop.f32.mrb[0].mxu0
        %6881 = vdwg.mxu0
        %6882 = vmatprep.subr.bf16.mxu0 0
        %6883 = vmatpush1.bf16.msra.mxu0 %v6729
        %6884 = vmatprep.subr.bf16.mxu0 0
        %6885 = vmatpush1.bf16.msra.mxu0 0
        %6886 = vmatprep.subr.bf16.mxu0 0
        %6887 = vmatpush1.bf16.msra.mxu0 0
        %6888 = vmatprep.subr.bf16.mxu0 0
        %6889 = vmatpush1.bf16.msra.mxu0 0
        %6890 = vmatprep.subr.bf16.mxu0 0
        %6891 = vmatpush1.bf16.msra.mxu0 0
        %6892 = vmatprep.subr.bf16.mxu0 0
        %6893 = vmatpush1.bf16.msra.mxu0 0
        %6894 = vmatprep.subr.bf16.mxu0 0
        %6895 = vmatpush1.bf16.msra.mxu0 0
        %6896 = vmatprep.subr.bf16.mxu0 0
        %6897 = vmatpush1.bf16.msra.mxu0 0
        %6898 = vmatprep.subr.bf16.mxu0 0
        %6899 = vmatpush1.bf16.msra.mxu0 0
        %6900 = vmatprep.subr.bf16.mxu0 0
        %6901 = vmatpush1.bf16.msra.mxu0 0
        %6902 = vmatprep.subr.bf16.mxu0 0
        %6903 = vmatpush1.bf16.msra.mxu0 0
        %6904 = vmatprep.subr.bf16.mxu0 0
        %6905 = vmatpush1.bf16.msra.mxu0 0
        %6906 = vmatprep.subr.bf16.mxu0 0
        %6907 = vmatpush1.bf16.msra.mxu0 0
        %6908 = vmatprep.subr.bf16.mxu0 0
        %6909 = vmatpush1.bf16.msra.mxu0 0
        %6910 = vmatprep.subr.bf16.mxu0 0
        %6911 = vmatpush1.bf16.msra.mxu0 0
        %6912 = vmatprep.subr.bf16.mxu0 0
        %6913 = vmatpush1.bf16.msra.mxu0 0
        %6914 = vmatprep.mubr.bf16.mxu0 0
        %6915 = vmatmul.mubr.bf16.gmra.mrb[0].mxu0 %v6839
        %v6916 = vpop.f32.mrb[0].mxu0
        %v6917 = vadd.f32 0.0, %v6916
        %v6918 = vpop.f32.mrb[0].mxu0
        %v6919 = vpop.f32.mrb[0].mxu0
        %v6920 = vpop.f32.mrb[0].mxu0
        %6921 = vdwg.mxu0
        %s6922 = scalar_lea.vmem %s69, 3
        %v6923 = vld [vmem:[%s6922] sm:$0x7]
        %v6925 = vlaneseq
        %v6926 = vshrl.u32 %v6925, 7
        %v6927 = vsub.s32 0, %v6926
        %v6928 = vrot.slane %v6923, %v6927
        %v6929 = vlaneseq
        %v6930 = vshrl.u32 %v6929, 7
        %v6931 = vsub.s32 1, %v6930
        %v6932 = vrot.slane %v6923, %v6931
        %v6933 = vlaneseq
        %v6934 = vshrl.u32 %v6933, 7
        %v6935 = vsub.s32 2, %v6934
        %v6936 = vrot.slane %v6923, %v6935
        %v6940 = vmul.f32 %v6876, %v6928
        %v6941 = vmul.f32 %v6878, %v6932
        %v6942 = vmul.f32 %v6917, %v6936
        %v6943 = vadd.f32 %v6833, %v6940
        %v6944 = vadd.f32 %v6834, %v6941
        %v6945 = vadd.f32 %v6835, %v6942
        %s6946 = scalar_lea.vmem %s67, 4
        %v6947 = vld [vmem:[%s6946] sm:$0x3]
        %v6949 = vsel %vm6731, %v6947, 0
        %6951 = vmatprep.subr.bf16.mxu0 %v6728
        %6952 = vmatpush1.bf16.msra.mxu0 %v6727
        %6953 = vmatprep.subr.bf16.mxu0 0
        %6954 = vmatpush1.bf16.msra.mxu0 0
        %6955 = vmatprep.subr.bf16.mxu0 0
        %6956 = vmatpush1.bf16.msra.mxu0 0
        %6957 = vmatprep.subr.bf16.mxu0 0
        %6958 = vmatpush1.bf16.msra.mxu0 0
        %6959 = vmatprep.subr.bf16.mxu0 0
        %6960 = vmatpush1.bf16.msra.mxu0 0
        %6961 = vmatprep.subr.bf16.mxu0 0
        %6962 = vmatpush1.bf16.msra.mxu0 0
        %6963 = vmatprep.subr.bf16.mxu0 0
        %6964 = vmatpush1.bf16.msra.mxu0 0
        %6965 = vmatprep.subr.bf16.mxu0 0
        %6966 = vmatpush1.bf16.msra.mxu0 0
        %6967 = vmatprep.subr.bf16.mxu0 0
        %6968 = vmatpush1.bf16.msra.mxu0 0
        %6969 = vmatprep.subr.bf16.mxu0 0
        %6970 = vmatpush1.bf16.msra.mxu0 0
        %6971 = vmatprep.subr.bf16.mxu0 0
        %6972 = vmatpush1.bf16.msra.mxu0 0
        %6973 = vmatprep.subr.bf16.mxu0 0
        %6974 = vmatpush1.bf16.msra.mxu0 0
        %6975 = vmatprep.subr.bf16.mxu0 0
        %6976 = vmatpush1.bf16.msra.mxu0 0
        %6977 = vmatprep.subr.bf16.mxu0 0
        %6978 = vmatpush1.bf16.msra.mxu0 0
        %6979 = vmatprep.subr.bf16.mxu0 0
        %6980 = vmatpush1.bf16.msra.mxu0 0
        %6981 = vmatprep.subr.bf16.mxu0 0
        %6982 = vmatpush1.bf16.msra.mxu0 0
        %6983 = vmatprep.mubr.bf16.mxu0 0
        %6984 = vmatmul.mubr.bf16.gmra.mrb[0].mxu0 %v6949
        %v6985 = vpop.f32.mrb[0].mxu0
        %v6986 = vadd.f32 0.0, %v6985
        %v6987 = vpop.f32.mrb[0].mxu0
        %v6988 = vadd.f32 0.0, %v6987
        %v6989 = vpop.f32.mrb[0].mxu0
        %v6990 = vpop.f32.mrb[0].mxu0
        %6991 = vdwg.mxu0
        %6992 = vmatprep.subr.bf16.mxu0 0
        %6993 = vmatpush1.bf16.msra.mxu0 %v6729
        %6994 = vmatprep.subr.bf16.mxu0 0
        %6995 = vmatpush1.bf16.msra.mxu0 0
        %6996 = vmatprep.subr.bf16.mxu0 0
        %6997 = vmatpush1.bf16.msra.mxu0 0
        %6998 = vmatprep.subr.bf16.mxu0 0
        %6999 = vmatpush1.bf16.msra.mxu0 0
        %7000 = vmatprep.subr.bf16.mxu0 0
        %7001 = vmatpush1.bf16.msra.mxu0 0
        %7002 = vmatprep.subr.bf16.mxu0 0
        %7003 = vmatpush1.bf16.msra.mxu0 0
        %7004 = vmatprep.subr.bf16.mxu0 0
        %7005 = vmatpush1.bf16.msra.mxu0 0
        %7006 = vmatprep.subr.bf16.mxu0 0
        %7007 = vmatpush1.bf16.msra.mxu0 0
        %7008 = vmatprep.subr.bf16.mxu0 0
        %7009 = vmatpush1.bf16.msra.mxu0 0
        %7010 = vmatprep.subr.bf16.mxu0 0
        %7011 = vmatpush1.bf16.msra.mxu0 0
        %7012 = vmatprep.subr.bf16.mxu0 0
        %7013 = vmatpush1.bf16.msra.mxu0 0
        %7014 = vmatprep.subr.bf16.mxu0 0
        %7015 = vmatpush1.bf16.msra.mxu0 0
        %7016 = vmatprep.subr.bf16.mxu0 0
        %7017 = vmatpush1.bf16.msra.mxu0 0
        %7018 = vmatprep.subr.bf16.mxu0 0
        %7019 = vmatpush1.bf16.msra.mxu0 0
        %7020 = vmatprep.subr.bf16.mxu0 0
        %7021 = vmatpush1.bf16.msra.mxu0 0
        %7022 = vmatprep.subr.bf16.mxu0 0
        %7023 = vmatpush1.bf16.msra.mxu0 0
        %7024 = vmatprep.mubr.bf16.mxu0 0
        %7025 = vmatmul.mubr.bf16.gmra.mrb[0].mxu0 %v6949
        %v7026 = vpop.f32.mrb[0].mxu0
        %v7027 = vadd.f32 0.0, %v7026
        %v7028 = vpop.f32.mrb[0].mxu0
        %v7029 = vpop.f32.mrb[0].mxu0
        %v7030 = vpop.f32.mrb[0].mxu0
        %7031 = vdwg.mxu0
        %s7032 = scalar_lea.vmem %s69, 6
        %v7033 = vld [vmem:[%s7032] sm:$0x7]
        %v7035 = vlaneseq
        %v7036 = vshrl.u32 %v7035, 7
        %v7037 = vsub.s32 0, %v7036
        %v7038 = vrot.slane %v7033, %v7037
        %v7039 = vlaneseq
        %v7040 = vshrl.u32 %v7039, 7
        %v7041 = vsub.s32 1, %v7040
        %v7042 = vrot.slane %v7033, %v7041
        %v7043 = vlaneseq
        %v7044 = vshrl.u32 %v7043, 7
        %v7045 = vsub.s32 2, %v7044
        %v7046 = vrot.slane %v7033, %v7045
        %v7050 = vmul.f32 %v6986, %v7038
        %v7051 = vmul.f32 %v6988, %v7042
        %v7052 = vmul.f32 %v7027, %v7046
        %v7053 = vadd.f32 %v6943, %v7050
        %v7054 = vadd.f32 %v6944, %v7051
        %v7055 = vadd.f32 %v6945, %v7052
        %s7056 = scalar_lea.vmem %s67, 6
        %v7057 = vld [vmem:[%s7056] sm:$0x3]
        %v7059 = vsel %vm6731, %v7057, 0
        %7061 = vmatprep.subr.bf16.mxu0 %v6728
        %7062 = vmatpush1.bf16.msra.mxu0 %v6727
        %7063 = vmatprep.subr.bf16.mxu0 0
        %7064 = vmatpush1.bf16.msra.mxu0 0
        %7065 = vmatprep.subr.bf16.mxu0 0
        %7066 = vmatpush1.bf16.msra.mxu0 0
        %7067 = vmatprep.subr.bf16.mxu0 0
        %7068 = vmatpush1.bf16.msra.mxu0 0
        %7069 = vmatprep.subr.bf16.mxu0 0
        %7070 = vmatpush1.bf16.msra.mxu0 0
        %7071 = vmatprep.subr.bf16.mxu0 0
        %7072 = vmatpush1.bf16.msra.mxu0 0
        %7073 = vmatprep.subr.bf16.mxu0 0
        %7074 = vmatpush1.bf16.msra.mxu0 0
        %7075 = vmatprep.subr.bf16.mxu0 0
        %7076 = vmatpush1.bf16.msra.mxu0 0
        %7077 = vmatprep.subr.bf16.mxu0 0
        %7078 = vmatpush1.bf16.msra.mxu0 0
        %7079 = vmatprep.subr.bf16.mxu0 0
        %7080 = vmatpush1.bf16.msra.mxu0 0
        %7081 = vmatprep.subr.bf16.mxu0 0
        %7082 = vmatpush1.bf16.msra.mxu0 0
        %7083 = vmatprep.subr.bf16.mxu0 0
        %7084 = vmatpush1.bf16.msra.mxu0 0
        %7085 = vmatprep.subr.bf16.mxu0 0
        %7086 = vmatpush1.bf16.msra.mxu0 0
        %7087 = vmatprep.subr.bf16.mxu0 0
        %7088 = vmatpush1.bf16.msra.mxu0 0
        %7089 = vmatprep.subr.bf16.mxu0 0
        %7090 = vmatpush1.bf16.msra.mxu0 0
        %7091 = vmatprep.subr.bf16.mxu0 0
        %7092 = vmatpush1.bf16.msra.mxu0 0
        %7093 = vmatprep.mubr.bf16.mxu0 0
        %7094 = vmatmul.mubr.bf16.gmra.mrb[0].mxu0 %v7059
        %v7095 = vpop.f32.mrb[0].mxu0
        %v7096 = vadd.f32 0.0, %v7095
        %v7097 = vpop.f32.mrb[0].mxu0
        %v7098 = vadd.f32 0.0, %v7097
        %v7099 = vpop.f32.mrb[0].mxu0
        %v7100 = vpop.f32.mrb[0].mxu0
        %7101 = vdwg.mxu0
        %7102 = vmatprep.subr.bf16.mxu0 0
        %7103 = vmatpush1.bf16.msra.mxu0 %v6729
        %7104 = vmatprep.subr.bf16.mxu0 0
        %7105 = vmatpush1.bf16.msra.mxu0 0
        %7106 = vmatprep.subr.bf16.mxu0 0
        %7107 = vmatpush1.bf16.msra.mxu0 0
        %7108 = vmatprep.subr.bf16.mxu0 0
        %7109 = vmatpush1.bf16.msra.mxu0 0
        %7110 = vmatprep.subr.bf16.mxu0 0
        %7111 = vmatpush1.bf16.msra.mxu0 0
        %7112 = vmatprep.subr.bf16.mxu0 0
        %7113 = vmatpush1.bf16.msra.mxu0 0
        %7114 = vmatprep.subr.bf16.mxu0 0
        %7115 = vmatpush1.bf16.msra.mxu0 0
        %7116 = vmatprep.subr.bf16.mxu0 0
        %7117 = vmatpush1.bf16.msra.mxu0 0
        %7118 = vmatprep.subr.bf16.mxu0 0
        %7119 = vmatpush1.bf16.msra.mxu0 0
        %7120 = vmatprep.subr.bf16.mxu0 0
        %7121 = vmatpush1.bf16.msra.mxu0 0
        %7122 = vmatprep.subr.bf16.mxu0 0
        %7123 = vmatpush1.bf16.msra.mxu0 0
        %7124 = vmatprep.subr.bf16.mxu0 0
        %7125 = vmatpush1.bf16.msra.mxu0 0
        %7126 = vmatprep.subr.bf16.mxu0 0
        %7127 = vmatpush1.bf16.msra.mxu0 0
        %7128 = vmatprep.subr.bf16.mxu0 0
        %7129 = vmatpush1.bf16.msra.mxu0 0
        %7130 = vmatprep.subr.bf16.mxu0 0
        %7131 = vmatpush1.bf16.msra.mxu0 0
        %7132 = vmatprep.subr.bf16.mxu0 0
        %7133 = vmatpush1.bf16.msra.mxu0 0
        %7134 = vmatprep.mubr.bf16.mxu0 0
        %7135 = vmatmul.mubr.bf16.gmra.mrb[0].mxu0 %v7059
        %v7136 = vpop.f32.mrb[0].mxu0
        %v7137 = vadd.f32 0.0, %v7136
        %v7138 = vpop.f32.mrb[0].mxu0
        %v7139 = vpop.f32.mrb[0].mxu0
        %v7140 = vpop.f32.mrb[0].mxu0
        %7141 = vdwg.mxu0
        %s7142 = scalar_lea.vmem %s69, 9
        %v7143 = vld [vmem:[%s7142] sm:$0x7]
        %v7145 = vlaneseq
        %v7146 = vshrl.u32 %v7145, 7
        %v7147 = vsub.s32 0, %v7146
        %v7148 = vrot.slane %v7143, %v7147
        %v7149 = vlaneseq
        %v7150 = vshrl.u32 %v7149, 7
        %v7151 = vsub.s32 1, %v7150
        %v7152 = vrot.slane %v7143, %v7151
        %v7153 = vlaneseq
        %v7154 = vshrl.u32 %v7153, 7
        %v7155 = vsub.s32 2, %v7154
        %v7156 = vrot.slane %v7143, %v7155
        %v7160 = vmul.f32 %v7096, %v7148
        %v7161 = vmul.f32 %v7098, %v7152
        %v7162 = vmul.f32 %v7137, %v7156
        %v7163 = vadd.f32 %v7053, %v7160
        %v7164 = vadd.f32 %v7054, %v7161
        %v7165 = vadd.f32 %v7055, %v7162
        %s7166 = scalar_lea.vmem %s67, 8
        %v7167 = vld [vmem:[%s7166] sm:$0x3]
        %v7169 = vsel %vm6731, %v7167, 0
        %7171 = vmatprep.subr.bf16.mxu0 %v6728
        %7172 = vmatpush1.bf16.msra.mxu0 %v6727
        %7173 = vmatprep.subr.bf16.mxu0 0
        %7174 = vmatpush1.bf16.msra.mxu0 0
        %7175 = vmatprep.subr.bf16.mxu0 0
        %7176 = vmatpush1.bf16.msra.mxu0 0
        %7177 = vmatprep.subr.bf16.mxu0 0
        %7178 = vmatpush1.bf16.msra.mxu0 0
        %7179 = vmatprep.subr.bf16.mxu0 0
        %7180 = vmatpush1.bf16.msra.mxu0 0
        %7181 = vmatprep.subr.bf16.mxu0 0
        %7182 = vmatpush1.bf16.msra.mxu0 0
        %7183 = vmatprep.subr.bf16.mxu0 0
        %7184 = vmatpush1.bf16.msra.mxu0 0
        %7185 = vmatprep.subr.bf16.mxu0 0
        %7186 = vmatpush1.bf16.msra.mxu0 0
        %7187 = vmatprep.subr.bf16.mxu0 0
        %7188 = vmatpush1.bf16.msra.mxu0 0
        %7189 = vmatprep.subr.bf16.mxu0 0
        %7190 = vmatpush1.bf16.msra.mxu0 0
        %7191 = vmatprep.subr.bf16.mxu0 0
        %7192 = vmatpush1.bf16.msra.mxu0 0
        %7193 = vmatprep.subr.bf16.mxu0 0
        %7194 = vmatpush1.bf16.msra.mxu0 0
        %7195 = vmatprep.subr.bf16.mxu0 0
        %7196 = vmatpush1.bf16.msra.mxu0 0
        %7197 = vmatprep.subr.bf16.mxu0 0
        %7198 = vmatpush1.bf16.msra.mxu0 0
        %7199 = vmatprep.subr.bf16.mxu0 0
        %7200 = vmatpush1.bf16.msra.mxu0 0
        %7201 = vmatprep.subr.bf16.mxu0 0
        %7202 = vmatpush1.bf16.msra.mxu0 0
        %7203 = vmatprep.mubr.bf16.mxu0 0
        %7204 = vmatmul.mubr.bf16.gmra.mrb[0].mxu0 %v7169
        %v7205 = vpop.f32.mrb[0].mxu0
        %v7206 = vadd.f32 0.0, %v7205
        %v7207 = vpop.f32.mrb[0].mxu0
        %v7208 = vadd.f32 0.0, %v7207
        %v7209 = vpop.f32.mrb[0].mxu0
        %v7210 = vpop.f32.mrb[0].mxu0
        %7211 = vdwg.mxu0
        %7212 = vmatprep.subr.bf16.mxu0 0
        %7213 = vmatpush1.bf16.msra.mxu0 %v6729
        %7214 = vmatprep.subr.bf16.mxu0 0
        %7215 = vmatpush1.bf16.msra.mxu0 0
        %7216 = vmatprep.subr.bf16.mxu0 0
        %7217 = vmatpush1.bf16.msra.mxu0 0
        %7218 = vmatprep.subr.bf16.mxu0 0
        %7219 = vmatpush1.bf16.msra.mxu0 0
        %7220 = vmatprep.subr.bf16.mxu0 0
        %7221 = vmatpush1.bf16.msra.mxu0 0
        %7222 = vmatprep.subr.bf16.mxu0 0
        %7223 = vmatpush1.bf16.msra.mxu0 0
        %7224 = vmatprep.subr.bf16.mxu0 0
        %7225 = vmatpush1.bf16.msra.mxu0 0
        %7226 = vmatprep.subr.bf16.mxu0 0
        %7227 = vmatpush1.bf16.msra.mxu0 0
        %7228 = vmatprep.subr.bf16.mxu0 0
        %7229 = vmatpush1.bf16.msra.mxu0 0
        %7230 = vmatprep.subr.bf16.mxu0 0
        %7231 = vmatpush1.bf16.msra.mxu0 0
        %7232 = vmatprep.subr.bf16.mxu0 0
        %7233 = vmatpush1.bf16.msra.mxu0 0
        %7234 = vmatprep.subr.bf16.mxu0 0
        %7235 = vmatpush1.bf16.msra.mxu0 0
        %7236 = vmatprep.subr.bf16.mxu0 0
        %7237 = vmatpush1.bf16.msra.mxu0 0
        %7238 = vmatprep.subr.bf16.mxu0 0
        %7239 = vmatpush1.bf16.msra.mxu0 0
        %7240 = vmatprep.subr.bf16.mxu0 0
        %7241 = vmatpush1.bf16.msra.mxu0 0
        %7242 = vmatprep.subr.bf16.mxu0 0
        %7243 = vmatpush1.bf16.msra.mxu0 0
        %7244 = vmatprep.mubr.bf16.mxu0 0
        %7245 = vmatmul.mubr.bf16.gmra.mrb[0].mxu0 %v7169
        %v7246 = vpop.f32.mrb[0].mxu0
        %v7247 = vadd.f32 0.0, %v7246
        %v7248 = vpop.f32.mrb[0].mxu0
        %v7249 = vpop.f32.mrb[0].mxu0
        %v7250 = vpop.f32.mrb[0].mxu0
        %7251 = vdwg.mxu0
        %s7252 = scalar_lea.vmem %s69, 12
        %v7253 = vld [vmem:[%s7252] sm:$0x7]
        %v7255 = vlaneseq
        %v7256 = vshrl.u32 %v7255, 7
        %v7257 = vsub.s32 0, %v7256
        %v7258 = vrot.slane %v7253, %v7257
        %v7259 = vlaneseq
        %v7260 = vshrl.u32 %v7259, 7
        %v7261 = vsub.s32 1, %v7260
        %v7262 = vrot.slane %v7253, %v7261
        %v7263 = vlaneseq
        %v7264 = vshrl.u32 %v7263, 7
        %v7265 = vsub.s32 2, %v7264
        %v7266 = vrot.slane %v7253, %v7265
        %v7270 = vmul.f32 %v7206, %v7258
        %v7271 = vmul.f32 %v7208, %v7262
        %v7272 = vmul.f32 %v7247, %v7266
        %v7273 = vadd.f32 %v7163, %v7270
        %v7274 = vadd.f32 %v7164, %v7271
        %v7275 = vadd.f32 %v7165, %v7272
        %s7276 = scalar_lea.vmem %s67, 10
        %v7277 = vld [vmem:[%s7276] sm:$0x3]
        %v7279 = vsel %vm6731, %v7277, 0
        %7281 = vmatprep.subr.bf16.mxu0 %v6728
        %7282 = vmatpush1.bf16.msra.mxu0 %v6727
        %7283 = vmatprep.subr.bf16.mxu0 0
        %7284 = vmatpush1.bf16.msra.mxu0 0
        %7285 = vmatprep.subr.bf16.mxu0 0
        %7286 = vmatpush1.bf16.msra.mxu0 0
        %7287 = vmatprep.subr.bf16.mxu0 0
        %7288 = vmatpush1.bf16.msra.mxu0 0
        %7289 = vmatprep.subr.bf16.mxu0 0
        %7290 = vmatpush1.bf16.msra.mxu0 0
        %7291 = vmatprep.subr.bf16.mxu0 0
        %7292 = vmatpush1.bf16.msra.mxu0 0
        %7293 = vmatprep.subr.bf16.mxu0 0
        %7294 = vmatpush1.bf16.msra.mxu0 0
        %7295 = vmatprep.subr.bf16.mxu0 0
        %7296 = vmatpush1.bf16.msra.mxu0 0
        %7297 = vmatprep.subr.bf16.mxu0 0
        %7298 = vmatpush1.bf16.msra.mxu0 0
        %7299 = vmatprep.subr.bf16.mxu0 0
        %7300 = vmatpush1.bf16.msra.mxu0 0
        %7301 = vmatprep.subr.bf16.mxu0 0
        %7302 = vmatpush1.bf16.msra.mxu0 0
        %7303 = vmatprep.subr.bf16.mxu0 0
        %7304 = vmatpush1.bf16.msra.mxu0 0
        %7305 = vmatprep.subr.bf16.mxu0 0
        %7306 = vmatpush1.bf16.msra.mxu0 0
        %7307 = vmatprep.subr.bf16.mxu0 0
        %7308 = vmatpush1.bf16.msra.mxu0 0
        %7309 = vmatprep.subr.bf16.mxu0 0
        %7310 = vmatpush1.bf16.msra.mxu0 0
        %7311 = vmatprep.subr.bf16.mxu0 0
        %7312 = vmatpush1.bf16.msra.mxu0 0
        %7313 = vmatprep.mubr.bf16.mxu0 0
        %7314 = vmatmul.mubr.bf16.gmra.mrb[0].mxu0 %v7279
        %v7315 = vpop.f32.mrb[0].mxu0
        %v7316 = vadd.f32 0.0, %v7315
        %v7317 = vpop.f32.mrb[0].mxu0
        %v7318 = vadd.f32 0.0, %v7317
        %v7319 = vpop.f32.mrb[0].mxu0
        %v7320 = vpop.f32.mrb[0].mxu0
        %7321 = vdwg.mxu0
        %7322 = vmatprep.subr.bf16.mxu0 0
        %7323 = vmatpush1.bf16.msra.mxu0 %v6729
        %7324 = vmatprep.subr.bf16.mxu0 0
        %7325 = vmatpush1.bf16.msra.mxu0 0
        %7326 = vmatprep.subr.bf16.mxu0 0
        %7327 = vmatpush1.bf16.msra.mxu0 0
        %7328 = vmatprep.subr.bf16.mxu0 0
        %7329 = vmatpush1.bf16.msra.mxu0 0
        %7330 = vmatprep.subr.bf16.mxu0 0
        %7331 = vmatpush1.bf16.msra.mxu0 0
        %7332 = vmatprep.subr.bf16.mxu0 0
        %7333 = vmatpush1.bf16.msra.mxu0 0
        %7334 = vmatprep.subr.bf16.mxu0 0
        %7335 = vmatpush1.bf16.msra.mxu0 0
        %7336 = vmatprep.subr.bf16.mxu0 0
        %7337 = vmatpush1.bf16.msra.mxu0 0
        %7338 = vmatprep.subr.bf16.mxu0 0
        %7339 = vmatpush1.bf16.msra.mxu0 0
        %7340 = vmatprep.subr.bf16.mxu0 0
        %7341 = vmatpush1.bf16.msra.mxu0 0
        %7342 = vmatprep.subr.bf16.mxu0 0
        %7343 = vmatpush1.bf16.msra.mxu0 0
        %7344 = vmatprep.subr.bf16.mxu0 0
        %7345 = vmatpush1.bf16.msra.mxu0 0
        %7346 = vmatprep.subr.bf16.mxu0 0
        %7347 = vmatpush1.bf16.msra.mxu0 0
        %7348 = vmatprep.subr.bf16.mxu0 0
        %7349 = vmatpush1.bf16.msra.mxu0 0
        %7350 = vmatprep.subr.bf16.mxu0 0
        %7351 = vmatpush1.bf16.msra.mxu0 0
        %7352 = vmatprep.subr.bf16.mxu0 0
        %7353 = vmatpush1.bf16.msra.mxu0 0
        %7354 = vmatprep.mubr.bf16.mxu0 0
        %7355 = vmatmul.mubr.bf16.gmra.mrb[0].mxu0 %v7279
        %v7356 = vpop.f32.mrb[0].mxu0
        %v7357 = vadd.f32 0.0, %v7356
        %v7358 = vpop.f32.mrb[0].mxu0
        %v7359 = vpop.f32.mrb[0].mxu0
        %v7360 = vpop.f32.mrb[0].mxu0
        %7361 = vdwg.mxu0
        %s7362 = scalar_lea.vmem %s69, 15
        %v7363 = vld [vmem:[%s7362] sm:$0x7]
        %v7365 = vlaneseq
        %v7366 = vshrl.u32 %v7365, 7
        %v7367 = vsub.s32 0, %v7366
        %v7368 = vrot.slane %v7363, %v7367
        %v7369 = vlaneseq
        %v7370 = vshrl.u32 %v7369, 7
        %v7371 = vsub.s32 1, %v7370
        %v7372 = vrot.slane %v7363, %v7371
        %v7373 = vlaneseq
        %v7374 = vshrl.u32 %v7373, 7
        %v7375 = vsub.s32 2, %v7374
        %v7376 = vrot.slane %v7363, %v7375
        %v7380 = vmul.f32 %v7316, %v7368
        %v7381 = vmul.f32 %v7318, %v7372
        %v7382 = vmul.f32 %v7357, %v7376
        %v7383 = vadd.f32 %v7273, %v7380
        %v7384 = vadd.f32 %v7274, %v7381
        %v7385 = vadd.f32 %v7275, %v7382
        %s7386 = scalar_lea.vmem %s67, 12
        %v7387 = vld [vmem:[%s7386] sm:$0x3]
        %v7389 = vsel %vm6731, %v7387, 0
        %7391 = vmatprep.subr.bf16.mxu0 %v6728
        %7392 = vmatpush1.bf16.msra.mxu0 %v6727
        %7393 = vmatprep.subr.bf16.mxu0 0
        %7394 = vmatpush1.bf16.msra.mxu0 0
        %7395 = vmatprep.subr.bf16.mxu0 0
        %7396 = vmatpush1.bf16.msra.mxu0 0
        %7397 = vmatprep.subr.bf16.mxu0 0
        %7398 = vmatpush1.bf16.msra.mxu0 0
        %7399 = vmatprep.subr.bf16.mxu0 0
        %7400 = vmatpush1.bf16.msra.mxu0 0
        %7401 = vmatprep.subr.bf16.mxu0 0
        %7402 = vmatpush1.bf16.msra.mxu0 0
        %7403 = vmatprep.subr.bf16.mxu0 0
        %7404 = vmatpush1.bf16.msra.mxu0 0
        %7405 = vmatprep.subr.bf16.mxu0 0
        %7406 = vmatpush1.bf16.msra.mxu0 0
        %7407 = vmatprep.subr.bf16.mxu0 0
        %7408 = vmatpush1.bf16.msra.mxu0 0
        %7409 = vmatprep.subr.bf16.mxu0 0
        %7410 = vmatpush1.bf16.msra.mxu0 0
        %7411 = vmatprep.subr.bf16.mxu0 0
        %7412 = vmatpush1.bf16.msra.mxu0 0
        %7413 = vmatprep.subr.bf16.mxu0 0
        %7414 = vmatpush1.bf16.msra.mxu0 0
        %7415 = vmatprep.subr.bf16.mxu0 0
        %7416 = vmatpush1.bf16.msra.mxu0 0
        %7417 = vmatprep.subr.bf16.mxu0 0
        %7418 = vmatpush1.bf16.msra.mxu0 0
        %7419 = vmatprep.subr.bf16.mxu0 0
        %7420 = vmatpush1.bf16.msra.mxu0 0
        %7421 = vmatprep.subr.bf16.mxu0 0
        %7422 = vmatpush1.bf16.msra.mxu0 0
        %7423 = vmatprep.mubr.bf16.mxu0 0
        %7424 = vmatmul.mubr.bf16.gmra.mrb[0].mxu0 %v7389
        %v7425 = vpop.f32.mrb[0].mxu0
        %v7426 = vadd.f32 0.0, %v7425
        %v7427 = vpop.f32.mrb[0].mxu0
        %v7428 = vadd.f32 0.0, %v7427
        %v7429 = vpop.f32.mrb[0].mxu0
        %v7430 = vpop.f32.mrb[0].mxu0
        %7431 = vdwg.mxu0
        %7432 = vmatprep.subr.bf16.mxu0 0
        %7433 = vmatpush1.bf16.msra.mxu0 %v6729
        %7434 = vmatprep.subr.bf16.mxu0 0
        %7435 = vmatpush1.bf16.msra.mxu0 0
        %7436 = vmatprep.subr.bf16.mxu0 0
        %7437 = vmatpush1.bf16.msra.mxu0 0
        %7438 = vmatprep.subr.bf16.mxu0 0
        %7439 = vmatpush1.bf16.msra.mxu0 0
        %7440 = vmatprep.subr.bf16.mxu0 0
        %7441 = vmatpush1.bf16.msra.mxu0 0
        %7442 = vmatprep.subr.bf16.mxu0 0
        %7443 = vmatpush1.bf16.msra.mxu0 0
        %7444 = vmatprep.subr.bf16.mxu0 0
        %7445 = vmatpush1.bf16.msra.mxu0 0
        %7446 = vmatprep.subr.bf16.mxu0 0
        %7447 = vmatpush1.bf16.msra.mxu0 0
        %7448 = vmatprep.subr.bf16.mxu0 0
        %7449 = vmatpush1.bf16.msra.mxu0 0
        %7450 = vmatprep.subr.bf16.mxu0 0
        %7451 = vmatpush1.bf16.msra.mxu0 0
        %7452 = vmatprep.subr.bf16.mxu0 0
        %7453 = vmatpush1.bf16.msra.mxu0 0
        %7454 = vmatprep.subr.bf16.mxu0 0
        %7455 = vmatpush1.bf16.msra.mxu0 0
        %7456 = vmatprep.subr.bf16.mxu0 0
        %7457 = vmatpush1.bf16.msra.mxu0 0
        %7458 = vmatprep.subr.bf16.mxu0 0
        %7459 = vmatpush1.bf16.msra.mxu0 0
        %7460 = vmatprep.subr.bf16.mxu0 0
        %7461 = vmatpush1.bf16.msra.mxu0 0
        %7462 = vmatprep.subr.bf16.mxu0 0
        %7463 = vmatpush1.bf16.msra.mxu0 0
        %7464 = vmatprep.mubr.bf16.mxu0 0
        %7465 = vmatmul.mubr.bf16.gmra.mrb[0].mxu0 %v7389
        %v7466 = vpop.f32.mrb[0].mxu0
        %v7467 = vadd.f32 0.0, %v7466
        %v7468 = vpop.f32.mrb[0].mxu0
        %v7469 = vpop.f32.mrb[0].mxu0
        %v7470 = vpop.f32.mrb[0].mxu0
        %7471 = vdwg.mxu0
        %s7472 = scalar_lea.vmem %s69, 18
        %v7473 = vld [vmem:[%s7472] sm:$0x7]
        %v7475 = vlaneseq
        %v7476 = vshrl.u32 %v7475, 7
        %v7477 = vsub.s32 0, %v7476
        %v7478 = vrot.slane %v7473, %v7477
        %v7479 = vlaneseq
        %v7480 = vshrl.u32 %v7479, 7
        %v7481 = vsub.s32 1, %v7480
        %v7482 = vrot.slane %v7473, %v7481
        %v7483 = vlaneseq
        %v7484 = vshrl.u32 %v7483, 7
        %v7485 = vsub.s32 2, %v7484
        %v7486 = vrot.slane %v7473, %v7485
        %v7490 = vmul.f32 %v7426, %v7478
        %v7491 = vmul.f32 %v7428, %v7482
        %v7492 = vmul.f32 %v7467, %v7486
        %v7493 = vadd.f32 %v7383, %v7490
        %v7494 = vadd.f32 %v7384, %v7491
        %v7495 = vadd.f32 %v7385, %v7492
        %s7496 = scalar_lea.vmem %s67, 14
        %v7497 = vld [vmem:[%s7496] sm:$0x3]
        %v7499 = vsel %vm6731, %v7497, 0
        %7501 = vmatprep.subr.bf16.mxu0 %v6728
        %7502 = vmatpush1.bf16.msra.mxu0 %v6727
        %7503 = vmatprep.subr.bf16.mxu0 0
        %7504 = vmatpush1.bf16.msra.mxu0 0
        %7505 = vmatprep.subr.bf16.mxu0 0
        %7506 = vmatpush1.bf16.msra.mxu0 0
        %7507 = vmatprep.subr.bf16.mxu0 0
        %7508 = vmatpush1.bf16.msra.mxu0 0
        %7509 = vmatprep.subr.bf16.mxu0 0
        %7510 = vmatpush1.bf16.msra.mxu0 0
        %7511 = vmatprep.subr.bf16.mxu0 0
        %7512 = vmatpush1.bf16.msra.mxu0 0
        %7513 = vmatprep.subr.bf16.mxu0 0
        %7514 = vmatpush1.bf16.msra.mxu0 0
        %7515 = vmatprep.subr.bf16.mxu0 0
        %7516 = vmatpush1.bf16.msra.mxu0 0
        %7517 = vmatprep.subr.bf16.mxu0 0
        %7518 = vmatpush1.bf16.msra.mxu0 0
        %7519 = vmatprep.subr.bf16.mxu0 0
        %7520 = vmatpush1.bf16.msra.mxu0 0
        %7521 = vmatprep.subr.bf16.mxu0 0
        %7522 = vmatpush1.bf16.msra.mxu0 0
        %7523 = vmatprep.subr.bf16.mxu0 0
        %7524 = vmatpush1.bf16.msra.mxu0 0
        %7525 = vmatprep.subr.bf16.mxu0 0
        %7526 = vmatpush1.bf16.msra.mxu0 0
        %7527 = vmatprep.subr.bf16.mxu0 0
        %7528 = vmatpush1.bf16.msra.mxu0 0
        %7529 = vmatprep.subr.bf16.mxu0 0
        %7530 = vmatpush1.bf16.msra.mxu0 0
        %7531 = vmatprep.subr.bf16.mxu0 0
        %7532 = vmatpush1.bf16.msra.mxu0 0
        %7533 = vmatprep.mubr.bf16.mxu0 0
        %7534 = vmatmul.mubr.bf16.gmra.mrb[0].mxu0 %v7499
        %v7535 = vpop.f32.mrb[0].mxu0
        %v7536 = vadd.f32 0.0, %v7535
        %v7537 = vpop.f32.mrb[0].mxu0
        %v7538 = vadd.f32 0.0, %v7537
        %v7539 = vpop.f32.mrb[0].mxu0
        %v7540 = vpop.f32.mrb[0].mxu0
        %7541 = vdwg.mxu0
        %7542 = vmatprep.subr.bf16.mxu0 0
        %7543 = vmatpush1.bf16.msra.mxu0 %v6729
        %7544 = vmatprep.subr.bf16.mxu0 0
        %7545 = vmatpush1.bf16.msra.mxu0 0
        %7546 = vmatprep.subr.bf16.mxu0 0
        %7547 = vmatpush1.bf16.msra.mxu0 0
        %7548 = vmatprep.subr.bf16.mxu0 0
        %7549 = vmatpush1.bf16.msra.mxu0 0
        %7550 = vmatprep.subr.bf16.mxu0 0
        %7551 = vmatpush1.bf16.msra.mxu0 0
        %7552 = vmatprep.subr.bf16.mxu0 0
        %7553 = vmatpush1.bf16.msra.mxu0 0
        %7554 = vmatprep.subr.bf16.mxu0 0
        %7555 = vmatpush1.bf16.msra.mxu0 0
        %7556 = vmatprep.subr.bf16.mxu0 0
        %7557 = vmatpush1.bf16.msra.mxu0 0
        %7558 = vmatprep.subr.bf16.mxu0 0
        %7559 = vmatpush1.bf16.msra.mxu0 0
        %7560 = vmatprep.subr.bf16.mxu0 0
        %7561 = vmatpush1.bf16.msra.mxu0 0
        %7562 = vmatprep.subr.bf16.mxu0 0
        %7563 = vmatpush1.bf16.msra.mxu0 0
        %7564 = vmatprep.subr.bf16.mxu0 0
        %7565 = vmatpush1.bf16.msra.mxu0 0
        %7566 = vmatprep.subr.bf16.mxu0 0
        %7567 = vmatpush1.bf16.msra.mxu0 0
        %7568 = vmatprep.subr.bf16.mxu0 0
        %7569 = vmatpush1.bf16.msra.mxu0 0
        %7570 = vmatprep.subr.bf16.mxu0 0
        %7571 = vmatpush1.bf16.msra.mxu0 0
        %7572 = vmatprep.subr.bf16.mxu0 0
        %7573 = vmatpush1.bf16.msra.mxu0 0
        %7574 = vmatprep.mubr.bf16.mxu0 0
        %7575 = vmatmul.mubr.bf16.gmra.mrb[0].mxu0 %v7499
        %v7576 = vpop.f32.mrb[0].mxu0
        %v7577 = vadd.f32 0.0, %v7576
        %v7578 = vpop.f32.mrb[0].mxu0
        %v7579 = vpop.f32.mrb[0].mxu0
        %v7580 = vpop.f32.mrb[0].mxu0
        %7581 = vdwg.mxu0
        %s7582 = scalar_lea.vmem %s69, 21
        %v7583 = vld [vmem:[%s7582] sm:$0x7]
        %v7585 = vlaneseq
        %v7586 = vshrl.u32 %v7585, 7
        %v7587 = vsub.s32 0, %v7586
        %v7588 = vrot.slane %v7583, %v7587
        %v7589 = vlaneseq
        %v7590 = vshrl.u32 %v7589, 7
        %v7591 = vsub.s32 1, %v7590
        %v7592 = vrot.slane %v7583, %v7591
        %v7593 = vlaneseq
        %v7594 = vshrl.u32 %v7593, 7
        %v7595 = vsub.s32 2, %v7594
        %v7596 = vrot.slane %v7583, %v7595
        %v7600 = vmul.f32 %v7536, %v7588
        %v7601 = vmul.f32 %v7538, %v7592
        %v7602 = vmul.f32 %v7577, %v7596
        %v7603 = vadd.f32 %v7493, %v7600
        %v7604 = vadd.f32 %v7494, %v7601
        %v7605 = vadd.f32 %v7495, %v7602
        %s7606 = scalar_lea.vmem %s67, 16
        %v7607 = vld [vmem:[%s7606] sm:$0x3]
        %v7609 = vsel %vm6731, %v7607, 0
        %7611 = vmatprep.subr.bf16.mxu0 %v6728
        %7612 = vmatpush1.bf16.msra.mxu0 %v6727
        %7613 = vmatprep.subr.bf16.mxu0 0
        %7614 = vmatpush1.bf16.msra.mxu0 0
        %7615 = vmatprep.subr.bf16.mxu0 0
        %7616 = vmatpush1.bf16.msra.mxu0 0
        %7617 = vmatprep.subr.bf16.mxu0 0
        %7618 = vmatpush1.bf16.msra.mxu0 0
        %7619 = vmatprep.subr.bf16.mxu0 0
        %7620 = vmatpush1.bf16.msra.mxu0 0
        %7621 = vmatprep.subr.bf16.mxu0 0
        %7622 = vmatpush1.bf16.msra.mxu0 0
        %7623 = vmatprep.subr.bf16.mxu0 0
        %7624 = vmatpush1.bf16.msra.mxu0 0
        %7625 = vmatprep.subr.bf16.mxu0 0
        %7626 = vmatpush1.bf16.msra.mxu0 0
        %7627 = vmatprep.subr.bf16.mxu0 0
        %7628 = vmatpush1.bf16.msra.mxu0 0
        %7629 = vmatprep.subr.bf16.mxu0 0
        %7630 = vmatpush1.bf16.msra.mxu0 0
        %7631 = vmatprep.subr.bf16.mxu0 0
        %7632 = vmatpush1.bf16.msra.mxu0 0
        %7633 = vmatprep.subr.bf16.mxu0 0
        %7634 = vmatpush1.bf16.msra.mxu0 0
        %7635 = vmatprep.subr.bf16.mxu0 0
        %7636 = vmatpush1.bf16.msra.mxu0 0
        %7637 = vmatprep.subr.bf16.mxu0 0
        %7638 = vmatpush1.bf16.msra.mxu0 0
        %7639 = vmatprep.subr.bf16.mxu0 0
        %7640 = vmatpush1.bf16.msra.mxu0 0
        %7641 = vmatprep.subr.bf16.mxu0 0
        %7642 = vmatpush1.bf16.msra.mxu0 0
        %7643 = vmatprep.mubr.bf16.mxu0 0
        %7644 = vmatmul.mubr.bf16.gmra.mrb[0].mxu0 %v7609
        %v7645 = vpop.f32.mrb[0].mxu0
        %v7646 = vadd.f32 0.0, %v7645
        %v7647 = vpop.f32.mrb[0].mxu0
        %v7648 = vadd.f32 0.0, %v7647
        %v7649 = vpop.f32.mrb[0].mxu0
        %v7650 = vpop.f32.mrb[0].mxu0
        %7651 = vdwg.mxu0
        %7652 = vmatprep.subr.bf16.mxu0 0
        %7653 = vmatpush1.bf16.msra.mxu0 %v6729
        %7654 = vmatprep.subr.bf16.mxu0 0
        %7655 = vmatpush1.bf16.msra.mxu0 0
        %7656 = vmatprep.subr.bf16.mxu0 0
        %7657 = vmatpush1.bf16.msra.mxu0 0
        %7658 = vmatprep.subr.bf16.mxu0 0
        %7659 = vmatpush1.bf16.msra.mxu0 0
        %7660 = vmatprep.subr.bf16.mxu0 0
        %7661 = vmatpush1.bf16.msra.mxu0 0
        %7662 = vmatprep.subr.bf16.mxu0 0
        %7663 = vmatpush1.bf16.msra.mxu0 0
        %7664 = vmatprep.subr.bf16.mxu0 0
        %7665 = vmatpush1.bf16.msra.mxu0 0
        %7666 = vmatprep.subr.bf16.mxu0 0
        %7667 = vmatpush1.bf16.msra.mxu0 0
        %7668 = vmatprep.subr.bf16.mxu0 0
        %7669 = vmatpush1.bf16.msra.mxu0 0
        %7670 = vmatprep.subr.bf16.mxu0 0
        %7671 = vmatpush1.bf16.msra.mxu0 0
        %7672 = vmatprep.subr.bf16.mxu0 0
        %7673 = vmatpush1.bf16.msra.mxu0 0
        %7674 = vmatprep.subr.bf16.mxu0 0
        %7675 = vmatpush1.bf16.msra.mxu0 0
        %7676 = vmatprep.subr.bf16.mxu0 0
        %7677 = vmatpush1.bf16.msra.mxu0 0
        %7678 = vmatprep.subr.bf16.mxu0 0
        %7679 = vmatpush1.bf16.msra.mxu0 0
        %7680 = vmatprep.subr.bf16.mxu0 0
        %7681 = vmatpush1.bf16.msra.mxu0 0
        %7682 = vmatprep.subr.bf16.mxu0 0
        %7683 = vmatpush1.bf16.msra.mxu0 0
        %7684 = vmatprep.mubr.bf16.mxu0 0
        %7685 = vmatmul.mubr.bf16.gmra.mrb[0].mxu0 %v7609
        %v7686 = vpop.f32.mrb[0].mxu0
        %v7687 = vadd.f32 0.0, %v7686
        %v7688 = vpop.f32.mrb[0].mxu0
        %v7689 = vpop.f32.mrb[0].mxu0
        %v7690 = vpop.f32.mrb[0].mxu0
        %7691 = vdwg.mxu0
        %s7692 = scalar_lea.vmem %s69, 24
        %v7693 = vld [vmem:[%s7692] sm:$0x7]
        %v7695 = vlaneseq
        %v7696 = vshrl.u32 %v7695, 7
        %v7697 = vsub.s32 0, %v7696
        %v7698 = vrot.slane %v7693, %v7697
        %v7699 = vlaneseq
        %v7700 = vshrl.u32 %v7699, 7
        %v7701 = vsub.s32 1, %v7700
        %v7702 = vrot.slane %v7693, %v7701
        %v7703 = vlaneseq
        %v7704 = vshrl.u32 %v7703, 7
        %v7705 = vsub.s32 2, %v7704
        %v7706 = vrot.slane %v7693, %v7705
        %v7710 = vmul.f32 %v7646, %v7698
        %v7711 = vmul.f32 %v7648, %v7702
        %v7712 = vmul.f32 %v7687, %v7706
        %v7713 = vadd.f32 %v7603, %v7710
        %v7714 = vadd.f32 %v7604, %v7711
        %v7715 = vadd.f32 %v7605, %v7712
        %v7716 = vld [vmem:[%s71] sm:$0x7]
        %v7718 = vlaneseq
        %v7719 = vshrl.u32 %v7718, 7
        %v7720 = vsub.s32 0, %v7719
        %v7721 = vrot.slane %v7716, %v7720
        %v7722 = vlaneseq
        %v7723 = vshrl.u32 %v7722, 7
        %v7724 = vsub.s32 1, %v7723
        %v7725 = vrot.slane %v7716, %v7724
        %v7726 = vlaneseq
        %v7727 = vshrl.u32 %v7726, 7
        %v7728 = vsub.s32 2, %v7727
        %v7729 = vrot.slane %v7716, %v7728
        %v7733 = vmul.f32 %v7713, %v7721
        %v7734 = vmul.f32 %v7714, %v7725
        %v7735 = vmul.f32 %v7715, %v7729
        %v7736 = vld [vmem:[%s73] sm:$0x7]
        %v7738 = vlaneseq
        %v7739 = vshrl.u32 %v7738, 7
        %v7740 = vsub.s32 0, %v7739
        %v7741 = vrot.slane %v7736, %v7740
        %v7742 = vlaneseq
        %v7743 = vshrl.u32 %v7742, 7
        %v7744 = vsub.s32 1, %v7743
        %v7745 = vrot.slane %v7736, %v7744
        %v7746 = vlaneseq
        %v7747 = vshrl.u32 %v7746, 7
        %v7748 = vsub.s32 2, %v7747
        %v7749 = vrot.slane %v7736, %v7748
        %v7753 = vadd.f32 %v7733, %v7741
        %v7754 = vadd.f32 %v7734, %v7745
        %v7755 = vadd.f32 %v7735, %v7749
        %vm7756 = vcmp.gt.f32.partialorder %v7753, 0.0
        %vm7757 = vcmp.gt.f32.partialorder %v7754, 0.0
        %vm7758 = vcmp.gt.f32.partialorder %v7755, 0.0
        %v7759 = vmul.f32 %v7753, 0.3
        %v7760 = vmul.f32 %v7754, 0.3
        %v7761 = vmul.f32 %v7755, 0.3
        %v7762 = vsel %vm7756, %v7753, %v7759
        %v7763 = vsel %vm7757, %v7754, %v7760
        %v7764 = vsel %vm7758, %v7755, %v7761
        %vm7765 = vcmask 1043456
        %v7766 = vsel %vm7765, %v7762, 0.0
        %v7767 = vrot.slane %v7766, 4
        %v7768 = vadd.f32 %v7766, %v7767
        %v7769 = vrot.slane %v7768, 2
        %v7770 = vadd.f32 %v7768, %v7769
        %v7771 = vrot.slane %v7770, 1
        %v7772 = vadd.f32 %v7770, %v7771
        %v7773 = vsel %vm7765, %v7763, 0.0
        %v7774 = vrot.slane %v7773, 4
        %v7775 = vadd.f32 %v7773, %v7774
        %v7776 = vrot.slane %v7775, 2
        %v7777 = vadd.f32 %v7775, %v7776
        %v7778 = vrot.slane %v7777, 1
        %v7779 = vadd.f32 %v7777, %v7778
        %v7780 = vsel %vm7765, %v7764, 0.0
        %v7781 = vrot.slane %v7780, 4
        %v7782 = vadd.f32 %v7780, %v7781
        %v7783 = vrot.slane %v7782, 2
        %v7784 = vadd.f32 %v7782, %v7783
        %v7785 = vrot.slane %v7784, 1
        %v7786 = vadd.f32 %v7784, %v7785
        %v7787 = vrcp.pop 4.0
        %v7788 = vmul.f32 %v7772, %v7787
        %v7789 = vmul.f32 %v7779, %v7787
        %v7790 = vmul.f32 %v7786, %v7787
        %v7791 = vld [vmem:[%s75] sm:$0xf]
        %v7792 = vld [vmem:[%s75 + $0x4] sm:$0xf]
        %v7793 = vld [vmem:[%s75 + $0x8] sm:$0xf]
        %v7794 = vld [vmem:[%s75 + $0xc] sm:$0xf]
        %v7795 = vld [vmem:[%s75 + $0x10] sm:$0xf]
        %v7796 = vld [vmem:[%s75 + $0x14] sm:$0xf]
        %v7797 = vld [vmem:[%s75 + $0x18] sm:$0xf]
        %v7798 = vld [vmem:[%s75 + $0x1c] sm:$0xf]
        %v7799 = vld [vmem:[%s75 + $0x20] sm:$0xf]
        %v7800 = vld [vmem:[%s75 + $0x24] sm:$0xf]
        %v7801 = vld [vmem:[%s75 + $0x28] sm:$0xf]
        %v7802 = vld [vmem:[%s75 + $0x2c] sm:$0xf]
        %v7803 = vld [vmem:[%s75 + $0x30] sm:$0xf]
        %v7804 = vld [vmem:[%s75 + $0x34] sm:$0xf]
        %v7805 = vld [vmem:[%s75 + $0x38] sm:$0xf]
        %v7806 = vld [vmem:[%s75 + $0x3c] sm:$0xf]
        %v7807 = vld [vmem:[%s75 + $0x40] sm:$0xf]
        %v7808 = vld [vmem:[%s75 + $0x44] sm:$0xf]
        %v7809 = vld [vmem:[%s75 + $0x48] sm:$0xf]
        %v7810 = vld [vmem:[%s75 + $0x4c] sm:$0xf]
        %v7811 = vld [vmem:[%s75 + $0x50] sm:$0xf]
        %v7812 = vld [vmem:[%s75 + $0x54] sm:$0xf]
        %v7813 = vld [vmem:[%s75 + $0x58] sm:$0xf]
        %v7814 = vld [vmem:[%s75 + $0x5c] sm:$0xf]
        %v7815 = vld [vmem:[%s75 + $0x60] sm:$0xf]
        %v7816 = vld [vmem:[%s75 + $0x64] sm:$0xf]
        %v7817 = vld [vmem:[%s75 + $0x68] sm:$0xf]
        %v7818 = vld [vmem:[%s75 + $0x6c] sm:$0xf]
        %v7819 = vld [vmem:[%s75 + $0x70] sm:$0xf]
        %v7820 = vld [vmem:[%s75 + $0x74] sm:$0xf]
        %v7821 = vld [vmem:[%s75 + $0x78] sm:$0xf]
        %v7822 = vld [vmem:[%s75 + $0x7c] sm:$0xf]
        %v7823 = vld [vmem:[%s75 + $0x80] sm:$0xf]
        %v7824 = vld [vmem:[%s75 + $0x84] sm:$0xf]
        %v7825 = vld [vmem:[%s75 + $0x88] sm:$0xf]
        %v7826 = vld [vmem:[%s75 + $0x8c] sm:$0xf]
        %v7827 = vld [vmem:[%s75 + $0x90] sm:$0xf]
        %v7828 = vld [vmem:[%s75 + $0x94] sm:$0xf]
        %v7829 = vld [vmem:[%s75 + $0x98] sm:$0xf]
        %v7830 = vld [vmem:[%s75 + $0x9c] sm:$0xf]
        %v7831 = vld [vmem:[%s75 + $0xa0] sm:$0xf]
        %v7832 = vld [vmem:[%s75 + $0xa4] sm:$0xf]
        %v7833 = vld [vmem:[%s75 + $0xa8] sm:$0xf]
        %v7834 = vld [vmem:[%s75 + $0xac] sm:$0xf]
        %v7835 = vld [vmem:[%s75 + $0xb0] sm:$0xf]
        %v7836 = vld [vmem:[%s75 + $0xb4] sm:$0xf]
        %v7837 = vld [vmem:[%s75 + $0xb8] sm:$0xf]
        %v7838 = vld [vmem:[%s75 + $0xbc] sm:$0xf]
        %v7839 = vpack.c.bf16 %v7788, %v7788
        %v7840 = vpack.c.bf16 %v7789, %v7789
        %v7841 = vpack.c.bf16 %v7790, %v7790
        %v7842 = vld [vmem:[#allocation10] sm:$0x1]
        %v7891 = vunpack.c.l.b16 %v7791
        %v7892 = vunpack.c.l.b16 %v7792
        %v7893 = vunpack.c.l.b16 %v7793
        %v7894 = vunpack.c.l.b16 %v7794
        %v7895 = vunpack.c.l.b16 %v7795
        %v7896 = vunpack.c.l.b16 %v7796
        %v7897 = vunpack.c.l.b16 %v7797
        %v7898 = vunpack.c.l.b16 %v7798
        %v7899 = vunpack.c.l.b16 %v7799
        %v7900 = vunpack.c.l.b16 %v7800
        %v7901 = vunpack.c.l.b16 %v7801
        %v7902 = vunpack.c.l.b16 %v7802
        %v7903 = vunpack.c.l.b16 %v7803
        %v7904 = vunpack.c.l.b16 %v7804
        %v7905 = vunpack.c.l.b16 %v7805
        %v7906 = vunpack.c.l.b16 %v7806
        %v7907 = vunpack.c.l.b16 %v7807
        %v7908 = vunpack.c.l.b16 %v7808
        %v7909 = vunpack.c.l.b16 %v7809
        %v7910 = vunpack.c.l.b16 %v7810
        %v7911 = vunpack.c.l.b16 %v7811
        %v7912 = vunpack.c.l.b16 %v7812
        %v7913 = vunpack.c.l.b16 %v7813
        %v7914 = vunpack.c.l.b16 %v7814
        %v7915 = vunpack.c.l.b16 %v7815
        %v7916 = vunpack.c.l.b16 %v7816
        %v7917 = vunpack.c.l.b16 %v7817
        %v7918 = vunpack.c.l.b16 %v7818
        %v7919 = vunpack.c.l.b16 %v7819
        %v7920 = vunpack.c.l.b16 %v7820
        %v7921 = vunpack.c.l.b16 %v7821
        %v7922 = vunpack.c.l.b16 %v7822
        %v7923 = vunpack.c.l.b16 %v7823
        %v7924 = vunpack.c.l.b16 %v7824
        %v7925 = vunpack.c.l.b16 %v7825
        %v7926 = vunpack.c.l.b16 %v7826
        %v7927 = vunpack.c.l.b16 %v7827
        %v7928 = vunpack.c.l.b16 %v7828
        %v7929 = vunpack.c.l.b16 %v7829
        %v7930 = vunpack.c.l.b16 %v7830
        %v7931 = vunpack.c.l.b16 %v7831
        %v7932 = vunpack.c.l.b16 %v7832
        %v7933 = vunpack.c.l.b16 %v7833
        %v7934 = vunpack.c.l.b16 %v7834
        %v7935 = vunpack.c.l.b16 %v7835
        %v7936 = vunpack.c.l.b16 %v7836
        %v7937 = vunpack.c.l.b16 %v7837
        %v7938 = vunpack.c.l.b16 %v7838
        %v7939 = vpack.c.b16 %v7892, %v7891
        %v7940 = vpack.c.b16 %v7894, %v7893
        %v7941 = vpack.c.b16 %v7896, %v7895
        %v7942 = vpack.c.b16 %v7898, %v7897
        %v7943 = vpack.c.b16 %v7900, %v7899
        %v7944 = vpack.c.b16 %v7902, %v7901
        %v7945 = vpack.c.b16 %v7904, %v7903
        %v7946 = vpack.c.b16 %v7906, %v7905
        %v7947 = vpack.c.b16 %v7908, %v7907
        %v7948 = vpack.c.b16 %v7910, %v7909
        %v7949 = vpack.c.b16 %v7912, %v7911
        %v7950 = vpack.c.b16 %v7914, %v7913
        %v7951 = vpack.c.b16 %v7916, %v7915
        %v7952 = vpack.c.b16 %v7918, %v7917
        %v7953 = vpack.c.b16 %v7920, %v7919
        %v7954 = vpack.c.b16 %v7922, %v7921
        %v7955 = vpack.c.b16 %v7924, %v7923
        %v7956 = vpack.c.b16 %v7926, %v7925
        %v7957 = vpack.c.b16 %v7928, %v7927
        %v7958 = vpack.c.b16 %v7930, %v7929
        %v7959 = vpack.c.b16 %v7932, %v7931
        %v7960 = vpack.c.b16 %v7934, %v7933
        %v7961 = vpack.c.b16 %v7936, %v7935
        %v7962 = vpack.c.b16 %v7938, %v7937
        %7987 = vmatprep.subr.bf16.mxu0 0
        %7988 = vmatpush1.bf16.msra.mxu0 %v7939
        %7989 = vmatprep.subr.bf16.mxu0 0
        %7990 = vmatpush1.bf16.msra.mxu0 %v7940
        %7991 = vmatprep.subr.bf16.mxu0 0
        %7992 = vmatpush1.bf16.msra.mxu0 %v7941
        %7993 = vmatprep.subr.bf16.mxu0 0
        %7994 = vmatpush1.bf16.msra.mxu0 %v7942
        %7995 = vmatprep.subr.bf16.mxu0 0
        %7996 = vmatpush1.bf16.msra.mxu0 %v7943
        %7997 = vmatprep.subr.bf16.mxu0 0
        %7998 = vmatpush1.bf16.msra.mxu0 %v7944
        %7999 = vmatprep.subr.bf16.mxu0 0
        %8000 = vmatpush1.bf16.msra.mxu0 %v7945
        %8001 = vmatprep.subr.bf16.mxu0 0
        %8002 = vmatpush1.bf16.msra.mxu0 %v7946
        %8003 = vmatprep.subr.bf16.mxu0 0
        %8004 = vmatpush1.bf16.msra.mxu0 %v7947
        %8005 = vmatprep.subr.bf16.mxu0 0
        %8006 = vmatpush1.bf16.msra.mxu0 %v7948
        %8007 = vmatprep.subr.bf16.mxu0 0
        %8008 = vmatpush1.bf16.msra.mxu0 %v7949
        %8009 = vmatprep.subr.bf16.mxu0 0
        %8010 = vmatpush1.bf16.msra.mxu0 %v7950
        %8011 = vmatprep.subr.bf16.mxu0 0
        %8012 = vmatpush1.bf16.msra.mxu0 %v7951
        %8013 = vmatprep.subr.bf16.mxu0 0
        %8014 = vmatpush1.bf16.msra.mxu0 %v7952
        %8015 = vmatprep.subr.bf16.mxu0 0
        %8016 = vmatpush1.bf16.msra.mxu0 %v7953
        %8017 = vmatprep.subr.bf16.mxu0 0
        %8018 = vmatpush1.bf16.msra.mxu0 %v7954
        %8019 = vmatprep.mubr.bf16.mxu0 %v7840
        %8020 = vmatmul.mubr.bf16.gmra.mrb[0].mxu0 %v7839
        %v8021 = vpop.f32.mrb[0].mxu0
        %v8022 = vadd.f32 %v7842, %v8021
        %v8023 = vpop.f32.mrb[0].mxu0
        %v8024 = vpop.f32.mrb[0].mxu0
        %v8025 = vpop.f32.mrb[0].mxu0
        %8026 = vdwg.mxu0
        %8027 = vmatprep.subr.bf16.mxu0 0
        %8028 = vmatpush1.bf16.msra.mxu0 %v7955
        %8029 = vmatprep.subr.bf16.mxu0 0
        %8030 = vmatpush1.bf16.msra.mxu0 %v7956
        %8031 = vmatprep.subr.bf16.mxu0 0
        %8032 = vmatpush1.bf16.msra.mxu0 %v7957
        %8033 = vmatprep.subr.bf16.mxu0 0
        %8034 = vmatpush1.bf16.msra.mxu0 %v7958
        %8035 = vmatprep.subr.bf16.mxu0 0
        %8036 = vmatpush1.bf16.msra.mxu0 %v7959
        %8037 = vmatprep.subr.bf16.mxu0 0
        %8038 = vmatpush1.bf16.msra.mxu0 %v7960
        %8039 = vmatprep.subr.bf16.mxu0 0
        %8040 = vmatpush1.bf16.msra.mxu0 %v7961
        %8041 = vmatprep.subr.bf16.mxu0 0
        %8042 = vmatpush1.bf16.msra.mxu0 %v7962
        %8043 = vmatprep.subr.bf16.mxu0 0
        %8044 = vmatpush1.bf16.msra.mxu0 0
        %8045 = vmatprep.subr.bf16.mxu0 0
        %8046 = vmatpush1.bf16.msra.mxu0 0
        %8047 = vmatprep.subr.bf16.mxu0 0
        %8048 = vmatpush1.bf16.msra.mxu0 0
        %8049 = vmatprep.subr.bf16.mxu0 0
        %8050 = vmatpush1.bf16.msra.mxu0 0
        %8051 = vmatprep.subr.bf16.mxu0 0
        %8052 = vmatpush1.bf16.msra.mxu0 0
        %8053 = vmatprep.subr.bf16.mxu0 0
        %8054 = vmatpush1.bf16.msra.mxu0 0
        %8055 = vmatprep.subr.bf16.mxu0 0
        %8056 = vmatpush1.bf16.msra.mxu0 0
        %8057 = vmatprep.subr.bf16.mxu0 0
        %8058 = vmatpush1.bf16.msra.mxu0 0
        %8059 = vmatprep.mubr.bf16.mxu0 0
        %8060 = vmatmul.mubr.bf16.gmra.mrb[0].mxu0 %v7841
        %v8061 = vpop.f32.mrb[0].mxu0
        %v8062 = vadd.f32 %v8022, %v8061
        %v8063 = vpop.f32.mrb[0].mxu0
        %v8064 = vpop.f32.mrb[0].mxu0
        %v8065 = vpop.f32.mrb[0].mxu0
        %8066 = vdwg.mxu0
        %vm8067 = vcmp.gt.f32.partialorder %v8062, 0.0
        %v8068 = vmul.f32 %v8062, 0.3
        %v8069 = vsel %vm8067, %v8062, %v8068
        %v8070 = vld [vmem:[%s79] sm:$0xff]
        %v8071 = vld [vmem:[%s79 + $0x8] sm:$0xf]
        %v8072 = vld [vmem:[%s79 + $0xc] sm:$0xff]
        %v8073 = vld [vmem:[%s79 + $0x14] sm:$0xf]
        %v8074 = vld [vmem:[%s79 + $0x18] sm:$0xff]
        %v8075 = vld [vmem:[%s79 + $0x20] sm:$0xf]
        %v8076 = vld [vmem:[%s79 + $0x24] sm:$0xff]
        %v8077 = vld [vmem:[%s79 + $0x2c] sm:$0xf]
        %v8078 = vld [vmem:[%s79 + $0x30] sm:$0xff]
        %v8079 = vld [vmem:[%s79 + $0x38] sm:$0xf]
        %v8080 = vld [vmem:[%s79 + $0x3c] sm:$0xff]
        %v8081 = vld [vmem:[%s79 + $0x44] sm:$0xf]
        %v8082 = vld [vmem:[%s79 + $0x48] sm:$0xff]
        %v8083 = vld [vmem:[%s79 + $0x50] sm:$0xf]
        %v8084 = vld [vmem:[%s79 + $0x54] sm:$0xff]
        %v8085 = vld [vmem:[%s79 + $0x5c] sm:$0xf]
        %v8086 = vld [vmem:[%s79 + $0x60] sm:$0xff]
        %v8087 = vld [vmem:[%s79 + $0x68] sm:$0xf]
        %v8088 = vld [vmem:[%s79 + $0x6c] sm:$0xff]
        %v8089 = vld [vmem:[%s79 + $0x74] sm:$0xf]
        %v8090 = vld [vmem:[%s79 + $0x78] sm:$0xff]
        %v8091 = vld [vmem:[%s79 + $0x80] sm:$0xf]
        %v8092 = vld [vmem:[%s79 + $0x84] sm:$0xff]
        %v8093 = vld [vmem:[%s79 + $0x8c] sm:$0xf]
        %v8094 = vpack.c.bf16 %v8069, %v8069
        %v8095 = vld [vmem:[%s81] sm:$0x7]
        %v8120 = vunpack.c.l.b16 %v8070
        %v8121 = vunpack.c.h.b16 %v8070
        %v8122 = vunpack.c.l.b16 %v8071
        %v8123 = vunpack.c.l.b16 %v8072
        %v8124 = vunpack.c.h.b16 %v8072
        %v8125 = vunpack.c.l.b16 %v8073
        %v8126 = vunpack.c.l.b16 %v8074
        %v8127 = vunpack.c.h.b16 %v8074
        %v8128 = vunpack.c.l.b16 %v8075
        %v8129 = vunpack.c.l.b16 %v8076
        %v8130 = vunpack.c.h.b16 %v8076
        %v8131 = vunpack.c.l.b16 %v8077
        %v8132 = vunpack.c.l.b16 %v8078
        %v8133 = vunpack.c.h.b16 %v8078
        %v8134 = vunpack.c.l.b16 %v8079
        %v8135 = vunpack.c.l.b16 %v8080
        %v8136 = vunpack.c.h.b16 %v8080
        %v8137 = vunpack.c.l.b16 %v8081
        %v8138 = vunpack.c.l.b16 %v8082
        %v8139 = vunpack.c.h.b16 %v8082
        %v8140 = vunpack.c.l.b16 %v8083
        %v8141 = vunpack.c.l.b16 %v8084
        %v8142 = vunpack.c.h.b16 %v8084
        %v8143 = vunpack.c.l.b16 %v8085
        %v8144 = vunpack.c.l.b16 %v8086
        %v8145 = vunpack.c.h.b16 %v8086
        %v8146 = vunpack.c.l.b16 %v8087
        %v8147 = vunpack.c.l.b16 %v8088
        %v8148 = vunpack.c.h.b16 %v8088
        %v8149 = vunpack.c.l.b16 %v8089
        %v8150 = vunpack.c.l.b16 %v8090
        %v8151 = vunpack.c.h.b16 %v8090
        %v8152 = vunpack.c.l.b16 %v8091
        %v8153 = vunpack.c.l.b16 %v8092
        %v8154 = vunpack.c.h.b16 %v8092
        %v8155 = vunpack.c.l.b16 %v8093
        %v8156 = vpack.c.b16 %v8123, %v8120
        %v8157 = vpack.c.b16 %v8124, %v8121
        %v8158 = vpack.c.b16 %v8125, %v8122
        %v8159 = vpack.c.b16 %v8129, %v8126
        %v8160 = vpack.c.b16 %v8130, %v8127
        %v8161 = vpack.c.b16 %v8131, %v8128
        %v8162 = vpack.c.b16 %v8135, %v8132
        %v8163 = vpack.c.b16 %v8136, %v8133
        %v8164 = vpack.c.b16 %v8137, %v8134
        %v8165 = vpack.c.b16 %v8141, %v8138
        %v8166 = vpack.c.b16 %v8142, %v8139
        %v8167 = vpack.c.b16 %v8143, %v8140
        %v8168 = vpack.c.b16 %v8147, %v8144
        %v8169 = vpack.c.b16 %v8148, %v8145
        %v8170 = vpack.c.b16 %v8149, %v8146
        %v8171 = vpack.c.b16 %v8153, %v8150
        %v8172 = vpack.c.b16 %v8154, %v8151
        %v8173 = vpack.c.b16 %v8155, %v8152
        %v8193 = vlaneseq
        %v8194 = vshrl.u32 %v8193, 7
        %v8195 = vsub.s32 0, %v8194
        %v8196 = vrot.slane %v8095, %v8195
        %v8197 = vlaneseq
        %v8198 = vshrl.u32 %v8197, 7
        %v8199 = vsub.s32 1, %v8198
        %v8200 = vrot.slane %v8095, %v8199
        %v8201 = vlaneseq
        %v8202 = vshrl.u32 %v8201, 7
        %v8203 = vsub.s32 2, %v8202
        %v8204 = vrot.slane %v8095, %v8203
        %vm8208 = vcmask 785408
        %v8210 = vsel %vm8208, %v8094, 0
        %8212 = vmatprep.subr.bf16.mxu0 %v8157
        %8213 = vmatpush1.bf16.msra.mxu0 %v8156
        %8214 = vmatprep.subr.bf16.mxu0 %v8160
        %8215 = vmatpush1.bf16.msra.mxu0 %v8159
        %8216 = vmatprep.subr.bf16.mxu0 %v8163
        %8217 = vmatpush1.bf16.msra.mxu0 %v8162
        %8218 = vmatprep.subr.bf16.mxu0 %v8166
        %8219 = vmatpush1.bf16.msra.mxu0 %v8165
        %8220 = vmatprep.subr.bf16.mxu0 %v8169
        %8221 = vmatpush1.bf16.msra.mxu0 %v8168
        %8222 = vmatprep.subr.bf16.mxu0 %v8172
        %8223 = vmatpush1.bf16.msra.mxu0 %v8171
        %8224 = vmatprep.subr.bf16.mxu0 0
        %8225 = vmatpush1.bf16.msra.mxu0 0
        %8226 = vmatprep.subr.bf16.mxu0 0
        %8227 = vmatpush1.bf16.msra.mxu0 0
        %8228 = vmatprep.subr.bf16.mxu0 0
        %8229 = vmatpush1.bf16.msra.mxu0 0
        %8230 = vmatprep.subr.bf16.mxu0 0
        %8231 = vmatpush1.bf16.msra.mxu0 0
        %8232 = vmatprep.subr.bf16.mxu0 0
        %8233 = vmatpush1.bf16.msra.mxu0 0
        %8234 = vmatprep.subr.bf16.mxu0 0
        %8235 = vmatpush1.bf16.msra.mxu0 0
        %8236 = vmatprep.subr.bf16.mxu0 0
        %8237 = vmatpush1.bf16.msra.mxu0 0
        %8238 = vmatprep.subr.bf16.mxu0 0
        %8239 = vmatpush1.bf16.msra.mxu0 0
        %8240 = vmatprep.subr.bf16.mxu0 0
        %8241 = vmatpush1.bf16.msra.mxu0 0
        %8242 = vmatprep.subr.bf16.mxu0 0
        %8243 = vmatpush1.bf16.msra.mxu0 0
        %8244 = vmatprep.mubr.bf16.mxu0 0
        %8245 = vmatmul.mubr.bf16.gmra.mrb[0].mxu0 %v8210
        %v8246 = vpop.f32.mrb[0].mxu0
        %v8247 = vadd.f32 %v8196, %v8246
        %v8248 = vpop.f32.mrb[0].mxu0
        %v8249 = vadd.f32 %v8200, %v8248
        %v8250 = vpop.f32.mrb[0].mxu0
        %v8251 = vpop.f32.mrb[0].mxu0
        %8252 = vdwg.mxu0
        %8253 = vmatprep.subr.bf16.mxu0 0
        %8254 = vmatpush1.bf16.msra.mxu0 %v8158
        %8255 = vmatprep.subr.bf16.mxu0 0
        %8256 = vmatpush1.bf16.msra.mxu0 %v8161
        %8257 = vmatprep.subr.bf16.mxu0 0
        %8258 = vmatpush1.bf16.msra.mxu0 %v8164
        %8259 = vmatprep.subr.bf16.mxu0 0
        %8260 = vmatpush1.bf16.msra.mxu0 %v8167
        %8261 = vmatprep.subr.bf16.mxu0 0
        %8262 = vmatpush1.bf16.msra.mxu0 %v8170
        %8263 = vmatprep.subr.bf16.mxu0 0
        %8264 = vmatpush1.bf16.msra.mxu0 %v8173
        %8265 = vmatprep.subr.bf16.mxu0 0
        %8266 = vmatpush1.bf16.msra.mxu0 0
        %8267 = vmatprep.subr.bf16.mxu0 0
        %8268 = vmatpush1.bf16.msra.mxu0 0
        %8269 = vmatprep.subr.bf16.mxu0 0
        %8270 = vmatpush1.bf16.msra.mxu0 0
        %8271 = vmatprep.subr.bf16.mxu0 0
        %8272 = vmatpush1.bf16.msra.mxu0 0
        %8273 = vmatprep.subr.bf16.mxu0 0
        %8274 = vmatpush1.bf16.msra.mxu0 0
        %8275 = vmatprep.subr.bf16.mxu0 0
        %8276 = vmatpush1.bf16.msra.mxu0 0
        %8277 = vmatprep.subr.bf16.mxu0 0
        %8278 = vmatpush1.bf16.msra.mxu0 0
        %8279 = vmatprep.subr.bf16.mxu0 0
        %8280 = vmatpush1.bf16.msra.mxu0 0
        %8281 = vmatprep.subr.bf16.mxu0 0
        %8282 = vmatpush1.bf16.msra.mxu0 0
        %8283 = vmatprep.subr.bf16.mxu0 0
        %8284 = vmatpush1.bf16.msra.mxu0 0
        %8285 = vmatprep.mubr.bf16.mxu0 0
        %8286 = vmatmul.mubr.bf16.gmra.mrb[0].mxu0 %v8210
        %v8287 = vpop.f32.mrb[0].mxu0
        %v8288 = vadd.f32 %v8204, %v8287
        %v8289 = vpop.f32.mrb[0].mxu0
        %v8290 = vpop.f32.mrb[0].mxu0
        %v8291 = vpop.f32.mrb[0].mxu0
        %8292 = vdwg.mxu0
        %v8293 = vxor.u32 %v8247, 2147483648
        %v8294 = vxor.u32 %v8249, 2147483648
        %v8295 = vxor.u32 %v8288, 2147483648
        %v8296 = vmul.f32 %v8293, 1.442695
        %v8297 = vpow.pop %v8296
        %v8298 = vmul.f32 %v8294, 1.442695
        %v8299 = vpow.pop %v8298
        %v8300 = vmul.f32 %v8295, 1.442695
        %v8301 = vpow.pop %v8300
        %v8302 = vadd.f32 %v8297, 1.0
        %v8303 = vadd.f32 %v8299, 1.0
        %v8304 = vadd.f32 %v8301, 1.0
        %v8305 = vrcp.pop %v8302
        %v8306 = vmul.f32 1.0, %v8305
        %v8307 = vrcp.pop %v8303
        %v8308 = vmul.f32 1.0, %v8307
        %v8309 = vrcp.pop %v8304
        %v8310 = vmul.f32 1.0, %v8309
        %v8311 = vlaneseq
        %v8312 = vshrl.u32 %v8311, 7
        %v8313 = vsub.s32 0, %v8312
        %v8314 = vrot.slane %v8306, %v8313
        %v8315 = vlaneseq
        %v8316 = vshrl.u32 %v8315, 7
        %v8317 = vsub.s32 0, %v8316
        %v8318 = vrot.slane %v8308, %v8317
        %v8319 = vlaneseq
        %v8320 = vshrl.u32 %v8319, 7
        %v8321 = vsub.s32 0, %v8320
        %v8322 = vrot.slane %v8310, %v8321
        %v8323 = vmul.f32 %v7762, %v8314
        %v8324 = vmul.f32 %v7763, %v8318
        %v8325 = vmul.f32 %v7764, %v8322
        %v8326 = vld [vmem:[%s83] sm:$0xf]
        %v8327 = vld [vmem:[%s83 + $0x4] sm:$0xf]
        %v8328 = vld [vmem:[%s83 + $0x8] sm:$0xf]
        %v8329 = vld [vmem:[%s83 + $0xc] sm:$0xf]
        %v8330 = vld [vmem:[%s83 + $0x10] sm:$0xf]
        %v8331 = vld [vmem:[%s83 + $0x14] sm:$0xf]
        %v8332 = vld [vmem:[%s83 + $0x18] sm:$0xf]
        %v8333 = vld [vmem:[%s83 + $0x1c] sm:$0xf]
        %v8334 = vld [vmem:[%s83 + $0x20] sm:$0xf]
        %v8335 = vld [vmem:[%s83 + $0x24] sm:$0xf]
        %v8336 = vld [vmem:[%s83 + $0x28] sm:$0xf]
        %v8337 = vld [vmem:[%s83 + $0x2c] sm:$0xf]
        %v8338 = vld [vmem:[%s83 + $0x30] sm:$0xf]
        %v8339 = vld [vmem:[%s83 + $0x34] sm:$0xf]
        %v8340 = vld [vmem:[%s83 + $0x38] sm:$0xf]
        %v8341 = vld [vmem:[%s83 + $0x3c] sm:$0xf]
        %v8342 = vld [vmem:[%s83 + $0x40] sm:$0xf]
        %v8343 = vld [vmem:[%s83 + $0x44] sm:$0xf]
        %v8344 = vld [vmem:[%s83 + $0x48] sm:$0xf]
        %v8345 = vld [vmem:[%s83 + $0x4c] sm:$0xf]
        %v8346 = vld [vmem:[%s83 + $0x50] sm:$0xf]
        %v8347 = vld [vmem:[%s83 + $0x54] sm:$0xf]
        %v8348 = vld [vmem:[%s83 + $0x58] sm:$0xf]
        %v8349 = vld [vmem:[%s83 + $0x5c] sm:$0xf]
        %v8350 = vld [vmem:[%s83 + $0x60] sm:$0xf]
        %v8351 = vld [vmem:[%s83 + $0x64] sm:$0xf]
        %v8352 = vld [vmem:[%s83 + $0x68] sm:$0xf]
        %v8353 = vld [vmem:[%s83 + $0x6c] sm:$0xf]
        %v8354 = vld [vmem:[%s83 + $0x70] sm:$0xf]
        %v8355 = vld [vmem:[%s83 + $0x74] sm:$0xf]
        %v8356 = vld [vmem:[%s83 + $0x78] sm:$0xf]
        %v8357 = vld [vmem:[%s83 + $0x7c] sm:$0xf]
        %v8358 = vld [vmem:[%s83 + $0x80] sm:$0xf]
        %v8359 = vld [vmem:[%s83 + $0x84] sm:$0xf]
        %v8360 = vld [vmem:[%s83 + $0x88] sm:$0xf]
        %v8361 = vld [vmem:[%s83 + $0x8c] sm:$0xf]
        %v8362 = vld [vmem:[%s83 + $0x90] sm:$0xf]
        %v8363 = vld [vmem:[%s83 + $0x94] sm:$0xf]
        %v8364 = vld [vmem:[%s83 + $0x98] sm:$0xf]
        %v8365 = vld [vmem:[%s83 + $0x9c] sm:$0xf]
        %v8366 = vld [vmem:[%s83 + $0xa0] sm:$0xf]
        %v8367 = vld [vmem:[%s83 + $0xa4] sm:$0xf]
        %v8368 = vld [vmem:[%s83 + $0xa8] sm:$0xf]
        %v8369 = vld [vmem:[%s83 + $0xac] sm:$0xf]
        %v8370 = vld [vmem:[%s83 + $0xb0] sm:$0xf]
        %v8371 = vld [vmem:[%s83 + $0xb4] sm:$0xf]
        %v8372 = vld [vmem:[%s83 + $0xb8] sm:$0xf]
        %v8373 = vld [vmem:[%s83 + $0xbc] sm:$0xf]
        %v8374 = vpack.c.bf16 %v8323, %v8323
        %v8375 = vpack.c.bf16 %v8324, %v8324
        %v8376 = vpack.c.bf16 %v8325, %v8325
        %v8425 = vunpack.c.l.b16 %v8326
        %v8426 = vunpack.c.l.b16 %v8327
        %v8427 = vunpack.c.l.b16 %v8328
        %v8428 = vunpack.c.l.b16 %v8329
        %v8429 = vunpack.c.l.b16 %v8330
        %v8430 = vunpack.c.l.b16 %v8331
        %v8431 = vunpack.c.l.b16 %v8332
        %v8432 = vunpack.c.l.b16 %v8333
        %v8433 = vunpack.c.l.b16 %v8334
        %v8434 = vunpack.c.l.b16 %v8335
        %v8435 = vunpack.c.l.b16 %v8336
        %v8436 = vunpack.c.l.b16 %v8337
        %v8437 = vunpack.c.l.b16 %v8338
        %v8438 = vunpack.c.l.b16 %v8339
        %v8439 = vunpack.c.l.b16 %v8340
        %v8440 = vunpack.c.l.b16 %v8341
        %v8441 = vunpack.c.l.b16 %v8342
        %v8442 = vunpack.c.l.b16 %v8343
        %v8443 = vunpack.c.l.b16 %v8344
        %v8444 = vunpack.c.l.b16 %v8345
        %v8445 = vunpack.c.l.b16 %v8346
        %v8446 = vunpack.c.l.b16 %v8347
        %v8447 = vunpack.c.l.b16 %v8348
        %v8448 = vunpack.c.l.b16 %v8349
        %v8449 = vunpack.c.l.b16 %v8350
        %v8450 = vunpack.c.l.b16 %v8351
        %v8451 = vunpack.c.l.b16 %v8352
        %v8452 = vunpack.c.l.b16 %v8353
        %v8453 = vunpack.c.l.b16 %v8354
        %v8454 = vunpack.c.l.b16 %v8355
        %v8455 = vunpack.c.l.b16 %v8356
        %v8456 = vunpack.c.l.b16 %v8357
        %v8457 = vunpack.c.l.b16 %v8358
        %v8458 = vunpack.c.l.b16 %v8359
        %v8459 = vunpack.c.l.b16 %v8360
        %v8460 = vunpack.c.l.b16 %v8361
        %v8461 = vunpack.c.l.b16 %v8362
        %v8462 = vunpack.c.l.b16 %v8363
        %v8463 = vunpack.c.l.b16 %v8364
        %v8464 = vunpack.c.l.b16 %v8365
        %v8465 = vunpack.c.l.b16 %v8366
        %v8466 = vunpack.c.l.b16 %v8367
        %v8467 = vunpack.c.l.b16 %v8368
        %v8468 = vunpack.c.l.b16 %v8369
        %v8469 = vunpack.c.l.b16 %v8370
        %v8470 = vunpack.c.l.b16 %v8371
        %v8471 = vunpack.c.l.b16 %v8372
        %v8472 = vunpack.c.l.b16 %v8373
        %v8473 = vpack.c.b16 %v8426, %v8425
        %v8474 = vpack.c.b16 %v8428, %v8427
        %v8475 = vpack.c.b16 %v8430, %v8429
        %v8476 = vpack.c.b16 %v8432, %v8431
        %v8477 = vpack.c.b16 %v8434, %v8433
        %v8478 = vpack.c.b16 %v8436, %v8435
        %v8479 = vpack.c.b16 %v8438, %v8437
        %v8480 = vpack.c.b16 %v8440, %v8439
        %v8481 = vpack.c.b16 %v8442, %v8441
        %v8482 = vpack.c.b16 %v8444, %v8443
        %v8483 = vpack.c.b16 %v8446, %v8445
        %v8484 = vpack.c.b16 %v8448, %v8447
        %v8485 = vpack.c.b16 %v8450, %v8449
        %v8486 = vpack.c.b16 %v8452, %v8451
        %v8487 = vpack.c.b16 %v8454, %v8453
        %v8488 = vpack.c.b16 %v8456, %v8455
        %v8489 = vpack.c.b16 %v8458, %v8457
        %v8490 = vpack.c.b16 %v8460, %v8459
        %v8491 = vpack.c.b16 %v8462, %v8461
        %v8492 = vpack.c.b16 %v8464, %v8463
        %v8493 = vpack.c.b16 %v8466, %v8465
        %v8494 = vpack.c.b16 %v8468, %v8467
        %v8495 = vpack.c.b16 %v8470, %v8469
        %v8496 = vpack.c.b16 %v8472, %v8471
        %8521 = vmatprep.subr.bf16.mxu0 0
        %8522 = vmatpush1.bf16.msra.mxu0 %v8473
        %8523 = vmatprep.subr.bf16.mxu0 0
        %8524 = vmatpush1.bf16.msra.mxu0 %v8474
        %8525 = vmatprep.subr.bf16.mxu0 0
        %8526 = vmatpush1.bf16.msra.mxu0 %v8475
        %8527 = vmatprep.subr.bf16.mxu0 0
        %8528 = vmatpush1.bf16.msra.mxu0 %v8476
        %8529 = vmatprep.subr.bf16.mxu0 0
        %8530 = vmatpush1.bf16.msra.mxu0 %v8477
        %8531 = vmatprep.subr.bf16.mxu0 0
        %8532 = vmatpush1.bf16.msra.mxu0 %v8478
        %8533 = vmatprep.subr.bf16.mxu0 0
        %8534 = vmatpush1.bf16.msra.mxu0 %v8479
        %8535 = vmatprep.subr.bf16.mxu0 0
        %8536 = vmatpush1.bf16.msra.mxu0 %v8480
        %8537 = vmatprep.subr.bf16.mxu0 0
        %8538 = vmatpush1.bf16.msra.mxu0 %v8481
        %8539 = vmatprep.subr.bf16.mxu0 0
        %8540 = vmatpush1.bf16.msra.mxu0 %v8482
        %8541 = vmatprep.subr.bf16.mxu0 0
        %8542 = vmatpush1.bf16.msra.mxu0 %v8483
        %8543 = vmatprep.subr.bf16.mxu0 0
        %8544 = vmatpush1.bf16.msra.mxu0 %v8484
        %8545 = vmatprep.subr.bf16.mxu0 0
        %8546 = vmatpush1.bf16.msra.mxu0 %v8485
        %8547 = vmatprep.subr.bf16.mxu0 0
        %8548 = vmatpush1.bf16.msra.mxu0 %v8486
        %8549 = vmatprep.subr.bf16.mxu0 0
        %8550 = vmatpush1.bf16.msra.mxu0 %v8487
        %8551 = vmatprep.subr.bf16.mxu0 0
        %8552 = vmatpush1.bf16.msra.mxu0 %v8488
        %8553 = vmatprep.mubr.bf16.mxu0 %v8375
        %8554 = vmatmul.mubr.bf16.gmra.mrb[0].mxu0 %v8374
        %v8555 = vpop.f32.mrb[0].mxu0
        %v8556 = vadd.f32 0.0, %v8555
        %v8557 = vpop.f32.mrb[0].mxu0
        %v8558 = vpop.f32.mrb[0].mxu0
        %v8559 = vpop.f32.mrb[0].mxu0
        %8560 = vdwg.mxu0
        %8561 = vmatprep.subr.bf16.mxu0 0
        %8562 = vmatpush1.bf16.msra.mxu0 %v8489
        %8563 = vmatprep.subr.bf16.mxu0 0
        %8564 = vmatpush1.bf16.msra.mxu0 %v8490
        %8565 = vmatprep.subr.bf16.mxu0 0
        %8566 = vmatpush1.bf16.msra.mxu0 %v8491
        %8567 = vmatprep.subr.bf16.mxu0 0
        %8568 = vmatpush1.bf16.msra.mxu0 %v8492
        %8569 = vmatprep.subr.bf16.mxu0 0
        %8570 = vmatpush1.bf16.msra.mxu0 %v8493
        %8571 = vmatprep.subr.bf16.mxu0 0
        %8572 = vmatpush1.bf16.msra.mxu0 %v8494
        %8573 = vmatprep.subr.bf16.mxu0 0
        %8574 = vmatpush1.bf16.msra.mxu0 %v8495
        %8575 = vmatprep.subr.bf16.mxu0 0
        %8576 = vmatpush1.bf16.msra.mxu0 %v8496
        %8577 = vmatprep.subr.bf16.mxu0 0
        %8578 = vmatpush1.bf16.msra.mxu0 0
        %8579 = vmatprep.subr.bf16.mxu0 0
        %8580 = vmatpush1.bf16.msra.mxu0 0
        %8581 = vmatprep.subr.bf16.mxu0 0
        %8582 = vmatpush1.bf16.msra.mxu0 0
        %8583 = vmatprep.subr.bf16.mxu0 0
        %8584 = vmatpush1.bf16.msra.mxu0 0
        %8585 = vmatprep.subr.bf16.mxu0 0
        %8586 = vmatpush1.bf16.msra.mxu0 0
        %8587 = vmatprep.subr.bf16.mxu0 0
        %8588 = vmatpush1.bf16.msra.mxu0 0
        %8589 = vmatprep.subr.bf16.mxu0 0
        %8590 = vmatpush1.bf16.msra.mxu0 0
        %8591 = vmatprep.subr.bf16.mxu0 0
        %8592 = vmatpush1.bf16.msra.mxu0 0
        %8593 = vmatprep.mubr.bf16.mxu0 0
        %8594 = vmatmul.mubr.bf16.gmra.mrb[0].mxu0 %v8376
        %v8595 = vpop.f32.mrb[0].mxu0
        %v8596 = vadd.f32 %v8556, %v8595
        %v8597 = vpop.f32.mrb[0].mxu0
        %v8598 = vpop.f32.mrb[0].mxu0
        %v8599 = vpop.f32.mrb[0].mxu0
        %8600 = vdwg.mxu0
        %v8601 = vld [vmem:[#allocation11] sm:$0x1]
        %v8603 = vlaneseq
        %v8604 = vshrl.u32 %v8603, 7
        %v8605 = vsub.s32 0, %v8604
        %v8606 = vrot.slane %v8601, %v8605
        %v8608 = vmul.f32 %v8596, %v8606
        %v8609 = vld [vmem:[#allocation13] sm:$0x1]
        %v8611 = vlaneseq
        %v8612 = vshrl.u32 %v8611, 7
        %v8613 = vsub.s32 0, %v8612
        %v8614 = vrot.slane %v8609, %v8613
        %v8616 = vadd.f32 %v8608, %v8614
        %v8617 = vld [vmem:[%s91] sm:$0x3]
        %v8618 = vpack.c.bf16 %v8616, %v8616
        %vm8619 = vcmp.eq.s32.totalorder %v5042, 0
        %v8620 = vsel %vm8619, 1, 0
        %v8621 = vcvt.s32.f32 %v8620
        %v8622 = vpack.c.bf16 %v8621, %v8621
        %vm8623 = vcmask 31744
        %v8625 = vsel %vm8623, %v8622, 0
        %vm8627 = vcmask 1041408
        %v8629 = vsel %vm8627, %v8618, 0
        %8631 = vmatprep.subr.bf16.mxu0 0
        %8632 = vmatpush1.bf16.msra.mxu0 %v8629
        %8633 = vmatprep.subr.bf16.mxu0 0
        %8634 = vmatpush1.bf16.msra.mxu0 0
        %8635 = vmatprep.subr.bf16.mxu0 0
        %8636 = vmatpush1.bf16.msra.mxu0 0
        %8637 = vmatprep.subr.bf16.mxu0 0
        %8638 = vmatpush1.bf16.msra.mxu0 0
        %8639 = vmatprep.subr.bf16.mxu0 0
        %8640 = vmatpush1.bf16.msra.mxu0 0
        %8641 = vmatprep.subr.bf16.mxu0 0
        %8642 = vmatpush1.bf16.msra.mxu0 0
        %8643 = vmatprep.subr.bf16.mxu0 0
        %8644 = vmatpush1.bf16.msra.mxu0 0
        %8645 = vmatprep.subr.bf16.mxu0 0
        %8646 = vmatpush1.bf16.msra.mxu0 0
        %8647 = vmatprep.subr.bf16.mxu0 0
        %8648 = vmatpush1.bf16.msra.mxu0 0
        %8649 = vmatprep.subr.bf16.mxu0 0
        %8650 = vmatpush1.bf16.msra.mxu0 0
        %8651 = vmatprep.subr.bf16.mxu0 0
        %8652 = vmatpush1.bf16.msra.mxu0 0
        %8653 = vmatprep.subr.bf16.mxu0 0
        %8654 = vmatpush1.bf16.msra.mxu0 0
        %8655 = vmatprep.subr.bf16.mxu0 0
        %8656 = vmatpush1.bf16.msra.mxu0 0
        %8657 = vmatprep.subr.bf16.mxu0 0
        %8658 = vmatpush1.bf16.msra.mxu0 0
        %8659 = vmatprep.subr.bf16.mxu0 0
        %8660 = vmatpush1.bf16.msra.mxu0 0
        %8661 = vmatprep.subr.bf16.mxu0 0
        %8662 = vmatpush1.bf16.msra.mxu0 0
        %8663 = vmatprep.mubr.bf16.mxu0 0
        %8664 = vmatmul.mubr.bf16.gmra.mrb[0].mxu0 %v8625
        %v8665 = vpop.f32.mrb[0].mxu0
        %v8666 = vadd.f32 0.0, %v8665
        %v8667 = vpop.f32.mrb[0].mxu0
        %v8668 = vpop.f32.mrb[0].mxu0
        %v8669 = vpop.f32.mrb[0].mxu0
        %8670 = vdwg.mxu0
        %v8671 = vld [vmem:[%s89] sm:$0xff]
        %v8672 = vld [vmem:[%s89 + $0x8] sm:$0xff]
        %v8673 = vld [vmem:[%s89 + $0x10] sm:$0xff]
        %v8674 = vld [vmem:[%s89 + $0x18] sm:$0xff]
        %v8675 = vld [vmem:[%s89 + $0x20] sm:$0xff]
        %v8676 = vld [vmem:[%s89 + $0x28] sm:$0xff]
        %v8677 = vld [vmem:[%s89 + $0x30] sm:$0xff]
        %v8678 = vld [vmem:[%s89 + $0x38] sm:$0xff]
        %v8679 = vld [vmem:[%s89 + $0x40] sm:$0xff]
        %v8680 = vld [vmem:[%s89 + $0x48] sm:$0xff]
        %v8681 = vld [vmem:[%s89 + $0x50] sm:$0xff]
        %v8682 = vld [vmem:[%s89 + $0x58] sm:$0xff]
        %v8683 = vld [vmem:[%s89 + $0x60] sm:$0xff]
        %v8684 = vld [vmem:[%s89 + $0x68] sm:$0xff]
        %v8685 = vld [vmem:[%s89 + $0x70] sm:$0xff]
        %v8686 = vld [vmem:[%s89 + $0x78] sm:$0xff]
        %v8687 = vpack.c.bf16 %v8666, %v8666
        %v8704 = vunpack.c.l.b16 %v8671
        %v8705 = vunpack.c.h.b16 %v8671
        %v8706 = vunpack.c.l.b16 %v8672
        %v8707 = vunpack.c.h.b16 %v8672
        %v8708 = vunpack.c.l.b16 %v8673
        %v8709 = vunpack.c.h.b16 %v8673
        %v8710 = vunpack.c.l.b16 %v8674
        %v8711 = vunpack.c.h.b16 %v8674
        %v8712 = vunpack.c.l.b16 %v8675
        %v8713 = vunpack.c.h.b16 %v8675
        %v8714 = vunpack.c.l.b16 %v8676
        %v8715 = vunpack.c.h.b16 %v8676
        %v8716 = vunpack.c.l.b16 %v8677
        %v8717 = vunpack.c.h.b16 %v8677
        %v8718 = vunpack.c.l.b16 %v8678
        %v8719 = vunpack.c.h.b16 %v8678
        %v8720 = vunpack.c.l.b16 %v8679
        %v8721 = vunpack.c.h.b16 %v8679
        %v8722 = vunpack.c.l.b16 %v8680
        %v8723 = vunpack.c.h.b16 %v8680
        %v8724 = vunpack.c.l.b16 %v8681
        %v8725 = vunpack.c.h.b16 %v8681
        %v8726 = vunpack.c.l.b16 %v8682
        %v8727 = vunpack.c.h.b16 %v8682
        %v8728 = vunpack.c.l.b16 %v8683
        %v8729 = vunpack.c.h.b16 %v8683
        %v8730 = vunpack.c.l.b16 %v8684
        %v8731 = vunpack.c.h.b16 %v8684
        %v8732 = vunpack.c.l.b16 %v8685
        %v8733 = vunpack.c.h.b16 %v8685
        %v8734 = vunpack.c.l.b16 %v8686
        %v8735 = vunpack.c.h.b16 %v8686
        %v8736 = vpack.c.b16 %v8706, %v8704
        %v8737 = vpack.c.b16 %v8707, %v8705
        %v8738 = vpack.c.b16 %v8710, %v8708
        %v8739 = vpack.c.b16 %v8711, %v8709
        %v8740 = vpack.c.b16 %v8714, %v8712
        %v8741 = vpack.c.b16 %v8715, %v8713
        %v8742 = vpack.c.b16 %v8718, %v8716
        %v8743 = vpack.c.b16 %v8719, %v8717
        %v8744 = vpack.c.b16 %v8722, %v8720
        %v8745 = vpack.c.b16 %v8723, %v8721
        %v8746 = vpack.c.b16 %v8726, %v8724
        %v8747 = vpack.c.b16 %v8727, %v8725
        %v8748 = vpack.c.b16 %v8730, %v8728
        %v8749 = vpack.c.b16 %v8731, %v8729
        %v8750 = vpack.c.b16 %v8734, %v8732
        %v8751 = vpack.c.b16 %v8735, %v8733
        %8768 = vmatprep.subr.bf16.mxu0 %v8737
        %8769 = vmatpush1.bf16.msra.mxu0 %v8736
        %8770 = vmatprep.subr.bf16.mxu0 %v8739
        %8771 = vmatpush1.bf16.msra.mxu0 %v8738
        %8772 = vmatprep.subr.bf16.mxu0 %v8741
        %8773 = vmatpush1.bf16.msra.mxu0 %v8740
        %8774 = vmatprep.subr.bf16.mxu0 %v8743
        %8775 = vmatpush1.bf16.msra.mxu0 %v8742
        %8776 = vmatprep.subr.bf16.mxu0 %v8745
        %8777 = vmatpush1.bf16.msra.mxu0 %v8744
        %8778 = vmatprep.subr.bf16.mxu0 %v8747
        %8779 = vmatpush1.bf16.msra.mxu0 %v8746
        %8780 = vmatprep.subr.bf16.mxu0 %v8749
        %8781 = vmatpush1.bf16.msra.mxu0 %v8748
        %8782 = vmatprep.subr.bf16.mxu0 %v8751
        %8783 = vmatpush1.bf16.msra.mxu0 %v8750
        %8784 = vmatprep.subr.bf16.mxu0 0
        %8785 = vmatpush1.bf16.msra.mxu0 0
        %8786 = vmatprep.subr.bf16.mxu0 0
        %8787 = vmatpush1.bf16.msra.mxu0 0
        %8788 = vmatprep.subr.bf16.mxu0 0
        %8789 = vmatpush1.bf16.msra.mxu0 0
        %8790 = vmatprep.subr.bf16.mxu0 0
        %8791 = vmatpush1.bf16.msra.mxu0 0
        %8792 = vmatprep.subr.bf16.mxu0 0
        %8793 = vmatpush1.bf16.msra.mxu0 0
        %8794 = vmatprep.subr.bf16.mxu0 0
        %8795 = vmatpush1.bf16.msra.mxu0 0
        %8796 = vmatprep.subr.bf16.mxu0 0
        %8797 = vmatpush1.bf16.msra.mxu0 0
        %8798 = vmatprep.subr.bf16.mxu0 0
        %8799 = vmatpush1.bf16.msra.mxu0 0
        %8800 = vmatprep.mubr.bf16.mxu0 0
        %8801 = vmatmul.mubr.bf16.gmra.mrb[0].mxu0 %v8687
        %v8802 = vpop.f32.mrb[0].mxu0
        %v8803 = vadd.f32 0.0, %v8802
        %v8804 = vpop.f32.mrb[0].mxu0
        %v8805 = vadd.f32 0.0, %v8804
        %v8806 = vpop.f32.mrb[0].mxu0
        %v8807 = vpop.f32.mrb[0].mxu0
        %8808 = vdwg.mxu0
        %v8811 = vcombine.low %v8803, %v8805
        %v8813 = vunpack.c.l.s4 1966171168
        %v8814 = vunpack.c.0.s8 %v8813
        %v8815 = vlaneseq
        %v8816 = vshrl.u32 %v8815, 7
        %v8817 = vsub.s32 %v8814, %v8816
        %v8818 = vrot.slane %v8811, %v8817
        %v8820 = vunpack.c.l.s4 1966171168
        %v8821 = vunpack.c.0.s8 %v8820
        %v8822 = vlaneseq
        %v8823 = vshrl.u32 %v8822, 7
        %v8824 = vsub.s32 %v8821, %v8823
        %v8825 = vrot.slane %v8818, %v8824
        %v8827 = vadd.f32 %v8617, %v8825
        %vm8828 = vcmp.eq.s32.totalorder %v5042, 1
        %v8829 = vsel %vm8828, 1, 0
        %v8830 = vcvt.s32.f32 %v8829
        %v8831 = vpack.c.bf16 %v8830, %v8830
        %v8833 = vsel %vm8623, %v8831, 0
        %8835 = vmatprep.subr.bf16.mxu0 0
        %8836 = vmatpush1.bf16.msra.mxu0 %v8629
        %8837 = vmatprep.subr.bf16.mxu0 0
        %8838 = vmatpush1.bf16.msra.mxu0 0
        %8839 = vmatprep.subr.bf16.mxu0 0
        %8840 = vmatpush1.bf16.msra.mxu0 0
        %8841 = vmatprep.subr.bf16.mxu0 0
        %8842 = vmatpush1.bf16.msra.mxu0 0
        %8843 = vmatprep.subr.bf16.mxu0 0
        %8844 = vmatpush1.bf16.msra.mxu0 0
        %8845 = vmatprep.subr.bf16.mxu0 0
        %8846 = vmatpush1.bf16.msra.mxu0 0
        %8847 = vmatprep.subr.bf16.mxu0 0
        %8848 = vmatpush1.bf16.msra.mxu0 0
        %8849 = vmatprep.subr.bf16.mxu0 0
        %8850 = vmatpush1.bf16.msra.mxu0 0
        %8851 = vmatprep.subr.bf16.mxu0 0
        %8852 = vmatpush1.bf16.msra.mxu0 0
        %8853 = vmatprep.subr.bf16.mxu0 0
        %8854 = vmatpush1.bf16.msra.mxu0 0
        %8855 = vmatprep.subr.bf16.mxu0 0
        %8856 = vmatpush1.bf16.msra.mxu0 0
        %8857 = vmatprep.subr.bf16.mxu0 0
        %8858 = vmatpush1.bf16.msra.mxu0 0
        %8859 = vmatprep.subr.bf16.mxu0 0
        %8860 = vmatpush1.bf16.msra.mxu0 0
        %8861 = vmatprep.subr.bf16.mxu0 0
        %8862 = vmatpush1.bf16.msra.mxu0 0
        %8863 = vmatprep.subr.bf16.mxu0 0
        %8864 = vmatpush1.bf16.msra.mxu0 0
        %8865 = vmatprep.subr.bf16.mxu0 0
        %8866 = vmatpush1.bf16.msra.mxu0 0
        %8867 = vmatprep.mubr.bf16.mxu0 0
        %8868 = vmatmul.mubr.bf16.gmra.mrb[0].mxu0 %v8833
        %v8869 = vpop.f32.mrb[0].mxu0
        %v8870 = vadd.f32 0.0, %v8869
        %v8871 = vpop.f32.mrb[0].mxu0
        %v8872 = vpop.f32.mrb[0].mxu0
        %v8873 = vpop.f32.mrb[0].mxu0
        %8874 = vdwg.mxu0
        %s8875 = scalar_lea.vmem %s89, 128
        %v8876 = vld [vmem:[%s8875] sm:$0xff]
        %v8877 = vld [vmem:[%s8875 + $0x8] sm:$0xff]
        %v8878 = vld [vmem:[%s8875 + $0x10] sm:$0xff]
        %v8879 = vld [vmem:[%s8875 + $0x18] sm:$0xff]
        %v8880 = vld [vmem:[%s8875 + $0x20] sm:$0xff]
        %v8881 = vld [vmem:[%s8875 + $0x28] sm:$0xff]
        %v8882 = vld [vmem:[%s8875 + $0x30] sm:$0xff]
        %v8883 = vld [vmem:[%s8875 + $0x38] sm:$0xff]
        %v8884 = vld [vmem:[%s8875 + $0x40] sm:$0xff]
        %v8885 = vld [vmem:[%s8875 + $0x48] sm:$0xff]
        %v8886 = vld [vmem:[%s8875 + $0x50] sm:$0xff]
        %v8887 = vld [vmem:[%s8875 + $0x58] sm:$0xff]
        %v8888 = vld [vmem:[%s8875 + $0x60] sm:$0xff]
        %v8889 = vld [vmem:[%s8875 + $0x68] sm:$0xff]
        %v8890 = vld [vmem:[%s8875 + $0x70] sm:$0xff]
        %v8891 = vld [vmem:[%s8875 + $0x78] sm:$0xff]
        %v8892 = vpack.c.bf16 %v8870, %v8870
        %v8909 = vunpack.c.l.b16 %v8876
        %v8910 = vunpack.c.h.b16 %v8876
        %v8911 = vunpack.c.l.b16 %v8877
        %v8912 = vunpack.c.h.b16 %v8877
        %v8913 = vunpack.c.l.b16 %v8878
        %v8914 = vunpack.c.h.b16 %v8878
        %v8915 = vunpack.c.l.b16 %v8879
        %v8916 = vunpack.c.h.b16 %v8879
        %v8917 = vunpack.c.l.b16 %v8880
        %v8918 = vunpack.c.h.b16 %v8880
        %v8919 = vunpack.c.l.b16 %v8881
        %v8920 = vunpack.c.h.b16 %v8881
        %v8921 = vunpack.c.l.b16 %v8882
        %v8922 = vunpack.c.h.b16 %v8882
        %v8923 = vunpack.c.l.b16 %v8883
        %v8924 = vunpack.c.h.b16 %v8883
        %v8925 = vunpack.c.l.b16 %v8884
        %v8926 = vunpack.c.h.b16 %v8884
        %v8927 = vunpack.c.l.b16 %v8885
        %v8928 = vunpack.c.h.b16 %v8885
        %v8929 = vunpack.c.l.b16 %v8886
        %v8930 = vunpack.c.h.b16 %v8886
        %v8931 = vunpack.c.l.b16 %v8887
        %v8932 = vunpack.c.h.b16 %v8887
        %v8933 = vunpack.c.l.b16 %v8888
        %v8934 = vunpack.c.h.b16 %v8888
        %v8935 = vunpack.c.l.b16 %v8889
        %v8936 = vunpack.c.h.b16 %v8889
        %v8937 = vunpack.c.l.b16 %v8890
        %v8938 = vunpack.c.h.b16 %v8890
        %v8939 = vunpack.c.l.b16 %v8891
        %v8940 = vunpack.c.h.b16 %v8891
        %v8941 = vpack.c.b16 %v8911, %v8909
        %v8942 = vpack.c.b16 %v8912, %v8910
        %v8943 = vpack.c.b16 %v8915, %v8913
        %v8944 = vpack.c.b16 %v8916, %v8914
        %v8945 = vpack.c.b16 %v8919, %v8917
        %v8946 = vpack.c.b16 %v8920, %v8918
        %v8947 = vpack.c.b16 %v8923, %v8921
        %v8948 = vpack.c.b16 %v8924, %v8922
        %v8949 = vpack.c.b16 %v8927, %v8925
        %v8950 = vpack.c.b16 %v8928, %v8926
        %v8951 = vpack.c.b16 %v8931, %v8929
        %v8952 = vpack.c.b16 %v8932, %v8930
        %v8953 = vpack.c.b16 %v8935, %v8933
        %v8954 = vpack.c.b16 %v8936, %v8934
        %v8955 = vpack.c.b16 %v8939, %v8937
        %v8956 = vpack.c.b16 %v8940, %v8938
        %8973 = vmatprep.subr.bf16.mxu0 %v8942
        %8974 = vmatpush1.bf16.msra.mxu0 %v8941
        %8975 = vmatprep.subr.bf16.mxu0 %v8944
        %8976 = vmatpush1.bf16.msra.mxu0 %v8943
        %8977 = vmatprep.subr.bf16.mxu0 %v8946
        %8978 = vmatpush1.bf16.msra.mxu0 %v8945
        %8979 = vmatprep.subr.bf16.mxu0 %v8948
        %8980 = vmatpush1.bf16.msra.mxu0 %v8947
        %8981 = vmatprep.subr.bf16.mxu0 %v8950
        %8982 = vmatpush1.bf16.msra.mxu0 %v8949
        %8983 = vmatprep.subr.bf16.mxu0 %v8952
        %8984 = vmatpush1.bf16.msra.mxu0 %v8951
        %8985 = vmatprep.subr.bf16.mxu0 %v8954
        %8986 = vmatpush1.bf16.msra.mxu0 %v8953
        %8987 = vmatprep.subr.bf16.mxu0 %v8956
        %8988 = vmatpush1.bf16.msra.mxu0 %v8955
        %8989 = vmatprep.subr.bf16.mxu0 0
        %8990 = vmatpush1.bf16.msra.mxu0 0
        %8991 = vmatprep.subr.bf16.mxu0 0
        %8992 = vmatpush1.bf16.msra.mxu0 0
        %8993 = vmatprep.subr.bf16.mxu0 0
        %8994 = vmatpush1.bf16.msra.mxu0 0
        %8995 = vmatprep.subr.bf16.mxu0 0
        %8996 = vmatpush1.bf16.msra.mxu0 0
        %8997 = vmatprep.subr.bf16.mxu0 0
        %8998 = vmatpush1.bf16.msra.mxu0 0
        %8999 = vmatprep.subr.bf16.mxu0 0
        %9000 = vmatpush1.bf16.msra.mxu0 0
        %9001 = vmatprep.subr.bf16.mxu0 0
        %9002 = vmatpush1.bf16.msra.mxu0 0
        %9003 = vmatprep.subr.bf16.mxu0 0
        %9004 = vmatpush1.bf16.msra.mxu0 0
        %9005 = vmatprep.mubr.bf16.mxu0 0
        %9006 = vmatmul.mubr.bf16.gmra.mrb[0].mxu0 %v8892
        %v9007 = vpop.f32.mrb[0].mxu0
        %v9008 = vadd.f32 0.0, %v9007
        %v9009 = vpop.f32.mrb[0].mxu0
        %v9010 = vadd.f32 0.0, %v9009
        %v9011 = vpop.f32.mrb[0].mxu0
        %v9012 = vpop.f32.mrb[0].mxu0
        %9013 = vdwg.mxu0
        %v9016 = vcombine.low %v9008, %v9010
        %v9018 = vunpack.c.l.s4 1966171168
        %v9019 = vunpack.c.0.s8 %v9018
        %v9020 = vlaneseq
        %v9021 = vshrl.u32 %v9020, 7
        %v9022 = vsub.s32 %v9019, %v9021
        %v9023 = vrot.slane %v9016, %v9022
        %v9025 = vunpack.c.l.s4 1966171168
        %v9026 = vunpack.c.0.s8 %v9025
        %v9027 = vlaneseq
        %v9028 = vshrl.u32 %v9027, 7
        %v9029 = vsub.s32 %v9026, %v9028
        %v9030 = vrot.slane %v9023, %v9029
        %v9032 = vadd.f32 %v8827, %v9030
        %vm9033 = vcmp.eq.s32.totalorder %v5042, 2
        %v9034 = vsel %vm9033, 1, 0
        %v9035 = vcvt.s32.f32 %v9034
        %v9036 = vpack.c.bf16 %v9035, %v9035
        %v9038 = vsel %vm8623, %v9036, 0
        %9040 = vmatprep.subr.bf16.mxu0 0
        %9041 = vmatpush1.bf16.msra.mxu0 %v8629
        %9042 = vmatprep.subr.bf16.mxu0 0
        %9043 = vmatpush1.bf16.msra.mxu0 0
        %9044 = vmatprep.subr.bf16.mxu0 0
        %9045 = vmatpush1.bf16.msra.mxu0 0
        %9046 = vmatprep.subr.bf16.mxu0 0
        %9047 = vmatpush1.bf16.msra.mxu0 0
        %9048 = vmatprep.subr.bf16.mxu0 0
        %9049 = vmatpush1.bf16.msra.mxu0 0
        %9050 = vmatprep.subr.bf16.mxu0 0
        %9051 = vmatpush1.bf16.msra.mxu0 0
        %9052 = vmatprep.subr.bf16.mxu0 0
        %9053 = vmatpush1.bf16.msra.mxu0 0
        %9054 = vmatprep.subr.bf16.mxu0 0
        %9055 = vmatpush1.bf16.msra.mxu0 0
        %9056 = vmatprep.subr.bf16.mxu0 0
        %9057 = vmatpush1.bf16.msra.mxu0 0
        %9058 = vmatprep.subr.bf16.mxu0 0
        %9059 = vmatpush1.bf16.msra.mxu0 0
        %9060 = vmatprep.subr.bf16.mxu0 0
        %9061 = vmatpush1.bf16.msra.mxu0 0
        %9062 = vmatprep.subr.bf16.mxu0 0
        %9063 = vmatpush1.bf16.msra.mxu0 0
        %9064 = vmatprep.subr.bf16.mxu0 0
        %9065 = vmatpush1.bf16.msra.mxu0 0
        %9066 = vmatprep.subr.bf16.mxu0 0
        %9067 = vmatpush1.bf16.msra.mxu0 0
        %9068 = vmatprep.subr.bf16.mxu0 0
        %9069 = vmatpush1.bf16.msra.mxu0 0
        %9070 = vmatprep.subr.bf16.mxu0 0
        %9071 = vmatpush1.bf16.msra.mxu0 0
        %9072 = vmatprep.mubr.bf16.mxu0 0
        %9073 = vmatmul.mubr.bf16.gmra.mrb[0].mxu0 %v9038
        %v9074 = vpop.f32.mrb[0].mxu0
        %v9075 = vadd.f32 0.0, %v9074
        %v9076 = vpop.f32.mrb[0].mxu0
        %v9077 = vpop.f32.mrb[0].mxu0
        %v9078 = vpop.f32.mrb[0].mxu0
        %9079 = vdwg.mxu0
        %s9080 = scalar_lea.vmem %s89, 256
        %v9081 = vld [vmem:[%s9080] sm:$0xff]
        %v9082 = vld [vmem:[%s9080 + $0x8] sm:$0xff]
        %v9083 = vld [vmem:[%s9080 + $0x10] sm:$0xff]
        %v9084 = vld [vmem:[%s9080 + $0x18] sm:$0xff]
        %v9085 = vld [vmem:[%s9080 + $0x20] sm:$0xff]
        %v9086 = vld [vmem:[%s9080 + $0x28] sm:$0xff]
        %v9087 = vld [vmem:[%s9080 + $0x30] sm:$0xff]
        %v9088 = vld [vmem:[%s9080 + $0x38] sm:$0xff]
        %v9089 = vld [vmem:[%s9080 + $0x40] sm:$0xff]
        %v9090 = vld [vmem:[%s9080 + $0x48] sm:$0xff]
        %v9091 = vld [vmem:[%s9080 + $0x50] sm:$0xff]
        %v9092 = vld [vmem:[%s9080 + $0x58] sm:$0xff]
        %v9093 = vld [vmem:[%s9080 + $0x60] sm:$0xff]
        %v9094 = vld [vmem:[%s9080 + $0x68] sm:$0xff]
        %v9095 = vld [vmem:[%s9080 + $0x70] sm:$0xff]
        %v9096 = vld [vmem:[%s9080 + $0x78] sm:$0xff]
        %v9097 = vpack.c.bf16 %v9075, %v9075
        %v9114 = vunpack.c.l.b16 %v9081
        %v9115 = vunpack.c.h.b16 %v9081
        %v9116 = vunpack.c.l.b16 %v9082
        %v9117 = vunpack.c.h.b16 %v9082
        %v9118 = vunpack.c.l.b16 %v9083
        %v9119 = vunpack.c.h.b16 %v9083
        %v9120 = vunpack.c.l.b16 %v9084
        %v9121 = vunpack.c.h.b16 %v9084
        %v9122 = vunpack.c.l.b16 %v9085
        %v9123 = vunpack.c.h.b16 %v9085
        %v9124 = vunpack.c.l.b16 %v9086
        %v9125 = vunpack.c.h.b16 %v9086
        %v9126 = vunpack.c.l.b16 %v9087
        %v9127 = vunpack.c.h.b16 %v9087
        %v9128 = vunpack.c.l.b16 %v9088
        %v9129 = vunpack.c.h.b16 %v9088
        %v9130 = vunpack.c.l.b16 %v9089
        %v9131 = vunpack.c.h.b16 %v9089
        %v9132 = vunpack.c.l.b16 %v9090
        %v9133 = vunpack.c.h.b16 %v9090
        %v9134 = vunpack.c.l.b16 %v9091
        %v9135 = vunpack.c.h.b16 %v9091
        %v9136 = vunpack.c.l.b16 %v9092
        %v9137 = vunpack.c.h.b16 %v9092
        %v9138 = vunpack.c.l.b16 %v9093
        %v9139 = vunpack.c.h.b16 %v9093
        %v9140 = vunpack.c.l.b16 %v9094
        %v9141 = vunpack.c.h.b16 %v9094
        %v9142 = vunpack.c.l.b16 %v9095
        %v9143 = vunpack.c.h.b16 %v9095
        %v9144 = vunpack.c.l.b16 %v9096
        %v9145 = vunpack.c.h.b16 %v9096
        %v9146 = vpack.c.b16 %v9116, %v9114
        %v9147 = vpack.c.b16 %v9117, %v9115
        %v9148 = vpack.c.b16 %v9120, %v9118
        %v9149 = vpack.c.b16 %v9121, %v9119
        %v9150 = vpack.c.b16 %v9124, %v9122
        %v9151 = vpack.c.b16 %v9125, %v9123
        %v9152 = vpack.c.b16 %v9128, %v9126
        %v9153 = vpack.c.b16 %v9129, %v9127
        %v9154 = vpack.c.b16 %v9132, %v9130
        %v9155 = vpack.c.b16 %v9133, %v9131
        %v9156 = vpack.c.b16 %v9136, %v9134
        %v9157 = vpack.c.b16 %v9137, %v9135
        %v9158 = vpack.c.b16 %v9140, %v9138
        %v9159 = vpack.c.b16 %v9141, %v9139
        %v9160 = vpack.c.b16 %v9144, %v9142
        %v9161 = vpack.c.b16 %v9145, %v9143
        %9178 = vmatprep.subr.bf16.mxu0 %v9147
        %9179 = vmatpush1.bf16.msra.mxu0 %v9146
        %9180 = vmatprep.subr.bf16.mxu0 %v9149
        %9181 = vmatpush1.bf16.msra.mxu0 %v9148
        %9182 = vmatprep.subr.bf16.mxu0 %v9151
        %9183 = vmatpush1.bf16.msra.mxu0 %v9150
        %9184 = vmatprep.subr.bf16.mxu0 %v9153
        %9185 = vmatpush1.bf16.msra.mxu0 %v9152
        %9186 = vmatprep.subr.bf16.mxu0 %v9155
        %9187 = vmatpush1.bf16.msra.mxu0 %v9154
        %9188 = vmatprep.subr.bf16.mxu0 %v9157
        %9189 = vmatpush1.bf16.msra.mxu0 %v9156
        %9190 = vmatprep.subr.bf16.mxu0 %v9159
        %9191 = vmatpush1.bf16.msra.mxu0 %v9158
        %9192 = vmatprep.subr.bf16.mxu0 %v9161
        %9193 = vmatpush1.bf16.msra.mxu0 %v9160
        %9194 = vmatprep.subr.bf16.mxu0 0
        %9195 = vmatpush1.bf16.msra.mxu0 0
        %9196 = vmatprep.subr.bf16.mxu0 0
        %9197 = vmatpush1.bf16.msra.mxu0 0
        %9198 = vmatprep.subr.bf16.mxu0 0
        %9199 = vmatpush1.bf16.msra.mxu0 0
        %9200 = vmatprep.subr.bf16.mxu0 0
        %9201 = vmatpush1.bf16.msra.mxu0 0
        %9202 = vmatprep.subr.bf16.mxu0 0
        %9203 = vmatpush1.bf16.msra.mxu0 0
        %9204 = vmatprep.subr.bf16.mxu0 0
        %9205 = vmatpush1.bf16.msra.mxu0 0
        %9206 = vmatprep.subr.bf16.mxu0 0
        %9207 = vmatpush1.bf16.msra.mxu0 0
        %9208 = vmatprep.subr.bf16.mxu0 0
        %9209 = vmatpush1.bf16.msra.mxu0 0
        %9210 = vmatprep.mubr.bf16.mxu0 0
        %9211 = vmatmul.mubr.bf16.gmra.mrb[0].mxu0 %v9097
        %v9212 = vpop.f32.mrb[0].mxu0
        %v9213 = vadd.f32 0.0, %v9212
        %v9214 = vpop.f32.mrb[0].mxu0
        %v9215 = vadd.f32 0.0, %v9214
        %v9216 = vpop.f32.mrb[0].mxu0
        %v9217 = vpop.f32.mrb[0].mxu0
        %9218 = vdwg.mxu0
        %v9221 = vcombine.low %v9213, %v9215
        %v9223 = vunpack.c.l.s4 1966171168
        %v9224 = vunpack.c.0.s8 %v9223
        %v9225 = vlaneseq
        %v9226 = vshrl.u32 %v9225, 7
        %v9227 = vsub.s32 %v9224, %v9226
        %v9228 = vrot.slane %v9221, %v9227
        %v9230 = vunpack.c.l.s4 1966171168
        %v9231 = vunpack.c.0.s8 %v9230
        %v9232 = vlaneseq
        %v9233 = vshrl.u32 %v9232, 7
        %v9234 = vsub.s32 %v9231, %v9233
        %v9235 = vrot.slane %v9228, %v9234
        %v9237 = vadd.f32 %v9032, %v9235
        %vm9238 = vcmp.eq.s32.totalorder %v5042, 3
        %v9239 = vsel %vm9238, 1, 0
        %v9240 = vcvt.s32.f32 %v9239
        %v9241 = vpack.c.bf16 %v9240, %v9240
        %v9243 = vsel %vm8623, %v9241, 0
        %9245 = vmatprep.subr.bf16.mxu0 0
        %9246 = vmatpush1.bf16.msra.mxu0 %v8629
        %9247 = vmatprep.subr.bf16.mxu0 0
        %9248 = vmatpush1.bf16.msra.mxu0 0
        %9249 = vmatprep.subr.bf16.mxu0 0
        %9250 = vmatpush1.bf16.msra.mxu0 0
        %9251 = vmatprep.subr.bf16.mxu0 0
        %9252 = vmatpush1.bf16.msra.mxu0 0
        %9253 = vmatprep.subr.bf16.mxu0 0
        %9254 = vmatpush1.bf16.msra.mxu0 0
        %9255 = vmatprep.subr.bf16.mxu0 0
        %9256 = vmatpush1.bf16.msra.mxu0 0
        %9257 = vmatprep.subr.bf16.mxu0 0
        %9258 = vmatpush1.bf16.msra.mxu0 0
        %9259 = vmatprep.subr.bf16.mxu0 0
        %9260 = vmatpush1.bf16.msra.mxu0 0
        %9261 = vmatprep.subr.bf16.mxu0 0
        %9262 = vmatpush1.bf16.msra.mxu0 0
        %9263 = vmatprep.subr.bf16.mxu0 0
        %9264 = vmatpush1.bf16.msra.mxu0 0
        %9265 = vmatprep.subr.bf16.mxu0 0
        %9266 = vmatpush1.bf16.msra.mxu0 0
        %9267 = vmatprep.subr.bf16.mxu0 0
        %9268 = vmatpush1.bf16.msra.mxu0 0
        %9269 = vmatprep.subr.bf16.mxu0 0
        %9270 = vmatpush1.bf16.msra.mxu0 0
        %9271 = vmatprep.subr.bf16.mxu0 0
        %9272 = vmatpush1.bf16.msra.mxu0 0
        %9273 = vmatprep.subr.bf16.mxu0 0
        %9274 = vmatpush1.bf16.msra.mxu0 0
        %9275 = vmatprep.subr.bf16.mxu0 0
        %9276 = vmatpush1.bf16.msra.mxu0 0
        %9277 = vmatprep.mubr.bf16.mxu0 0
        %9278 = vmatmul.mubr.bf16.gmra.mrb[0].mxu0 %v9243
        %v9279 = vpop.f32.mrb[0].mxu0
        %v9280 = vadd.f32 0.0, %v9279
        %v9281 = vpop.f32.mrb[0].mxu0
        %v9282 = vpop.f32.mrb[0].mxu0
        %v9283 = vpop.f32.mrb[0].mxu0
        %9284 = vdwg.mxu0
        %s9285 = scalar_lea.vmem %s89, 384
        %v9286 = vld [vmem:[%s9285] sm:$0xff]
        %v9287 = vld [vmem:[%s9285 + $0x8] sm:$0xff]
        %v9288 = vld [vmem:[%s9285 + $0x10] sm:$0xff]
        %v9289 = vld [vmem:[%s9285 + $0x18] sm:$0xff]
        %v9290 = vld [vmem:[%s9285 + $0x20] sm:$0xff]
        %v9291 = vld [vmem:[%s9285 + $0x28] sm:$0xff]
        %v9292 = vld [vmem:[%s9285 + $0x30] sm:$0xff]
        %v9293 = vld [vmem:[%s9285 + $0x38] sm:$0xff]
        %v9294 = vld [vmem:[%s9285 + $0x40] sm:$0xff]
        %v9295 = vld [vmem:[%s9285 + $0x48] sm:$0xff]
        %v9296 = vld [vmem:[%s9285 + $0x50] sm:$0xff]
        %v9297 = vld [vmem:[%s9285 + $0x58] sm:$0xff]
        %v9298 = vld [vmem:[%s9285 + $0x60] sm:$0xff]
        %v9299 = vld [vmem:[%s9285 + $0x68] sm:$0xff]
        %v9300 = vld [vmem:[%s9285 + $0x70] sm:$0xff]
        %v9301 = vld [vmem:[%s9285 + $0x78] sm:$0xff]
        %v9302 = vpack.c.bf16 %v9280, %v9280
        %v9319 = vunpack.c.l.b16 %v9286
        %v9320 = vunpack.c.h.b16 %v9286
        %v9321 = vunpack.c.l.b16 %v9287
        %v9322 = vunpack.c.h.b16 %v9287
        %v9323 = vunpack.c.l.b16 %v9288
        %v9324 = vunpack.c.h.b16 %v9288
        %v9325 = vunpack.c.l.b16 %v9289
        %v9326 = vunpack.c.h.b16 %v9289
        %v9327 = vunpack.c.l.b16 %v9290
        %v9328 = vunpack.c.h.b16 %v9290
        %v9329 = vunpack.c.l.b16 %v9291
        %v9330 = vunpack.c.h.b16 %v9291
        %v9331 = vunpack.c.l.b16 %v9292
        %v9332 = vunpack.c.h.b16 %v9292
        %v9333 = vunpack.c.l.b16 %v9293
        %v9334 = vunpack.c.h.b16 %v9293
        %v9335 = vunpack.c.l.b16 %v9294
        %v9336 = vunpack.c.h.b16 %v9294
        %v9337 = vunpack.c.l.b16 %v9295
        %v9338 = vunpack.c.h.b16 %v9295
        %v9339 = vunpack.c.l.b16 %v9296
        %v9340 = vunpack.c.h.b16 %v9296
        %v9341 = vunpack.c.l.b16 %v9297
        %v9342 = vunpack.c.h.b16 %v9297
        %v9343 = vunpack.c.l.b16 %v9298
        %v9344 = vunpack.c.h.b16 %v9298
        %v9345 = vunpack.c.l.b16 %v9299
        %v9346 = vunpack.c.h.b16 %v9299
        %v9347 = vunpack.c.l.b16 %v9300
        %v9348 = vunpack.c.h.b16 %v9300
        %v9349 = vunpack.c.l.b16 %v9301
        %v9350 = vunpack.c.h.b16 %v9301
        %v9351 = vpack.c.b16 %v9321, %v9319
        %v9352 = vpack.c.b16 %v9322, %v9320
        %v9353 = vpack.c.b16 %v9325, %v9323
        %v9354 = vpack.c.b16 %v9326, %v9324
        %v9355 = vpack.c.b16 %v9329, %v9327
        %v9356 = vpack.c.b16 %v9330, %v9328
        %v9357 = vpack.c.b16 %v9333, %v9331
        %v9358 = vpack.c.b16 %v9334, %v9332
        %v9359 = vpack.c.b16 %v9337, %v9335
        %v9360 = vpack.c.b16 %v9338, %v9336
        %v9361 = vpack.c.b16 %v9341, %v9339
        %v9362 = vpack.c.b16 %v9342, %v9340
        %v9363 = vpack.c.b16 %v9345, %v9343
        %v9364 = vpack.c.b16 %v9346, %v9344
        %v9365 = vpack.c.b16 %v9349, %v9347
        %v9366 = vpack.c.b16 %v9350, %v9348
        %9383 = vmatprep.subr.bf16.mxu0 %v9352
        %9384 = vmatpush1.bf16.msra.mxu0 %v9351
        %9385 = vmatprep.subr.bf16.mxu0 %v9354
        %9386 = vmatpush1.bf16.msra.mxu0 %v9353
        %9387 = vmatprep.subr.bf16.mxu0 %v9356
        %9388 = vmatpush1.bf16.msra.mxu0 %v9355
        %9389 = vmatprep.subr.bf16.mxu0 %v9358
        %9390 = vmatpush1.bf16.msra.mxu0 %v9357
        %9391 = vmatprep.subr.bf16.mxu0 %v9360
        %9392 = vmatpush1.bf16.msra.mxu0 %v9359
        %9393 = vmatprep.subr.bf16.mxu0 %v9362
        %9394 = vmatpush1.bf16.msra.mxu0 %v9361
        %9395 = vmatprep.subr.bf16.mxu0 %v9364
        %9396 = vmatpush1.bf16.msra.mxu0 %v9363
        %9397 = vmatprep.subr.bf16.mxu0 %v9366
        %9398 = vmatpush1.bf16.msra.mxu0 %v9365
        %9399 = vmatprep.subr.bf16.mxu0 0
        %9400 = vmatpush1.bf16.msra.mxu0 0
        %9401 = vmatprep.subr.bf16.mxu0 0
        %9402 = vmatpush1.bf16.msra.mxu0 0
        %9403 = vmatprep.subr.bf16.mxu0 0
        %9404 = vmatpush1.bf16.msra.mxu0 0
        %9405 = vmatprep.subr.bf16.mxu0 0
        %9406 = vmatpush1.bf16.msra.mxu0 0
        %9407 = vmatprep.subr.bf16.mxu0 0
        %9408 = vmatpush1.bf16.msra.mxu0 0
        %9409 = vmatprep.subr.bf16.mxu0 0
        %9410 = vmatpush1.bf16.msra.mxu0 0
        %9411 = vmatprep.subr.bf16.mxu0 0
        %9412 = vmatpush1.bf16.msra.mxu0 0
        %9413 = vmatprep.subr.bf16.mxu0 0
        %9414 = vmatpush1.bf16.msra.mxu0 0
        %9415 = vmatprep.mubr.bf16.mxu0 0
        %9416 = vmatmul.mubr.bf16.gmra.mrb[0].mxu0 %v9302
        %v9417 = vpop.f32.mrb[0].mxu0
        %v9418 = vadd.f32 0.0, %v9417
        %v9419 = vpop.f32.mrb[0].mxu0
        %v9420 = vadd.f32 0.0, %v9419
        %v9421 = vpop.f32.mrb[0].mxu0
        %v9422 = vpop.f32.mrb[0].mxu0
        %9423 = vdwg.mxu0
        %v9426 = vcombine.low %v9418, %v9420
        %v9428 = vunpack.c.l.s4 1966171168
        %v9429 = vunpack.c.0.s8 %v9428
        %v9430 = vlaneseq
        %v9431 = vshrl.u32 %v9430, 7
        %v9432 = vsub.s32 %v9429, %v9431
        %v9433 = vrot.slane %v9426, %v9432
        %v9435 = vunpack.c.l.s4 1966171168
        %v9436 = vunpack.c.0.s8 %v9435
        %v9437 = vlaneseq
        %v9438 = vshrl.u32 %v9437, 7
        %v9439 = vsub.s32 %v9436, %v9438
        %v9440 = vrot.slane %v9433, %v9439
        %v9442 = vadd.f32 %v9237, %v9440
        %vm9443 = vcmp.gt.f32.partialorder %v9442, 0.0
        %v9444 = vmul.f32 %v9442, 0.3
        %v9445 = vsel %vm9443, %v9442, %v9444
        %v9446 = vld [vmem:[%s93] sm:$0xff]
        %v9447 = vld [vmem:[%s93 + $0x8] sm:$0xff]
        %v9448 = vld [vmem:[%s93 + $0x10] sm:$0xff]
        %v9449 = vld [vmem:[%s93 + $0x18] sm:$0xff]
        %v9450 = vld [vmem:[%s93 + $0x20] sm:$0xff]
        %v9451 = vld [vmem:[%s93 + $0x28] sm:$0xff]
        %v9452 = vld [vmem:[%s93 + $0x30] sm:$0xff]
        %v9453 = vld [vmem:[%s93 + $0x38] sm:$0xff]
        %v9454 = vld [vmem:[%s93 + $0x40] sm:$0xff]
        %v9455 = vld [vmem:[%s93 + $0x48] sm:$0xff]
        %v9456 = vld [vmem:[%s93 + $0x50] sm:$0xff]
        %v9457 = vld [vmem:[%s93 + $0x58] sm:$0xff]
        %v9458 = vld [vmem:[%s93 + $0x60] sm:$0xff]
        %v9459 = vld [vmem:[%s93 + $0x68] sm:$0xff]
        %v9460 = vld [vmem:[%s93 + $0x70] sm:$0xff]
        %v9461 = vld [vmem:[%s93 + $0x78] sm:$0xff]
        %v9462 = vld [vmem:[%s93 + $0x80] sm:$0xff]
        %v9463 = vld [vmem:[%s93 + $0x88] sm:$0xff]
        %v9464 = vld [vmem:[%s93 + $0x90] sm:$0xff]
        %v9465 = vld [vmem:[%s93 + $0x98] sm:$0xff]
        %v9466 = vld [vmem:[%s93 + $0xa0] sm:$0xff]
        %v9467 = vld [vmem:[%s93 + $0xa8] sm:$0xff]
        %v9468 = vld [vmem:[%s93 + $0xb0] sm:$0xff]
        %v9469 = vld [vmem:[%s93 + $0xb8] sm:$0xff]
        %v9470 = vld [vmem:[%s93 + $0xc0] sm:$0xff]
        %v9471 = vld [vmem:[%s93 + $0xc8] sm:$0xff]
        %v9472 = vld [vmem:[%s93 + $0xd0] sm:$0xff]
        %v9473 = vld [vmem:[%s93 + $0xd8] sm:$0xff]
        %v9474 = vld [vmem:[%s93 + $0xe0] sm:$0xff]
        %v9475 = vld [vmem:[%s93 + $0xe8] sm:$0xff]
        %v9476 = vld [vmem:[%s93 + $0xf0] sm:$0xff]
        %v9477 = vld [vmem:[%s93 + $0xf8] sm:$0xff]
        %v9479 = vlaneseq
        %v9480 = vshrl.u32 %v9479, 7
        %v9481 = vsub.s32 0, %v9480
        %v9482 = vrot.slane %v9445, %v9481
        %v9483 = vlaneseq
        %v9484 = vshrl.u32 %v9483, 7
        %v9485 = vsub.s32 1, %v9484
        %v9486 = vrot.slane %v9445, %v9485
        %v9489 = vpack.c.bf16 %v9482, %v9482
        %v9490 = vpack.c.bf16 %v9486, %v9486
        %v9491 = vld [vmem:[%s95] sm:$0x3]
        %v9524 = vunpack.c.l.b16 %v9446
        %v9525 = vunpack.c.h.b16 %v9446
        %v9526 = vunpack.c.l.b16 %v9447
        %v9527 = vunpack.c.h.b16 %v9447
        %v9528 = vunpack.c.l.b16 %v9448
        %v9529 = vunpack.c.h.b16 %v9448
        %v9530 = vunpack.c.l.b16 %v9449
        %v9531 = vunpack.c.h.b16 %v9449
        %v9532 = vunpack.c.l.b16 %v9450
        %v9533 = vunpack.c.h.b16 %v9450
        %v9534 = vunpack.c.l.b16 %v9451
        %v9535 = vunpack.c.h.b16 %v9451
        %v9536 = vunpack.c.l.b16 %v9452
        %v9537 = vunpack.c.h.b16 %v9452
        %v9538 = vunpack.c.l.b16 %v9453
        %v9539 = vunpack.c.h.b16 %v9453
        %v9540 = vunpack.c.l.b16 %v9454
        %v9541 = vunpack.c.h.b16 %v9454
        %v9542 = vunpack.c.l.b16 %v9455
        %v9543 = vunpack.c.h.b16 %v9455
        %v9544 = vunpack.c.l.b16 %v9456
        %v9545 = vunpack.c.h.b16 %v9456
        %v9546 = vunpack.c.l.b16 %v9457
        %v9547 = vunpack.c.h.b16 %v9457
        %v9548 = vunpack.c.l.b16 %v9458
        %v9549 = vunpack.c.h.b16 %v9458
        %v9550 = vunpack.c.l.b16 %v9459
        %v9551 = vunpack.c.h.b16 %v9459
        %v9552 = vunpack.c.l.b16 %v9460
        %v9553 = vunpack.c.h.b16 %v9460
        %v9554 = vunpack.c.l.b16 %v9461
        %v9555 = vunpack.c.h.b16 %v9461
        %v9556 = vunpack.c.l.b16 %v9462
        %v9557 = vunpack.c.h.b16 %v9462
        %v9558 = vunpack.c.l.b16 %v9463
        %v9559 = vunpack.c.h.b16 %v9463
        %v9560 = vunpack.c.l.b16 %v9464
        %v9561 = vunpack.c.h.b16 %v9464
        %v9562 = vunpack.c.l.b16 %v9465
        %v9563 = vunpack.c.h.b16 %v9465
        %v9564 = vunpack.c.l.b16 %v9466
        %v9565 = vunpack.c.h.b16 %v9466
        %v9566 = vunpack.c.l.b16 %v9467
        %v9567 = vunpack.c.h.b16 %v9467
        %v9568 = vunpack.c.l.b16 %v9468
        %v9569 = vunpack.c.h.b16 %v9468
        %v9570 = vunpack.c.l.b16 %v9469
        %v9571 = vunpack.c.h.b16 %v9469
        %v9572 = vunpack.c.l.b16 %v9470
        %v9573 = vunpack.c.h.b16 %v9470
        %v9574 = vunpack.c.l.b16 %v9471
        %v9575 = vunpack.c.h.b16 %v9471
        %v9576 = vunpack.c.l.b16 %v9472
        %v9577 = vunpack.c.h.b16 %v9472
        %v9578 = vunpack.c.l.b16 %v9473
        %v9579 = vunpack.c.h.b16 %v9473
        %v9580 = vunpack.c.l.b16 %v9474
        %v9581 = vunpack.c.h.b16 %v9474
        %v9582 = vunpack.c.l.b16 %v9475
        %v9583 = vunpack.c.h.b16 %v9475
        %v9584 = vunpack.c.l.b16 %v9476
        %v9585 = vunpack.c.h.b16 %v9476
        %v9586 = vunpack.c.l.b16 %v9477
        %v9587 = vunpack.c.h.b16 %v9477
        %v9588 = vpack.c.b16 %v9526, %v9524
        %v9589 = vpack.c.b16 %v9527, %v9525
        %v9590 = vpack.c.b16 %v9530, %v9528
        %v9591 = vpack.c.b16 %v9531, %v9529
        %v9592 = vpack.c.b16 %v9534, %v9532
        %v9593 = vpack.c.b16 %v9535, %v9533
        %v9594 = vpack.c.b16 %v9538, %v9536
        %v9595 = vpack.c.b16 %v9539, %v9537
        %v9596 = vpack.c.b16 %v9542, %v9540
        %v9597 = vpack.c.b16 %v9543, %v9541
        %v9598 = vpack.c.b16 %v9546, %v9544
        %v9599 = vpack.c.b16 %v9547, %v9545
        %v9600 = vpack.c.b16 %v9550, %v9548
        %v9601 = vpack.c.b16 %v9551, %v9549
        %v9602 = vpack.c.b16 %v9554, %v9552
        %v9603 = vpack.c.b16 %v9555, %v9553
        %v9604 = vpack.c.b16 %v9558, %v9556
        %v9605 = vpack.c.b16 %v9559, %v9557
        %v9606 = vpack.c.b16 %v9562, %v9560
        %v9607 = vpack.c.b16 %v9563, %v9561
        %v9608 = vpack.c.b16 %v9566, %v9564
        %v9609 = vpack.c.b16 %v9567, %v9565
        %v9610 = vpack.c.b16 %v9570, %v9568
        %v9611 = vpack.c.b16 %v9571, %v9569
        %v9612 = vpack.c.b16 %v9574, %v9572
        %v9613 = vpack.c.b16 %v9575, %v9573
        %v9614 = vpack.c.b16 %v9578, %v9576
        %v9615 = vpack.c.b16 %v9579, %v9577
        %v9616 = vpack.c.b16 %v9582, %v9580
        %v9617 = vpack.c.b16 %v9583, %v9581
        %v9618 = vpack.c.b16 %v9586, %v9584
        %v9619 = vpack.c.b16 %v9587, %v9585
        %v9653 = vlaneseq
        %v9654 = vshrl.u32 %v9653, 7
        %v9655 = vsub.s32 0, %v9654
        %v9656 = vrot.slane %v9491, %v9655
        %v9657 = vlaneseq
        %v9658 = vshrl.u32 %v9657, 7
        %v9659 = vsub.s32 1, %v9658
        %v9660 = vrot.slane %v9491, %v9659
        %9663 = vmatprep.subr.bf16.mxu0 %v9589
        %9664 = vmatpush1.bf16.msra.mxu0 %v9588
        %9665 = vmatprep.subr.bf16.mxu0 %v9591
        %9666 = vmatpush1.bf16.msra.mxu0 %v9590
        %9667 = vmatprep.subr.bf16.mxu0 %v9593
        %9668 = vmatpush1.bf16.msra.mxu0 %v9592
        %9669 = vmatprep.subr.bf16.mxu0 %v9595
        %9670 = vmatpush1.bf16.msra.mxu0 %v9594
        %9671 = vmatprep.subr.bf16.mxu0 %v9597
        %9672 = vmatpush1.bf16.msra.mxu0 %v9596
        %9673 = vmatprep.subr.bf16.mxu0 %v9599
        %9674 = vmatpush1.bf16.msra.mxu0 %v9598
        %9675 = vmatprep.subr.bf16.mxu0 %v9601
        %9676 = vmatpush1.bf16.msra.mxu0 %v9600
        %9677 = vmatprep.subr.bf16.mxu0 %v9603
        %9678 = vmatpush1.bf16.msra.mxu0 %v9602
        %9679 = vmatprep.subr.bf16.mxu0 %v9605
        %9680 = vmatpush1.bf16.msra.mxu0 %v9604
        %9681 = vmatprep.subr.bf16.mxu0 %v9607
        %9682 = vmatpush1.bf16.msra.mxu0 %v9606
        %9683 = vmatprep.subr.bf16.mxu0 %v9609
        %9684 = vmatpush1.bf16.msra.mxu0 %v9608
        %9685 = vmatprep.subr.bf16.mxu0 %v9611
        %9686 = vmatpush1.bf16.msra.mxu0 %v9610
        %9687 = vmatprep.subr.bf16.mxu0 %v9613
        %9688 = vmatpush1.bf16.msra.mxu0 %v9612
        %9689 = vmatprep.subr.bf16.mxu0 %v9615
        %9690 = vmatpush1.bf16.msra.mxu0 %v9614
        %9691 = vmatprep.subr.bf16.mxu0 %v9617
        %9692 = vmatpush1.bf16.msra.mxu0 %v9616
        %9693 = vmatprep.subr.bf16.mxu0 %v9619
        %9694 = vmatpush1.bf16.msra.mxu0 %v9618
        %9695 = vmatprep.mubr.bf16.mxu0 %v9490
        %9696 = vmatmul.mubr.bf16.gmra.mrb[0].mxu0 %v9489
        %v9697 = vpop.f32.mrb[0].mxu0
        %v9698 = vadd.f32 %v9656, %v9697
        %v9699 = vpop.f32.mrb[0].mxu0
        %v9700 = vadd.f32 %v9660, %v9699
        %v9701 = vpop.f32.mrb[0].mxu0
        %v9702 = vpop.f32.mrb[0].mxu0
        %9703 = vdwg.mxu0
        %vm9704 = vcmp.gt.f32.partialorder %v9698, 0.0
        %vm9705 = vcmp.gt.f32.partialorder %v9700, 0.0
        %v9706 = vmul.f32 %v9698, 0.3
        %v9707 = vmul.f32 %v9700, 0.3
        %v9708 = vsel %vm9704, %v9698, %v9706
        %v9709 = vsel %vm9705, %v9700, %v9707
        %v9710 = vld [vmem:[%s97] sm:$0xf]
        %v9711 = vld [vmem:[%s97 + $0x4] sm:$0xf]
        %v9712 = vld [vmem:[%s97 + $0x8] sm:$0xf]
        %v9713 = vld [vmem:[%s97 + $0xc] sm:$0xf]
        %v9714 = vld [vmem:[%s97 + $0x10] sm:$0xf]
        %v9715 = vld [vmem:[%s97 + $0x14] sm:$0xf]
        %v9716 = vld [vmem:[%s97 + $0x18] sm:$0xf]
        %v9717 = vld [vmem:[%s97 + $0x1c] sm:$0xf]
        %v9718 = vld [vmem:[%s97 + $0x20] sm:$0xf]
        %v9719 = vld [vmem:[%s97 + $0x24] sm:$0xf]
        %v9720 = vld [vmem:[%s97 + $0x28] sm:$0xf]
        %v9721 = vld [vmem:[%s97 + $0x2c] sm:$0xf]
        %v9722 = vld [vmem:[%s97 + $0x30] sm:$0xf]
        %v9723 = vld [vmem:[%s97 + $0x34] sm:$0xf]
        %v9724 = vld [vmem:[%s97 + $0x38] sm:$0xf]
        %v9725 = vld [vmem:[%s97 + $0x3c] sm:$0xf]
        %v9726 = vld [vmem:[%s97 + $0x40] sm:$0xf]
        %v9727 = vld [vmem:[%s97 + $0x44] sm:$0xf]
        %v9728 = vld [vmem:[%s97 + $0x48] sm:$0xf]
        %v9729 = vld [vmem:[%s97 + $0x4c] sm:$0xf]
        %v9730 = vld [vmem:[%s97 + $0x50] sm:$0xf]
        %v9731 = vld [vmem:[%s97 + $0x54] sm:$0xf]
        %v9732 = vld [vmem:[%s97 + $0x58] sm:$0xf]
        %v9733 = vld [vmem:[%s97 + $0x5c] sm:$0xf]
        %v9734 = vld [vmem:[%s97 + $0x60] sm:$0xf]
        %v9735 = vld [vmem:[%s97 + $0x64] sm:$0xf]
        %v9736 = vld [vmem:[%s97 + $0x68] sm:$0xf]
        %v9737 = vld [vmem:[%s97 + $0x6c] sm:$0xf]
        %v9738 = vld [vmem:[%s97 + $0x70] sm:$0xf]
        %v9739 = vld [vmem:[%s97 + $0x74] sm:$0xf]
        %v9740 = vld [vmem:[%s97 + $0x78] sm:$0xf]
        %v9741 = vld [vmem:[%s97 + $0x7c] sm:$0xf]
        %v9742 = vpack.c.bf16 %v9708, %v9708
        %v9743 = vpack.c.bf16 %v9709, %v9709
        %v9744 = vld [vmem:[#allocation14] sm:$0x1]
        %v9777 = vunpack.c.l.b16 %v9710
        %v9778 = vunpack.c.l.b16 %v9711
        %v9779 = vunpack.c.l.b16 %v9712
        %v9780 = vunpack.c.l.b16 %v9713
        %v9781 = vunpack.c.l.b16 %v9714
        %v9782 = vunpack.c.l.b16 %v9715
        %v9783 = vunpack.c.l.b16 %v9716
        %v9784 = vunpack.c.l.b16 %v9717
        %v9785 = vunpack.c.l.b16 %v9718
        %v9786 = vunpack.c.l.b16 %v9719
        %v9787 = vunpack.c.l.b16 %v9720
        %v9788 = vunpack.c.l.b16 %v9721
        %v9789 = vunpack.c.l.b16 %v9722
        %v9790 = vunpack.c.l.b16 %v9723
        %v9791 = vunpack.c.l.b16 %v9724
        %v9792 = vunpack.c.l.b16 %v9725
        %v9793 = vunpack.c.l.b16 %v9726
        %v9794 = vunpack.c.l.b16 %v9727
        %v9795 = vunpack.c.l.b16 %v9728
        %v9796 = vunpack.c.l.b16 %v9729
        %v9797 = vunpack.c.l.b16 %v9730
        %v9798 = vunpack.c.l.b16 %v9731
        %v9799 = vunpack.c.l.b16 %v9732
        %v9800 = vunpack.c.l.b16 %v9733
        %v9801 = vunpack.c.l.b16 %v9734
        %v9802 = vunpack.c.l.b16 %v9735
        %v9803 = vunpack.c.l.b16 %v9736
        %v9804 = vunpack.c.l.b16 %v9737
        %v9805 = vunpack.c.l.b16 %v9738
        %v9806 = vunpack.c.l.b16 %v9739
        %v9807 = vunpack.c.l.b16 %v9740
        %v9808 = vunpack.c.l.b16 %v9741
        %v9809 = vpack.c.b16 %v9778, %v9777
        %v9810 = vpack.c.b16 %v9780, %v9779
        %v9811 = vpack.c.b16 %v9782, %v9781
        %v9812 = vpack.c.b16 %v9784, %v9783
        %v9813 = vpack.c.b16 %v9786, %v9785
        %v9814 = vpack.c.b16 %v9788, %v9787
        %v9815 = vpack.c.b16 %v9790, %v9789
        %v9816 = vpack.c.b16 %v9792, %v9791
        %v9817 = vpack.c.b16 %v9794, %v9793
        %v9818 = vpack.c.b16 %v9796, %v9795
        %v9819 = vpack.c.b16 %v9798, %v9797
        %v9820 = vpack.c.b16 %v9800, %v9799
        %v9821 = vpack.c.b16 %v9802, %v9801
        %v9822 = vpack.c.b16 %v9804, %v9803
        %v9823 = vpack.c.b16 %v9806, %v9805
        %v9824 = vpack.c.b16 %v9808, %v9807
        %9841 = vmatprep.subr.bf16.mxu0 0
        %9842 = vmatpush1.bf16.msra.mxu0 %v9809
        %9843 = vmatprep.subr.bf16.mxu0 0
        %9844 = vmatpush1.bf16.msra.mxu0 %v9810
        %9845 = vmatprep.subr.bf16.mxu0 0
        %9846 = vmatpush1.bf16.msra.mxu0 %v9811
        %9847 = vmatprep.subr.bf16.mxu0 0
        %9848 = vmatpush1.bf16.msra.mxu0 %v9812
        %9849 = vmatprep.subr.bf16.mxu0 0
        %9850 = vmatpush1.bf16.msra.mxu0 %v9813
        %9851 = vmatprep.subr.bf16.mxu0 0
        %9852 = vmatpush1.bf16.msra.mxu0 %v9814
        %9853 = vmatprep.subr.bf16.mxu0 0
        %9854 = vmatpush1.bf16.msra.mxu0 %v9815
        %9855 = vmatprep.subr.bf16.mxu0 0
        %9856 = vmatpush1.bf16.msra.mxu0 %v9816
        %9857 = vmatprep.subr.bf16.mxu0 0
        %9858 = vmatpush1.bf16.msra.mxu0 %v9817
        %9859 = vmatprep.subr.bf16.mxu0 0
        %9860 = vmatpush1.bf16.msra.mxu0 %v9818
        %9861 = vmatprep.subr.bf16.mxu0 0
        %9862 = vmatpush1.bf16.msra.mxu0 %v9819
        %9863 = vmatprep.subr.bf16.mxu0 0
        %9864 = vmatpush1.bf16.msra.mxu0 %v9820
        %9865 = vmatprep.subr.bf16.mxu0 0
        %9866 = vmatpush1.bf16.msra.mxu0 %v9821
        %9867 = vmatprep.subr.bf16.mxu0 0
        %9868 = vmatpush1.bf16.msra.mxu0 %v9822
        %9869 = vmatprep.subr.bf16.mxu0 0
        %9870 = vmatpush1.bf16.msra.mxu0 %v9823
        %9871 = vmatprep.subr.bf16.mxu0 0
        %9872 = vmatpush1.bf16.msra.mxu0 %v9824
        %9873 = vmatprep.mubr.bf16.mxu0 %v9743
        %9874 = vmatmul.mubr.bf16.gmra.mrb[0].mxu0 %v9742
        %v9875 = vpop.f32.mrb[0].mxu0
        %v9876 = vadd.f32 %v9744, %v9875
        %v9877 = vpop.f32.mrb[0].mxu0
        %v9878 = vpop.f32.mrb[0].mxu0
        %v9879 = vpop.f32.mrb[0].mxu0
        %9880 = vdwg.mxu0
        %vm9881 = vcmask 81920
        %v9882 = vsel %vm9881, %v9876, -inf
        %9883 = vmax.xlane.f32.xlu0 %v9882
        %v9884 = vpop.xlane.xlu0 %9883
        %v9885 = vsub.f32 %v9876, %v9884
        %v9886 = vmul.f32 %v9885, 1.442695
        %v9887 = vpow.pop %v9886
        %v9888 = vsel %vm9881, %v9887, 0.0
        %9889 = vadd.xlane.f32.xlu0 %v9888
        %v9890 = vpop.xlane.xlu0 %9889
        %v9891 = vlog2.pop %v9890
        %v9892 = vmul.f32 %v9891, 0.6931472
        %v9893 = vsub.f32 %v9885, %v9892
        %9894 = vst.msk [vmem:[%s1598] sm:$0x1] %vm9881, %v9893
        %s9895 = sand.u32 %s1188, 1
        %s9896 = scalar_lea.sflag [#allocation4], %s9895
        %s9897 = sand.u32 %s1188, 1
        %s9898 = scalar_lea.vmem [#allocation16], %s9897
        // Predicated region
        $region253: #{course_progress_classifier.1} parent=219 // pred_check
          %p9899 = pneg %p1198
        $region254: #{course_progress_classifier.1} parent=219 // pred_check_branch
          %9901 = sbr.rel (%p9899) target = $region256
        $region255: #{course_progress_classifier.1} parent=219 // pred_region
          %s9903 = ssub.s32 16, 16
          %9904 = vsyncadd %s9896, %s9903
          %s9905 = smul.addr %s120, 16
          %s9906 = scalar_lea.hbm %s101, %s9905
          %s9908 = sshll.u32 %s9898, 4
          %s9909 = int_to_ptr.vmem [resolvable:$true] %s9908
          %9911 = dma.vmem_to_hbm [thread:$0]  %s9909, 16, %s9906, %s9896
        $region256: #{course_progress_classifier.1} parent=219 // pred_fallthru
          _
      $region220: #{course_progress_classifier.1} parent=5 // pred_fallthru
        _
      %p9912 = scmp.le.s32.totalorder 2, %s115
      // Predicated region
      $region257: #{course_progress_classifier.1} parent=5 // pred_check
        %p9913 = pneg %p9912
      $region258: #{course_progress_classifier.1} parent=5 // pred_check_branch
        %9915 = sbr.rel (%p9913) target = $region260
      $region259: #{course_progress_classifier.1} parent=5 // pred_region
        %s9916 = ssub.s32 %s115, 2
        // Predicated region
        $region261: #{course_progress_classifier.1} parent=259 // pred_check
          %p9917 = pneg %p1204
        $region262: #{course_progress_classifier.1} parent=259 // pred_check_branch
          %9919 = sbr.rel (%p9917) target = $region264
        $region263: #{course_progress_classifier.1} parent=259 // pred_region
          %s9920 = sand.u32 %s1189, 1
          %s9921 = scalar_lea.sflag [#allocation4], %s9920
          %s9922 = sand.u32 %s1189, 1
          %s9923 = scalar_lea.vmem [#allocation16], %s9922
          %9924 = dma.done %s9921, 16
        $region264: #{course_progress_classifier.1} parent=259 // pred_fallthru
          _
      $region260: #{course_progress_classifier.1} parent=5 // pred_fallthru
        _
    $region6: #{course_progress_classifier.1} parent=1 // loop_footer
      %s119 = sadd.s32 1, %s115
    $region7: #{course_progress_classifier.1} parent=1 // loop_footer_branch
      %114 = sbr.rel target = $region3
    $region8: #{course_progress_classifier.1} parent=1 // loop_exit
      _
    %9925 = vsyncpa [#allocation3], 1
    %s9926 = scalar_lea.sflag [#allocation3], 1
    %9927 = vsyncpa %s9926, 1
    %9928 = vsyncpa [#allocation6], 1
    %9929 = vsyncpa [#allocation9], 1
    %9930 = vsyncpa [#allocation12], 1
    %9931 = vsyncpa [#allocation15], 1
    %9932 = vsyncpa [#allocation4], 1
    %s9933 = scalar_lea.sflag [#allocation4], 1
    %9934 = vsyncpa %s9933, 1

</llo_original>
